<compile_context>
chip_gen: v7x
topology: tpu7x:2x2x1
jax: 0.10.0
libtpu: 0.0.40
codegen_flags: <defaults>
</compile_context>

<pallas_src>
import functools

import jax
import jax.numpy as jnp
import numpy as np
from jax.experimental import pallas as pl
from jax.experimental.pallas import tpu as pltpu

_KK = 4        # PatchGAN conv kernel size (4x4), pad=1
_SLOPE = 0.2   # LeakyReLU negative slope


def _vmem_limit_bytes():
    """Generation-aware scoped-VMEM limit (v7x: 64 MiB physical, v5e/v6e: 128 MiB)."""
    try:
        cap = int(pltpu.get_tpu_info().vmem_capacity_bytes)
        return int(min(cap * 3 // 4, 96 * 1024 * 1024))
    except Exception:
        return 48 * 1024 * 1024


_VMEM_LIMIT = _vmem_limit_bytes()


# ---------------------------------------------------------------------------
# Layout helpers (JAX / numpy glue: pure relayout + small zero pads, no expansion)
# ---------------------------------------------------------------------------
def _phase_split_pad(x_nhwc):
    """(n,H,W,C) -> (n, 4*Hp*Wp, C): even/odd row x col phases, each phase zero-padded
    (1 top, 2 bottom, 1 left, 1 right), stacked in order p = 2*py + px, flattened with
    channels minor.  Hp = H//2 + 3, Wp = W//2 + 2.  The extra bottom rows keep every
    in-kernel tap slice (length Hout*Wp, start <= 2*Wp + 2) inside the array."""
    n, h, w, c = x_nhwc.shape
    assert h % 2 == 0 and w % 2 == 0
    hh, wh = h // 2, w // 2
    xp = x_nhwc.reshape(n, hh, 2, wh, 2, c).transpose(0, 2, 4, 1, 3, 5)  # (n,2,2,hh,wh,c)
    xp = jnp.pad(xp, ((0, 0), (0, 0), (0, 0), (1, 2), (1, 1), (0, 0)))
    hp, wp = hh + 3, wh + 2
    return xp.reshape(n, 4 * hp * wp, c), (hh, wh, hp, wp)


def _stride2_tap_offsets(hp, wp):
    """Flat start offsets (in the _phase_split_pad layout) of the 16 taps of a 4x4 /
    stride-2 / pad-1 conv for output (0,0); successive virtual outputs advance the flat
    index by (wp, 1).  Derived from the ground-truth index map (floor div/mod handle the
    -1 padding coordinates)."""
    offs = []
    for ki in range(_KK):
        for kj in range(_KK):
            r0, c0 = ki - 1, kj - 1                  # input coords used by output (0,0)
            py, px = r0 % 2, c0 % 2
            rr, cc = r0 // 2 + 1, c0 // 2 + 1        # +1: top/left zero pad of each phase
            offs.append(((2 * py + px) * hp + rr) * wp + cc)
    return tuple(offs)


def _stride1_tap_offsets(wp):
    """Same for a 4x4 / stride-1 / pad-1 conv over a (1 top, 2 bottom, 1 left, 1 right)
    zero-padded feature map flattened to (rows, C)."""
    return tuple(ki * wp + kj for ki in range(_KK) for kj in range(_KK))


# ---------------------------------------------------------------------------
# Kernel 1: stride-2 Conv4x4 (pad 1) + bias + LeakyReLU, one image per grid step.
# The phase-split layout turns the conv into 16 contiguous-row-slice MXU matmuls,
# so no im2col slab is materialized in HBM.
# ---------------------------------------------------------------------------
def _conv_s2_lrelu_kernel(x_ref, w_ref, b_ref, o_ref, *, offsets, rows, cin):
    acc = None
    for t, off in enumerate(offsets):                        # 16 taps, unrolled
        part = jnp.dot(x_ref[0, off:off + rows, :],
                       w_ref[t * cin:(t + 1) * cin, :],
                       preferred_element_type=jnp.float32)
        acc = part if acc is None else acc + part
    acc = acc + b_ref[...]                                   # f32 epilogue
    acc = jnp.where(acc >= 0.0, acc, _SLOPE * acc)
    o_ref[0] = acc.astype(o_ref.dtype)


def _conv1(x_nhwc, w1, b1):
    """First PatchGAN layer: x (n,H,W,Cin) -> a1 (n,H/2,W/2,Cout) bf16."""
    n = x_nhwc.shape[0]
    cin, cout = w1.shape[2], w1.shape[3]
    xph, (hh, wh, hp, wp) = _phase_split_pad(x_nhwc.astype(jnp.bfloat16))
    offsets = _stride2_tap_offsets(hp, wp)
    rows = hh * wp                                            # "virtual" output rows
    w1r = w1.reshape(_KK * _KK * cin, cout).astype(jnp.bfloat16)
    b1r = b1.reshape(1, cout).astype(jnp.float32)

    out = pl.pallas_call(
        functools.partial(_conv_s2_lrelu_kernel, offsets=offsets, rows=rows, cin=cin),
        out_shape=jax.ShapeDtypeStruct((n, rows, cout), jnp.bfloat16),
        grid=(n,),
        in_specs=[
            pl.BlockSpec((1, 4 * hp * wp, cin), lambda i: (i, 0, 0)),
            pl.BlockSpec((_KK * _KK * cin, cout), lambda i: (0, 0)),  # VMEM-resident
            pl.BlockSpec((1, cout), lambda i: (0, 0)),                # VMEM-resident
        ],
        out_specs=pl.BlockSpec((1, rows, cout), lambda i: (i, 0, 0)),
        compiler_params=pltpu.CompilerParams(
            dimension_semantics=("parallel",),                # megacore split on v7x
            vmem_limit_bytes=_VMEM_LIMIT,
        ),
        cost_estimate=pl.CostEstimate(
            flops=2 * n * len(offsets) * rows * cin * cout,
            transcendentals=0,
            bytes_accessed=2 * n * (4 * hp * wp * cin + rows * cout)
                           + 2 * _KK * _KK * cin * cout + 4 * cout,
        ),
    )(xph, w1r, b1r)

    # drop the row-wrap ("garbage") columns of the virtual grid -> (n, H/2, W/2, Cout)
    return out.reshape(n, hh, wp, cout)[:, :, :wh, :]


# ---------------------------------------------------------------------------
# Kernel 2: conv2 (s2) + conv3 (s1, 1 channel) + hinge-D reduction, fully fused,
# one image per grid step; grid = (2 cores, images per core).
# ---------------------------------------------------------------------------
def _tail_hinge_kernel(a1_ref, w2_ref, b2_ref, w3_ref, b3_ref, m2_ref, m3_ref,
                       o_ref, pad_ref, acc_ref, *,
                       offs2, rows2, offs3, rows3, c1, c2, shift,
                       imgs_per_core, b_real, inv_m_real, inv_m_fake):
    c = pl.program_id(0)
    j = pl.program_id(1)
    img = c * imgs_per_core + j                       # [real batch | fake batch] ordering

    @pl.when(j == 0)
    def _init():
        acc_ref[...] = jnp.zeros_like(acc_ref)

    # ---- conv2: 16 tap matmuls over the phase-split padded a1 ----
    acc2 = None
    for t, off in enumerate(offs2):
        part = jnp.dot(a1_ref[0, off:off + rows2, :],
                       w2_ref[t * c1:(t + 1) * c1, :],
                       preferred_element_type=jnp.float32)
        acc2 = part if acc2 is None else acc2 + part
    a2 = acc2 + b2_ref[...]
    a2 = jnp.where(a2 >= 0.0, a2, _SLOPE * a2)
    a2 = a2 * m2_ref[...]                             # zero row-wrap garbage columns

    # The masked virtual grid, shifted by (width+1) rows, is exactly the interior (plus
    # side padding) of conv3's zero-padded input; top/bottom pad rows stay zero.
    pad_ref[...] = jnp.zeros_like(pad_ref)
    pad_ref[shift:shift + rows2, :] = a2.astype(pad_ref.dtype)

    # ---- conv3: 16 tap matmuls -> 1-channel patch scores (virtual grid) ----
    acc3 = None
    for t, off in enumerate(offs3):
        part = jnp.dot(pad_ref[off:off + rows3, :],
                       w3_ref[t * c2:(t + 1) * c2, :],
                       preferred_element_type=jnp.float32)
        acc3 = part if acc3 is None else acc3 + part
    s = acc3 + b3_ref[...]                            # (rows3, 1) scores

    # ---- hinge-D, fused reduction ----
    rf = (img < b_real).astype(jnp.float32)           # 1.0 for real images, 0.0 for fake
    contrib = (rf * (jnp.maximum(1.0 - s, 0.0) * inv_m_real)
               + (1.0 - rf) * (jnp.maximum(1.0 + s, 0.0) * inv_m_fake))
    acc_ref[...] = acc_ref[...] + jnp.sum(contrib * m3_ref[...])

    @pl.when(j == pl.num_programs(1) - 1)
    def _done():
        # lane-dense (8,128) per-core partial; the two values are summed in the wrapper
        o_ref[...] = jnp.broadcast_to(acc_ref[...], (1, 8, 128))


def _conv2_conv3_hinge(a1, w2, b2, w3, b3, *, b_real):
    """Fused PatchGAN tail + hinge-D loss.  a1: (n,h1,w1,c1), real images first."""
    n, h1, w1, c1 = a1.shape
    c2 = w2.shape[3]
    assert n % 2 == 0, "real+fake concat always gives an even image count"

    a1ph, (hh, wh, hp, wp) = _phase_split_pad(a1.astype(jnp.bfloat16))
    h2, w2sp = hh, wh                      # conv2 output spatial dims
    offs2 = _stride2_tap_offsets(hp, wp)
    rows2 = h2 * wp                        # conv2 virtual rows (width wp = w2sp + 2)

    h3, w3sp = h2 - 1, w2sp - 1            # conv3 (4x4, s1, p1) output spatial dims
    pw = w2sp + 2                          # conv3 padded width (== wp by construction)
    assert pw == wp
    prow = (h2 + 3) * pw                   # conv3 padded rows: 1 top + h2 + 2 bottom
    offs3 = _stride1_tap_offsets(pw)
    rows3 = h3 * pw                        # conv3 virtual rows
    shift = pw + 1                         # virtual (y,x) -> padded (y+1,x+1)

    mask2 = (np.arange(rows2) % wp < w2sp).astype(np.float32).reshape(rows2, 1)
    mask3 = (np.arange(rows3) % pw < w3sp).astype(np.float32).reshape(rows3, 1)

    m_real = b_real * h3 * w3sp
    m_fake = (n - b_real) * h3 * w3sp
    imgs_per_core = n // 2

    w2r = w2.reshape(_KK * _KK * c1, c2).astype(jnp.bfloat16)
    w3r = w3.reshape(_KK * _KK * c2, 1).astype(jnp.bfloat16)
    b2r = b2.reshape(1, c2).astype(jnp.float32)
    b3r = b3.reshape(1, 1).astype(jnp.float32)

    kernel = functools.partial(
        _tail_hinge_kernel,
        offs2=offs2, rows2=rows2, offs3=offs3, rows3=rows3, c1=c1, c2=c2,
        shift=shift, imgs_per_core=imgs_per_core, b_real=b_real,
        inv_m_real=1.0 / m_real, inv_m_fake=1.0 / m_fake)

    partials = pl.pallas_call(
        kernel,
        out_shape=jax.ShapeDtypeStruct((2, 8, 128), jnp.float32),
        grid=(2, imgs_per_core),
        in_specs=[
            pl.BlockSpec((1, 4 * hp * wp, c1),
                         lambda c, j: (c * imgs_per_core + j, 0, 0)),
            # grid-invariant weights / biases / masks stay VMEM-resident
            # (pipeline_mode=pl.Buffered(1) would also drop their second buffer)
            pl.BlockSpec((_KK * _KK * c1, c2), lambda c, j: (0, 0)),
            pl.BlockSpec((1, c2), lambda c, j: (0, 0)),
            pl.BlockSpec((_KK * _KK * c2, 1), lambda c, j: (0, 0)),
            pl.BlockSpec((1, 1), lambda c, j: (0, 0)),
            pl.BlockSpec((rows2, 1), lambda c, j: (0, 0)),
            pl.BlockSpec((rows3, 1), lambda c, j: (0, 0)),
        ],
        out_specs=pl.BlockSpec((1, 8, 128), lambda c, j: (c, 0, 0)),
        scratch_shapes=[
            pltpu.VMEM((prow, c2), jnp.bfloat16),   # conv3's zero-padded input
            pltpu.VMEM((1, 1), jnp.float32),        # running hinge partial sum
        ],
        compiler_params=pltpu.CompilerParams(
            dimension_semantics=("parallel", "arbitrary"),    # 2-way TC split on v7x
            vmem_limit_bytes=_VMEM_LIMIT,
        ),
        cost_estimate=pl.CostEstimate(
            flops=2 * n * (len(offs2) * rows2 * c1 * c2 + len(offs3) * rows3 * c2),
            transcendentals=0,
            bytes_accessed=2 * n * 4 * hp * wp * c1
                           + 2 * (_KK * _KK * c1 * c2 + _KK * _KK * c2)
                           + 4 * 2 * 8 * 128,
        ),
    )(a1ph, w2r, b2r, w3r, b3r, jnp.asarray(mask2), jnp.asarray(mask3))

    return partials[:, 0, 0].sum()


# ---------------------------------------------------------------------------
# PatchGAN discriminator + hinge objective built on the Pallas kernels
# ---------------------------------------------------------------------------
def make_disc_params(key, c_in):
    """PatchGAN parameters (HWIO): c_in -> 16 -> 32 -> 1 channels, 4x4 kernels."""
    k1, k2, k3 = jax.random.split(key, 3)
    scale = 0.05
    return {
        "w1": scale * jax.random.normal(k1, (4, 4, c_in, 16), jnp.float32),
        "b1": jnp.zeros((16,), jnp.float32),
        "w2": scale * jax.random.normal(k2, (4, 4, 16, 32), jnp.float32),
        "b2": jnp.zeros((32,), jnp.float32),
        "w3": scale * jax.random.normal(k3, (4, 4, 32, 1), jnp.float32),
        "b3": jnp.zeros((1,), jnp.float32),
    }


def gan_objective_D(params, *, fake, real):
    """Hinge discriminator objective; the fake half is detached (matching .detach())."""
    fake = jax.lax.stop_gradient(fake)
    batch = jnp.concatenate([real, fake], axis=0)     # real rows first, then fake
    b_real = real.shape[0]
    assert batch.shape[2] % 4 == 0 and batch.shape[3] % 4 == 0
    x = jnp.transpose(batch, (0, 2, 3, 1))            # NCHW (PyTorch) -> NHWC
    a1 = _conv1(x, params["w1"], params["b1"])
    return _conv2_conv3_hinge(a1, params["w2"], params["b2"],
                              params["w3"], params["b3"], b_real=b_real)


def loss_D_forward(params_S, params_T, out_ST, x_T, out_TS, x_S):
    loss_disc = {}
    loss_disc["disc_S"] = gan_objective_D(params_S, fake=out_TS, real=x_S)
    loss_disc["disc_T"] = gan_objective_D(params_T, fake=out_ST, real=x_T)
    return loss_disc


# ---------------------------------------------------------------------------
# Pure-JAX reference (XLA convs) for validating the Pallas path
# ---------------------------------------------------------------------------
def _gan_objective_D_ref(params, *, fake, real):
    fake = jax.lax.stop_gradient(fake)
    x = jnp.concatenate([real, fake], axis=0).transpose(0, 2, 3, 1).astype(jnp.float32)

    def conv(h, w, b, stride):
        y = jax.lax.conv_general_dilated(
            h, w, (stride, stride), ((1, 1), (1, 1)),
            dimension_numbers=("NHWC", "HWIO", "NHWC"))
        return y + b

    a1 = jax.nn.leaky_relu(conv(x, params["w1"], params["b1"], 2), _SLOPE)
    a2 = jax.nn.leaky_relu(conv(a1, params["w2"], params["b2"], 2), _SLOPE)
    s = conv(a2, params["w3"], params["b3"], 1)
    b_real = real.shape[0]
    return (jnp.mean(jax.nn.relu(1.0 - s[:b_real]))
            + jnp.mean(jax.nn.relu(1.0 + s[b_real:])))


if __name__ == "__main__":
    key = jax.random.PRNGKey(0)
    k_ps, k_pt, k1, k2, k3, k4 = jax.random.split(key, 6)

    B, C, H, W = 2, 3, 16, 16
    params_S = make_disc_params(k_ps, C)
    params_T = make_disc_params(k_pt, C)

    # NCHW inputs (PyTorch convention)
    out_ST = jax.random.normal(k1, (B, C, H, W), jnp.float32)   # translated S->T (fake T)
    x_T = jax.random.normal(k2, (B, C, H, W), jnp.float32)      # real T
    out_TS = jax.random.normal(k3, (B, C, H, W), jnp.float32)   # translated T->S (fake S)
    x_S = jax.random.normal(k4, (B, C, H, W), jnp.float32)      # real S

    losses = jax.jit(loss_D_forward)(params_S, params_T, out_ST, x_T, out_TS, x_S)
    losses = jax.block_until_ready(losses)

    ref = {
        "disc_S": float(_gan_objective_D_ref(params_S, fake=out_TS, real=x_S)),
        "disc_T": float(_gan_objective_D_ref(params_T, fake=out_ST, real=x_T)),
    }
    for name in ("disc_S", "disc_T"):
        got, want = float(losses[name]), ref[name]
        assert np.isfinite(got), (name, got)
        # bf16 MXU operands vs f32 reference -> loose tolerance
        assert abs(got - want) <= 5e-2 + 5e-2 * abs(want), (name, got, want)
    print("KERNEL_OK")
</pallas_src>

<mosaic_0001>
module attributes {stable_mosaic.version = 11 : i64} {
  func.func @_conv_s2_lrelu_kernel(%arg0: i32, %arg1: memref<1x440x3xbf16, #tpu.memory_space<vmem>>, %arg2: memref<48x16xbf16, #tpu.memory_space<vmem>>, %arg3: memref<1x16xf32, #tpu.memory_space<vmem>>, %arg4: memref<1x80x16xbf16, #tpu.memory_space<vmem>>) attributes {dimension_semantics = [#tpu.dimension_semantics<parallel>], iteration_bounds = array<i64: 4>, scalar_prefetch = 0 : i64, scratch_operands = 0 : i64, tpu.core_type = #tpu.core_type<tc>, window_params = [{transform_indices = @transform_0, window_bounds = array<i64: 1, 440, 3>}, {pipeline_mode = #tpu.pipeline_mode<synchronous>, transform_indices = @transform_1, window_bounds = array<i64: 48, 16>}, {pipeline_mode = #tpu.pipeline_mode<synchronous>, transform_indices = @transform_2, window_bounds = array<i64: 1, 16>}, {transform_indices = @transform_3, window_bounds = array<i64: 1, 80, 16>}]} {
    %c0 = arith.constant 0 : index
    %c330 = arith.constant 330 : index
    %c0_0 = arith.constant 0 : index
    %0 = vector.load %arg1[%c0, %c330, %c0_0] : memref<1x440x3xbf16, #tpu.memory_space<vmem>>, vector<1x80x3xbf16>
    %1 = vector.shape_cast %0 : vector<1x80x3xbf16> to vector<80x3xbf16>
    %c0_1 = arith.constant 0 : index
    %c0_2 = arith.constant 0 : index
    %2 = vector.load %arg2[%c0_1, %c0_2] : memref<48x16xbf16, #tpu.memory_space<vmem>>, vector<3x16xbf16>
    %cst = arith.constant dense<0.000000e+00> : vector<80x16xf32>
    %3 = tpu.matmul %1, %2, %cst {dimension_numbers = #tpu.dot_dimension_numbers<[1], [0], [0], [1], [0, 0, 1, 1], [], []>} : vector<80x3xbf16>, vector<3x16xbf16>, vector<80x16xf32> -> vector<80x16xf32>
    %c0_3 = arith.constant 0 : index
    %c221 = arith.constant 221 : index
    %c0_4 = arith.constant 0 : index
    %4 = vector.load %arg1[%c0_3, %c221, %c0_4] : memref<1x440x3xbf16, #tpu.memory_space<vmem>>, vector<1x80x3xbf16>
    %5 = vector.shape_cast %4 : vector<1x80x3xbf16> to vector<80x3xbf16>
    %c3 = arith.constant 3 : index
    %c0_5 = arith.constant 0 : index
    %6 = vector.load %arg2[%c3, %c0_5] : memref<48x16xbf16, #tpu.memory_space<vmem>>, vector<3x16xbf16>
    %cst_6 = arith.constant dense<0.000000e+00> : vector<80x16xf32>
    %7 = tpu.matmul %5, %6, %cst_6 {dimension_numbers = #tpu.dot_dimension_numbers<[1], [0], [0], [1], [0, 0, 1, 1], [], []>} : vector<80x3xbf16>, vector<3x16xbf16>, vector<80x16xf32> -> vector<80x16xf32>
    %8 = arith.addf %3, %7 : vector<80x16xf32>
    %c0_7 = arith.constant 0 : index
    %c331 = arith.constant 331 : index
    %c0_8 = arith.constant 0 : index
    %9 = vector.load %arg1[%c0_7, %c331, %c0_8] : memref<1x440x3xbf16, #tpu.memory_space<vmem>>, vector<1x80x3xbf16>
    %10 = vector.shape_cast %9 : vector<1x80x3xbf16> to vector<80x3xbf16>
    %c6 = arith.constant 6 : index
    %c0_9 = arith.constant 0 : index
    %11 = vector.load %arg2[%c6, %c0_9] : memref<48x16xbf16, #tpu.memory_space<vmem>>, vector<3x16xbf16>
    %cst_10 = arith.constant dense<0.000000e+00> : vector<80x16xf32>
    %12 = tpu.matmul %10, %11, %cst_10 {dimension_numbers = #tpu.dot_dimension_numbers<[1], [0], [0], [1], [0, 0, 1, 1], [], []>} : vector<80x3xbf16>, vector<3x16xbf16>, vector<80x16xf32> -> vector<80x16xf32>
    %13 = arith.addf %8, %12 : vector<80x16xf32>
    %c0_11 = arith.constant 0 : index
    %c222 = arith.constant 222 : index
    %c0_12 = arith.constant 0 : index
    %14 = vector.load %arg1[%c0_11, %c222, %c0_12] : memref<1x440x3xbf16, #tpu.memory_space<vmem>>, vector<1x80x3xbf16>
    %15 = vector.shape_cast %14 : vector<1x80x3xbf16> to vector<80x3xbf16>
    %c9 = arith.constant 9 : index
    %c0_13 = arith.constant 0 : index
    %16 = vector.load %arg2[%c9, %c0_13] : memref<48x16xbf16, #tpu.memory_space<vmem>>, vector<3x16xbf16>
    %cst_14 = arith.constant dense<0.000000e+00> : vector<80x16xf32>
    %17 = tpu.matmul %15, %16, %cst_14 {dimension_numbers = #tpu.dot_dimension_numbers<[1], [0], [0], [1], [0, 0, 1, 1], [], []>} : vector<80x3xbf16>, vector<3x16xbf16>, vector<80x16xf32> -> vector<80x16xf32>
    %18 = arith.addf %13, %17 : vector<80x16xf32>
    %c0_15 = arith.constant 0 : index
    %c120 = arith.constant 120 : index
    %c0_16 = arith.constant 0 : index
    %19 = vector.load %arg1[%c0_15, %c120, %c0_16] : memref<1x440x3xbf16, #tpu.memory_space<vmem>>, vector<1x80x3xbf16>
    %20 = vector.shape_cast %19 : vector<1x80x3xbf16> to vector<80x3xbf16>
    %c12 = arith.constant 12 : index
    %c0_17 = arith.constant 0 : index
    %21 = vector.load %arg2[%c12, %c0_17] : memref<48x16xbf16, #tpu.memory_space<vmem>>, vector<3x16xbf16>
    %cst_18 = arith.constant dense<0.000000e+00> : vector<80x16xf32>
    %22 = tpu.matmul %20, %21, %cst_18 {dimension_numbers = #tpu.dot_dimension_numbers<[1], [0], [0], [1], [0, 0, 1, 1], [], []>} : vector<80x3xbf16>, vector<3x16xbf16>, vector<80x16xf32> -> vector<80x16xf32>
    %23 = arith.addf %18, %22 : vector<80x16xf32>
    %c0_19 = arith.constant 0 : index
    %c11 = arith.constant 11 : index
    %c0_20 = arith.constant 0 : index
    %24 = vector.load %arg1[%c0_19, %c11, %c0_20] : memref<1x440x3xbf16, #tpu.memory_space<vmem>>, vector<1x80x3xbf16>
    %25 = vector.shape_cast %24 : vector<1x80x3xbf16> to vector<80x3xbf16>
    %c15 = arith.constant 15 : index
    %c0_21 = arith.constant 0 : index
    %26 = vector.load %arg2[%c15, %c0_21] : memref<48x16xbf16, #tpu.memory_space<vmem>>, vector<3x16xbf16>
    %cst_22 = arith.constant dense<0.000000e+00> : vector<80x16xf32>
    %27 = tpu.matmul %25, %26, %cst_22 {dimension_numbers = #tpu.dot_dimension_numbers<[1], [0], [0], [1], [0, 0, 1, 1], [], []>} : vector<80x3xbf16>, vector<3x16xbf16>, vector<80x16xf32> -> vector<80x16xf32>
    %28 = arith.addf %23, %27 : vector<80x16xf32>
    %c0_23 = arith.constant 0 : index
    %c121 = arith.constant 121 : index
    %c0_24 = arith.constant 0 : index
    %29 = vector.load %arg1[%c0_23, %c121, %c0_24] : memref<1x440x3xbf16, #tpu.memory_space<vmem>>, vector<1x80x3xbf16>
    %30 = vector.shape_cast %29 : vector<1x80x3xbf16> to vector<80x3xbf16>
    %c18 = arith.constant 18 : index
    %c0_25 = arith.constant 0 : index
    %31 = vector.load %arg2[%c18, %c0_25] : memref<48x16xbf16, #tpu.memory_space<vmem>>, vector<3x16xbf16>
    %cst_26 = arith.constant dense<0.000000e+00> : vector<80x16xf32>
    %32 = tpu.matmul %30, %31, %cst_26 {dimension_numbers = #tpu.dot_dimension_numbers<[1], [0], [0], [1], [0, 0, 1, 1], [], []>} : vector<80x3xbf16>, vector<3x16xbf16>, vector<80x16xf32> -> vector<80x16xf32>
    %33 = arith.addf %28, %32 : vector<80x16xf32>
    %c0_27 = arith.constant 0 : index
    %c12_28 = arith.constant 12 : index
    %c0_29 = arith.constant 0 : index
    %34 = vector.load %arg1[%c0_27, %c12_28, %c0_29] : memref<1x440x3xbf16, #tpu.memory_space<vmem>>, vector<1x80x3xbf16>
    %35 = vector.shape_cast %34 : vector<1x80x3xbf16> to vector<80x3xbf16>
    %c21 = arith.constant 21 : index
    %c0_30 = arith.constant 0 : index
    %36 = vector.load %arg2[%c21, %c0_30] : memref<48x16xbf16, #tpu.memory_space<vmem>>, vector<3x16xbf16>
    %cst_31 = arith.constant dense<0.000000e+00> : vector<80x16xf32>
    %37 = tpu.matmul %35, %36, %cst_31 {dimension_numbers = #tpu.dot_dimension_numbers<[1], [0], [0], [1], [0, 0, 1, 1], [], []>} : vector<80x3xbf16>, vector<3x16xbf16>, vector<80x16xf32> -> vector<80x16xf32>
    %38 = arith.addf %33, %37 : vector<80x16xf32>
    %c0_32 = arith.constant 0 : index
    %c340 = arith.constant 340 : index
    %c0_33 = arith.constant 0 : index
    %39 = vector.load %arg1[%c0_32, %c340, %c0_33] : memref<1x440x3xbf16, #tpu.memory_space<vmem>>, vector<1x80x3xbf16>
    %40 = vector.shape_cast %39 : vector<1x80x3xbf16> to vector<80x3xbf16>
    %c24 = arith.constant 24 : index
    %c0_34 = arith.constant 0 : index
    %41 = vector.load %arg2[%c24, %c0_34] : memref<48x16xbf16, #tpu.memory_space<vmem>>, vector<3x16xbf16>
    %cst_35 = arith.constant dense<0.000000e+00> : vector<80x16xf32>
    %42 = tpu.matmul %40, %41, %cst_35 {dimension_numbers = #tpu.dot_dimension_numbers<[1], [0], [0], [1], [0, 0, 1, 1], [], []>} : vector<80x3xbf16>, vector<3x16xbf16>, vector<80x16xf32> -> vector<80x16xf32>
    %43 = arith.addf %38, %42 : vector<80x16xf32>
    %c0_36 = arith.constant 0 : index
    %c231 = arith.constant 231 : index
    %c0_37 = arith.constant 0 : index
    %44 = vector.load %arg1[%c0_36, %c231, %c0_37] : memref<1x440x3xbf16, #tpu.memory_space<vmem>>, vector<1x80x3xbf16>
    %45 = vector.shape_cast %44 : vector<1x80x3xbf16> to vector<80x3xbf16>
    %c27 = arith.constant 27 : index
    %c0_38 = arith.constant 0 : index
    %46 = vector.load %arg2[%c27, %c0_38] : memref<48x16xbf16, #tpu.memory_space<vmem>>, vector<3x16xbf16>
    %cst_39 = arith.constant dense<0.000000e+00> : vector<80x16xf32>
    %47 = tpu.matmul %45, %46, %cst_39 {dimension_numbers = #tpu.dot_dimension_numbers<[1], [0], [0], [1], [0, 0, 1, 1], [], []>} : vector<80x3xbf16>, vector<3x16xbf16>, vector<80x16xf32> -> vector<80x16xf32>
    %48 = arith.addf %43, %47 : vector<80x16xf32>
    %c0_40 = arith.constant 0 : index
    %c341 = arith.constant 341 : index
    %c0_41 = arith.constant 0 : index
    %49 = vector.load %arg1[%c0_40, %c341, %c0_41] : memref<1x440x3xbf16, #tpu.memory_space<vmem>>, vector<1x80x3xbf16>
    %50 = vector.shape_cast %49 : vector<1x80x3xbf16> to vector<80x3xbf16>
    %c30 = arith.constant 30 : index
    %c0_42 = arith.constant 0 : index
    %51 = vector.load %arg2[%c30, %c0_42] : memref<48x16xbf16, #tpu.memory_space<vmem>>, vector<3x16xbf16>
    %cst_43 = arith.constant dense<0.000000e+00> : vector<80x16xf32>
    %52 = tpu.matmul %50, %51, %cst_43 {dimension_numbers = #tpu.dot_dimension_numbers<[1], [0], [0], [1], [0, 0, 1, 1], [], []>} : vector<80x3xbf16>, vector<3x16xbf16>, vector<80x16xf32> -> vector<80x16xf32>
    %53 = arith.addf %48, %52 : vector<80x16xf32>
    %c0_44 = arith.constant 0 : index
    %c232 = arith.constant 232 : index
    %c0_45 = arith.constant 0 : index
    %54 = vector.load %arg1[%c0_44, %c232, %c0_45] : memref<1x440x3xbf16, #tpu.memory_space<vmem>>, vector<1x80x3xbf16>
    %55 = vector.shape_cast %54 : vector<1x80x3xbf16> to vector<80x3xbf16>
    %c33 = arith.constant 33 : index
    %c0_46 = arith.constant 0 : index
    %56 = vector.load %arg2[%c33, %c0_46] : memref<48x16xbf16, #tpu.memory_space<vmem>>, vector<3x16xbf16>
    %cst_47 = arith.constant dense<0.000000e+00> : vector<80x16xf32>
    %57 = tpu.matmul %55, %56, %cst_47 {dimension_numbers = #tpu.dot_dimension_numbers<[1], [0], [0], [1], [0, 0, 1, 1], [], []>} : vector<80x3xbf16>, vector<3x16xbf16>, vector<80x16xf32> -> vector<80x16xf32>
    %58 = arith.addf %53, %57 : vector<80x16xf32>
    %c0_48 = arith.constant 0 : index
    %c130 = arith.constant 130 : index
    %c0_49 = arith.constant 0 : index
    %59 = vector.load %arg1[%c0_48, %c130, %c0_49] : memref<1x440x3xbf16, #tpu.memory_space<vmem>>, vector<1x80x3xbf16>
    %60 = vector.shape_cast %59 : vector<1x80x3xbf16> to vector<80x3xbf16>
    %c36 = arith.constant 36 : index
    %c0_50 = arith.constant 0 : index
    %61 = vector.load %arg2[%c36, %c0_50] : memref<48x16xbf16, #tpu.memory_space<vmem>>, vector<3x16xbf16>
    %cst_51 = arith.constant dense<0.000000e+00> : vector<80x16xf32>
    %62 = tpu.matmul %60, %61, %cst_51 {dimension_numbers = #tpu.dot_dimension_numbers<[1], [0], [0], [1], [0, 0, 1, 1], [], []>} : vector<80x3xbf16>, vector<3x16xbf16>, vector<80x16xf32> -> vector<80x16xf32>
    %63 = arith.addf %58, %62 : vector<80x16xf32>
    %c0_52 = arith.constant 0 : index
    %c21_53 = arith.constant 21 : index
    %c0_54 = arith.constant 0 : index
    %64 = vector.load %arg1[%c0_52, %c21_53, %c0_54] : memref<1x440x3xbf16, #tpu.memory_space<vmem>>, vector<1x80x3xbf16>
    %65 = vector.shape_cast %64 : vector<1x80x3xbf16> to vector<80x3xbf16>
    %c39 = arith.constant 39 : index
    %c0_55 = arith.constant 0 : index
    %66 = vector.load %arg2[%c39, %c0_55] : memref<48x16xbf16, #tpu.memory_space<vmem>>, vector<3x16xbf16>
    %cst_56 = arith.constant dense<0.000000e+00> : vector<80x16xf32>
    %67 = tpu.matmul %65, %66, %cst_56 {dimension_numbers = #tpu.dot_dimension_numbers<[1], [0], [0], [1], [0, 0, 1, 1], [], []>} : vector<80x3xbf16>, vector<3x16xbf16>, vector<80x16xf32> -> vector<80x16xf32>
    %68 = arith.addf %63, %67 : vector<80x16xf32>
    %c0_57 = arith.constant 0 : index
    %c131 = arith.constant 131 : index
    %c0_58 = arith.constant 0 : index
    %69 = vector.load %arg1[%c0_57, %c131, %c0_58] : memref<1x440x3xbf16, #tpu.memory_space<vmem>>, vector<1x80x3xbf16>
    %70 = vector.shape_cast %69 : vector<1x80x3xbf16> to vector<80x3xbf16>
    %c42 = arith.constant 42 : index
    %c0_59 = arith.constant 0 : index
    %71 = vector.load %arg2[%c42, %c0_59] : memref<48x16xbf16, #tpu.memory_space<vmem>>, vector<3x16xbf16>
    %cst_60 = arith.constant dense<0.000000e+00> : vector<80x16xf32>
    %72 = tpu.matmul %70, %71, %cst_60 {dimension_numbers = #tpu.dot_dimension_numbers<[1], [0], [0], [1], [0, 0, 1, 1], [], []>} : vector<80x3xbf16>, vector<3x16xbf16>, vector<80x16xf32> -> vector<80x16xf32>
    %73 = arith.addf %68, %72 : vector<80x16xf32>
    %c0_61 = arith.constant 0 : index
    %c22 = arith.constant 22 : index
    %c0_62 = arith.constant 0 : index
    %74 = vector.load %arg1[%c0_61, %c22, %c0_62] : memref<1x440x3xbf16, #tpu.memory_space<vmem>>, vector<1x80x3xbf16>
    %75 = vector.shape_cast %74 : vector<1x80x3xbf16> to vector<80x3xbf16>
    %c45 = arith.constant 45 : index
    %c0_63 = arith.constant 0 : index
    %76 = vector.load %arg2[%c45, %c0_63] : memref<48x16xbf16, #tpu.memory_space<vmem>>, vector<3x16xbf16>
    %cst_64 = arith.constant dense<0.000000e+00> : vector<80x16xf32>
    %77 = tpu.matmul %75, %76, %cst_64 {dimension_numbers = #tpu.dot_dimension_numbers<[1], [0], [0], [1], [0, 0, 1, 1], [], []>} : vector<80x3xbf16>, vector<3x16xbf16>, vector<80x16xf32> -> vector<80x16xf32>
    %78 = arith.addf %73, %77 : vector<80x16xf32>
    %c0_65 = arith.constant 0 : index
    %c0_66 = arith.constant 0 : index
    %79 = vector.load %arg3[%c0_65, %c0_66] : memref<1x16xf32, #tpu.memory_space<vmem>>, vector<1x16xf32>
    %80 = vector.broadcast %79 : vector<1x16xf32> to vector<80x16xf32>
    %81 = arith.addf %78, %80 : vector<80x16xf32>
    %cst_67 = arith.constant 0.000000e+00 : f32
    %82 = vector.broadcast %cst_67 : f32 to vector<80x16xf32>
    %83 = arith.cmpf oge, %81, %82 : vector<80x16xf32>
    %cst_68 = arith.constant 2.000000e-01 : f32
    %84 = vector.broadcast %cst_68 : f32 to vector<80x16xf32>
    %85 = arith.mulf %84, %81 : vector<80x16xf32>
    %86 = arith.select %83, %81, %85 : vector<80x16xi1>, vector<80x16xf32>
    %87 = arith.truncf %86 : vector<80x16xf32> to vector<80x16xbf16>
    %c0_69 = arith.constant 0 : index
    %c0_70 = arith.constant 0 : index
    %c0_71 = arith.constant 0 : index
    %88 = vector.load %arg4[%c0_69, %c0_70, %c0_71] : memref<1x80x16xbf16, #tpu.memory_space<vmem>>, vector<1x80x16xbf16>
    %89 = vector.shape_cast %88 : vector<1x80x16xbf16> to vector<80x16xbf16>
    %90 = vector.shape_cast %87 : vector<80x16xbf16> to vector<1x80x16xbf16>
    tpu.vector_store %arg4[%c0_69, %c0_70, %c0_71], %90 {strides = array<i32>} : memref<1x80x16xbf16, #tpu.memory_space<vmem>>, vector<1x80x16xbf16>,
    return
  }
  func.func @transform_0(%arg0: i32) -> (i32, i32, i32) {
    %c0_i32 = arith.constant 0 : i32
    %c0_i32_0 = arith.constant 0 : i32
    %c0_i32_1 = arith.constant 0 : i32
    return %arg0, %c0_i32, %c0_i32_0 : i32, i32, i32
  }
  func.func @transform_1(%arg0: i32) -> (i32, i32) {
    %c0_i32 = arith.constant 0 : i32
    %c0_i32_0 = arith.constant 0 : i32
    %c0_i32_1 = arith.constant 0 : i32
    return %c0_i32, %c0_i32_0 : i32, i32
  }
  func.func @transform_2(%arg0: i32) -> (i32, i32) {
    %c0_i32 = arith.constant 0 : i32
    %c0_i32_0 = arith.constant 0 : i32
    %c0_i32_1 = arith.constant 0 : i32
    return %c0_i32, %c0_i32_0 : i32, i32
  }
  func.func @transform_3(%arg0: i32) -> (i32, i32, i32) {
    %c0_i32 = arith.constant 0 : i32
    %c0_i32_0 = arith.constant 0 : i32
    %c0_i32_1 = arith.constant 0 : i32
    return %arg0, %c0_i32, %c0_i32_0 : i32, i32, i32
  }
}

module attributes {stable_mosaic.version = 11 : i64} {
  func.func @_tail_hinge_kernel(%arg0: i32, %arg1: i32, %arg2: memref<1x168x16xbf16, #tpu.memory_space<vmem>>, %arg3: memref<256x32xbf16, #tpu.memory_space<vmem>>, %arg4: memref<1x32xf32, #tpu.memory_space<vmem>>, %arg5: memref<512x1xbf16, #tpu.memory_space<vmem>>, %arg6: memref<1x1xf32, #tpu.memory_space<vmem>>, %arg7: memref<24x1xf32, #tpu.memory_space<vmem>>, %arg8: memref<18x1xf32, #tpu.memory_space<vmem>>, %arg9: memref<1x8x128xf32, #tpu.memory_space<vmem>>, %arg10: memref<42x32xbf16, #tpu.memory_space<vmem>>, %arg11: memref<1x1xf32, #tpu.memory_space<vmem>>) attributes {dimension_semantics = [#tpu.dimension_semantics<parallel>, #tpu.dimension_semantics<arbitrary>], iteration_bounds = array<i64: 2, 2>, scalar_prefetch = 0 : i64, scratch_operands = 2 : i64, tpu.core_type = #tpu.core_type<tc>, window_params = [{transform_indices = @transform_0, window_bounds = array<i64: 1, 168, 16>}, {pipeline_mode = #tpu.pipeline_mode<synchronous>, transform_indices = @transform_1, window_bounds = array<i64: 256, 32>}, {pipeline_mode = #tpu.pipeline_mode<synchronous>, transform_indices = @transform_2, window_bounds = array<i64: 1, 32>}, {pipeline_mode = #tpu.pipeline_mode<synchronous>, transform_indices = @transform_3, window_bounds = array<i64: 512, 1>}, {pipeline_mode = #tpu.pipeline_mode<synchronous>, transform_indices = @transform_4, window_bounds = array<i64: 1, 1>}, {pipeline_mode = #tpu.pipeline_mode<synchronous>, transform_indices = @transform_5, window_bounds = array<i64: 24, 1>}, {pipeline_mode = #tpu.pipeline_mode<synchronous>, transform_indices = @transform_6, window_bounds = array<i64: 18, 1>}, {transform_indices = @transform_7, window_bounds = array<i64: 1, 8, 128>}]} {
    %c2_i32 = arith.constant 2 : i32
    %0 = arith.muli %arg0, %c2_i32 : i32
    %1 = arith.addi %0, %arg1 : i32
    %c0_i32 = arith.constant 0 : i32
    %2 = arith.cmpi eq, %arg1, %c0_i32 : i32
    %3 = arith.extui %2 : i1 to i32
    %c0_i32_0 = arith.constant 0 : i32
    %4 = arith.cmpi ne, %3, %c0_i32_0 : i32
    scf.if %4 {
      %cst_155 = arith.constant 0.000000e+00 : f32
      %199 = vector.broadcast %cst_155 : f32 to vector<1x1xf32>
      %c0_156 = arith.constant 0 : index
      %c0_157 = arith.constant 0 : index
      %200 = vector.load %arg11[%c0_156, %c0_157] : memref<1x1xf32, #tpu.memory_space<vmem>>, vector<1x1xf32>
      tpu.vector_store %arg11[%c0_156, %c0_157], %199 {strides = array<i32>} : memref<1x1xf32, #tpu.memory_space<vmem>>, vector<1x1xf32>,
    } else {
    }
    %c0 = arith.constant 0 : index
    %c126 = arith.constant 126 : index
    %c0_1 = arith.constant 0 : index
    %5 = vector.load %arg2[%c0, %c126, %c0_1] : memref<1x168x16xbf16, #tpu.memory_space<vmem>>, vector<1x24x16xbf16>
    %6 = vector.shape_cast %5 : vector<1x24x16xbf16> to vector<24x16xbf16>
    %c0_2 = arith.constant 0 : index
    %c0_3 = arith.constant 0 : index
    %7 = vector.load %arg3[%c0_2, %c0_3] : memref<256x32xbf16, #tpu.memory_space<vmem>>, vector<16x32xbf16>
    %cst = arith.constant dense<0.000000e+00> : vector<24x32xf32>
    %8 = tpu.matmul %6, %7, %cst {dimension_numbers = #tpu.dot_dimension_numbers<[1], [0], [0], [1], [0, 0, 1, 1], [], []>} : vector<24x16xbf16>, vector<16x32xbf16>, vector<24x32xf32> -> vector<24x32xf32>
    %c0_4 = arith.constant 0 : index
    %c85 = arith.constant 85 : index
    %c0_5 = arith.constant 0 : index
    %9 = vector.load %arg2[%c0_4, %c85, %c0_5] : memref<1x168x16xbf16, #tpu.memory_space<vmem>>, vector<1x24x16xbf16>
    %10 = vector.shape_cast %9 : vector<1x24x16xbf16> to vector<24x16xbf16>
    %c16 = arith.constant 16 : index
    %c0_6 = arith.constant 0 : index
    %11 = vector.load %arg3[%c16, %c0_6] : memref<256x32xbf16, #tpu.memory_space<vmem>>, vector<16x32xbf16>
    %cst_7 = arith.constant dense<0.000000e+00> : vector<24x32xf32>
    %12 = tpu.matmul %10, %11, %cst_7 {dimension_numbers = #tpu.dot_dimension_numbers<[1], [0], [0], [1], [0, 0, 1, 1], [], []>} : vector<24x16xbf16>, vector<16x32xbf16>, vector<24x32xf32> -> vector<24x32xf32>
    %13 = arith.addf %8, %12 : vector<24x32xf32>
    %c0_8 = arith.constant 0 : index
    %c127 = arith.constant 127 : index
    %c0_9 = arith.constant 0 : index
    %14 = vector.load %arg2[%c0_8, %c127, %c0_9] : memref<1x168x16xbf16, #tpu.memory_space<vmem>>, vector<1x24x16xbf16>
    %15 = vector.shape_cast %14 : vector<1x24x16xbf16> to vector<24x16xbf16>
    %c32 = arith.constant 32 : index
    %c0_10 = arith.constant 0 : index
    %16 = vector.load %arg3[%c32, %c0_10] : memref<256x32xbf16, #tpu.memory_space<vmem>>, vector<16x32xbf16>
    %cst_11 = arith.constant dense<0.000000e+00> : vector<24x32xf32>
    %17 = tpu.matmul %15, %16, %cst_11 {dimension_numbers = #tpu.dot_dimension_numbers<[1], [0], [0], [1], [0, 0, 1, 1], [], []>} : vector<24x16xbf16>, vector<16x32xbf16>, vector<24x32xf32> -> vector<24x32xf32>
    %18 = arith.addf %13, %17 : vector<24x32xf32>
    %c0_12 = arith.constant 0 : index
    %c86 = arith.constant 86 : index
    %c0_13 = arith.constant 0 : index
    %19 = vector.load %arg2[%c0_12, %c86, %c0_13] : memref<1x168x16xbf16, #tpu.memory_space<vmem>>, vector<1x24x16xbf16>
    %20 = vector.shape_cast %19 : vector<1x24x16xbf16> to vector<24x16xbf16>
    %c48 = arith.constant 48 : index
    %c0_14 = arith.constant 0 : index
    %21 = vector.load %arg3[%c48, %c0_14] : memref<256x32xbf16, #tpu.memory_space<vmem>>, vector<16x32xbf16>
    %cst_15 = arith.constant dense<0.000000e+00> : vector<24x32xf32>
    %22 = tpu.matmul %20, %21, %cst_15 {dimension_numbers = #tpu.dot_dimension_numbers<[1], [0], [0], [1], [0, 0, 1, 1], [], []>} : vector<24x16xbf16>, vector<16x32xbf16>, vector<24x32xf32> -> vector<24x32xf32>
    %23 = arith.addf %18, %22 : vector<24x32xf32>
    %c0_16 = arith.constant 0 : index
    %c48_17 = arith.constant 48 : index
    %c0_18 = arith.constant 0 : index
    %24 = vector.load %arg2[%c0_16, %c48_17, %c0_18] : memref<1x168x16xbf16, #tpu.memory_space<vmem>>, vector<1x24x16xbf16>
    %25 = vector.shape_cast %24 : vector<1x24x16xbf16> to vector<24x16xbf16>
    %c64 = arith.constant 64 : index
    %c0_19 = arith.constant 0 : index
    %26 = vector.load %arg3[%c64, %c0_19] : memref<256x32xbf16, #tpu.memory_space<vmem>>, vector<16x32xbf16>
    %cst_20 = arith.constant dense<0.000000e+00> : vector<24x32xf32>
    %27 = tpu.matmul %25, %26, %cst_20 {dimension_numbers = #tpu.dot_dimension_numbers<[1], [0], [0], [1], [0, 0, 1, 1], [], []>} : vector<24x16xbf16>, vector<16x32xbf16>, vector<24x32xf32> -> vector<24x32xf32>
    %28 = arith.addf %23, %27 : vector<24x32xf32>
    %c0_21 = arith.constant 0 : index
    %c7 = arith.constant 7 : index
    %c0_22 = arith.constant 0 : index
    %29 = vector.load %arg2[%c0_21, %c7, %c0_22] : memref<1x168x16xbf16, #tpu.memory_space<vmem>>, vector<1x24x16xbf16>
    %30 = vector.shape_cast %29 : vector<1x24x16xbf16> to vector<24x16xbf16>
    %c80 = arith.constant 80 : index
    %c0_23 = arith.constant 0 : index
    %31 = vector.load %arg3[%c80, %c0_23] : memref<256x32xbf16, #tpu.memory_space<vmem>>, vector<16x32xbf16>
    %cst_24 = arith.constant dense<0.000000e+00> : vector<24x32xf32>
    %32 = tpu.matmul %30, %31, %cst_24 {dimension_numbers = #tpu.dot_dimension_numbers<[1], [0], [0], [1], [0, 0, 1, 1], [], []>} : vector<24x16xbf16>, vector<16x32xbf16>, vector<24x32xf32> -> vector<24x32xf32>
    %33 = arith.addf %28, %32 : vector<24x32xf32>
    %c0_25 = arith.constant 0 : index
    %c49 = arith.constant 49 : index
    %c0_26 = arith.constant 0 : index
    %34 = vector.load %arg2[%c0_25, %c49, %c0_26] : memref<1x168x16xbf16, #tpu.memory_space<vmem>>, vector<1x24x16xbf16>
    %35 = vector.shape_cast %34 : vector<1x24x16xbf16> to vector<24x16xbf16>
    %c96 = arith.constant 96 : index
    %c0_27 = arith.constant 0 : index
    %36 = vector.load %arg3[%c96, %c0_27] : memref<256x32xbf16, #tpu.memory_space<vmem>>, vector<16x32xbf16>
    %cst_28 = arith.constant dense<0.000000e+00> : vector<24x32xf32>
    %37 = tpu.matmul %35, %36, %cst_28 {dimension_numbers = #tpu.dot_dimension_numbers<[1], [0], [0], [1], [0, 0, 1, 1], [], []>} : vector<24x16xbf16>, vector<16x32xbf16>, vector<24x32xf32> -> vector<24x32xf32>
    %38 = arith.addf %33, %37 : vector<24x32xf32>
    %c0_29 = arith.constant 0 : index
    %c8 = arith.constant 8 : index
    %c0_30 = arith.constant 0 : index
    %39 = vector.load %arg2[%c0_29, %c8, %c0_30] : memref<1x168x16xbf16, #tpu.memory_space<vmem>>, vector<1x24x16xbf16>
    %40 = vector.shape_cast %39 : vector<1x24x16xbf16> to vector<24x16xbf16>
    %c112 = arith.constant 112 : index
    %c0_31 = arith.constant 0 : index
    %41 = vector.load %arg3[%c112, %c0_31] : memref<256x32xbf16, #tpu.memory_space<vmem>>, vector<16x32xbf16>
    %cst_32 = arith.constant dense<0.000000e+00> : vector<24x32xf32>
    %42 = tpu.matmul %40, %41, %cst_32 {dimension_numbers = #tpu.dot_dimension_numbers<[1], [0], [0], [1], [0, 0, 1, 1], [], []>} : vector<24x16xbf16>, vector<16x32xbf16>, vector<24x32xf32> -> vector<24x32xf32>
    %43 = arith.addf %38, %42 : vector<24x32xf32>
    %c0_33 = arith.constant 0 : index
    %c132 = arith.constant 132 : index
    %c0_34 = arith.constant 0 : index
    %44 = vector.load %arg2[%c0_33, %c132, %c0_34] : memref<1x168x16xbf16, #tpu.memory_space<vmem>>, vector<1x24x16xbf16>
    %45 = vector.shape_cast %44 : vector<1x24x16xbf16> to vector<24x16xbf16>
    %c128 = arith.constant 128 : index
    %c0_35 = arith.constant 0 : index
    %46 = vector.load %arg3[%c128, %c0_35] : memref<256x32xbf16, #tpu.memory_space<vmem>>, vector<16x32xbf16>
    %cst_36 = arith.constant dense<0.000000e+00> : vector<24x32xf32>
    %47 = tpu.matmul %45, %46, %cst_36 {dimension_numbers = #tpu.dot_dimension_numbers<[1], [0], [0], [1], [0, 0, 1, 1], [], []>} : vector<24x16xbf16>, vector<16x32xbf16>, vector<24x32xf32> -> vector<24x32xf32>
    %48 = arith.addf %43, %47 : vector<24x32xf32>
    %c0_37 = arith.constant 0 : index
    %c91 = arith.constant 91 : index
    %c0_38 = arith.constant 0 : index
    %49 = vector.load %arg2[%c0_37, %c91, %c0_38] : memref<1x168x16xbf16, #tpu.memory_space<vmem>>, vector<1x24x16xbf16>
    %50 = vector.shape_cast %49 : vector<1x24x16xbf16> to vector<24x16xbf16>
    %c144 = arith.constant 144 : index
    %c0_39 = arith.constant 0 : index
    %51 = vector.load %arg3[%c144, %c0_39] : memref<256x32xbf16, #tpu.memory_space<vmem>>, vector<16x32xbf16>
    %cst_40 = arith.constant dense<0.000000e+00> : vector<24x32xf32>
    %52 = tpu.matmul %50, %51, %cst_40 {dimension_numbers = #tpu.dot_dimension_numbers<[1], [0], [0], [1], [0, 0, 1, 1], [], []>} : vector<24x16xbf16>, vector<16x32xbf16>, vector<24x32xf32> -> vector<24x32xf32>
    %53 = arith.addf %48, %52 : vector<24x32xf32>
    %c0_41 = arith.constant 0 : index
    %c133 = arith.constant 133 : index
    %c0_42 = arith.constant 0 : index
    %54 = vector.load %arg2[%c0_41, %c133, %c0_42] : memref<1x168x16xbf16, #tpu.memory_space<vmem>>, vector<1x24x16xbf16>
    %55 = vector.shape_cast %54 : vector<1x24x16xbf16> to vector<24x16xbf16>
    %c160 = arith.constant 160 : index
    %c0_43 = arith.constant 0 : index
    %56 = vector.load %arg3[%c160, %c0_43] : memref<256x32xbf16, #tpu.memory_space<vmem>>, vector<16x32xbf16>
    %cst_44 = arith.constant dense<0.000000e+00> : vector<24x32xf32>
    %57 = tpu.matmul %55, %56, %cst_44 {dimension_numbers = #tpu.dot_dimension_numbers<[1], [0], [0], [1], [0, 0, 1, 1], [], []>} : vector<24x16xbf16>, vector<16x32xbf16>, vector<24x32xf32> -> vector<24x32xf32>
    %58 = arith.addf %53, %57 : vector<24x32xf32>
    %c0_45 = arith.constant 0 : index
    %c92 = arith.constant 92 : index
    %c0_46 = arith.constant 0 : index
    %59 = vector.load %arg2[%c0_45, %c92, %c0_46] : memref<1x168x16xbf16, #tpu.memory_space<vmem>>, vector<1x24x16xbf16>
    %60 = vector.shape_cast %59 : vector<1x24x16xbf16> to vector<24x16xbf16>
    %c176 = arith.constant 176 : index
    %c0_47 = arith.constant 0 : index
    %61 = vector.load %arg3[%c176, %c0_47] : memref<256x32xbf16, #tpu.memory_space<vmem>>, vector<16x32xbf16>
    %cst_48 = arith.constant dense<0.000000e+00> : vector<24x32xf32>
    %62 = tpu.matmul %60, %61, %cst_48 {dimension_numbers = #tpu.dot_dimension_numbers<[1], [0], [0], [1], [0, 0, 1, 1], [], []>} : vector<24x16xbf16>, vector<16x32xbf16>, vector<24x32xf32> -> vector<24x32xf32>
    %63 = arith.addf %58, %62 : vector<24x32xf32>
    %c0_49 = arith.constant 0 : index
    %c54 = arith.constant 54 : index
    %c0_50 = arith.constant 0 : index
    %64 = vector.load %arg2[%c0_49, %c54, %c0_50] : memref<1x168x16xbf16, #tpu.memory_space<vmem>>, vector<1x24x16xbf16>
    %65 = vector.shape_cast %64 : vector<1x24x16xbf16> to vector<24x16xbf16>
    %c192 = arith.constant 192 : index
    %c0_51 = arith.constant 0 : index
    %66 = vector.load %arg3[%c192, %c0_51] : memref<256x32xbf16, #tpu.memory_space<vmem>>, vector<16x32xbf16>
    %cst_52 = arith.constant dense<0.000000e+00> : vector<24x32xf32>
    %67 = tpu.matmul %65, %66, %cst_52 {dimension_numbers = #tpu.dot_dimension_numbers<[1], [0], [0], [1], [0, 0, 1, 1], [], []>} : vector<24x16xbf16>, vector<16x32xbf16>, vector<24x32xf32> -> vector<24x32xf32>
    %68 = arith.addf %63, %67 : vector<24x32xf32>
    %c0_53 = arith.constant 0 : index
    %c13 = arith.constant 13 : index
    %c0_54 = arith.constant 0 : index
    %69 = vector.load %arg2[%c0_53, %c13, %c0_54] : memref<1x168x16xbf16, #tpu.memory_space<vmem>>, vector<1x24x16xbf16>
    %70 = vector.shape_cast %69 : vector<1x24x16xbf16> to vector<24x16xbf16>
    %c208 = arith.constant 208 : index
    %c0_55 = arith.constant 0 : index
    %71 = vector.load %arg3[%c208, %c0_55] : memref<256x32xbf16, #tpu.memory_space<vmem>>, vector<16x32xbf16>
    %cst_56 = arith.constant dense<0.000000e+00> : vector<24x32xf32>
    %72 = tpu.matmul %70, %71, %cst_56 {dimension_numbers = #tpu.dot_dimension_numbers<[1], [0], [0], [1], [0, 0, 1, 1], [], []>} : vector<24x16xbf16>, vector<16x32xbf16>, vector<24x32xf32> -> vector<24x32xf32>
    %73 = arith.addf %68, %72 : vector<24x32xf32>
    %c0_57 = arith.constant 0 : index
    %c55 = arith.constant 55 : index
    %c0_58 = arith.constant 0 : index
    %74 = vector.load %arg2[%c0_57, %c55, %c0_58] : memref<1x168x16xbf16, #tpu.memory_space<vmem>>, vector<1x24x16xbf16>
    %75 = vector.shape_cast %74 : vector<1x24x16xbf16> to vector<24x16xbf16>
    %c224 = arith.constant 224 : index
    %c0_59 = arith.constant 0 : index
    %76 = vector.load %arg3[%c224, %c0_59] : memref<256x32xbf16, #tpu.memory_space<vmem>>, vector<16x32xbf16>
    %cst_60 = arith.constant dense<0.000000e+00> : vector<24x32xf32>
    %77 = tpu.matmul %75, %76, %cst_60 {dimension_numbers = #tpu.dot_dimension_numbers<[1], [0], [0], [1], [0, 0, 1, 1], [], []>} : vector<24x16xbf16>, vector<16x32xbf16>, vector<24x32xf32> -> vector<24x32xf32>
    %78 = arith.addf %73, %77 : vector<24x32xf32>
    %c0_61 = arith.constant 0 : index
    %c14 = arith.constant 14 : index
    %c0_62 = arith.constant 0 : index
    %79 = vector.load %arg2[%c0_61, %c14, %c0_62] : memref<1x168x16xbf16, #tpu.memory_space<vmem>>, vector<1x24x16xbf16>
    %80 = vector.shape_cast %79 : vector<1x24x16xbf16> to vector<24x16xbf16>
    %c240 = arith.constant 240 : index
    %c0_63 = arith.constant 0 : index
    %81 = vector.load %arg3[%c240, %c0_63] : memref<256x32xbf16, #tpu.memory_space<vmem>>, vector<16x32xbf16>
    %cst_64 = arith.constant dense<0.000000e+00> : vector<24x32xf32>
    %82 = tpu.matmul %80, %81, %cst_64 {dimension_numbers = #tpu.dot_dimension_numbers<[1], [0], [0], [1], [0, 0, 1, 1], [], []>} : vector<24x16xbf16>, vector<16x32xbf16>, vector<24x32xf32> -> vector<24x32xf32>
    %83 = arith.addf %78, %82 : vector<24x32xf32>
    %c0_65 = arith.constant 0 : index
    %c0_66 = arith.constant 0 : index
    %84 = vector.load %arg4[%c0_65, %c0_66] : memref<1x32xf32, #tpu.memory_space<vmem>>, vector<1x32xf32>
    %85 = vector.broadcast %84 : vector<1x32xf32> to vector<24x32xf32>
    %86 = arith.addf %83, %85 : vector<24x32xf32>
    %cst_67 = arith.constant 0.000000e+00 : f32
    %87 = vector.broadcast %cst_67 : f32 to vector<24x32xf32>
    %88 = arith.cmpf oge, %86, %87 : vector<24x32xf32>
    %cst_68 = arith.constant 2.000000e-01 : f32
    %89 = vector.broadcast %cst_68 : f32 to vector<24x32xf32>
    %90 = arith.mulf %89, %86 : vector<24x32xf32>
    %91 = arith.select %88, %86, %90 : vector<24x32xi1>, vector<24x32xf32>
    %c0_69 = arith.constant 0 : index
    %c0_70 = arith.constant 0 : index
    %92 = vector.load %arg7[%c0_69, %c0_70] : memref<24x1xf32, #tpu.memory_space<vmem>>, vector<24x1xf32>
    %93 = vector.broadcast %92 : vector<24x1xf32> to vector<24x32xf32>
    %94 = arith.mulf %91, %93 : vector<24x32xf32>
    %cst_71 = arith.constant 0.000000e+00 : bf16
    %95 = vector.broadcast %cst_71 : bf16 to vector<42x32xbf16>
    %c0_72 = arith.constant 0 : index
    %c0_73 = arith.constant 0 : index
    %96 = vector.load %arg10[%c0_72, %c0_73] : memref<42x32xbf16, #tpu.memory_space<vmem>>, vector<42x32xbf16>
    tpu.vector_store %arg10[%c0_72, %c0_73], %95 {strides = array<i32>} : memref<42x32xbf16, #tpu.memory_space<vmem>>, vector<42x32xbf16>,
    %97 = arith.truncf %94 : vector<24x32xf32> to vector<24x32xbf16>
    %c7_74 = arith.constant 7 : index
    %c0_75 = arith.constant 0 : index
    %98 = vector.load %arg10[%c7_74, %c0_75] : memref<42x32xbf16, #tpu.memory_space<vmem>>, vector<24x32xbf16>
    tpu.vector_store %arg10[%c7_74, %c0_75], %97 {strides = array<i32>} : memref<42x32xbf16, #tpu.memory_space<vmem>>, vector<24x32xbf16>,
    %c0_76 = arith.constant 0 : index
    %c0_77 = arith.constant 0 : index
    %99 = vector.load %arg10[%c0_76, %c0_77] : memref<42x32xbf16, #tpu.memory_space<vmem>>, vector<18x32xbf16>
    %c0_78 = arith.constant 0 : index
    %c0_79 = arith.constant 0 : index
    %100 = vector.load %arg5[%c0_78, %c0_79] : memref<512x1xbf16, #tpu.memory_space<vmem>>, vector<32x1xbf16>
    %cst_80 = arith.constant dense<0.000000e+00> : vector<18x1xf32>
    %101 = tpu.matmul %99, %100, %cst_80 {dimension_numbers = #tpu.dot_dimension_numbers<[1], [0], [0], [1], [0, 0, 1, 1], [], []>} : vector<18x32xbf16>, vector<32x1xbf16>, vector<18x1xf32> -> vector<18x1xf32>
    %c1 = arith.constant 1 : index
    %c0_81 = arith.constant 0 : index
    %102 = vector.load %arg10[%c1, %c0_81] : memref<42x32xbf16, #tpu.memory_space<vmem>>, vector<18x32xbf16>
    %c32_82 = arith.constant 32 : index
    %c0_83 = arith.constant 0 : index
    %103 = vector.load %arg5[%c32_82, %c0_83] : memref<512x1xbf16, #tpu.memory_space<vmem>>, vector<32x1xbf16>
    %cst_84 = arith.constant dense<0.000000e+00> : vector<18x1xf32>
    %104 = tpu.matmul %102, %103, %cst_84 {dimension_numbers = #tpu.dot_dimension_numbers<[1], [0], [0], [1], [0, 0, 1, 1], [], []>} : vector<18x32xbf16>, vector<32x1xbf16>, vector<18x1xf32> -> vector<18x1xf32>
    %105 = arith.addf %101, %104 : vector<18x1xf32>
    %c2 = arith.constant 2 : index
    %c0_85 = arith.constant 0 : index
    %106 = vector.load %arg10[%c2, %c0_85] : memref<42x32xbf16, #tpu.memory_space<vmem>>, vector<18x32xbf16>
    %c64_86 = arith.constant 64 : index
    %c0_87 = arith.constant 0 : index
    %107 = vector.load %arg5[%c64_86, %c0_87] : memref<512x1xbf16, #tpu.memory_space<vmem>>, vector<32x1xbf16>
    %cst_88 = arith.constant dense<0.000000e+00> : vector<18x1xf32>
    %108 = tpu.matmul %106, %107, %cst_88 {dimension_numbers = #tpu.dot_dimension_numbers<[1], [0], [0], [1], [0, 0, 1, 1], [], []>} : vector<18x32xbf16>, vector<32x1xbf16>, vector<18x1xf32> -> vector<18x1xf32>
    %109 = arith.addf %105, %108 : vector<18x1xf32>
    %c3 = arith.constant 3 : index
    %c0_89 = arith.constant 0 : index
    %110 = vector.load %arg10[%c3, %c0_89] : memref<42x32xbf16, #tpu.memory_space<vmem>>, vector<18x32xbf16>
    %c96_90 = arith.constant 96 : index
    %c0_91 = arith.constant 0 : index
    %111 = vector.load %arg5[%c96_90, %c0_91] : memref<512x1xbf16, #tpu.memory_space<vmem>>, vector<32x1xbf16>
    %cst_92 = arith.constant dense<0.000000e+00> : vector<18x1xf32>
    %112 = tpu.matmul %110, %111, %cst_92 {dimension_numbers = #tpu.dot_dimension_numbers<[1], [0], [0], [1], [0, 0, 1, 1], [], []>} : vector<18x32xbf16>, vector<32x1xbf16>, vector<18x1xf32> -> vector<18x1xf32>
    %113 = arith.addf %109, %112 : vector<18x1xf32>
    %c6 = arith.constant 6 : index
    %c0_93 = arith.constant 0 : index
    %114 = vector.load %arg10[%c6, %c0_93] : memref<42x32xbf16, #tpu.memory_space<vmem>>, vector<18x32xbf16>
    %c128_94 = arith.constant 128 : index
    %c0_95 = arith.constant 0 : index
    %115 = vector.load %arg5[%c128_94, %c0_95] : memref<512x1xbf16, #tpu.memory_space<vmem>>, vector<32x1xbf16>
    %cst_96 = arith.constant dense<0.000000e+00> : vector<18x1xf32>
    %116 = tpu.matmul %114, %115, %cst_96 {dimension_numbers = #tpu.dot_dimension_numbers<[1], [0], [0], [1], [0, 0, 1, 1], [], []>} : vector<18x32xbf16>, vector<32x1xbf16>, vector<18x1xf32> -> vector<18x1xf32>
    %117 = arith.addf %113, %116 : vector<18x1xf32>
    %c7_97 = arith.constant 7 : index
    %c0_98 = arith.constant 0 : index
    %118 = vector.load %arg10[%c7_97, %c0_98] : memref<42x32xbf16, #tpu.memory_space<vmem>>, vector<18x32xbf16>
    %c160_99 = arith.constant 160 : index
    %c0_100 = arith.constant 0 : index
    %119 = vector.load %arg5[%c160_99, %c0_100] : memref<512x1xbf16, #tpu.memory_space<vmem>>, vector<32x1xbf16>
    %cst_101 = arith.constant dense<0.000000e+00> : vector<18x1xf32>
    %120 = tpu.matmul %118, %119, %cst_101 {dimension_numbers = #tpu.dot_dimension_numbers<[1], [0], [0], [1], [0, 0, 1, 1], [], []>} : vector<18x32xbf16>, vector<32x1xbf16>, vector<18x1xf32> -> vector<18x1xf32>
    %121 = arith.addf %117, %120 : vector<18x1xf32>
    %c8_102 = arith.constant 8 : index
    %c0_103 = arith.constant 0 : index
    %122 = vector.load %arg10[%c8_102, %c0_103] : memref<42x32xbf16, #tpu.memory_space<vmem>>, vector<18x32xbf16>
    %c192_104 = arith.constant 192 : index
    %c0_105 = arith.constant 0 : index
    %123 = vector.load %arg5[%c192_104, %c0_105] : memref<512x1xbf16, #tpu.memory_space<vmem>>, vector<32x1xbf16>
    %cst_106 = arith.constant dense<0.000000e+00> : vector<18x1xf32>
    %124 = tpu.matmul %122, %123, %cst_106 {dimension_numbers = #tpu.dot_dimension_numbers<[1], [0], [0], [1], [0, 0, 1, 1], [], []>} : vector<18x32xbf16>, vector<32x1xbf16>, vector<18x1xf32> -> vector<18x1xf32>
    %125 = arith.addf %121, %124 : vector<18x1xf32>
    %c9 = arith.constant 9 : index
    %c0_107 = arith.constant 0 : index
    %126 = vector.load %arg10[%c9, %c0_107] : memref<42x32xbf16, #tpu.memory_space<vmem>>, vector<18x32xbf16>
    %c224_108 = arith.constant 224 : index
    %c0_109 = arith.constant 0 : index
    %127 = vector.load %arg5[%c224_108, %c0_109] : memref<512x1xbf16, #tpu.memory_space<vmem>>, vector<32x1xbf16>
    %cst_110 = arith.constant dense<0.000000e+00> : vector<18x1xf32>
    %128 = tpu.matmul %126, %127, %cst_110 {dimension_numbers = #tpu.dot_dimension_numbers<[1], [0], [0], [1], [0, 0, 1, 1], [], []>} : vector<18x32xbf16>, vector<32x1xbf16>, vector<18x1xf32> -> vector<18x1xf32>
    %129 = arith.addf %125, %128 : vector<18x1xf32>
    %c12 = arith.constant 12 : index
    %c0_111 = arith.constant 0 : index
    %130 = vector.load %arg10[%c12, %c0_111] : memref<42x32xbf16, #tpu.memory_space<vmem>>, vector<18x32xbf16>
    %c256 = arith.constant 256 : index
    %c0_112 = arith.constant 0 : index
    %131 = vector.load %arg5[%c256, %c0_112] : memref<512x1xbf16, #tpu.memory_space<vmem>>, vector<32x1xbf16>
    %cst_113 = arith.constant dense<0.000000e+00> : vector<18x1xf32>
    %132 = tpu.matmul %130, %131, %cst_113 {dimension_numbers = #tpu.dot_dimension_numbers<[1], [0], [0], [1], [0, 0, 1, 1], [], []>} : vector<18x32xbf16>, vector<32x1xbf16>, vector<18x1xf32> -> vector<18x1xf32>
    %133 = arith.addf %129, %132 : vector<18x1xf32>
    %c13_114 = arith.constant 13 : index
    %c0_115 = arith.constant 0 : index
    %134 = vector.load %arg10[%c13_114, %c0_115] : memref<42x32xbf16, #tpu.memory_space<vmem>>, vector<18x32xbf16>
    %c288 = arith.constant 288 : index
    %c0_116 = arith.constant 0 : index
    %135 = vector.load %arg5[%c288, %c0_116] : memref<512x1xbf16, #tpu.memory_space<vmem>>, vector<32x1xbf16>
    %cst_117 = arith.constant dense<0.000000e+00> : vector<18x1xf32>
    %136 = tpu.matmul %134, %135, %cst_117 {dimension_numbers = #tpu.dot_dimension_numbers<[1], [0], [0], [1], [0, 0, 1, 1], [], []>} : vector<18x32xbf16>, vector<32x1xbf16>, vector<18x1xf32> -> vector<18x1xf32>
    %137 = arith.addf %133, %136 : vector<18x1xf32>
    %c14_118 = arith.constant 14 : index
    %c0_119 = arith.constant 0 : index
    %138 = vector.load %arg10[%c14_118, %c0_119] : memref<42x32xbf16, #tpu.memory_space<vmem>>, vector<18x32xbf16>
    %c320 = arith.constant 320 : index
    %c0_120 = arith.constant 0 : index
    %139 = vector.load %arg5[%c320, %c0_120] : memref<512x1xbf16, #tpu.memory_space<vmem>>, vector<32x1xbf16>
    %cst_121 = arith.constant dense<0.000000e+00> : vector<18x1xf32>
    %140 = tpu.matmul %138, %139, %cst_121 {dimension_numbers = #tpu.dot_dimension_numbers<[1], [0], [0], [1], [0, 0, 1, 1], [], []>} : vector<18x32xbf16>, vector<32x1xbf16>, vector<18x1xf32> -> vector<18x1xf32>
    %141 = arith.addf %137, %140 : vector<18x1xf32>
    %c15 = arith.constant 15 : index
    %c0_122 = arith.constant 0 : index
    %142 = vector.load %arg10[%c15, %c0_122] : memref<42x32xbf16, #tpu.memory_space<vmem>>, vector<18x32xbf16>
    %c352 = arith.constant 352 : index
    %c0_123 = arith.constant 0 : index
    %143 = vector.load %arg5[%c352, %c0_123] : memref<512x1xbf16, #tpu.memory_space<vmem>>, vector<32x1xbf16>
    %cst_124 = arith.constant dense<0.000000e+00> : vector<18x1xf32>
    %144 = tpu.matmul %142, %143, %cst_124 {dimension_numbers = #tpu.dot_dimension_numbers<[1], [0], [0], [1], [0, 0, 1, 1], [], []>} : vector<18x32xbf16>, vector<32x1xbf16>, vector<18x1xf32> -> vector<18x1xf32>
    %145 = arith.addf %141, %144 : vector<18x1xf32>
    %c18 = arith.constant 18 : index
    %c0_125 = arith.constant 0 : index
    %146 = vector.load %arg10[%c18, %c0_125] : memref<42x32xbf16, #tpu.memory_space<vmem>>, vector<18x32xbf16>
    %c384 = arith.constant 384 : index
    %c0_126 = arith.constant 0 : index
    %147 = vector.load %arg5[%c384, %c0_126] : memref<512x1xbf16, #tpu.memory_space<vmem>>, vector<32x1xbf16>
    %cst_127 = arith.constant dense<0.000000e+00> : vector<18x1xf32>
    %148 = tpu.matmul %146, %147, %cst_127 {dimension_numbers = #tpu.dot_dimension_numbers<[1], [0], [0], [1], [0, 0, 1, 1], [], []>} : vector<18x32xbf16>, vector<32x1xbf16>, vector<18x1xf32> -> vector<18x1xf32>
    %149 = arith.addf %145, %148 : vector<18x1xf32>
    %c19 = arith.constant 19 : index
    %c0_128 = arith.constant 0 : index
    %150 = vector.load %arg10[%c19, %c0_128] : memref<42x32xbf16, #tpu.memory_space<vmem>>, vector<18x32xbf16>
    %c416 = arith.constant 416 : index
    %c0_129 = arith.constant 0 : index
    %151 = vector.load %arg5[%c416, %c0_129] : memref<512x1xbf16, #tpu.memory_space<vmem>>, vector<32x1xbf16>
    %cst_130 = arith.constant dense<0.000000e+00> : vector<18x1xf32>
    %152 = tpu.matmul %150, %151, %cst_130 {dimension_numbers = #tpu.dot_dimension_numbers<[1], [0], [0], [1], [0, 0, 1, 1], [], []>} : vector<18x32xbf16>, vector<32x1xbf16>, vector<18x1xf32> -> vector<18x1xf32>
    %153 = arith.addf %149, %152 : vector<18x1xf32>
    %c20 = arith.constant 20 : index
    %c0_131 = arith.constant 0 : index
    %154 = vector.load %arg10[%c20, %c0_131] : memref<42x32xbf16, #tpu.memory_space<vmem>>, vector<18x32xbf16>
    %c448 = arith.constant 448 : index
    %c0_132 = arith.constant 0 : index
    %155 = vector.load %arg5[%c448, %c0_132] : memref<512x1xbf16, #tpu.memory_space<vmem>>, vector<32x1xbf16>
    %cst_133 = arith.constant dense<0.000000e+00> : vector<18x1xf32>
    %156 = tpu.matmul %154, %155, %cst_133 {dimension_numbers = #tpu.dot_dimension_numbers<[1], [0], [0], [1], [0, 0, 1, 1], [], []>} : vector<18x32xbf16>, vector<32x1xbf16>, vector<18x1xf32> -> vector<18x1xf32>
    %157 = arith.addf %153, %156 : vector<18x1xf32>
    %c21 = arith.constant 21 : index
    %c0_134 = arith.constant 0 : index
    %158 = vector.load %arg10[%c21, %c0_134] : memref<42x32xbf16, #tpu.memory_space<vmem>>, vector<18x32xbf16>
    %c480 = arith.constant 480 : index
    %c0_135 = arith.constant 0 : index
    %159 = vector.load %arg5[%c480, %c0_135] : memref<512x1xbf16, #tpu.memory_space<vmem>>, vector<32x1xbf16>
    %cst_136 = arith.constant dense<0.000000e+00> : vector<18x1xf32>
    %160 = tpu.matmul %158, %159, %cst_136 {dimension_numbers = #tpu.dot_dimension_numbers<[1], [0], [0], [1], [0, 0, 1, 1], [], []>} : vector<18x32xbf16>, vector<32x1xbf16>, vector<18x1xf32> -> vector<18x1xf32>
    %161 = arith.addf %157, %160 : vector<18x1xf32>
    %c0_137 = arith.constant 0 : index
    %c0_138 = arith.constant 0 : index
    %162 = vector.load %arg6[%c0_137, %c0_138] : memref<1x1xf32, #tpu.memory_space<vmem>>, vector<1x1xf32>
    %163 = vector.broadcast %162 : vector<1x1xf32> to vector<18x1xf32>
    %164 = arith.addf %161, %163 : vector<18x1xf32>
    %c2_i32_139 = arith.constant 2 : i32
    %165 = arith.cmpi slt, %1, %c2_i32_139 : i32
    %166 = arith.extui %165 : i1 to i32
    %167 = arith.sitofp %166 : i32 to f32
    %cst_140 = arith.constant 1.000000e+00 : f32
    %168 = vector.broadcast %cst_140 : f32 to vector<18x1xf32>
    %169 = arith.subf %168, %164 : vector<18x1xf32>
    %cst_141 = arith.constant 0.000000e+00 : f32
    %170 = vector.broadcast %cst_141 : f32 to vector<18x1xf32>
    %171 = arith.maximumf %169, %170 : vector<18x1xf32>
    %cst_142 = arith.constant 0.055555556 : f32
    %172 = vector.broadcast %cst_142 : f32 to vector<18x1xf32>
    %173 = arith.mulf %171, %172 : vector<18x1xf32>
    %174 = vector.broadcast %167 : f32 to vector<18x1xf32>
    %175 = arith.mulf %174, %173 : vector<18x1xf32>
    %cst_143 = arith.constant 1.000000e+00 : f32
    %176 = arith.subf %cst_143, %167 : f32
    %cst_144 = arith.constant 1.000000e+00 : f32
    %177 = vector.broadcast %cst_144 : f32 to vector<18x1xf32>
    %178 = arith.addf %177, %164 : vector<18x1xf32>
    %cst_145 = arith.constant 0.000000e+00 : f32
    %179 = vector.broadcast %cst_145 : f32 to vector<18x1xf32>
    %180 = arith.maximumf %178, %179 : vector<18x1xf32>
    %cst_146 = arith.constant 0.055555556 : f32
    %181 = vector.broadcast %cst_146 : f32 to vector<18x1xf32>
    %182 = arith.mulf %180, %181 : vector<18x1xf32>
    %183 = vector.broadcast %176 : f32 to vector<18x1xf32>
    %184 = arith.mulf %183, %182 : vector<18x1xf32>
    %185 = arith.addf %175, %184 : vector<18x1xf32>
    %c0_147 = arith.constant 0 : index
    %c0_148 = arith.constant 0 : index
    %186 = vector.load %arg11[%c0_147, %c0_148] : memref<1x1xf32, #tpu.memory_space<vmem>>, vector<1x1xf32>
    %c0_149 = arith.constant 0 : index
    %c0_150 = arith.constant 0 : index
    %187 = vector.load %arg8[%c0_149, %c0_150] : memref<18x1xf32, #tpu.memory_space<vmem>>, vector<18x1xf32>
    %188 = arith.mulf %185, %187 : vector<18x1xf32>
    %189 = vector.shape_cast %188 : vector<18x1xf32> to vector<1x18x1xf32>
    %cst_151 = arith.constant dense<0.000000e+00> : vector<1xf32>
    %190 = vector.multi_reduction <add>, %189, %cst_151 [1, 2] : vector<1x18x1xf32> to vector<1xf32>
    %191 = vector.shape_cast %190 : vector<1xf32> to vector<1x1x1xf32>
    %192 = vector.extract %191[0, 0, 0] : f32 from vector<1x1x1xf32>
    %193 = vector.broadcast %192 : f32 to vector<1x1xf32>
    %194 = arith.addf %186, %193 : vector<1x1xf32>
    %c0_152 = arith.constant 0 : index
    %c0_153 = arith.constant 0 : index
    %195 = vector.load %arg11[%c0_152, %c0_153] : memref<1x1xf32, #tpu.memory_space<vmem>>, vector<1x1xf32>
    tpu.vector_store %arg11[%c0_152, %c0_153], %194 {strides = array<i32>} : memref<1x1xf32, #tpu.memory_space<vmem>>, vector<1x1xf32>,
    %c1_i32 = arith.constant 1 : i32
    %196 = arith.cmpi eq, %arg1, %c1_i32 : i32
    %197 = arith.extui %196 : i1 to i32
    %c0_i32_154 = arith.constant 0 : i32
    %198 = arith.cmpi ne, %197, %c0_i32_154 : i32
    scf.if %198 {
      %c0_155 = arith.constant 0 : index
      %c0_156 = arith.constant 0 : index
      %199 = vector.load %arg11[%c0_155, %c0_156] : memref<1x1xf32, #tpu.memory_space<vmem>>, vector<1x1xf32>
      %200 = vector.shape_cast %199 : vector<1x1xf32> to vector<1x1x1xf32>
      %201 = vector.broadcast %200 : vector<1x1x1xf32> to vector<1x8x128xf32>
      %c0_157 = arith.constant 0 : index
      %c0_158 = arith.constant 0 : index
      %c0_159 = arith.constant 0 : index
      %202 = vector.load %arg9[%c0_157, %c0_158, %c0_159] : memref<1x8x128xf32, #tpu.memory_space<vmem>>, vector<1x8x128xf32>
      tpu.vector_store %arg9[%c0_157, %c0_158, %c0_159], %201 {strides = array<i32>} : memref<1x8x128xf32, #tpu.memory_space<vmem>>, vector<1x8x128xf32>,
    } else {
    }
    return
  }
  func.func @transform_0(%arg0: i32, %arg1: i32) -> (i32, i32, i32) {
    %c2_i32 = arith.constant 2 : i32
    %0 = arith.muli %arg0, %c2_i32 : i32
    %1 = arith.addi %0, %arg1 : i32
    %c0_i32 = arith.constant 0 : i32
    %c0_i32_0 = arith.constant 0 : i32
    %c0_i32_1 = arith.constant 0 : i32
    return %1, %c0_i32, %c0_i32_0 : i32, i32, i32
  }
  func.func @transform_1(%arg0: i32, %arg1: i32) -> (i32, i32) {
    %c0_i32 = arith.constant 0 : i32
    %c0_i32_0 = arith.constant 0 : i32
    %c0_i32_1 = arith.constant 0 : i32
    return %c0_i32, %c0_i32_0 : i32, i32
  }
  func.func @transform_2(%arg0: i32, %arg1: i32) -> (i32, i32) {
    %c0_i32 = arith.constant 0 : i32
    %c0_i32_0 = arith.constant 0 : i32
    %c0_i32_1 = arith.constant 0 : i32
    return %c0_i32, %c0_i32_0 : i32, i32
  }
  func.func @transform_3(%arg0: i32, %arg1: i32) -> (i32, i32) {
    %c0_i32 = arith.constant 0 : i32
    %c0_i32_0 = arith.constant 0 : i32
    %c0_i32_1 = arith.constant 0 : i32
    return %c0_i32, %c0_i32_0 : i32, i32
  }
  func.func @transform_4(%arg0: i32, %arg1: i32) -> (i32, i32) {
    %c0_i32 = arith.constant 0 : i32
    %c0_i32_0 = arith.constant 0 : i32
    %c0_i32_1 = arith.constant 0 : i32
    return %c0_i32, %c0_i32_0 : i32, i32
  }
  func.func @transform_5(%arg0: i32, %arg1: i32) -> (i32, i32) {
    %c0_i32 = arith.constant 0 : i32
    %c0_i32_0 = arith.constant 0 : i32
    %c0_i32_1 = arith.constant 0 : i32
    return %c0_i32, %c0_i32_0 : i32, i32
  }
  func.func @transform_6(%arg0: i32, %arg1: i32) -> (i32, i32) {
    %c0_i32 = arith.constant 0 : i32
    %c0_i32_0 = arith.constant 0 : i32
    %c0_i32_1 = arith.constant 0 : i32
    return %c0_i32, %c0_i32_0 : i32, i32
  }
  func.func @transform_7(%arg0: i32, %arg1: i32) -> (i32, i32, i32) {
    %c0_i32 = arith.constant 0 : i32
    %c0_i32_0 = arith.constant 0 : i32
    %c0_i32_1 = arith.constant 0 : i32
    return %arg0, %c0_i32, %c0_i32_0 : i32, i32, i32
  }
}

</mosaic_0001>

<llo_original>
// kernel: loss_D_forward.4
$region0: #{loss_D_forward.4}
  #allocation0 [shape = 'u32[]', space=smem, size = 0x4, offset = 0x4, fixed_abs, tag = 'smem constant byte address 0x4 - core index']
  #allocation1 [shape = 'u32[144,128]{1,0:T(1,128)}', space=vmem, size = 0x12000, scoped, tag = 'internal scratch']
  %s0 = inlined_call_operand.vmem [shape: bf16[4,440,3], index: 0, kind: input, shape index: {}]
  %s1 = inlined_call_operand.vmem [shape: bf16[48,16], index: 1, kind: input, shape index: {}]
  %s2 = inlined_call_operand.vmem [shape: f32[1,16], index: 2, kind: input, shape index: {}]
  %s3 = inlined_call_operand.vmem [shape: bf16[4,80,16], index: 3, kind: output, shape index: {}]
  %s4 = sld [smem:[#allocation0]]
  $region45: #{loss_D_forward.4} parent=0
    _
  %s6 = ssub.s32 1, %s4
  %s7 = scalar_select 0, %s6, %s4
  loop: start=0, step=1, limit=6
  $region2: #{loss_D_forward.4} parent=0 // loop_pre_header
    _
  $region3: #{loss_D_forward.4} parent=0 // loop_header
    %s9 = sphi 0, %s13
    %p10 = scmp.ge.s32.totalorder %s9, 6
    %s19 = sphi 0, %s21
    %s22 = sphi 0, %s19
    %s23 = sphi 0, %s22
    %s39 = sphi 0, %s23
    %s43 = sphi 0, %s43
    %s45 = sphi 0, %s43
    %s46 = sphi 0, %s45
    %s60 = sphi 0, %s46
    %s64 = sphi 0, %s64
    %s66 = sphi 0, %s64
    %s67 = sphi 0, %s66
    %s81 = sphi 0, %s67
    %s87 = sphi 0, %s89
    %s90 = sphi 0, %s87
    %s91 = sphi 0, %s90
    %s107 = sphi 0, %s91
  $region4: #{loss_D_forward.4} parent=0 // loop_header_branch
    %12 = sbr.rel (%p10) target = $region8
  $region5: #{loss_D_forward.4} parent=0 // loop_body
    %s14 = ssub.s32 %s9, 1
    %s15 = ssub.s32 %s9, 2
    %s16 = sadd.s32 %s9, 1
    %s17 = ssub.s32 %s9, %s16
    %p18 = scmp.eq.s32.totalorder %s17, 0
    %s20 = sadd.s32 %s19, 1
    %s21 = scalar_select %p18, %s19, %s20
    %p24 = pneg %p18
    %p25 = scmp.eq.s32.totalorder %s9, 3
    %p26 = por %p24, %p25
    %p27 = scmp.ne.s32.totalorder %s19, %s22
    %p28 = scmp.eq.s32.totalorder %s9, 0
    %p29 = por %p27, %p28
    %p30 = scmp.ne.s32.totalorder %s19, %s22
    %p31 = scmp.eq.s32.totalorder %s14, 3
    %p32 = por %p30, %p31
    %p33 = scmp.ne.s32.totalorder %s22, %s23
    %p34 = scmp.eq.s32.totalorder %s14, 0
    %p35 = por %p33, %p34
    %p36 = scmp.ne.s32.totalorder %s22, %s23
    %p37 = scmp.eq.s32.totalorder %s15, 3
    %p38 = por %p36, %p37
    %p40 = scmp.ne.s32.totalorder %s23, %s39
    %p41 = scmp.eq.s32.totalorder %s15, 0
    %p42 = por %p40, %p41
    %s44 = sadd.s32 %s43, 1
    %p47 = scmp.eq.s32.totalorder %s9, 3
    %p48 = scmp.ne.s32.totalorder %s43, %s45
    %p49 = scmp.eq.s32.totalorder %s9, 0
    %p50 = por %p48, %p49
    %p51 = scmp.ne.s32.totalorder %s43, %s45
    %p52 = scmp.eq.s32.totalorder %s14, 3
    %p53 = por %p51, %p52
    %p54 = scmp.ne.s32.totalorder %s45, %s46
    %p55 = scmp.eq.s32.totalorder %s14, 0
    %p56 = por %p54, %p55
    %p57 = scmp.ne.s32.totalorder %s45, %s46
    %p58 = scmp.eq.s32.totalorder %s15, 3
    %p59 = por %p57, %p58
    %p61 = scmp.ne.s32.totalorder %s46, %s60
    %p62 = scmp.eq.s32.totalorder %s15, 0
    %p63 = por %p61, %p62
    %s65 = sadd.s32 %s64, 1
    %p68 = scmp.eq.s32.totalorder %s9, 3
    %p69 = scmp.ne.s32.totalorder %s64, %s66
    %p70 = scmp.eq.s32.totalorder %s9, 0
    %p71 = por %p69, %p70
    %p72 = scmp.ne.s32.totalorder %s64, %s66
    %p73 = scmp.eq.s32.totalorder %s14, 3
    %p74 = por %p72, %p73
    %p75 = scmp.ne.s32.totalorder %s66, %s67
    %p76 = scmp.eq.s32.totalorder %s14, 0
    %p77 = por %p75, %p76
    %p78 = scmp.ne.s32.totalorder %s66, %s67
    %p79 = scmp.eq.s32.totalorder %s15, 3
    %p80 = por %p78, %p79
    %p82 = scmp.ne.s32.totalorder %s67, %s81
    %p83 = scmp.eq.s32.totalorder %s15, 0
    %p84 = por %p82, %p83
    %s85 = ssub.s32 %s9, %s16
    %p86 = scmp.eq.s32.totalorder %s85, 0
    %s88 = sadd.s32 %s87, 1
    %s89 = scalar_select %p86, %s87, %s88
    %p92 = pneg %p86
    %p93 = scmp.eq.s32.totalorder %s9, 3
    %p94 = por %p92, %p93
    %p95 = scmp.ne.s32.totalorder %s87, %s90
    %p96 = scmp.eq.s32.totalorder %s9, 0
    %p97 = por %p95, %p96
    %p98 = scmp.ne.s32.totalorder %s87, %s90
    %p99 = scmp.eq.s32.totalorder %s14, 3
    %p100 = por %p98, %p99
    %p101 = scmp.ne.s32.totalorder %s90, %s91
    %p102 = scmp.eq.s32.totalorder %s14, 0
    %p103 = por %p101, %p102
    %p104 = scmp.ne.s32.totalorder %s90, %s91
    %p105 = scmp.eq.s32.totalorder %s15, 3
    %p106 = por %p104, %p105
    %p108 = scmp.ne.s32.totalorder %s91, %s107
    %p109 = scmp.eq.s32.totalorder %s15, 0
    %p110 = por %p108, %p109
    %p111 = scmp.le.s32.totalorder 1, %s9
    %p112 = scmp.lt.s32.totalorder %s9, 5
    %p113 = pnand %p111, %p112
    %p114 = pneg %p113
    // Predicated region
    $region9: #{loss_D_forward.4} parent=5 // pred_check
      _
    $region10: #{loss_D_forward.4} parent=5 // pred_check_branch
      %116 = sbr.rel (%p113) target = $region12
    $region11: #{loss_D_forward.4} parent=5 // pred_region
      %s117 = ssub.s32 %s9, 1
      // Predicated region
      $region13: #{loss_D_forward.4} parent=11 // pred_check
        %p118 = pneg %p56
      $region14: #{loss_D_forward.4} parent=11 // pred_check_branch
        %120 = sbr.rel (%p118) target = $region16
      $region15: #{loss_D_forward.4} parent=11 // pred_region
        _
      $region16: #{loss_D_forward.4} parent=11 // pred_fallthru
        _
      // Predicated region
      $region17: #{loss_D_forward.4} parent=11 // pred_check
        %p121 = pneg %p77
      $region18: #{loss_D_forward.4} parent=11 // pred_check_branch
        %123 = sbr.rel (%p121) target = $region20
      $region19: #{loss_D_forward.4} parent=11 // pred_region
        _
      $region20: #{loss_D_forward.4} parent=11 // pred_fallthru
        _
    $region12: #{loss_D_forward.4} parent=5 // pred_fallthru
      _
    %p124 = scmp.lt.s32.totalorder %s9, 4
    // Predicated region
    $region21: #{loss_D_forward.4} parent=5 // pred_check
      %p125 = pneg %p124
    $region22: #{loss_D_forward.4} parent=5 // pred_check_branch
      %127 = sbr.rel (%p125) target = $region24
    $region23: #{loss_D_forward.4} parent=5 // pred_region
      // Predicated region
      $region25: #{loss_D_forward.4} parent=23 // pred_check
        %p128 = pneg %p29
      $region26: #{loss_D_forward.4} parent=23 // pred_check_branch
        %130 = sbr.rel (%p128) target = $region28
      $region27: #{loss_D_forward.4} parent=23 // pred_region
        %p131 = scmp.lt.s32.totalorder %s9, 3
        %s132 = scalar_select %p131, %s9, 3
        %s133 = smul.addr %s132, 55
        %s134 = smul.addr %s133, 4
        %s135 = scalar_lea.vmem %s0, %s134
      $region28: #{loss_D_forward.4} parent=23 // pred_fallthru
        _
    $region24: #{loss_D_forward.4} parent=5 // pred_fallthru
      _
    %p136 = scmp.le.s32.totalorder 1, %s9
    %p137 = scmp.lt.s32.totalorder %s9, 5
    %p138 = pnand %p136, %p137
    %p139 = pneg %p138
    // Predicated region
    $region29: #{loss_D_forward.4} parent=5 // pred_check
      _
    $region30: #{loss_D_forward.4} parent=5 // pred_check_branch
      %141 = sbr.rel (%p138) target = $region32
    $region31: #{loss_D_forward.4} parent=5 // pred_region
      %s142 = ssub.s32 %s9, 1
      %p143 = scmp.lt.s32.totalorder %s14, 3
      %s144 = scalar_select %p143, %s14, 3
      %s145 = smul.addr %s144, 55
      %s146 = smul.addr %s145, 4
      %s147 = scalar_lea.vmem %s0, %s146
      %p148 = pneg %p35
      %p149 = pneg %p32
      %p150 = pneg %p56
      %p151 = pneg %p53
      %p152 = pneg %p77
      %p153 = pneg %p74
      %p154 = pneg %p103
      %p155 = pneg %p100
      %p156 = scmp.lt.s32.totalorder %s14, 3
      %s157 = scalar_select %p156, %s14, 3
      %s158 = smul.addr %s157, 10
      %s159 = smul.addr %s158, 4
      %s160 = scalar_lea.vmem %s3, %s159
      %p161 = scmp.lt.s32.totalorder %s14, 3
      %s162 = scalar_select %p161, %s14, 3
      %s163 = smul.addr %s162, 55
      %s164 = smul.addr %s163, 4
      %s165 = scalar_lea.vmem %s0, %s164
      %p166 = scmp.lt.s32.totalorder %s14, 3
      %s167 = scalar_select %p166, %s14, 3
      %s168 = smul.addr %s167, 10
      %s169 = smul.addr %s168, 4
      %s170 = scalar_lea.vmem %s3, %s169
      %v172 = vld [vmem:[%s165 + $0xa4] sm:$0xe]
      %v173 = vld [vmem:[%s165 + $0xa8] sm:$0xf]
      %v174 = vld [vmem:[%s165 + $0xac] sm:$0xf]
      %v175 = vld [vmem:[%s165 + $0xb0] sm:$0xf]
      %v176 = vld [vmem:[%s165 + $0xb4] sm:$0xf]
      %v177 = vld [vmem:[%s165 + $0xb8] sm:$0xf]
      %v178 = vld [vmem:[%s165 + $0xbc] sm:$0xf]
      %v179 = vld [vmem:[%s165 + $0xc0] sm:$0xf]
      %v180 = vld [vmem:[%s165 + $0xc4] sm:$0xf]
      %v181 = vld [vmem:[%s165 + $0xc8] sm:$0xf]
      %v182 = vld [vmem:[%s165 + $0xcc] sm:$0x1]
      %v183 = vld [vmem:[%s1] sm:$0x3]
      %v184 = vld [vmem:[%s165 + $0x6c] sm:$0xc]
      %v185 = vld [vmem:[%s165 + $0x70] sm:$0xf]
      %v186 = vld [vmem:[%s165 + $0x74] sm:$0xf]
      %v187 = vld [vmem:[%s165 + $0x78] sm:$0xf]
      %v188 = vld [vmem:[%s165 + $0x7c] sm:$0xf]
      %v189 = vld [vmem:[%s165 + $0x80] sm:$0xf]
      %v190 = vld [vmem:[%s165 + $0x84] sm:$0xf]
      %v191 = vld [vmem:[%s165 + $0x88] sm:$0xf]
      %v192 = vld [vmem:[%s165 + $0x8c] sm:$0xf]
      %v193 = vld [vmem:[%s165 + $0x90] sm:$0xf]
      %v194 = vld [vmem:[%s165 + $0x94] sm:$0x7]
      %v195 = vld [vmem:[%s1] sm:$0x6]
      %v207 = vunpack.c.l.b16 %v184
      %v208 = vunpack.c.l.b16 %v185
      %v209 = vunpack.c.l.b16 %v186
      %v210 = vunpack.c.l.b16 %v187
      %v211 = vunpack.c.l.b16 %v188
      %v212 = vunpack.c.l.b16 %v189
      %v213 = vunpack.c.l.b16 %v190
      %v214 = vunpack.c.l.b16 %v191
      %v215 = vunpack.c.l.b16 %v192
      %v216 = vunpack.c.l.b16 %v193
      %v217 = vunpack.c.l.b16 %v194
      %v218 = vpack.c.b16 %v208, %v207
      %v219 = vpack.c.b16 %v210, %v209
      %v220 = vpack.c.b16 %v212, %v211
      %v221 = vpack.c.b16 %v214, %v213
      %v222 = vpack.c.b16 %v216, %v215
      %v223 = vpack.c.b16 %v217, %v217
      %vm224 = vsmask.f32 5376
      %v226 = vshrl.u32 %v218, 16
      %v228 = vrot.slane %v226, 2
      %v229 = vshll.u32 %v218, 16
      %v231 = vrot.slane %v229, 3
      %v232 = vor.u32 %v228, %v231
      %v234 = vshrl.u32 %v219, 16
      %v236 = vrot.slane %v234, 2
      %v237 = vshll.u32 %v219, 16
      %v239 = vrot.slane %v237, 3
      %v240 = vor.u32 %v236, %v239
      %v241 = vsel %vm224, %v232, %v240
      %v243 = vshrl.u32 %v220, 16
      %v245 = vrot.slane %v243, 2
      %v246 = vshll.u32 %v220, 16
      %v248 = vrot.slane %v246, 3
      %v249 = vor.u32 %v245, %v248
      %v250 = vsel %vm224, %v240, %v249
      %v252 = vshrl.u32 %v221, 16
      %v254 = vrot.slane %v252, 2
      %v255 = vshll.u32 %v221, 16
      %v257 = vrot.slane %v255, 3
      %v258 = vor.u32 %v254, %v257
      %v259 = vsel %vm224, %v249, %v258
      %v261 = vshrl.u32 %v222, 16
      %v263 = vrot.slane %v261, 2
      %v264 = vshll.u32 %v222, 16
      %v266 = vrot.slane %v264, 3
      %v267 = vor.u32 %v263, %v266
      %v268 = vsel %vm224, %v258, %v267
      %v270 = vshrl.u32 %v223, 16
      %v272 = vrot.slane %v270, 2
      %v273 = vshll.u32 %v223, 16
      %v275 = vrot.slane %v273, 3
      %v276 = vor.u32 %v272, %v275
      %v277 = vsel %vm224, %v267, %v276
      %v279 = vunpack.c.l.b16 %v195
      %v280 = vpack.c.b16 %v279, %v279
      %v282 = vshrl.u32 %v280, 16
      %v284 = vrot.slane %v282, 1
      %v285 = vshll.u32 %v280, 16
      %v287 = vrot.slane %v285, 2
      %v288 = vor.u32 %v284, %v287
      %vm289 = vcmask 23552
      %v291 = vsel %vm289, %v241, 0
      %v294 = vsel %vm289, %v250, 0
      %v297 = vsel %vm289, %v259, 0
      %v300 = vsel %vm289, %v268, 0
      %v303 = vsel %vm289, %v277, 0
      %vm305 = vcmask 1040384
      %vm306 = vcmask 1041408
      %v307 = vsel %vm305, 4294967295, 65535
      %v308 = vsel %vm306, %v307, 0
      %v310 = vand.u32 %v288, %v308
      %312 = vmatprep.subr.bf16.mxu0 0
      %313 = vmatpush1.bf16.msra.mxu0 %v310
      %314 = vmatprep.subr.bf16.mxu0 0
      %315 = vmatpush1.bf16.msra.mxu0 0
      %316 = vmatprep.subr.bf16.mxu0 0
      %317 = vmatpush1.bf16.msra.mxu0 0
      %318 = vmatprep.subr.bf16.mxu0 0
      %319 = vmatpush1.bf16.msra.mxu0 0
      %320 = vmatprep.subr.bf16.mxu0 0
      %321 = vmatpush1.bf16.msra.mxu0 0
      %322 = vmatprep.subr.bf16.mxu0 0
      %323 = vmatpush1.bf16.msra.mxu0 0
      %324 = vmatprep.subr.bf16.mxu0 0
      %325 = vmatpush1.bf16.msra.mxu0 0
      %326 = vmatprep.subr.bf16.mxu0 0
      %327 = vmatpush1.bf16.msra.mxu0 0
      %328 = vmatprep.subr.bf16.mxu0 0
      %329 = vmatpush1.bf16.msra.mxu0 0
      %330 = vmatprep.subr.bf16.mxu0 0
      %331 = vmatpush1.bf16.msra.mxu0 0
      %332 = vmatprep.subr.bf16.mxu0 0
      %333 = vmatpush1.bf16.msra.mxu0 0
      %334 = vmatprep.subr.bf16.mxu0 0
      %335 = vmatpush1.bf16.msra.mxu0 0
      %336 = vmatprep.subr.bf16.mxu0 0
      %337 = vmatpush1.bf16.msra.mxu0 0
      %338 = vmatprep.subr.bf16.mxu0 0
      %339 = vmatpush1.bf16.msra.mxu0 0
      %340 = vmatprep.subr.bf16.mxu0 0
      %341 = vmatpush1.bf16.msra.mxu0 0
      %342 = vmatprep.subr.bf16.mxu0 0
      %343 = vmatpush1.bf16.msra.mxu0 0
      %344 = vmatprep.mubr.bf16.mxu0 0
      %345 = vmatmul.mubr.bf16.gmra.mrb[0].mxu0 %v291
      %v346 = vpop.f32.mrb[0].mxu0
      %v347 = vadd.f32 0.0, %v346
      %v348 = vpop.f32.mrb[0].mxu0
      %v349 = vpop.f32.mrb[0].mxu0
      %v350 = vadd.f32 0.0, %v349
      %v351 = vpop.f32.mrb[0].mxu0
      %352 = vmatprep.mubr.bf16.mxu0 0
      %353 = vmatmul.mubr.bf16.gmra.mrb[0].mxu0 %v294
      %v354 = vpop.f32.mrb[0].mxu0
      %v355 = vadd.f32 0.0, %v354
      %v356 = vpop.f32.mrb[0].mxu0
      %v357 = vpop.f32.mrb[0].mxu0
      %v358 = vadd.f32 0.0, %v357
      %v359 = vpop.f32.mrb[0].mxu0
      %360 = vmatprep.mubr.bf16.mxu0 0
      %361 = vmatmul.mubr.bf16.gmra.mrb[0].mxu0 %v297
      %v362 = vpop.f32.mrb[0].mxu0
      %v363 = vadd.f32 0.0, %v362
      %v364 = vpop.f32.mrb[0].mxu0
      %v365 = vpop.f32.mrb[0].mxu0
      %v366 = vadd.f32 0.0, %v365
      %v367 = vpop.f32.mrb[0].mxu0
      %368 = vmatprep.mubr.bf16.mxu0 0
      %369 = vmatmul.mubr.bf16.gmra.mrb[0].mxu0 %v300
      %v370 = vpop.f32.mrb[0].mxu0
      %v371 = vadd.f32 0.0, %v370
      %v372 = vpop.f32.mrb[0].mxu0
      %v373 = vpop.f32.mrb[0].mxu0
      %v374 = vadd.f32 0.0, %v373
      %v375 = vpop.f32.mrb[0].mxu0
      %376 = vmatprep.mubr.bf16.mxu0 0
      %377 = vmatmul.mubr.bf16.gmra.mrb[0].mxu0 %v303
      %v378 = vpop.f32.mrb[0].mxu0
      %v379 = vadd.f32 0.0, %v378
      %v380 = vpop.f32.mrb[0].mxu0
      %v381 = vpop.f32.mrb[0].mxu0
      %v382 = vadd.f32 0.0, %v381
      %v383 = vpop.f32.mrb[0].mxu0
      %384 = vdwg.mxu0
      %v396 = vunpack.c.l.b16 %v172
      %v397 = vunpack.c.l.b16 %v173
      %v398 = vunpack.c.l.b16 %v174
      %v399 = vunpack.c.l.b16 %v175
      %v400 = vunpack.c.l.b16 %v176
      %v401 = vunpack.c.l.b16 %v177
      %v402 = vunpack.c.l.b16 %v178
      %v403 = vunpack.c.l.b16 %v179
      %v404 = vunpack.c.l.b16 %v180
      %v405 = vunpack.c.l.b16 %v181
      %v406 = vunpack.c.l.b16 %v182
      %v407 = vpack.c.b16 %v397, %v396
      %v408 = vpack.c.b16 %v399, %v398
      %v409 = vpack.c.b16 %v401, %v400
      %v410 = vpack.c.b16 %v403, %v402
      %v411 = vpack.c.b16 %v405, %v404
      %v412 = vpack.c.b16 %v406, %v406
      %vm413 = vcmask 1046528
      %v414 = vrot.slane %v407, 1
      %v415 = vrot.slane %v408, 1
      %v416 = vsel %vm413, %v414, %v415
      %v417 = vrot.slane %v409, 1
      %v418 = vsel %vm413, %v415, %v417
      %v419 = vrot.slane %v410, 1
      %v420 = vsel %vm413, %v417, %v419
      %v421 = vrot.slane %v411, 1
      %v422 = vsel %vm413, %v419, %v421
      %v423 = vrot.slane %v412, 1
      %v424 = vsel %vm413, %v421, %v423
      %v426 = vsel %vm289, %v416, 0
      %v429 = vsel %vm289, %v418, 0
      %v432 = vsel %vm289, %v420, 0
      %v435 = vsel %vm289, %v422, 0
      %v438 = vsel %vm289, %v424, 0
      %v441 = vand.u32 %v183, %v308
      %443 = vmatprep.subr.bf16.mxu0 0
      %444 = vmatpush1.bf16.msra.mxu0 %v441
      %445 = vmatprep.subr.bf16.mxu0 0
      %446 = vmatpush1.bf16.msra.mxu0 0
      %447 = vmatprep.subr.bf16.mxu0 0
      %448 = vmatpush1.bf16.msra.mxu0 0
      %449 = vmatprep.subr.bf16.mxu0 0
      %450 = vmatpush1.bf16.msra.mxu0 0
      %451 = vmatprep.subr.bf16.mxu0 0
      %452 = vmatpush1.bf16.msra.mxu0 0
      %453 = vmatprep.subr.bf16.mxu0 0
      %454 = vmatpush1.bf16.msra.mxu0 0
      %455 = vmatprep.subr.bf16.mxu0 0
      %456 = vmatpush1.bf16.msra.mxu0 0
      %457 = vmatprep.subr.bf16.mxu0 0
      %458 = vmatpush1.bf16.msra.mxu0 0
      %459 = vmatprep.subr.bf16.mxu0 0
      %460 = vmatpush1.bf16.msra.mxu0 0
      %461 = vmatprep.subr.bf16.mxu0 0
      %462 = vmatpush1.bf16.msra.mxu0 0
      %463 = vmatprep.subr.bf16.mxu0 0
      %464 = vmatpush1.bf16.msra.mxu0 0
      %465 = vmatprep.subr.bf16.mxu0 0
      %466 = vmatpush1.bf16.msra.mxu0 0
      %467 = vmatprep.subr.bf16.mxu0 0
      %468 = vmatpush1.bf16.msra.mxu0 0
      %469 = vmatprep.subr.bf16.mxu0 0
      %470 = vmatpush1.bf16.msra.mxu0 0
      %471 = vmatprep.subr.bf16.mxu0 0
      %472 = vmatpush1.bf16.msra.mxu0 0
      %473 = vmatprep.subr.bf16.mxu0 0
      %474 = vmatpush1.bf16.msra.mxu0 0
      %475 = vmatprep.mubr.bf16.mxu0 0
      %476 = vmatmul.mubr.bf16.gmra.mrb[0].mxu0 %v426
      %v477 = vpop.f32.mrb[0].mxu0
      %v478 = vadd.f32 %v347, %v477
      %v479 = vpop.f32.mrb[0].mxu0
      %v480 = vpop.f32.mrb[0].mxu0
      %v481 = vadd.f32 %v350, %v480
      %v482 = vpop.f32.mrb[0].mxu0
      %483 = vmatprep.mubr.bf16.mxu0 0
      %484 = vmatmul.mubr.bf16.gmra.mrb[0].mxu0 %v429
      %v485 = vpop.f32.mrb[0].mxu0
      %v486 = vadd.f32 %v355, %v485
      %v487 = vpop.f32.mrb[0].mxu0
      %v488 = vpop.f32.mrb[0].mxu0
      %v489 = vadd.f32 %v358, %v488
      %v490 = vpop.f32.mrb[0].mxu0
      %491 = vmatprep.mubr.bf16.mxu0 0
      %492 = vmatmul.mubr.bf16.gmra.mrb[0].mxu0 %v432
      %v493 = vpop.f32.mrb[0].mxu0
      %v494 = vadd.f32 %v363, %v493
      %v495 = vpop.f32.mrb[0].mxu0
      %v496 = vpop.f32.mrb[0].mxu0
      %v497 = vadd.f32 %v366, %v496
      %v498 = vpop.f32.mrb[0].mxu0
      %499 = vmatprep.mubr.bf16.mxu0 0
      %500 = vmatmul.mubr.bf16.gmra.mrb[0].mxu0 %v435
      %v501 = vpop.f32.mrb[0].mxu0
      %v502 = vadd.f32 %v371, %v501
      %v503 = vpop.f32.mrb[0].mxu0
      %v504 = vpop.f32.mrb[0].mxu0
      %v505 = vadd.f32 %v374, %v504
      %v506 = vpop.f32.mrb[0].mxu0
      %507 = vmatprep.mubr.bf16.mxu0 0
      %508 = vmatmul.mubr.bf16.gmra.mrb[0].mxu0 %v438
      %v509 = vpop.f32.mrb[0].mxu0
      %v510 = vadd.f32 %v379, %v509
      %v511 = vpop.f32.mrb[0].mxu0
      %v512 = vpop.f32.mrb[0].mxu0
      %v513 = vadd.f32 %v382, %v512
      %v514 = vpop.f32.mrb[0].mxu0
      %515 = vdwg.mxu0
      %v516 = vld [vmem:[%s165 + $0xcc] sm:$0x3]
      %v517 = vld [vmem:[%s1] sm:$0x8]
      %v518 = vld [vmem:[%s1 + $0x4] sm:$0x1]
      %v520 = vunpack.c.l.b16 %v516
      %v521 = vpack.c.b16 %v520, %v520
      %vm522 = vsmask.f32 6400
      %v524 = vshrl.u32 %v407, 16
      %v526 = vrot.slane %v524, 1
      %v527 = vshll.u32 %v407, 16
      %v529 = vrot.slane %v527, 2
      %v530 = vor.u32 %v526, %v529
      %v532 = vshrl.u32 %v408, 16
      %v534 = vrot.slane %v532, 1
      %v535 = vshll.u32 %v408, 16
      %v537 = vrot.slane %v535, 2
      %v538 = vor.u32 %v534, %v537
      %v539 = vsel %vm522, %v530, %v538
      %v541 = vshrl.u32 %v409, 16
      %v543 = vrot.slane %v541, 1
      %v544 = vshll.u32 %v409, 16
      %v546 = vrot.slane %v544, 2
      %v547 = vor.u32 %v543, %v546
      %v548 = vsel %vm522, %v538, %v547
      %v550 = vshrl.u32 %v410, 16
      %v552 = vrot.slane %v550, 1
      %v553 = vshll.u32 %v410, 16
      %v555 = vrot.slane %v553, 2
      %v556 = vor.u32 %v552, %v555
      %v557 = vsel %vm522, %v547, %v556
      %v559 = vshrl.u32 %v411, 16
      %v561 = vrot.slane %v559, 1
      %v562 = vshll.u32 %v411, 16
      %v564 = vrot.slane %v562, 2
      %v565 = vor.u32 %v561, %v564
      %v566 = vsel %vm522, %v556, %v565
      %v568 = vshrl.u32 %v521, 16
      %v570 = vrot.slane %v568, 1
      %v571 = vshll.u32 %v521, 16
      %v573 = vrot.slane %v571, 2
      %v574 = vor.u32 %v570, %v573
      %v575 = vsel %vm522, %v565, %v574
      %v578 = vunpack.c.l.b16 %v517
      %v579 = vunpack.c.l.b16 %v518
      %v580 = vpack.c.b16 %v579, %v578
      %v581 = vrot.slane %v580, 3
      %v583 = vsel %vm289, %v539, 0
      %v586 = vsel %vm289, %v548, 0
      %v589 = vsel %vm289, %v557, 0
      %v592 = vsel %vm289, %v566, 0
      %v595 = vsel %vm289, %v575, 0
      %v598 = vand.u32 %v581, %v308
      %600 = vmatprep.subr.bf16.mxu0 0
      %601 = vmatpush1.bf16.msra.mxu0 %v598
      %602 = vmatprep.subr.bf16.mxu0 0
      %603 = vmatpush1.bf16.msra.mxu0 0
      %604 = vmatprep.subr.bf16.mxu0 0
      %605 = vmatpush1.bf16.msra.mxu0 0
      %606 = vmatprep.subr.bf16.mxu0 0
      %607 = vmatpush1.bf16.msra.mxu0 0
      %608 = vmatprep.subr.bf16.mxu0 0
      %609 = vmatpush1.bf16.msra.mxu0 0
      %610 = vmatprep.subr.bf16.mxu0 0
      %611 = vmatpush1.bf16.msra.mxu0 0
      %612 = vmatprep.subr.bf16.mxu0 0
      %613 = vmatpush1.bf16.msra.mxu0 0
      %614 = vmatprep.subr.bf16.mxu0 0
      %615 = vmatpush1.bf16.msra.mxu0 0
      %616 = vmatprep.subr.bf16.mxu0 0
      %617 = vmatpush1.bf16.msra.mxu0 0
      %618 = vmatprep.subr.bf16.mxu0 0
      %619 = vmatpush1.bf16.msra.mxu0 0
      %620 = vmatprep.subr.bf16.mxu0 0
      %621 = vmatpush1.bf16.msra.mxu0 0
      %622 = vmatprep.subr.bf16.mxu0 0
      %623 = vmatpush1.bf16.msra.mxu0 0
      %624 = vmatprep.subr.bf16.mxu0 0
      %625 = vmatpush1.bf16.msra.mxu0 0
      %626 = vmatprep.subr.bf16.mxu0 0
      %627 = vmatpush1.bf16.msra.mxu0 0
      %628 = vmatprep.subr.bf16.mxu0 0
      %629 = vmatpush1.bf16.msra.mxu0 0
      %630 = vmatprep.subr.bf16.mxu0 0
      %631 = vmatpush1.bf16.msra.mxu0 0
      %632 = vmatprep.mubr.bf16.mxu0 0
      %633 = vmatmul.mubr.bf16.gmra.mrb[0].mxu0 %v583
      %v634 = vpop.f32.mrb[0].mxu0
      %v635 = vadd.f32 0.0, %v634
      %v636 = vpop.f32.mrb[0].mxu0
      %v637 = vpop.f32.mrb[0].mxu0
      %v638 = vadd.f32 0.0, %v637
      %v639 = vpop.f32.mrb[0].mxu0
      %640 = vmatprep.mubr.bf16.mxu0 0
      %641 = vmatmul.mubr.bf16.gmra.mrb[0].mxu0 %v586
      %v642 = vpop.f32.mrb[0].mxu0
      %v643 = vadd.f32 0.0, %v642
      %v644 = vpop.f32.mrb[0].mxu0
      %v645 = vpop.f32.mrb[0].mxu0
      %v646 = vadd.f32 0.0, %v645
      %v647 = vpop.f32.mrb[0].mxu0
      %648 = vmatprep.mubr.bf16.mxu0 0
      %649 = vmatmul.mubr.bf16.gmra.mrb[0].mxu0 %v589
      %v650 = vpop.f32.mrb[0].mxu0
      %v651 = vadd.f32 0.0, %v650
      %v652 = vpop.f32.mrb[0].mxu0
      %v653 = vpop.f32.mrb[0].mxu0
      %v654 = vadd.f32 0.0, %v653
      %v655 = vpop.f32.mrb[0].mxu0
      %656 = vmatprep.mubr.bf16.mxu0 0
      %657 = vmatmul.mubr.bf16.gmra.mrb[0].mxu0 %v592
      %v658 = vpop.f32.mrb[0].mxu0
      %v659 = vadd.f32 0.0, %v658
      %v660 = vpop.f32.mrb[0].mxu0
      %v661 = vpop.f32.mrb[0].mxu0
      %v662 = vadd.f32 0.0, %v661
      %v663 = vpop.f32.mrb[0].mxu0
      %664 = vmatprep.mubr.bf16.mxu0 0
      %665 = vmatmul.mubr.bf16.gmra.mrb[0].mxu0 %v595
      %v666 = vpop.f32.mrb[0].mxu0
      %v667 = vadd.f32 0.0, %v666
      %v668 = vpop.f32.mrb[0].mxu0
      %v669 = vpop.f32.mrb[0].mxu0
      %v670 = vadd.f32 0.0, %v669
      %v671 = vpop.f32.mrb[0].mxu0
      %672 = vdwg.mxu0
      %v673 = vadd.f32 %v478, %v635
      %v674 = vadd.f32 %v481, %v638
      %v675 = vadd.f32 %v486, %v643
      %v676 = vadd.f32 %v489, %v646
      %v677 = vadd.f32 %v494, %v651
      %v678 = vadd.f32 %v497, %v654
      %v679 = vadd.f32 %v502, %v659
      %v680 = vadd.f32 %v505, %v662
      %v681 = vadd.f32 %v510, %v667
      %v682 = vadd.f32 %v513, %v670
      %v683 = vld [vmem:[%s165 + $0x6c] sm:$0x8]
      %v684 = vld [vmem:[%s1 + $0x4] sm:$0x3]
      %v686 = vunpack.c.l.b16 %v683
      %v687 = vpack.c.b16 %v208, %v686
      %vm688 = vcmask 1044480
      %v689 = vrot.slane %v687, 3
      %v690 = vrot.slane %v219, 3
      %v691 = vsel %vm688, %v689, %v690
      %v692 = vrot.slane %v220, 3
      %v693 = vsel %vm688, %v690, %v692
      %v694 = vrot.slane %v221, 3
      %v695 = vsel %vm688, %v692, %v694
      %v696 = vrot.slane %v222, 3
      %v697 = vsel %vm688, %v694, %v696
      %v698 = vrot.slane %v223, 3
      %v699 = vsel %vm688, %v696, %v698
      %v701 = vunpack.c.l.b16 %v684
      %v702 = vpack.c.b16 %v701, %v701
      %v704 = vshrl.u32 %v702, 16
      %v706 = vshll.u32 %v702, 16
      %v708 = vrot.slane %v706, 1
      %v709 = vor.u32 %v704, %v708
      %v711 = vsel %vm289, %v691, 0
      %v714 = vsel %vm289, %v693, 0
      %v717 = vsel %vm289, %v695, 0
      %v720 = vsel %vm289, %v697, 0
      %v723 = vsel %vm289, %v699, 0
      %v726 = vand.u32 %v709, %v308
      %728 = vmatprep.subr.bf16.mxu0 0
      %729 = vmatpush1.bf16.msra.mxu0 %v726
      %730 = vmatprep.subr.bf16.mxu0 0
      %731 = vmatpush1.bf16.msra.mxu0 0
      %732 = vmatprep.subr.bf16.mxu0 0
      %733 = vmatpush1.bf16.msra.mxu0 0
      %734 = vmatprep.subr.bf16.mxu0 0
      %735 = vmatpush1.bf16.msra.mxu0 0
      %736 = vmatprep.subr.bf16.mxu0 0
      %737 = vmatpush1.bf16.msra.mxu0 0
      %738 = vmatprep.subr.bf16.mxu0 0
      %739 = vmatpush1.bf16.msra.mxu0 0
      %740 = vmatprep.subr.bf16.mxu0 0
      %741 = vmatpush1.bf16.msra.mxu0 0
      %742 = vmatprep.subr.bf16.mxu0 0
      %743 = vmatpush1.bf16.msra.mxu0 0
      %744 = vmatprep.subr.bf16.mxu0 0
      %745 = vmatpush1.bf16.msra.mxu0 0
      %746 = vmatprep.subr.bf16.mxu0 0
      %747 = vmatpush1.bf16.msra.mxu0 0
      %748 = vmatprep.subr.bf16.mxu0 0
      %749 = vmatpush1.bf16.msra.mxu0 0
      %750 = vmatprep.subr.bf16.mxu0 0
      %751 = vmatpush1.bf16.msra.mxu0 0
      %752 = vmatprep.subr.bf16.mxu0 0
      %753 = vmatpush1.bf16.msra.mxu0 0
      %754 = vmatprep.subr.bf16.mxu0 0
      %755 = vmatpush1.bf16.msra.mxu0 0
      %756 = vmatprep.subr.bf16.mxu0 0
      %757 = vmatpush1.bf16.msra.mxu0 0
      %758 = vmatprep.subr.bf16.mxu0 0
      %759 = vmatpush1.bf16.msra.mxu0 0
      %760 = vmatprep.mubr.bf16.mxu0 0
      %761 = vmatmul.mubr.bf16.gmra.mrb[0].mxu0 %v711
      %v762 = vpop.f32.mrb[0].mxu0
      %v763 = vadd.f32 0.0, %v762
      %v764 = vpop.f32.mrb[0].mxu0
      %v765 = vpop.f32.mrb[0].mxu0
      %v766 = vadd.f32 0.0, %v765
      %v767 = vpop.f32.mrb[0].mxu0
      %768 = vmatprep.mubr.bf16.mxu0 0
      %769 = vmatmul.mubr.bf16.gmra.mrb[0].mxu0 %v714
      %v770 = vpop.f32.mrb[0].mxu0
      %v771 = vadd.f32 0.0, %v770
      %v772 = vpop.f32.mrb[0].mxu0
      %v773 = vpop.f32.mrb[0].mxu0
      %v774 = vadd.f32 0.0, %v773
      %v775 = vpop.f32.mrb[0].mxu0
      %776 = vmatprep.mubr.bf16.mxu0 0
      %777 = vmatmul.mubr.bf16.gmra.mrb[0].mxu0 %v717
      %v778 = vpop.f32.mrb[0].mxu0
      %v779 = vadd.f32 0.0, %v778
      %v780 = vpop.f32.mrb[0].mxu0
      %v781 = vpop.f32.mrb[0].mxu0
      %v782 = vadd.f32 0.0, %v781
      %v783 = vpop.f32.mrb[0].mxu0
      %784 = vmatprep.mubr.bf16.mxu0 0
      %785 = vmatmul.mubr.bf16.gmra.mrb[0].mxu0 %v720
      %v786 = vpop.f32.mrb[0].mxu0
      %v787 = vadd.f32 0.0, %v786
      %v788 = vpop.f32.mrb[0].mxu0
      %v789 = vpop.f32.mrb[0].mxu0
      %v790 = vadd.f32 0.0, %v789
      %v791 = vpop.f32.mrb[0].mxu0
      %792 = vmatprep.mubr.bf16.mxu0 0
      %793 = vmatmul.mubr.bf16.gmra.mrb[0].mxu0 %v723
      %v794 = vpop.f32.mrb[0].mxu0
      %v795 = vadd.f32 0.0, %v794
      %v796 = vpop.f32.mrb[0].mxu0
      %v797 = vpop.f32.mrb[0].mxu0
      %v798 = vadd.f32 0.0, %v797
      %v799 = vpop.f32.mrb[0].mxu0
      %800 = vdwg.mxu0
      %v801 = vadd.f32 %v673, %v763
      %v802 = vadd.f32 %v674, %v766
      %v803 = vadd.f32 %v675, %v771
      %v804 = vadd.f32 %v676, %v774
      %v805 = vadd.f32 %v677, %v779
      %v806 = vadd.f32 %v678, %v782
      %v807 = vadd.f32 %v679, %v787
      %v808 = vadd.f32 %v680, %v790
      %v809 = vadd.f32 %v681, %v795
      %v810 = vadd.f32 %v682, %v798
      %v811 = vld [vmem:[%s165 + $0x3c] sm:$0xf]
      %v812 = vld [vmem:[%s165 + $0x40] sm:$0xf]
      %v813 = vld [vmem:[%s165 + $0x44] sm:$0xf]
      %v814 = vld [vmem:[%s165 + $0x48] sm:$0xf]
      %v815 = vld [vmem:[%s165 + $0x4c] sm:$0xf]
      %v816 = vld [vmem:[%s165 + $0x50] sm:$0xf]
      %v817 = vld [vmem:[%s165 + $0x54] sm:$0xf]
      %v818 = vld [vmem:[%s165 + $0x58] sm:$0xf]
      %v819 = vld [vmem:[%s165 + $0x5c] sm:$0xf]
      %v820 = vld [vmem:[%s165 + $0x60] sm:$0xf]
      %v821 = vld [vmem:[%s1 + $0x4] sm:$0xc]
      %v832 = vunpack.c.l.b16 %v811
      %v833 = vunpack.c.l.b16 %v812
      %v834 = vunpack.c.l.b16 %v813
      %v835 = vunpack.c.l.b16 %v814
      %v836 = vunpack.c.l.b16 %v815
      %v837 = vunpack.c.l.b16 %v816
      %v838 = vunpack.c.l.b16 %v817
      %v839 = vunpack.c.l.b16 %v818
      %v840 = vunpack.c.l.b16 %v819
      %v841 = vunpack.c.l.b16 %v820
      %v842 = vpack.c.b16 %v833, %v832
      %v843 = vpack.c.b16 %v835, %v834
      %v844 = vpack.c.b16 %v837, %v836
      %v845 = vpack.c.b16 %v839, %v838
      %v846 = vpack.c.b16 %v841, %v840
      %v848 = vunpack.c.l.b16 %v821
      %v849 = vpack.c.b16 %v848, %v848
      %v850 = vrot.slane %v849, 2
      %v852 = vsel %vm289, %v842, 0
      %v855 = vsel %vm289, %v843, 0
      %v858 = vsel %vm289, %v844, 0
      %v861 = vsel %vm289, %v845, 0
      %v864 = vsel %vm289, %v846, 0
      %v867 = vand.u32 %v850, %v308
      %869 = vmatprep.subr.bf16.mxu0 0
      %870 = vmatpush1.bf16.msra.mxu0 %v867
      %871 = vmatprep.subr.bf16.mxu0 0
      %872 = vmatpush1.bf16.msra.mxu0 0
      %873 = vmatprep.subr.bf16.mxu0 0
      %874 = vmatpush1.bf16.msra.mxu0 0
      %875 = vmatprep.subr.bf16.mxu0 0
      %876 = vmatpush1.bf16.msra.mxu0 0
      %877 = vmatprep.subr.bf16.mxu0 0
      %878 = vmatpush1.bf16.msra.mxu0 0
      %879 = vmatprep.subr.bf16.mxu0 0
      %880 = vmatpush1.bf16.msra.mxu0 0
      %881 = vmatprep.subr.bf16.mxu0 0
      %882 = vmatpush1.bf16.msra.mxu0 0
      %883 = vmatprep.subr.bf16.mxu0 0
      %884 = vmatpush1.bf16.msra.mxu0 0
      %885 = vmatprep.subr.bf16.mxu0 0
      %886 = vmatpush1.bf16.msra.mxu0 0
      %887 = vmatprep.subr.bf16.mxu0 0
      %888 = vmatpush1.bf16.msra.mxu0 0
      %889 = vmatprep.subr.bf16.mxu0 0
      %890 = vmatpush1.bf16.msra.mxu0 0
      %891 = vmatprep.subr.bf16.mxu0 0
      %892 = vmatpush1.bf16.msra.mxu0 0
      %893 = vmatprep.subr.bf16.mxu0 0
      %894 = vmatpush1.bf16.msra.mxu0 0
      %895 = vmatprep.subr.bf16.mxu0 0
      %896 = vmatpush1.bf16.msra.mxu0 0
      %897 = vmatprep.subr.bf16.mxu0 0
      %898 = vmatpush1.bf16.msra.mxu0 0
      %899 = vmatprep.subr.bf16.mxu0 0
      %900 = vmatpush1.bf16.msra.mxu0 0
      %901 = vmatprep.mubr.bf16.mxu0 0
      %902 = vmatmul.mubr.bf16.gmra.mrb[0].mxu0 %v852
      %v903 = vpop.f32.mrb[0].mxu0
      %v904 = vadd.f32 0.0, %v903
      %v905 = vpop.f32.mrb[0].mxu0
      %v906 = vpop.f32.mrb[0].mxu0
      %v907 = vadd.f32 0.0, %v906
      %v908 = vpop.f32.mrb[0].mxu0
      %909 = vmatprep.mubr.bf16.mxu0 0
      %910 = vmatmul.mubr.bf16.gmra.mrb[0].mxu0 %v855
      %v911 = vpop.f32.mrb[0].mxu0
      %v912 = vadd.f32 0.0, %v911
      %v913 = vpop.f32.mrb[0].mxu0
      %v914 = vpop.f32.mrb[0].mxu0
      %v915 = vadd.f32 0.0, %v914
      %v916 = vpop.f32.mrb[0].mxu0
      %917 = vmatprep.mubr.bf16.mxu0 0
      %918 = vmatmul.mubr.bf16.gmra.mrb[0].mxu0 %v858
      %v919 = vpop.f32.mrb[0].mxu0
      %v920 = vadd.f32 0.0, %v919
      %v921 = vpop.f32.mrb[0].mxu0
      %v922 = vpop.f32.mrb[0].mxu0
      %v923 = vadd.f32 0.0, %v922
      %v924 = vpop.f32.mrb[0].mxu0
      %925 = vmatprep.mubr.bf16.mxu0 0
      %926 = vmatmul.mubr.bf16.gmra.mrb[0].mxu0 %v861
      %v927 = vpop.f32.mrb[0].mxu0
      %v928 = vadd.f32 0.0, %v927
      %v929 = vpop.f32.mrb[0].mxu0
      %v930 = vpop.f32.mrb[0].mxu0
      %v931 = vadd.f32 0.0, %v930
      %v932 = vpop.f32.mrb[0].mxu0
      %933 = vmatprep.mubr.bf16.mxu0 0
      %934 = vmatmul.mubr.bf16.gmra.mrb[0].mxu0 %v864
      %v935 = vpop.f32.mrb[0].mxu0
      %v936 = vadd.f32 0.0, %v935
      %v937 = vpop.f32.mrb[0].mxu0
      %v938 = vpop.f32.mrb[0].mxu0
      %v939 = vadd.f32 0.0, %v938
      %v940 = vpop.f32.mrb[0].mxu0
      %941 = vdwg.mxu0
      %v942 = vadd.f32 %v801, %v904
      %v943 = vadd.f32 %v802, %v907
      %v944 = vadd.f32 %v803, %v912
      %v945 = vadd.f32 %v804, %v915
      %v946 = vadd.f32 %v805, %v920
      %v947 = vadd.f32 %v806, %v923
      %v948 = vadd.f32 %v807, %v928
      %v949 = vadd.f32 %v808, %v931
      %v950 = vadd.f32 %v809, %v936
      %v951 = vadd.f32 %v810, %v939
      %v952 = vld [vmem:[%s165 + $0x4] sm:$0xe]
      %v953 = vld [vmem:[%s165 + $0x8] sm:$0xf]
      %v954 = vld [vmem:[%s165 + $0xc] sm:$0xf]
      %v955 = vld [vmem:[%s165 + $0x10] sm:$0xf]
      %v956 = vld [vmem:[%s165 + $0x14] sm:$0xf]
      %v957 = vld [vmem:[%s165 + $0x18] sm:$0xf]
      %v958 = vld [vmem:[%s165 + $0x1c] sm:$0xf]
      %v959 = vld [vmem:[%s165 + $0x20] sm:$0xf]
      %v960 = vld [vmem:[%s165 + $0x24] sm:$0xf]
      %v961 = vld [vmem:[%s165 + $0x28] sm:$0xf]
      %v962 = vld [vmem:[%s165 + $0x2c] sm:$0x3]
      %v963 = vld [vmem:[%s1 + $0x4] sm:$0x8]
      %v964 = vld [vmem:[%s1 + $0x8] sm:$0x1]
      %v976 = vunpack.c.l.b16 %v952
      %v977 = vunpack.c.l.b16 %v953
      %v978 = vunpack.c.l.b16 %v954
      %v979 = vunpack.c.l.b16 %v955
      %v980 = vunpack.c.l.b16 %v956
      %v981 = vunpack.c.l.b16 %v957
      %v982 = vunpack.c.l.b16 %v958
      %v983 = vunpack.c.l.b16 %v959
      %v984 = vunpack.c.l.b16 %v960
      %v985 = vunpack.c.l.b16 %v961
      %v986 = vunpack.c.l.b16 %v962
      %v987 = vpack.c.b16 %v977, %v976
      %v988 = vpack.c.b16 %v979, %v978
      %v989 = vpack.c.b16 %v981, %v980
      %v990 = vpack.c.b16 %v983, %v982
      %v991 = vpack.c.b16 %v985, %v984
      %v992 = vpack.c.b16 %v986, %v986
      %v994 = vshrl.u32 %v987, 16
      %v996 = vrot.slane %v994, 1
      %v997 = vshll.u32 %v987, 16
      %v999 = vrot.slane %v997, 2
      %v1000 = vor.u32 %v996, %v999
      %v1002 = vshrl.u32 %v988, 16
      %v1004 = vrot.slane %v1002, 1
      %v1005 = vshll.u32 %v988, 16
      %v1007 = vrot.slane %v1005, 2
      %v1008 = vor.u32 %v1004, %v1007
      %v1009 = vsel %vm522, %v1000, %v1008
      %v1011 = vshrl.u32 %v989, 16
      %v1013 = vrot.slane %v1011, 1
      %v1014 = vshll.u32 %v989, 16
      %v1016 = vrot.slane %v1014, 2
      %v1017 = vor.u32 %v1013, %v1016
      %v1018 = vsel %vm522, %v1008, %v1017
      %v1020 = vshrl.u32 %v990, 16
      %v1022 = vrot.slane %v1020, 1
      %v1023 = vshll.u32 %v990, 16
      %v1025 = vrot.slane %v1023, 2
      %v1026 = vor.u32 %v1022, %v1025
      %v1027 = vsel %vm522, %v1017, %v1026
      %v1029 = vshrl.u32 %v991, 16
      %v1031 = vrot.slane %v1029, 1
      %v1032 = vshll.u32 %v991, 16
      %v1034 = vrot.slane %v1032, 2
      %v1035 = vor.u32 %v1031, %v1034
      %v1036 = vsel %vm522, %v1026, %v1035
      %v1038 = vshrl.u32 %v992, 16
      %v1040 = vrot.slane %v1038, 1
      %v1041 = vshll.u32 %v992, 16
      %v1043 = vrot.slane %v1041, 2
      %v1044 = vor.u32 %v1040, %v1043
      %v1045 = vsel %vm522, %v1035, %v1044
      %v1048 = vunpack.c.l.b16 %v963
      %v1049 = vunpack.c.l.b16 %v964
      %v1050 = vpack.c.b16 %v1049, %v1048
      %v1052 = vshrl.u32 %v1050, 16
      %v1054 = vrot.slane %v1052, 3
      %v1055 = vshll.u32 %v1050, 16
      %v1057 = vrot.slane %v1055, 4
      %v1058 = vor.u32 %v1054, %v1057
      %v1060 = vsel %vm289, %v1009, 0
      %v1063 = vsel %vm289, %v1018, 0
      %v1066 = vsel %vm289, %v1027, 0
      %v1069 = vsel %vm289, %v1036, 0
      %v1072 = vsel %vm289, %v1045, 0
      %v1075 = vand.u32 %v1058, %v308
      %1077 = vmatprep.subr.bf16.mxu0 0
      %1078 = vmatpush1.bf16.msra.mxu0 %v1075
      %1079 = vmatprep.subr.bf16.mxu0 0
      %1080 = vmatpush1.bf16.msra.mxu0 0
      %1081 = vmatprep.subr.bf16.mxu0 0
      %1082 = vmatpush1.bf16.msra.mxu0 0
      %1083 = vmatprep.subr.bf16.mxu0 0
      %1084 = vmatpush1.bf16.msra.mxu0 0
      %1085 = vmatprep.subr.bf16.mxu0 0
      %1086 = vmatpush1.bf16.msra.mxu0 0
      %1087 = vmatprep.subr.bf16.mxu0 0
      %1088 = vmatpush1.bf16.msra.mxu0 0
      %1089 = vmatprep.subr.bf16.mxu0 0
      %1090 = vmatpush1.bf16.msra.mxu0 0
      %1091 = vmatprep.subr.bf16.mxu0 0
      %1092 = vmatpush1.bf16.msra.mxu0 0
      %1093 = vmatprep.subr.bf16.mxu0 0
      %1094 = vmatpush1.bf16.msra.mxu0 0
      %1095 = vmatprep.subr.bf16.mxu0 0
      %1096 = vmatpush1.bf16.msra.mxu0 0
      %1097 = vmatprep.subr.bf16.mxu0 0
      %1098 = vmatpush1.bf16.msra.mxu0 0
      %1099 = vmatprep.subr.bf16.mxu0 0
      %1100 = vmatpush1.bf16.msra.mxu0 0
      %1101 = vmatprep.subr.bf16.mxu0 0
      %1102 = vmatpush1.bf16.msra.mxu0 0
      %1103 = vmatprep.subr.bf16.mxu0 0
      %1104 = vmatpush1.bf16.msra.mxu0 0
      %1105 = vmatprep.subr.bf16.mxu0 0
      %1106 = vmatpush1.bf16.msra.mxu0 0
      %1107 = vmatprep.subr.bf16.mxu0 0
      %1108 = vmatpush1.bf16.msra.mxu0 0
      %1109 = vmatprep.mubr.bf16.mxu0 0
      %1110 = vmatmul.mubr.bf16.gmra.mrb[0].mxu0 %v1060
      %v1111 = vpop.f32.mrb[0].mxu0
      %v1112 = vadd.f32 0.0, %v1111
      %v1113 = vpop.f32.mrb[0].mxu0
      %v1114 = vpop.f32.mrb[0].mxu0
      %v1115 = vadd.f32 0.0, %v1114
      %v1116 = vpop.f32.mrb[0].mxu0
      %1117 = vmatprep.mubr.bf16.mxu0 0
      %1118 = vmatmul.mubr.bf16.gmra.mrb[0].mxu0 %v1063
      %v1119 = vpop.f32.mrb[0].mxu0
      %v1120 = vadd.f32 0.0, %v1119
      %v1121 = vpop.f32.mrb[0].mxu0
      %v1122 = vpop.f32.mrb[0].mxu0
      %v1123 = vadd.f32 0.0, %v1122
      %v1124 = vpop.f32.mrb[0].mxu0
      %1125 = vmatprep.mubr.bf16.mxu0 0
      %1126 = vmatmul.mubr.bf16.gmra.mrb[0].mxu0 %v1066
      %v1127 = vpop.f32.mrb[0].mxu0
      %v1128 = vadd.f32 0.0, %v1127
      %v1129 = vpop.f32.mrb[0].mxu0
      %v1130 = vpop.f32.mrb[0].mxu0
      %v1131 = vadd.f32 0.0, %v1130
      %v1132 = vpop.f32.mrb[0].mxu0
      %1133 = vmatprep.mubr.bf16.mxu0 0
      %1134 = vmatmul.mubr.bf16.gmra.mrb[0].mxu0 %v1069
      %v1135 = vpop.f32.mrb[0].mxu0
      %v1136 = vadd.f32 0.0, %v1135
      %v1137 = vpop.f32.mrb[0].mxu0
      %v1138 = vpop.f32.mrb[0].mxu0
      %v1139 = vadd.f32 0.0, %v1138
      %v1140 = vpop.f32.mrb[0].mxu0
      %1141 = vmatprep.mubr.bf16.mxu0 0
      %1142 = vmatmul.mubr.bf16.gmra.mrb[0].mxu0 %v1072
      %v1143 = vpop.f32.mrb[0].mxu0
      %v1144 = vadd.f32 0.0, %v1143
      %v1145 = vpop.f32.mrb[0].mxu0
      %v1146 = vpop.f32.mrb[0].mxu0
      %v1147 = vadd.f32 0.0, %v1146
      %v1148 = vpop.f32.mrb[0].mxu0
      %1149 = vdwg.mxu0
      %v1150 = vadd.f32 %v942, %v1112
      %v1151 = vadd.f32 %v943, %v1115
      %v1152 = vadd.f32 %v944, %v1120
      %v1153 = vadd.f32 %v945, %v1123
      %v1154 = vadd.f32 %v946, %v1128
      %v1155 = vadd.f32 %v947, %v1131
      %v1156 = vadd.f32 %v948, %v1136
      %v1157 = vadd.f32 %v949, %v1139
      %v1158 = vadd.f32 %v950, %v1144
      %v1159 = vadd.f32 %v951, %v1147
      %v1160 = vld [vmem:[%s165 + $0x3c] sm:$0xf]
      %v1161 = vld [vmem:[%s165 + $0x40] sm:$0xf]
      %v1162 = vld [vmem:[%s165 + $0x44] sm:$0xf]
      %v1163 = vld [vmem:[%s165 + $0x48] sm:$0xf]
      %v1164 = vld [vmem:[%s165 + $0x4c] sm:$0xf]
      %v1165 = vld [vmem:[%s165 + $0x50] sm:$0xf]
      %v1166 = vld [vmem:[%s165 + $0x54] sm:$0xf]
      %v1167 = vld [vmem:[%s165 + $0x58] sm:$0xf]
      %v1168 = vld [vmem:[%s165 + $0x5c] sm:$0xf]
      %v1169 = vld [vmem:[%s165 + $0x60] sm:$0xf]
      %v1170 = vld [vmem:[%s165 + $0x64] sm:$0x1]
      %v1171 = vld [vmem:[%s1 + $0x8] sm:$0x6]
      %v1183 = vunpack.c.l.b16 %v1160
      %v1184 = vunpack.c.l.b16 %v1161
      %v1185 = vunpack.c.l.b16 %v1162
      %v1186 = vunpack.c.l.b16 %v1163
      %v1187 = vunpack.c.l.b16 %v1164
      %v1188 = vunpack.c.l.b16 %v1165
      %v1189 = vunpack.c.l.b16 %v1166
      %v1190 = vunpack.c.l.b16 %v1167
      %v1191 = vunpack.c.l.b16 %v1168
      %v1192 = vunpack.c.l.b16 %v1169
      %v1193 = vunpack.c.l.b16 %v1170
      %v1194 = vpack.c.b16 %v1184, %v1183
      %v1195 = vpack.c.b16 %v1186, %v1185
      %v1196 = vpack.c.b16 %v1188, %v1187
      %v1197 = vpack.c.b16 %v1190, %v1189
      %v1198 = vpack.c.b16 %v1192, %v1191
      %v1199 = vpack.c.b16 %v1193, %v1193
      %vm1200 = vsmask.f32 7424
      %v1202 = vshrl.u32 %v1194, 16
      %v1204 = vshll.u32 %v1194, 16
      %v1206 = vrot.slane %v1204, 1
      %v1207 = vor.u32 %v1202, %v1206
      %v1209 = vshll.u32 %v1195, 16
      %v1211 = vrot.slane %v1209, 1
      %v1212 = vsel %vm1200, %v1207, %v1211
      %v1213 = vshrl.u32 %v1195, 16
      %v1215 = vor.u32 %v1213, %v1211
      %v1217 = vshll.u32 %v1196, 16
      %v1219 = vrot.slane %v1217, 1
      %v1220 = vsel %vm1200, %v1215, %v1219
      %v1221 = vshrl.u32 %v1196, 16
      %v1223 = vor.u32 %v1221, %v1219
      %v1225 = vshll.u32 %v1197, 16
      %v1227 = vrot.slane %v1225, 1
      %v1228 = vsel %vm1200, %v1223, %v1227
      %v1229 = vshrl.u32 %v1197, 16
      %v1231 = vor.u32 %v1229, %v1227
      %v1233 = vshll.u32 %v1198, 16
      %v1235 = vrot.slane %v1233, 1
      %v1236 = vsel %vm1200, %v1231, %v1235
      %v1237 = vshrl.u32 %v1198, 16
      %v1239 = vor.u32 %v1237, %v1235
      %v1241 = vshll.u32 %v1199, 16
      %v1243 = vrot.slane %v1241, 1
      %v1244 = vsel %vm1200, %v1239, %v1243
      %v1246 = vunpack.c.l.b16 %v1171
      %v1247 = vpack.c.b16 %v1246, %v1246
      %v1248 = vrot.slane %v1247, 1
      %v1250 = vsel %vm289, %v1212, 0
      %v1253 = vsel %vm289, %v1220, 0
      %v1256 = vsel %vm289, %v1228, 0
      %v1259 = vsel %vm289, %v1236, 0
      %v1262 = vsel %vm289, %v1244, 0
      %v1265 = vand.u32 %v1248, %v308
      %1267 = vmatprep.subr.bf16.mxu0 0
      %1268 = vmatpush1.bf16.msra.mxu0 %v1265
      %1269 = vmatprep.subr.bf16.mxu0 0
      %1270 = vmatpush1.bf16.msra.mxu0 0
      %1271 = vmatprep.subr.bf16.mxu0 0
      %1272 = vmatpush1.bf16.msra.mxu0 0
      %1273 = vmatprep.subr.bf16.mxu0 0
      %1274 = vmatpush1.bf16.msra.mxu0 0
      %1275 = vmatprep.subr.bf16.mxu0 0
      %1276 = vmatpush1.bf16.msra.mxu0 0
      %1277 = vmatprep.subr.bf16.mxu0 0
      %1278 = vmatpush1.bf16.msra.mxu0 0
      %1279 = vmatprep.subr.bf16.mxu0 0
      %1280 = vmatpush1.bf16.msra.mxu0 0
      %1281 = vmatprep.subr.bf16.mxu0 0
      %1282 = vmatpush1.bf16.msra.mxu0 0
      %1283 = vmatprep.subr.bf16.mxu0 0
      %1284 = vmatpush1.bf16.msra.mxu0 0
      %1285 = vmatprep.subr.bf16.mxu0 0
      %1286 = vmatpush1.bf16.msra.mxu0 0
      %1287 = vmatprep.subr.bf16.mxu0 0
      %1288 = vmatpush1.bf16.msra.mxu0 0
      %1289 = vmatprep.subr.bf16.mxu0 0
      %1290 = vmatpush1.bf16.msra.mxu0 0
      %1291 = vmatprep.subr.bf16.mxu0 0
      %1292 = vmatpush1.bf16.msra.mxu0 0
      %1293 = vmatprep.subr.bf16.mxu0 0
      %1294 = vmatpush1.bf16.msra.mxu0 0
      %1295 = vmatprep.subr.bf16.mxu0 0
      %1296 = vmatpush1.bf16.msra.mxu0 0
      %1297 = vmatprep.subr.bf16.mxu0 0
      %1298 = vmatpush1.bf16.msra.mxu0 0
      %1299 = vmatprep.mubr.bf16.mxu0 0
      %1300 = vmatmul.mubr.bf16.gmra.mrb[0].mxu0 %v1250
      %v1301 = vpop.f32.mrb[0].mxu0
      %v1302 = vadd.f32 0.0, %v1301
      %v1303 = vpop.f32.mrb[0].mxu0
      %v1304 = vpop.f32.mrb[0].mxu0
      %v1305 = vadd.f32 0.0, %v1304
      %v1306 = vpop.f32.mrb[0].mxu0
      %1307 = vmatprep.mubr.bf16.mxu0 0
      %1308 = vmatmul.mubr.bf16.gmra.mrb[0].mxu0 %v1253
      %v1309 = vpop.f32.mrb[0].mxu0
      %v1310 = vadd.f32 0.0, %v1309
      %v1311 = vpop.f32.mrb[0].mxu0
      %v1312 = vpop.f32.mrb[0].mxu0
      %v1313 = vadd.f32 0.0, %v1312
      %v1314 = vpop.f32.mrb[0].mxu0
      %1315 = vmatprep.mubr.bf16.mxu0 0
      %1316 = vmatmul.mubr.bf16.gmra.mrb[0].mxu0 %v1256
      %v1317 = vpop.f32.mrb[0].mxu0
      %v1318 = vadd.f32 0.0, %v1317
      %v1319 = vpop.f32.mrb[0].mxu0
      %v1320 = vpop.f32.mrb[0].mxu0
      %v1321 = vadd.f32 0.0, %v1320
      %v1322 = vpop.f32.mrb[0].mxu0
      %1323 = vmatprep.mubr.bf16.mxu0 0
      %1324 = vmatmul.mubr.bf16.gmra.mrb[0].mxu0 %v1259
      %v1325 = vpop.f32.mrb[0].mxu0
      %v1326 = vadd.f32 0.0, %v1325
      %v1327 = vpop.f32.mrb[0].mxu0
      %v1328 = vpop.f32.mrb[0].mxu0
      %v1329 = vadd.f32 0.0, %v1328
      %v1330 = vpop.f32.mrb[0].mxu0
      %1331 = vmatprep.mubr.bf16.mxu0 0
      %1332 = vmatmul.mubr.bf16.gmra.mrb[0].mxu0 %v1262
      %v1333 = vpop.f32.mrb[0].mxu0
      %v1334 = vadd.f32 0.0, %v1333
      %v1335 = vpop.f32.mrb[0].mxu0
      %v1336 = vpop.f32.mrb[0].mxu0
      %v1337 = vadd.f32 0.0, %v1336
      %v1338 = vpop.f32.mrb[0].mxu0
      %1339 = vdwg.mxu0
      %v1340 = vadd.f32 %v1150, %v1302
      %v1341 = vadd.f32 %v1151, %v1305
      %v1342 = vadd.f32 %v1152, %v1310
      %v1343 = vadd.f32 %v1153, %v1313
      %v1344 = vadd.f32 %v1154, %v1318
      %v1345 = vadd.f32 %v1155, %v1321
      %v1346 = vadd.f32 %v1156, %v1326
      %v1347 = vadd.f32 %v1157, %v1329
      %v1348 = vadd.f32 %v1158, %v1334
      %v1349 = vadd.f32 %v1159, %v1337
      %v1350 = vld [vmem:[%s165 + $0x4] sm:$0xc]
      %v1351 = vld [vmem:[%s1 + $0x8] sm:$0xc]
      %v1353 = vunpack.c.l.b16 %v1350
      %v1354 = vpack.c.b16 %v977, %v1353
      %vm1355 = vcmask 1045504
      %v1356 = vrot.slane %v1354, 2
      %v1357 = vrot.slane %v988, 2
      %v1358 = vsel %vm1355, %v1356, %v1357
      %v1359 = vrot.slane %v989, 2
      %v1360 = vsel %vm1355, %v1357, %v1359
      %v1361 = vrot.slane %v990, 2
      %v1362 = vsel %vm1355, %v1359, %v1361
      %v1363 = vrot.slane %v991, 2
      %v1364 = vsel %vm1355, %v1361, %v1363
      %v1365 = vrot.slane %v992, 2
      %v1366 = vsel %vm1355, %v1363, %v1365
      %v1368 = vunpack.c.l.b16 %v1351
      %v1369 = vpack.c.b16 %v1368, %v1368
      %v1371 = vshrl.u32 %v1369, 16
      %v1373 = vrot.slane %v1371, 2
      %v1374 = vshll.u32 %v1369, 16
      %v1376 = vrot.slane %v1374, 3
      %v1377 = vor.u32 %v1373, %v1376
      %v1379 = vsel %vm289, %v1358, 0
      %v1382 = vsel %vm289, %v1360, 0
      %v1385 = vsel %vm289, %v1362, 0
      %v1388 = vsel %vm289, %v1364, 0
      %v1391 = vsel %vm289, %v1366, 0
      %v1394 = vand.u32 %v1377, %v308
      %1396 = vmatprep.subr.bf16.mxu0 0
      %1397 = vmatpush1.bf16.msra.mxu0 %v1394
      %1398 = vmatprep.subr.bf16.mxu0 0
      %1399 = vmatpush1.bf16.msra.mxu0 0
      %1400 = vmatprep.subr.bf16.mxu0 0
      %1401 = vmatpush1.bf16.msra.mxu0 0
      %1402 = vmatprep.subr.bf16.mxu0 0
      %1403 = vmatpush1.bf16.msra.mxu0 0
      %1404 = vmatprep.subr.bf16.mxu0 0
      %1405 = vmatpush1.bf16.msra.mxu0 0
      %1406 = vmatprep.subr.bf16.mxu0 0
      %1407 = vmatpush1.bf16.msra.mxu0 0
      %1408 = vmatprep.subr.bf16.mxu0 0
      %1409 = vmatpush1.bf16.msra.mxu0 0
      %1410 = vmatprep.subr.bf16.mxu0 0
      %1411 = vmatpush1.bf16.msra.mxu0 0
      %1412 = vmatprep.subr.bf16.mxu0 0
      %1413 = vmatpush1.bf16.msra.mxu0 0
      %1414 = vmatprep.subr.bf16.mxu0 0
      %1415 = vmatpush1.bf16.msra.mxu0 0
      %1416 = vmatprep.subr.bf16.mxu0 0
      %1417 = vmatpush1.bf16.msra.mxu0 0
      %1418 = vmatprep.subr.bf16.mxu0 0
      %1419 = vmatpush1.bf16.msra.mxu0 0
      %1420 = vmatprep.subr.bf16.mxu0 0
      %1421 = vmatpush1.bf16.msra.mxu0 0
      %1422 = vmatprep.subr.bf16.mxu0 0
      %1423 = vmatpush1.bf16.msra.mxu0 0
      %1424 = vmatprep.subr.bf16.mxu0 0
      %1425 = vmatpush1.bf16.msra.mxu0 0
      %1426 = vmatprep.subr.bf16.mxu0 0
      %1427 = vmatpush1.bf16.msra.mxu0 0
      %1428 = vmatprep.mubr.bf16.mxu0 0
      %1429 = vmatmul.mubr.bf16.gmra.mrb[0].mxu0 %v1379
      %v1430 = vpop.f32.mrb[0].mxu0
      %v1431 = vadd.f32 0.0, %v1430
      %v1432 = vpop.f32.mrb[0].mxu0
      %v1433 = vpop.f32.mrb[0].mxu0
      %v1434 = vadd.f32 0.0, %v1433
      %v1435 = vpop.f32.mrb[0].mxu0
      %1436 = vmatprep.mubr.bf16.mxu0 0
      %1437 = vmatmul.mubr.bf16.gmra.mrb[0].mxu0 %v1382
      %v1438 = vpop.f32.mrb[0].mxu0
      %v1439 = vadd.f32 0.0, %v1438
      %v1440 = vpop.f32.mrb[0].mxu0
      %v1441 = vpop.f32.mrb[0].mxu0
      %v1442 = vadd.f32 0.0, %v1441
      %v1443 = vpop.f32.mrb[0].mxu0
      %1444 = vmatprep.mubr.bf16.mxu0 0
      %1445 = vmatmul.mubr.bf16.gmra.mrb[0].mxu0 %v1385
      %v1446 = vpop.f32.mrb[0].mxu0
      %v1447 = vadd.f32 0.0, %v1446
      %v1448 = vpop.f32.mrb[0].mxu0
      %v1449 = vpop.f32.mrb[0].mxu0
      %v1450 = vadd.f32 0.0, %v1449
      %v1451 = vpop.f32.mrb[0].mxu0
      %1452 = vmatprep.mubr.bf16.mxu0 0
      %1453 = vmatmul.mubr.bf16.gmra.mrb[0].mxu0 %v1388
      %v1454 = vpop.f32.mrb[0].mxu0
      %v1455 = vadd.f32 0.0, %v1454
      %v1456 = vpop.f32.mrb[0].mxu0
      %v1457 = vpop.f32.mrb[0].mxu0
      %v1458 = vadd.f32 0.0, %v1457
      %v1459 = vpop.f32.mrb[0].mxu0
      %1460 = vmatprep.mubr.bf16.mxu0 0
      %1461 = vmatmul.mubr.bf16.gmra.mrb[0].mxu0 %v1391
      %v1462 = vpop.f32.mrb[0].mxu0
      %v1463 = vadd.f32 0.0, %v1462
      %v1464 = vpop.f32.mrb[0].mxu0
      %v1465 = vpop.f32.mrb[0].mxu0
      %v1466 = vadd.f32 0.0, %v1465
      %v1467 = vpop.f32.mrb[0].mxu0
      %1468 = vdwg.mxu0
      %v1469 = vadd.f32 %v1340, %v1431
      %v1470 = vadd.f32 %v1341, %v1434
      %v1471 = vadd.f32 %v1342, %v1439
      %v1472 = vadd.f32 %v1343, %v1442
      %v1473 = vadd.f32 %v1344, %v1447
      %v1474 = vadd.f32 %v1345, %v1450
      %v1475 = vadd.f32 %v1346, %v1455
      %v1476 = vadd.f32 %v1347, %v1458
      %v1477 = vadd.f32 %v1348, %v1463
      %v1478 = vadd.f32 %v1349, %v1466
      %v1479 = vld [vmem:[%s165 + $0xa8] sm:$0xc]
      %v1480 = vld [vmem:[%s165 + $0xac] sm:$0xf]
      %v1481 = vld [vmem:[%s165 + $0xb0] sm:$0xf]
      %v1482 = vld [vmem:[%s165 + $0xb4] sm:$0xf]
      %v1483 = vld [vmem:[%s165 + $0xb8] sm:$0xf]
      %v1484 = vld [vmem:[%s165 + $0xbc] sm:$0xf]
      %v1485 = vld [vmem:[%s165 + $0xc0] sm:$0xf]
      %v1486 = vld [vmem:[%s165 + $0xc4] sm:$0xf]
      %v1487 = vld [vmem:[%s165 + $0xc8] sm:$0xf]
      %v1488 = vld [vmem:[%s165 + $0xcc] sm:$0xf]
      %v1489 = vld [vmem:[%s165 + $0xd0] sm:$0x3]
      %v1490 = vld [vmem:[%s1 + $0xc] sm:$0x3]
      %v1502 = vunpack.c.l.b16 %v1479
      %v1503 = vunpack.c.l.b16 %v1480
      %v1504 = vunpack.c.l.b16 %v1481
      %v1505 = vunpack.c.l.b16 %v1482
      %v1506 = vunpack.c.l.b16 %v1483
      %v1507 = vunpack.c.l.b16 %v1484
      %v1508 = vunpack.c.l.b16 %v1485
      %v1509 = vunpack.c.l.b16 %v1486
      %v1510 = vunpack.c.l.b16 %v1487
      %v1511 = vunpack.c.l.b16 %v1488
      %v1512 = vunpack.c.l.b16 %v1489
      %v1513 = vpack.c.b16 %v1503, %v1502
      %v1514 = vpack.c.b16 %v1505, %v1504
      %v1515 = vpack.c.b16 %v1507, %v1506
      %v1516 = vpack.c.b16 %v1509, %v1508
      %v1517 = vpack.c.b16 %v1511, %v1510
      %v1518 = vpack.c.b16 %v1512, %v1512
      %v1519 = vrot.slane %v1513, 2
      %v1520 = vrot.slane %v1514, 2
      %v1521 = vsel %vm1355, %v1519, %v1520
      %v1522 = vrot.slane %v1515, 2
      %v1523 = vsel %vm1355, %v1520, %v1522
      %v1524 = vrot.slane %v1516, 2
      %v1525 = vsel %vm1355, %v1522, %v1524
      %v1526 = vrot.slane %v1517, 2
      %v1527 = vsel %vm1355, %v1524, %v1526
      %v1528 = vrot.slane %v1518, 2
      %v1529 = vsel %vm1355, %v1526, %v1528
      %v1531 = vsel %vm289, %v1521, 0
      %v1534 = vsel %vm289, %v1523, 0
      %v1537 = vsel %vm289, %v1525, 0
      %v1540 = vsel %vm289, %v1527, 0
      %v1543 = vsel %vm289, %v1529, 0
      %v1546 = vand.u32 %v1490, %v308
      %1548 = vmatprep.subr.bf16.mxu0 0
      %1549 = vmatpush1.bf16.msra.mxu0 %v1546
      %1550 = vmatprep.subr.bf16.mxu0 0
      %1551 = vmatpush1.bf16.msra.mxu0 0
      %1552 = vmatprep.subr.bf16.mxu0 0
      %1553 = vmatpush1.bf16.msra.mxu0 0
      %1554 = vmatprep.subr.bf16.mxu0 0
      %1555 = vmatpush1.bf16.msra.mxu0 0
      %1556 = vmatprep.subr.bf16.mxu0 0
      %1557 = vmatpush1.bf16.msra.mxu0 0
      %1558 = vmatprep.subr.bf16.mxu0 0
      %1559 = vmatpush1.bf16.msra.mxu0 0
      %1560 = vmatprep.subr.bf16.mxu0 0
      %1561 = vmatpush1.bf16.msra.mxu0 0
      %1562 = vmatprep.subr.bf16.mxu0 0
      %1563 = vmatpush1.bf16.msra.mxu0 0
      %1564 = vmatprep.subr.bf16.mxu0 0
      %1565 = vmatpush1.bf16.msra.mxu0 0
      %1566 = vmatprep.subr.bf16.mxu0 0
      %1567 = vmatpush1.bf16.msra.mxu0 0
      %1568 = vmatprep.subr.bf16.mxu0 0
      %1569 = vmatpush1.bf16.msra.mxu0 0
      %1570 = vmatprep.subr.bf16.mxu0 0
      %1571 = vmatpush1.bf16.msra.mxu0 0
      %1572 = vmatprep.subr.bf16.mxu0 0
      %1573 = vmatpush1.bf16.msra.mxu0 0
      %1574 = vmatprep.subr.bf16.mxu0 0
      %1575 = vmatpush1.bf16.msra.mxu0 0
      %1576 = vmatprep.subr.bf16.mxu0 0
      %1577 = vmatpush1.bf16.msra.mxu0 0
      %1578 = vmatprep.subr.bf16.mxu0 0
      %1579 = vmatpush1.bf16.msra.mxu0 0
      %1580 = vmatprep.mubr.bf16.mxu0 0
      %1581 = vmatmul.mubr.bf16.gmra.mrb[0].mxu0 %v1531
      %v1582 = vpop.f32.mrb[0].mxu0
      %v1583 = vadd.f32 0.0, %v1582
      %v1584 = vpop.f32.mrb[0].mxu0
      %v1585 = vpop.f32.mrb[0].mxu0
      %v1586 = vadd.f32 0.0, %v1585
      %v1587 = vpop.f32.mrb[0].mxu0
      %1588 = vmatprep.mubr.bf16.mxu0 0
      %1589 = vmatmul.mubr.bf16.gmra.mrb[0].mxu0 %v1534
      %v1590 = vpop.f32.mrb[0].mxu0
      %v1591 = vadd.f32 0.0, %v1590
      %v1592 = vpop.f32.mrb[0].mxu0
      %v1593 = vpop.f32.mrb[0].mxu0
      %v1594 = vadd.f32 0.0, %v1593
      %v1595 = vpop.f32.mrb[0].mxu0
      %1596 = vmatprep.mubr.bf16.mxu0 0
      %1597 = vmatmul.mubr.bf16.gmra.mrb[0].mxu0 %v1537
      %v1598 = vpop.f32.mrb[0].mxu0
      %v1599 = vadd.f32 0.0, %v1598
      %v1600 = vpop.f32.mrb[0].mxu0
      %v1601 = vpop.f32.mrb[0].mxu0
      %v1602 = vadd.f32 0.0, %v1601
      %v1603 = vpop.f32.mrb[0].mxu0
      %1604 = vmatprep.mubr.bf16.mxu0 0
      %1605 = vmatmul.mubr.bf16.gmra.mrb[0].mxu0 %v1540
      %v1606 = vpop.f32.mrb[0].mxu0
      %v1607 = vadd.f32 0.0, %v1606
      %v1608 = vpop.f32.mrb[0].mxu0
      %v1609 = vpop.f32.mrb[0].mxu0
      %v1610 = vadd.f32 0.0, %v1609
      %v1611 = vpop.f32.mrb[0].mxu0
      %1612 = vmatprep.mubr.bf16.mxu0 0
      %1613 = vmatmul.mubr.bf16.gmra.mrb[0].mxu0 %v1543
      %v1614 = vpop.f32.mrb[0].mxu0
      %v1615 = vadd.f32 0.0, %v1614
      %v1616 = vpop.f32.mrb[0].mxu0
      %v1617 = vpop.f32.mrb[0].mxu0
      %v1618 = vadd.f32 0.0, %v1617
      %v1619 = vpop.f32.mrb[0].mxu0
      %1620 = vdwg.mxu0
      %v1621 = vadd.f32 %v1469, %v1583
      %v1622 = vadd.f32 %v1470, %v1586
      %v1623 = vadd.f32 %v1471, %v1591
      %v1624 = vadd.f32 %v1472, %v1594
      %v1625 = vadd.f32 %v1473, %v1599
      %v1626 = vadd.f32 %v1474, %v1602
      %v1627 = vadd.f32 %v1475, %v1607
      %v1628 = vadd.f32 %v1476, %v1610
      %v1629 = vadd.f32 %v1477, %v1615
      %v1630 = vadd.f32 %v1478, %v1618
      %v1631 = vld [vmem:[%s165 + $0x70] sm:$0x8]
      %v1632 = vld [vmem:[%s165 + $0x74] sm:$0xf]
      %v1633 = vld [vmem:[%s165 + $0x78] sm:$0xf]
      %v1634 = vld [vmem:[%s165 + $0x7c] sm:$0xf]
      %v1635 = vld [vmem:[%s165 + $0x80] sm:$0xf]
      %v1636 = vld [vmem:[%s165 + $0x84] sm:$0xf]
      %v1637 = vld [vmem:[%s165 + $0x88] sm:$0xf]
      %v1638 = vld [vmem:[%s165 + $0x8c] sm:$0xf]
      %v1639 = vld [vmem:[%s165 + $0x90] sm:$0xf]
      %v1640 = vld [vmem:[%s165 + $0x94] sm:$0xf]
      %v1641 = vld [vmem:[%s165 + $0x98] sm:$0xf]
      %v1642 = vld [vmem:[%s1 + $0xc] sm:$0x6]
      %v1654 = vunpack.c.l.b16 %v1631
      %v1655 = vunpack.c.l.b16 %v1632
      %v1656 = vunpack.c.l.b16 %v1633
      %v1657 = vunpack.c.l.b16 %v1634
      %v1658 = vunpack.c.l.b16 %v1635
      %v1659 = vunpack.c.l.b16 %v1636
      %v1660 = vunpack.c.l.b16 %v1637
      %v1661 = vunpack.c.l.b16 %v1638
      %v1662 = vunpack.c.l.b16 %v1639
      %v1663 = vunpack.c.l.b16 %v1640
      %v1664 = vunpack.c.l.b16 %v1641
      %v1665 = vpack.c.b16 %v1655, %v1654
      %v1666 = vpack.c.b16 %v1657, %v1656
      %v1667 = vpack.c.b16 %v1659, %v1658
      %v1668 = vpack.c.b16 %v1661, %v1660
      %v1669 = vpack.c.b16 %v1663, %v1662
      %v1670 = vpack.c.b16 %v1664, %v1664
      %vm1671 = vsmask.f32 4352
      %v1673 = vshrl.u32 %v1665, 16
      %v1675 = vrot.slane %v1673, 3
      %v1676 = vshll.u32 %v1665, 16
      %v1678 = vrot.slane %v1676, 4
      %v1679 = vor.u32 %v1675, %v1678
      %v1681 = vshrl.u32 %v1666, 16
      %v1683 = vrot.slane %v1681, 3
      %v1684 = vshll.u32 %v1666, 16
      %v1686 = vrot.slane %v1684, 4
      %v1687 = vor.u32 %v1683, %v1686
      %v1688 = vsel %vm1671, %v1679, %v1687
      %v1690 = vshrl.u32 %v1667, 16
      %v1692 = vrot.slane %v1690, 3
      %v1693 = vshll.u32 %v1667, 16
      %v1695 = vrot.slane %v1693, 4
      %v1696 = vor.u32 %v1692, %v1695
      %v1697 = vsel %vm1671, %v1687, %v1696
      %v1699 = vshrl.u32 %v1668, 16
      %v1701 = vrot.slane %v1699, 3
      %v1702 = vshll.u32 %v1668, 16
      %v1704 = vrot.slane %v1702, 4
      %v1705 = vor.u32 %v1701, %v1704
      %v1706 = vsel %vm1671, %v1696, %v1705
      %v1708 = vshrl.u32 %v1669, 16
      %v1710 = vrot.slane %v1708, 3
      %v1711 = vshll.u32 %v1669, 16
      %v1713 = vrot.slane %v1711, 4
      %v1714 = vor.u32 %v1710, %v1713
      %v1715 = vsel %vm1671, %v1705, %v1714
      %v1717 = vshrl.u32 %v1670, 16
      %v1719 = vrot.slane %v1717, 3
      %v1720 = vshll.u32 %v1670, 16
      %v1722 = vrot.slane %v1720, 4
      %v1723 = vor.u32 %v1719, %v1722
      %v1724 = vsel %vm1671, %v1714, %v1723
      %v1726 = vunpack.c.l.b16 %v1642
      %v1727 = vpack.c.b16 %v1726, %v1726
      %v1729 = vshrl.u32 %v1727, 16
      %v1731 = vrot.slane %v1729, 1
      %v1732 = vshll.u32 %v1727, 16
      %v1734 = vrot.slane %v1732, 2
      %v1735 = vor.u32 %v1731, %v1734
      %v1737 = vsel %vm289, %v1688, 0
      %v1740 = vsel %vm289, %v1697, 0
      %v1743 = vsel %vm289, %v1706, 0
      %v1746 = vsel %vm289, %v1715, 0
      %v1749 = vsel %vm289, %v1724, 0
      %v1752 = vand.u32 %v1735, %v308
      %1754 = vmatprep.subr.bf16.mxu0 0
      %1755 = vmatpush1.bf16.msra.mxu0 %v1752
      %1756 = vmatprep.subr.bf16.mxu0 0
      %1757 = vmatpush1.bf16.msra.mxu0 0
      %1758 = vmatprep.subr.bf16.mxu0 0
      %1759 = vmatpush1.bf16.msra.mxu0 0
      %1760 = vmatprep.subr.bf16.mxu0 0
      %1761 = vmatpush1.bf16.msra.mxu0 0
      %1762 = vmatprep.subr.bf16.mxu0 0
      %1763 = vmatpush1.bf16.msra.mxu0 0
      %1764 = vmatprep.subr.bf16.mxu0 0
      %1765 = vmatpush1.bf16.msra.mxu0 0
      %1766 = vmatprep.subr.bf16.mxu0 0
      %1767 = vmatpush1.bf16.msra.mxu0 0
      %1768 = vmatprep.subr.bf16.mxu0 0
      %1769 = vmatpush1.bf16.msra.mxu0 0
      %1770 = vmatprep.subr.bf16.mxu0 0
      %1771 = vmatpush1.bf16.msra.mxu0 0
      %1772 = vmatprep.subr.bf16.mxu0 0
      %1773 = vmatpush1.bf16.msra.mxu0 0
      %1774 = vmatprep.subr.bf16.mxu0 0
      %1775 = vmatpush1.bf16.msra.mxu0 0
      %1776 = vmatprep.subr.bf16.mxu0 0
      %1777 = vmatpush1.bf16.msra.mxu0 0
      %1778 = vmatprep.subr.bf16.mxu0 0
      %1779 = vmatpush1.bf16.msra.mxu0 0
      %1780 = vmatprep.subr.bf16.mxu0 0
      %1781 = vmatpush1.bf16.msra.mxu0 0
      %1782 = vmatprep.subr.bf16.mxu0 0
      %1783 = vmatpush1.bf16.msra.mxu0 0
      %1784 = vmatprep.subr.bf16.mxu0 0
      %1785 = vmatpush1.bf16.msra.mxu0 0
      %1786 = vmatprep.mubr.bf16.mxu0 0
      %1787 = vmatmul.mubr.bf16.gmra.mrb[0].mxu0 %v1737
      %v1788 = vpop.f32.mrb[0].mxu0
      %v1789 = vadd.f32 0.0, %v1788
      %v1790 = vpop.f32.mrb[0].mxu0
      %v1791 = vpop.f32.mrb[0].mxu0
      %v1792 = vadd.f32 0.0, %v1791
      %v1793 = vpop.f32.mrb[0].mxu0
      %1794 = vmatprep.mubr.bf16.mxu0 0
      %1795 = vmatmul.mubr.bf16.gmra.mrb[0].mxu0 %v1740
      %v1796 = vpop.f32.mrb[0].mxu0
      %v1797 = vadd.f32 0.0, %v1796
      %v1798 = vpop.f32.mrb[0].mxu0
      %v1799 = vpop.f32.mrb[0].mxu0
      %v1800 = vadd.f32 0.0, %v1799
      %v1801 = vpop.f32.mrb[0].mxu0
      %1802 = vmatprep.mubr.bf16.mxu0 0
      %1803 = vmatmul.mubr.bf16.gmra.mrb[0].mxu0 %v1743
      %v1804 = vpop.f32.mrb[0].mxu0
      %v1805 = vadd.f32 0.0, %v1804
      %v1806 = vpop.f32.mrb[0].mxu0
      %v1807 = vpop.f32.mrb[0].mxu0
      %v1808 = vadd.f32 0.0, %v1807
      %v1809 = vpop.f32.mrb[0].mxu0
      %1810 = vmatprep.mubr.bf16.mxu0 0
      %1811 = vmatmul.mubr.bf16.gmra.mrb[0].mxu0 %v1746
      %v1812 = vpop.f32.mrb[0].mxu0
      %v1813 = vadd.f32 0.0, %v1812
      %v1814 = vpop.f32.mrb[0].mxu0
      %v1815 = vpop.f32.mrb[0].mxu0
      %v1816 = vadd.f32 0.0, %v1815
      %v1817 = vpop.f32.mrb[0].mxu0
      %1818 = vmatprep.mubr.bf16.mxu0 0
      %1819 = vmatmul.mubr.bf16.gmra.mrb[0].mxu0 %v1749
      %v1820 = vpop.f32.mrb[0].mxu0
      %v1821 = vadd.f32 0.0, %v1820
      %v1822 = vpop.f32.mrb[0].mxu0
      %v1823 = vpop.f32.mrb[0].mxu0
      %v1824 = vadd.f32 0.0, %v1823
      %v1825 = vpop.f32.mrb[0].mxu0
      %1826 = vdwg.mxu0
      %v1827 = vadd.f32 %v1621, %v1789
      %v1828 = vadd.f32 %v1622, %v1792
      %v1829 = vadd.f32 %v1623, %v1797
      %v1830 = vadd.f32 %v1624, %v1800
      %v1831 = vadd.f32 %v1625, %v1805
      %v1832 = vadd.f32 %v1626, %v1808
      %v1833 = vadd.f32 %v1627, %v1813
      %v1834 = vadd.f32 %v1628, %v1816
      %v1835 = vadd.f32 %v1629, %v1821
      %v1836 = vadd.f32 %v1630, %v1824
      %v1837 = vld [vmem:[%s165 + $0xd0] sm:$0x7]
      %v1838 = vld [vmem:[%s1 + $0xc] sm:$0x8]
      %v1839 = vld [vmem:[%s1 + $0x10] sm:$0x1]
      %v1841 = vunpack.c.l.b16 %v1837
      %v1842 = vpack.c.b16 %v1841, %v1841
      %v1844 = vshrl.u32 %v1513, 16
      %v1846 = vrot.slane %v1844, 2
      %v1847 = vshll.u32 %v1513, 16
      %v1849 = vrot.slane %v1847, 3
      %v1850 = vor.u32 %v1846, %v1849
      %v1852 = vshrl.u32 %v1514, 16
      %v1854 = vrot.slane %v1852, 2
      %v1855 = vshll.u32 %v1514, 16
      %v1857 = vrot.slane %v1855, 3
      %v1858 = vor.u32 %v1854, %v1857
      %v1859 = vsel %vm224, %v1850, %v1858
      %v1861 = vshrl.u32 %v1515, 16
      %v1863 = vrot.slane %v1861, 2
      %v1864 = vshll.u32 %v1515, 16
      %v1866 = vrot.slane %v1864, 3
      %v1867 = vor.u32 %v1863, %v1866
      %v1868 = vsel %vm224, %v1858, %v1867
      %v1870 = vshrl.u32 %v1516, 16
      %v1872 = vrot.slane %v1870, 2
      %v1873 = vshll.u32 %v1516, 16
      %v1875 = vrot.slane %v1873, 3
      %v1876 = vor.u32 %v1872, %v1875
      %v1877 = vsel %vm224, %v1867, %v1876
      %v1879 = vshrl.u32 %v1517, 16
      %v1881 = vrot.slane %v1879, 2
      %v1882 = vshll.u32 %v1517, 16
      %v1884 = vrot.slane %v1882, 3
      %v1885 = vor.u32 %v1881, %v1884
      %v1886 = vsel %vm224, %v1876, %v1885
      %v1888 = vshrl.u32 %v1842, 16
      %v1890 = vrot.slane %v1888, 2
      %v1891 = vshll.u32 %v1842, 16
      %v1893 = vrot.slane %v1891, 3
      %v1894 = vor.u32 %v1890, %v1893
      %v1895 = vsel %vm224, %v1885, %v1894
      %v1898 = vunpack.c.l.b16 %v1838
      %v1899 = vunpack.c.l.b16 %v1839
      %v1900 = vpack.c.b16 %v1899, %v1898
      %v1901 = vrot.slane %v1900, 3
      %v1903 = vsel %vm289, %v1859, 0
      %v1906 = vsel %vm289, %v1868, 0
      %v1909 = vsel %vm289, %v1877, 0
      %v1912 = vsel %vm289, %v1886, 0
      %v1915 = vsel %vm289, %v1895, 0
      %v1918 = vand.u32 %v1901, %v308
      %1920 = vmatprep.subr.bf16.mxu0 0
      %1921 = vmatpush1.bf16.msra.mxu0 %v1918
      %1922 = vmatprep.subr.bf16.mxu0 0
      %1923 = vmatpush1.bf16.msra.mxu0 0
      %1924 = vmatprep.subr.bf16.mxu0 0
      %1925 = vmatpush1.bf16.msra.mxu0 0
      %1926 = vmatprep.subr.bf16.mxu0 0
      %1927 = vmatpush1.bf16.msra.mxu0 0
      %1928 = vmatprep.subr.bf16.mxu0 0
      %1929 = vmatpush1.bf16.msra.mxu0 0
      %1930 = vmatprep.subr.bf16.mxu0 0
      %1931 = vmatpush1.bf16.msra.mxu0 0
      %1932 = vmatprep.subr.bf16.mxu0 0
      %1933 = vmatpush1.bf16.msra.mxu0 0
      %1934 = vmatprep.subr.bf16.mxu0 0
      %1935 = vmatpush1.bf16.msra.mxu0 0
      %1936 = vmatprep.subr.bf16.mxu0 0
      %1937 = vmatpush1.bf16.msra.mxu0 0
      %1938 = vmatprep.subr.bf16.mxu0 0
      %1939 = vmatpush1.bf16.msra.mxu0 0
      %1940 = vmatprep.subr.bf16.mxu0 0
      %1941 = vmatpush1.bf16.msra.mxu0 0
      %1942 = vmatprep.subr.bf16.mxu0 0
      %1943 = vmatpush1.bf16.msra.mxu0 0
      %1944 = vmatprep.subr.bf16.mxu0 0
      %1945 = vmatpush1.bf16.msra.mxu0 0
      %1946 = vmatprep.subr.bf16.mxu0 0
      %1947 = vmatpush1.bf16.msra.mxu0 0
      %1948 = vmatprep.subr.bf16.mxu0 0
      %1949 = vmatpush1.bf16.msra.mxu0 0
      %1950 = vmatprep.subr.bf16.mxu0 0
      %1951 = vmatpush1.bf16.msra.mxu0 0
      %1952 = vmatprep.mubr.bf16.mxu0 0
      %1953 = vmatmul.mubr.bf16.gmra.mrb[0].mxu0 %v1903
      %v1954 = vpop.f32.mrb[0].mxu0
      %v1955 = vadd.f32 0.0, %v1954
      %v1956 = vpop.f32.mrb[0].mxu0
      %v1957 = vpop.f32.mrb[0].mxu0
      %v1958 = vadd.f32 0.0, %v1957
      %v1959 = vpop.f32.mrb[0].mxu0
      %1960 = vmatprep.mubr.bf16.mxu0 0
      %1961 = vmatmul.mubr.bf16.gmra.mrb[0].mxu0 %v1906
      %v1962 = vpop.f32.mrb[0].mxu0
      %v1963 = vadd.f32 0.0, %v1962
      %v1964 = vpop.f32.mrb[0].mxu0
      %v1965 = vpop.f32.mrb[0].mxu0
      %v1966 = vadd.f32 0.0, %v1965
      %v1967 = vpop.f32.mrb[0].mxu0
      %1968 = vmatprep.mubr.bf16.mxu0 0
      %1969 = vmatmul.mubr.bf16.gmra.mrb[0].mxu0 %v1909
      %v1970 = vpop.f32.mrb[0].mxu0
      %v1971 = vadd.f32 0.0, %v1970
      %v1972 = vpop.f32.mrb[0].mxu0
      %v1973 = vpop.f32.mrb[0].mxu0
      %v1974 = vadd.f32 0.0, %v1973
      %v1975 = vpop.f32.mrb[0].mxu0
      %1976 = vmatprep.mubr.bf16.mxu0 0
      %1977 = vmatmul.mubr.bf16.gmra.mrb[0].mxu0 %v1912
      %v1978 = vpop.f32.mrb[0].mxu0
      %v1979 = vadd.f32 0.0, %v1978
      %v1980 = vpop.f32.mrb[0].mxu0
      %v1981 = vpop.f32.mrb[0].mxu0
      %v1982 = vadd.f32 0.0, %v1981
      %v1983 = vpop.f32.mrb[0].mxu0
      %1984 = vmatprep.mubr.bf16.mxu0 0
      %1985 = vmatmul.mubr.bf16.gmra.mrb[0].mxu0 %v1915
      %v1986 = vpop.f32.mrb[0].mxu0
      %v1987 = vadd.f32 0.0, %v1986
      %v1988 = vpop.f32.mrb[0].mxu0
      %v1989 = vpop.f32.mrb[0].mxu0
      %v1990 = vadd.f32 0.0, %v1989
      %v1991 = vpop.f32.mrb[0].mxu0
      %1992 = vdwg.mxu0
      %v1993 = vadd.f32 %v1827, %v1955
      %v1994 = vadd.f32 %v1828, %v1958
      %v1995 = vadd.f32 %v1829, %v1963
      %v1996 = vadd.f32 %v1830, %v1966
      %v1997 = vadd.f32 %v1831, %v1971
      %v1998 = vadd.f32 %v1832, %v1974
      %v1999 = vadd.f32 %v1833, %v1979
      %v2000 = vadd.f32 %v1834, %v1982
      %v2001 = vadd.f32 %v1835, %v1987
      %v2002 = vadd.f32 %v1836, %v1990
      %v2003 = vld [vmem:[%s1 + $0x10] sm:$0x3]
      %v2004 = vpack.c.b16 %v1656, %v1655
      %v2005 = vpack.c.b16 %v1658, %v1657
      %v2006 = vpack.c.b16 %v1660, %v1659
      %v2007 = vpack.c.b16 %v1662, %v1661
      %v2008 = vpack.c.b16 %v1664, %v1663
      %v2010 = vunpack.c.l.b16 %v2003
      %v2011 = vpack.c.b16 %v2010, %v2010
      %v2013 = vshrl.u32 %v2011, 16
      %v2015 = vshll.u32 %v2011, 16
      %v2017 = vrot.slane %v2015, 1
      %v2018 = vor.u32 %v2013, %v2017
      %v2020 = vsel %vm289, %v2004, 0
      %v2023 = vsel %vm289, %v2005, 0
      %v2026 = vsel %vm289, %v2006, 0
      %v2029 = vsel %vm289, %v2007, 0
      %v2032 = vsel %vm289, %v2008, 0
      %v2035 = vand.u32 %v2018, %v308
      %2037 = vmatprep.subr.bf16.mxu0 0
      %2038 = vmatpush1.bf16.msra.mxu0 %v2035
      %2039 = vmatprep.subr.bf16.mxu0 0
      %2040 = vmatpush1.bf16.msra.mxu0 0
      %2041 = vmatprep.subr.bf16.mxu0 0
      %2042 = vmatpush1.bf16.msra.mxu0 0
      %2043 = vmatprep.subr.bf16.mxu0 0
      %2044 = vmatpush1.bf16.msra.mxu0 0
      %2045 = vmatprep.subr.bf16.mxu0 0
      %2046 = vmatpush1.bf16.msra.mxu0 0
      %2047 = vmatprep.subr.bf16.mxu0 0
      %2048 = vmatpush1.bf16.msra.mxu0 0
      %2049 = vmatprep.subr.bf16.mxu0 0
      %2050 = vmatpush1.bf16.msra.mxu0 0
      %2051 = vmatprep.subr.bf16.mxu0 0
      %2052 = vmatpush1.bf16.msra.mxu0 0
      %2053 = vmatprep.subr.bf16.mxu0 0
      %2054 = vmatpush1.bf16.msra.mxu0 0
      %2055 = vmatprep.subr.bf16.mxu0 0
      %2056 = vmatpush1.bf16.msra.mxu0 0
      %2057 = vmatprep.subr.bf16.mxu0 0
      %2058 = vmatpush1.bf16.msra.mxu0 0
      %2059 = vmatprep.subr.bf16.mxu0 0
      %2060 = vmatpush1.bf16.msra.mxu0 0
      %2061 = vmatprep.subr.bf16.mxu0 0
      %2062 = vmatpush1.bf16.msra.mxu0 0
      %2063 = vmatprep.subr.bf16.mxu0 0
      %2064 = vmatpush1.bf16.msra.mxu0 0
      %2065 = vmatprep.subr.bf16.mxu0 0
      %2066 = vmatpush1.bf16.msra.mxu0 0
      %2067 = vmatprep.subr.bf16.mxu0 0
      %2068 = vmatpush1.bf16.msra.mxu0 0
      %2069 = vmatprep.mubr.bf16.mxu0 0
      %2070 = vmatmul.mubr.bf16.gmra.mrb[0].mxu0 %v2020
      %v2071 = vpop.f32.mrb[0].mxu0
      %v2072 = vadd.f32 0.0, %v2071
      %v2073 = vpop.f32.mrb[0].mxu0
      %v2074 = vpop.f32.mrb[0].mxu0
      %v2075 = vadd.f32 0.0, %v2074
      %v2076 = vpop.f32.mrb[0].mxu0
      %2077 = vmatprep.mubr.bf16.mxu0 0
      %2078 = vmatmul.mubr.bf16.gmra.mrb[0].mxu0 %v2023
      %v2079 = vpop.f32.mrb[0].mxu0
      %v2080 = vadd.f32 0.0, %v2079
      %v2081 = vpop.f32.mrb[0].mxu0
      %v2082 = vpop.f32.mrb[0].mxu0
      %v2083 = vadd.f32 0.0, %v2082
      %v2084 = vpop.f32.mrb[0].mxu0
      %2085 = vmatprep.mubr.bf16.mxu0 0
      %2086 = vmatmul.mubr.bf16.gmra.mrb[0].mxu0 %v2026
      %v2087 = vpop.f32.mrb[0].mxu0
      %v2088 = vadd.f32 0.0, %v2087
      %v2089 = vpop.f32.mrb[0].mxu0
      %v2090 = vpop.f32.mrb[0].mxu0
      %v2091 = vadd.f32 0.0, %v2090
      %v2092 = vpop.f32.mrb[0].mxu0
      %2093 = vmatprep.mubr.bf16.mxu0 0
      %2094 = vmatmul.mubr.bf16.gmra.mrb[0].mxu0 %v2029
      %v2095 = vpop.f32.mrb[0].mxu0
      %v2096 = vadd.f32 0.0, %v2095
      %v2097 = vpop.f32.mrb[0].mxu0
      %v2098 = vpop.f32.mrb[0].mxu0
      %v2099 = vadd.f32 0.0, %v2098
      %v2100 = vpop.f32.mrb[0].mxu0
      %2101 = vmatprep.mubr.bf16.mxu0 0
      %2102 = vmatmul.mubr.bf16.gmra.mrb[0].mxu0 %v2032
      %v2103 = vpop.f32.mrb[0].mxu0
      %v2104 = vadd.f32 0.0, %v2103
      %v2105 = vpop.f32.mrb[0].mxu0
      %v2106 = vpop.f32.mrb[0].mxu0
      %v2107 = vadd.f32 0.0, %v2106
      %v2108 = vpop.f32.mrb[0].mxu0
      %2109 = vdwg.mxu0
      %v2110 = vadd.f32 %v1993, %v2072
      %v2111 = vadd.f32 %v1994, %v2075
      %v2112 = vadd.f32 %v1995, %v2080
      %v2113 = vadd.f32 %v1996, %v2083
      %v2114 = vadd.f32 %v1997, %v2088
      %v2115 = vadd.f32 %v1998, %v2091
      %v2116 = vadd.f32 %v1999, %v2096
      %v2117 = vadd.f32 %v2000, %v2099
      %v2118 = vadd.f32 %v2001, %v2104
      %v2119 = vadd.f32 %v2002, %v2107
      %v2120 = vld [vmem:[%s165 + $0x40] sm:$0xe]
      %v2121 = vld [vmem:[%s165 + $0x44] sm:$0xf]
      %v2122 = vld [vmem:[%s165 + $0x48] sm:$0xf]
      %v2123 = vld [vmem:[%s165 + $0x4c] sm:$0xf]
      %v2124 = vld [vmem:[%s165 + $0x50] sm:$0xf]
      %v2125 = vld [vmem:[%s165 + $0x54] sm:$0xf]
      %v2126 = vld [vmem:[%s165 + $0x58] sm:$0xf]
      %v2127 = vld [vmem:[%s165 + $0x5c] sm:$0xf]
      %v2128 = vld [vmem:[%s165 + $0x60] sm:$0xf]
      %v2129 = vld [vmem:[%s165 + $0x64] sm:$0xf]
      %v2130 = vld [vmem:[%s165 + $0x68] sm:$0x1]
      %v2131 = vld [vmem:[%s1 + $0x10] sm:$0xc]
      %v2143 = vunpack.c.l.b16 %v2120
      %v2144 = vunpack.c.l.b16 %v2121
      %v2145 = vunpack.c.l.b16 %v2122
      %v2146 = vunpack.c.l.b16 %v2123
      %v2147 = vunpack.c.l.b16 %v2124
      %v2148 = vunpack.c.l.b16 %v2125
      %v2149 = vunpack.c.l.b16 %v2126
      %v2150 = vunpack.c.l.b16 %v2127
      %v2151 = vunpack.c.l.b16 %v2128
      %v2152 = vunpack.c.l.b16 %v2129
      %v2153 = vunpack.c.l.b16 %v2130
      %v2154 = vpack.c.b16 %v2144, %v2143
      %v2155 = vpack.c.b16 %v2146, %v2145
      %v2156 = vpack.c.b16 %v2148, %v2147
      %v2157 = vpack.c.b16 %v2150, %v2149
      %v2158 = vpack.c.b16 %v2152, %v2151
      %v2159 = vpack.c.b16 %v2153, %v2153
      %v2160 = vrot.slane %v2154, 1
      %v2161 = vrot.slane %v2155, 1
      %v2162 = vsel %vm413, %v2160, %v2161
      %v2163 = vrot.slane %v2156, 1
      %v2164 = vsel %vm413, %v2161, %v2163
      %v2165 = vrot.slane %v2157, 1
      %v2166 = vsel %vm413, %v2163, %v2165
      %v2167 = vrot.slane %v2158, 1
      %v2168 = vsel %vm413, %v2165, %v2167
      %v2169 = vrot.slane %v2159, 1
      %v2170 = vsel %vm413, %v2167, %v2169
      %v2172 = vunpack.c.l.b16 %v2131
      %v2173 = vpack.c.b16 %v2172, %v2172
      %v2174 = vrot.slane %v2173, 2
      %v2176 = vsel %vm289, %v2162, 0
      %v2179 = vsel %vm289, %v2164, 0
      %v2182 = vsel %vm289, %v2166, 0
      %v2185 = vsel %vm289, %v2168, 0
      %v2188 = vsel %vm289, %v2170, 0
      %v2191 = vand.u32 %v2174, %v308
      %2193 = vmatprep.subr.bf16.mxu0 0
      %2194 = vmatpush1.bf16.msra.mxu0 %v2191
      %2195 = vmatprep.subr.bf16.mxu0 0
      %2196 = vmatpush1.bf16.msra.mxu0 0
      %2197 = vmatprep.subr.bf16.mxu0 0
      %2198 = vmatpush1.bf16.msra.mxu0 0
      %2199 = vmatprep.subr.bf16.mxu0 0
      %2200 = vmatpush1.bf16.msra.mxu0 0
      %2201 = vmatprep.subr.bf16.mxu0 0
      %2202 = vmatpush1.bf16.msra.mxu0 0
      %2203 = vmatprep.subr.bf16.mxu0 0
      %2204 = vmatpush1.bf16.msra.mxu0 0
      %2205 = vmatprep.subr.bf16.mxu0 0
      %2206 = vmatpush1.bf16.msra.mxu0 0
      %2207 = vmatprep.subr.bf16.mxu0 0
      %2208 = vmatpush1.bf16.msra.mxu0 0
      %2209 = vmatprep.subr.bf16.mxu0 0
      %2210 = vmatpush1.bf16.msra.mxu0 0
      %2211 = vmatprep.subr.bf16.mxu0 0
      %2212 = vmatpush1.bf16.msra.mxu0 0
      %2213 = vmatprep.subr.bf16.mxu0 0
      %2214 = vmatpush1.bf16.msra.mxu0 0
      %2215 = vmatprep.subr.bf16.mxu0 0
      %2216 = vmatpush1.bf16.msra.mxu0 0
      %2217 = vmatprep.subr.bf16.mxu0 0
      %2218 = vmatpush1.bf16.msra.mxu0 0
      %2219 = vmatprep.subr.bf16.mxu0 0
      %2220 = vmatpush1.bf16.msra.mxu0 0
      %2221 = vmatprep.subr.bf16.mxu0 0
      %2222 = vmatpush1.bf16.msra.mxu0 0
      %2223 = vmatprep.subr.bf16.mxu0 0
      %2224 = vmatpush1.bf16.msra.mxu0 0
      %2225 = vmatprep.mubr.bf16.mxu0 0
      %2226 = vmatmul.mubr.bf16.gmra.mrb[0].mxu0 %v2176
      %v2227 = vpop.f32.mrb[0].mxu0
      %v2228 = vadd.f32 0.0, %v2227
      %v2229 = vpop.f32.mrb[0].mxu0
      %v2230 = vpop.f32.mrb[0].mxu0
      %v2231 = vadd.f32 0.0, %v2230
      %v2232 = vpop.f32.mrb[0].mxu0
      %2233 = vmatprep.mubr.bf16.mxu0 0
      %2234 = vmatmul.mubr.bf16.gmra.mrb[0].mxu0 %v2179
      %v2235 = vpop.f32.mrb[0].mxu0
      %v2236 = vadd.f32 0.0, %v2235
      %v2237 = vpop.f32.mrb[0].mxu0
      %v2238 = vpop.f32.mrb[0].mxu0
      %v2239 = vadd.f32 0.0, %v2238
      %v2240 = vpop.f32.mrb[0].mxu0
      %2241 = vmatprep.mubr.bf16.mxu0 0
      %2242 = vmatmul.mubr.bf16.gmra.mrb[0].mxu0 %v2182
      %v2243 = vpop.f32.mrb[0].mxu0
      %v2244 = vadd.f32 0.0, %v2243
      %v2245 = vpop.f32.mrb[0].mxu0
      %v2246 = vpop.f32.mrb[0].mxu0
      %v2247 = vadd.f32 0.0, %v2246
      %v2248 = vpop.f32.mrb[0].mxu0
      %2249 = vmatprep.mubr.bf16.mxu0 0
      %2250 = vmatmul.mubr.bf16.gmra.mrb[0].mxu0 %v2185
      %v2251 = vpop.f32.mrb[0].mxu0
      %v2252 = vadd.f32 0.0, %v2251
      %v2253 = vpop.f32.mrb[0].mxu0
      %v2254 = vpop.f32.mrb[0].mxu0
      %v2255 = vadd.f32 0.0, %v2254
      %v2256 = vpop.f32.mrb[0].mxu0
      %2257 = vmatprep.mubr.bf16.mxu0 0
      %2258 = vmatmul.mubr.bf16.gmra.mrb[0].mxu0 %v2188
      %v2259 = vpop.f32.mrb[0].mxu0
      %v2260 = vadd.f32 0.0, %v2259
      %v2261 = vpop.f32.mrb[0].mxu0
      %v2262 = vpop.f32.mrb[0].mxu0
      %v2263 = vadd.f32 0.0, %v2262
      %v2264 = vpop.f32.mrb[0].mxu0
      %2265 = vdwg.mxu0
      %v2266 = vadd.f32 %v2110, %v2228
      %v2267 = vadd.f32 %v2111, %v2231
      %v2268 = vadd.f32 %v2112, %v2236
      %v2269 = vadd.f32 %v2113, %v2239
      %v2270 = vadd.f32 %v2114, %v2244
      %v2271 = vadd.f32 %v2115, %v2247
      %v2272 = vadd.f32 %v2116, %v2252
      %v2273 = vadd.f32 %v2117, %v2255
      %v2274 = vadd.f32 %v2118, %v2260
      %v2275 = vadd.f32 %v2119, %v2263
      %v2276 = vld [vmem:[%s165 + $0x8] sm:$0xc]
      %v2277 = vld [vmem:[%s165 + $0xc] sm:$0xf]
      %v2278 = vld [vmem:[%s165 + $0x10] sm:$0xf]
      %v2279 = vld [vmem:[%s165 + $0x14] sm:$0xf]
      %v2280 = vld [vmem:[%s165 + $0x18] sm:$0xf]
      %v2281 = vld [vmem:[%s165 + $0x1c] sm:$0xf]
      %v2282 = vld [vmem:[%s165 + $0x20] sm:$0xf]
      %v2283 = vld [vmem:[%s165 + $0x24] sm:$0xf]
      %v2284 = vld [vmem:[%s165 + $0x28] sm:$0xf]
      %v2285 = vld [vmem:[%s165 + $0x2c] sm:$0xf]
      %v2286 = vld [vmem:[%s165 + $0x30] sm:$0x7]
      %v2287 = vld [vmem:[%s1 + $0x10] sm:$0x8]
      %v2288 = vld [vmem:[%s1 + $0x14] sm:$0x1]
      %v2300 = vunpack.c.l.b16 %v2276
      %v2301 = vunpack.c.l.b16 %v2277
      %v2302 = vunpack.c.l.b16 %v2278
      %v2303 = vunpack.c.l.b16 %v2279
      %v2304 = vunpack.c.l.b16 %v2280
      %v2305 = vunpack.c.l.b16 %v2281
      %v2306 = vunpack.c.l.b16 %v2282
      %v2307 = vunpack.c.l.b16 %v2283
      %v2308 = vunpack.c.l.b16 %v2284
      %v2309 = vunpack.c.l.b16 %v2285
      %v2310 = vunpack.c.l.b16 %v2286
      %v2311 = vpack.c.b16 %v2301, %v2300
      %v2312 = vpack.c.b16 %v2303, %v2302
      %v2313 = vpack.c.b16 %v2305, %v2304
      %v2314 = vpack.c.b16 %v2307, %v2306
      %v2315 = vpack.c.b16 %v2309, %v2308
      %v2316 = vpack.c.b16 %v2310, %v2310
      %v2318 = vshrl.u32 %v2311, 16
      %v2320 = vrot.slane %v2318, 2
      %v2321 = vshll.u32 %v2311, 16
      %v2323 = vrot.slane %v2321, 3
      %v2324 = vor.u32 %v2320, %v2323
      %v2326 = vshrl.u32 %v2312, 16
      %v2328 = vrot.slane %v2326, 2
      %v2329 = vshll.u32 %v2312, 16
      %v2331 = vrot.slane %v2329, 3
      %v2332 = vor.u32 %v2328, %v2331
      %v2333 = vsel %vm224, %v2324, %v2332
      %v2335 = vshrl.u32 %v2313, 16
      %v2337 = vrot.slane %v2335, 2
      %v2338 = vshll.u32 %v2313, 16
      %v2340 = vrot.slane %v2338, 3
      %v2341 = vor.u32 %v2337, %v2340
      %v2342 = vsel %vm224, %v2332, %v2341
      %v2344 = vshrl.u32 %v2314, 16
      %v2346 = vrot.slane %v2344, 2
      %v2347 = vshll.u32 %v2314, 16
      %v2349 = vrot.slane %v2347, 3
      %v2350 = vor.u32 %v2346, %v2349
      %v2351 = vsel %vm224, %v2341, %v2350
      %v2353 = vshrl.u32 %v2315, 16
      %v2355 = vrot.slane %v2353, 2
      %v2356 = vshll.u32 %v2315, 16
      %v2358 = vrot.slane %v2356, 3
      %v2359 = vor.u32 %v2355, %v2358
      %v2360 = vsel %vm224, %v2350, %v2359
      %v2362 = vshrl.u32 %v2316, 16
      %v2364 = vrot.slane %v2362, 2
      %v2365 = vshll.u32 %v2316, 16
      %v2367 = vrot.slane %v2365, 3
      %v2368 = vor.u32 %v2364, %v2367
      %v2369 = vsel %vm224, %v2359, %v2368
      %v2372 = vunpack.c.l.b16 %v2287
      %v2373 = vunpack.c.l.b16 %v2288
      %v2374 = vpack.c.b16 %v2373, %v2372
      %v2376 = vshrl.u32 %v2374, 16
      %v2378 = vrot.slane %v2376, 3
      %v2379 = vshll.u32 %v2374, 16
      %v2381 = vrot.slane %v2379, 4
      %v2382 = vor.u32 %v2378, %v2381
      %v2384 = vsel %vm289, %v2333, 0
      %v2387 = vsel %vm289, %v2342, 0
      %v2390 = vsel %vm289, %v2351, 0
      %v2393 = vsel %vm289, %v2360, 0
      %v2396 = vsel %vm289, %v2369, 0
      %v2399 = vand.u32 %v2382, %v308
      %2401 = vmatprep.subr.bf16.mxu0 0
      %2402 = vmatpush1.bf16.msra.mxu0 %v2399
      %2403 = vmatprep.subr.bf16.mxu0 0
      %2404 = vmatpush1.bf16.msra.mxu0 0
      %2405 = vmatprep.subr.bf16.mxu0 0
      %2406 = vmatpush1.bf16.msra.mxu0 0
      %2407 = vmatprep.subr.bf16.mxu0 0
      %2408 = vmatpush1.bf16.msra.mxu0 0
      %2409 = vmatprep.subr.bf16.mxu0 0
      %2410 = vmatpush1.bf16.msra.mxu0 0
      %2411 = vmatprep.subr.bf16.mxu0 0
      %2412 = vmatpush1.bf16.msra.mxu0 0
      %2413 = vmatprep.subr.bf16.mxu0 0
      %2414 = vmatpush1.bf16.msra.mxu0 0
      %2415 = vmatprep.subr.bf16.mxu0 0
      %2416 = vmatpush1.bf16.msra.mxu0 0
      %2417 = vmatprep.subr.bf16.mxu0 0
      %2418 = vmatpush1.bf16.msra.mxu0 0
      %2419 = vmatprep.subr.bf16.mxu0 0
      %2420 = vmatpush1.bf16.msra.mxu0 0
      %2421 = vmatprep.subr.bf16.mxu0 0
      %2422 = vmatpush1.bf16.msra.mxu0 0
      %2423 = vmatprep.subr.bf16.mxu0 0
      %2424 = vmatpush1.bf16.msra.mxu0 0
      %2425 = vmatprep.subr.bf16.mxu0 0
      %2426 = vmatpush1.bf16.msra.mxu0 0
      %2427 = vmatprep.subr.bf16.mxu0 0
      %2428 = vmatpush1.bf16.msra.mxu0 0
      %2429 = vmatprep.subr.bf16.mxu0 0
      %2430 = vmatpush1.bf16.msra.mxu0 0
      %2431 = vmatprep.subr.bf16.mxu0 0
      %2432 = vmatpush1.bf16.msra.mxu0 0
      %2433 = vmatprep.mubr.bf16.mxu0 0
      %2434 = vmatmul.mubr.bf16.gmra.mrb[0].mxu0 %v2384
      %v2435 = vpop.f32.mrb[0].mxu0
      %v2436 = vadd.f32 0.0, %v2435
      %v2437 = vpop.f32.mrb[0].mxu0
      %v2438 = vpop.f32.mrb[0].mxu0
      %v2439 = vadd.f32 0.0, %v2438
      %v2440 = vpop.f32.mrb[0].mxu0
      %2441 = vmatprep.mubr.bf16.mxu0 0
      %2442 = vmatmul.mubr.bf16.gmra.mrb[0].mxu0 %v2387
      %v2443 = vpop.f32.mrb[0].mxu0
      %v2444 = vadd.f32 0.0, %v2443
      %v2445 = vpop.f32.mrb[0].mxu0
      %v2446 = vpop.f32.mrb[0].mxu0
      %v2447 = vadd.f32 0.0, %v2446
      %v2448 = vpop.f32.mrb[0].mxu0
      %2449 = vmatprep.mubr.bf16.mxu0 0
      %2450 = vmatmul.mubr.bf16.gmra.mrb[0].mxu0 %v2390
      %v2451 = vpop.f32.mrb[0].mxu0
      %v2452 = vadd.f32 0.0, %v2451
      %v2453 = vpop.f32.mrb[0].mxu0
      %v2454 = vpop.f32.mrb[0].mxu0
      %v2455 = vadd.f32 0.0, %v2454
      %v2456 = vpop.f32.mrb[0].mxu0
      %2457 = vmatprep.mubr.bf16.mxu0 0
      %2458 = vmatmul.mubr.bf16.gmra.mrb[0].mxu0 %v2393
      %v2459 = vpop.f32.mrb[0].mxu0
      %v2460 = vadd.f32 0.0, %v2459
      %v2461 = vpop.f32.mrb[0].mxu0
      %v2462 = vpop.f32.mrb[0].mxu0
      %v2463 = vadd.f32 0.0, %v2462
      %v2464 = vpop.f32.mrb[0].mxu0
      %2465 = vmatprep.mubr.bf16.mxu0 0
      %2466 = vmatmul.mubr.bf16.gmra.mrb[0].mxu0 %v2396
      %v2467 = vpop.f32.mrb[0].mxu0
      %v2468 = vadd.f32 0.0, %v2467
      %v2469 = vpop.f32.mrb[0].mxu0
      %v2470 = vpop.f32.mrb[0].mxu0
      %v2471 = vadd.f32 0.0, %v2470
      %v2472 = vpop.f32.mrb[0].mxu0
      %2473 = vdwg.mxu0
      %v2474 = vadd.f32 %v2266, %v2436
      %v2475 = vadd.f32 %v2267, %v2439
      %v2476 = vadd.f32 %v2268, %v2444
      %v2477 = vadd.f32 %v2269, %v2447
      %v2478 = vadd.f32 %v2270, %v2452
      %v2479 = vadd.f32 %v2271, %v2455
      %v2480 = vadd.f32 %v2272, %v2460
      %v2481 = vadd.f32 %v2273, %v2463
      %v2482 = vadd.f32 %v2274, %v2468
      %v2483 = vadd.f32 %v2275, %v2471
      %v2484 = vld [vmem:[%s165 + $0x68] sm:$0x3]
      %v2485 = vld [vmem:[%s1 + $0x14] sm:$0x6]
      %v2487 = vunpack.c.l.b16 %v2484
      %v2488 = vpack.c.b16 %v2487, %v2487
      %v2490 = vshrl.u32 %v2154, 16
      %v2492 = vrot.slane %v2490, 1
      %v2493 = vshll.u32 %v2154, 16
      %v2495 = vrot.slane %v2493, 2
      %v2496 = vor.u32 %v2492, %v2495
      %v2498 = vshrl.u32 %v2155, 16
      %v2500 = vrot.slane %v2498, 1
      %v2501 = vshll.u32 %v2155, 16
      %v2503 = vrot.slane %v2501, 2
      %v2504 = vor.u32 %v2500, %v2503
      %v2505 = vsel %vm522, %v2496, %v2504
      %v2507 = vshrl.u32 %v2156, 16
      %v2509 = vrot.slane %v2507, 1
      %v2510 = vshll.u32 %v2156, 16
      %v2512 = vrot.slane %v2510, 2
      %v2513 = vor.u32 %v2509, %v2512
      %v2514 = vsel %vm522, %v2504, %v2513
      %v2516 = vshrl.u32 %v2157, 16
      %v2518 = vrot.slane %v2516, 1
      %v2519 = vshll.u32 %v2157, 16
      %v2521 = vrot.slane %v2519, 2
      %v2522 = vor.u32 %v2518, %v2521
      %v2523 = vsel %vm522, %v2513, %v2522
      %v2525 = vshrl.u32 %v2158, 16
      %v2527 = vrot.slane %v2525, 1
      %v2528 = vshll.u32 %v2158, 16
      %v2530 = vrot.slane %v2528, 2
      %v2531 = vor.u32 %v2527, %v2530
      %v2532 = vsel %vm522, %v2522, %v2531
      %v2534 = vshrl.u32 %v2488, 16
      %v2536 = vrot.slane %v2534, 1
      %v2537 = vshll.u32 %v2488, 16
      %v2539 = vrot.slane %v2537, 2
      %v2540 = vor.u32 %v2536, %v2539
      %v2541 = vsel %vm522, %v2531, %v2540
      %v2543 = vunpack.c.l.b16 %v2485
      %v2544 = vpack.c.b16 %v2543, %v2543
      %v2545 = vrot.slane %v2544, 1
      %v2547 = vsel %vm289, %v2505, 0
      %v2550 = vsel %vm289, %v2514, 0
      %v2553 = vsel %vm289, %v2523, 0
      %v2556 = vsel %vm289, %v2532, 0
      %v2559 = vsel %vm289, %v2541, 0
      %v2562 = vand.u32 %v2545, %v308
      %2564 = vmatprep.subr.bf16.mxu0 0
      %2565 = vmatpush1.bf16.msra.mxu0 %v2562
      %2566 = vmatprep.subr.bf16.mxu0 0
      %2567 = vmatpush1.bf16.msra.mxu0 0
      %2568 = vmatprep.subr.bf16.mxu0 0
      %2569 = vmatpush1.bf16.msra.mxu0 0
      %2570 = vmatprep.subr.bf16.mxu0 0
      %2571 = vmatpush1.bf16.msra.mxu0 0
      %2572 = vmatprep.subr.bf16.mxu0 0
      %2573 = vmatpush1.bf16.msra.mxu0 0
      %2574 = vmatprep.subr.bf16.mxu0 0
      %2575 = vmatpush1.bf16.msra.mxu0 0
      %2576 = vmatprep.subr.bf16.mxu0 0
      %2577 = vmatpush1.bf16.msra.mxu0 0
      %2578 = vmatprep.subr.bf16.mxu0 0
      %2579 = vmatpush1.bf16.msra.mxu0 0
      %2580 = vmatprep.subr.bf16.mxu0 0
      %2581 = vmatpush1.bf16.msra.mxu0 0
      %2582 = vmatprep.subr.bf16.mxu0 0
      %2583 = vmatpush1.bf16.msra.mxu0 0
      %2584 = vmatprep.subr.bf16.mxu0 0
      %2585 = vmatpush1.bf16.msra.mxu0 0
      %2586 = vmatprep.subr.bf16.mxu0 0
      %2587 = vmatpush1.bf16.msra.mxu0 0
      %2588 = vmatprep.subr.bf16.mxu0 0
      %2589 = vmatpush1.bf16.msra.mxu0 0
      %2590 = vmatprep.subr.bf16.mxu0 0
      %2591 = vmatpush1.bf16.msra.mxu0 0
      %2592 = vmatprep.subr.bf16.mxu0 0
      %2593 = vmatpush1.bf16.msra.mxu0 0
      %2594 = vmatprep.subr.bf16.mxu0 0
      %2595 = vmatpush1.bf16.msra.mxu0 0
      %2596 = vmatprep.mubr.bf16.mxu0 0
      %2597 = vmatmul.mubr.bf16.gmra.mrb[0].mxu0 %v2547
      %v2598 = vpop.f32.mrb[0].mxu0
      %v2599 = vadd.f32 0.0, %v2598
      %v2600 = vpop.f32.mrb[0].mxu0
      %v2601 = vpop.f32.mrb[0].mxu0
      %v2602 = vadd.f32 0.0, %v2601
      %v2603 = vpop.f32.mrb[0].mxu0
      %2604 = vmatprep.mubr.bf16.mxu0 0
      %2605 = vmatmul.mubr.bf16.gmra.mrb[0].mxu0 %v2550
      %v2606 = vpop.f32.mrb[0].mxu0
      %v2607 = vadd.f32 0.0, %v2606
      %v2608 = vpop.f32.mrb[0].mxu0
      %v2609 = vpop.f32.mrb[0].mxu0
      %v2610 = vadd.f32 0.0, %v2609
      %v2611 = vpop.f32.mrb[0].mxu0
      %2612 = vmatprep.mubr.bf16.mxu0 0
      %2613 = vmatmul.mubr.bf16.gmra.mrb[0].mxu0 %v2553
      %v2614 = vpop.f32.mrb[0].mxu0
      %v2615 = vadd.f32 0.0, %v2614
      %v2616 = vpop.f32.mrb[0].mxu0
      %v2617 = vpop.f32.mrb[0].mxu0
      %v2618 = vadd.f32 0.0, %v2617
      %v2619 = vpop.f32.mrb[0].mxu0
      %2620 = vmatprep.mubr.bf16.mxu0 0
      %2621 = vmatmul.mubr.bf16.gmra.mrb[0].mxu0 %v2556
      %v2622 = vpop.f32.mrb[0].mxu0
      %v2623 = vadd.f32 0.0, %v2622
      %v2624 = vpop.f32.mrb[0].mxu0
      %v2625 = vpop.f32.mrb[0].mxu0
      %v2626 = vadd.f32 0.0, %v2625
      %v2627 = vpop.f32.mrb[0].mxu0
      %2628 = vmatprep.mubr.bf16.mxu0 0
      %2629 = vmatmul.mubr.bf16.gmra.mrb[0].mxu0 %v2559
      %v2630 = vpop.f32.mrb[0].mxu0
      %v2631 = vadd.f32 0.0, %v2630
      %v2632 = vpop.f32.mrb[0].mxu0
      %v2633 = vpop.f32.mrb[0].mxu0
      %v2634 = vadd.f32 0.0, %v2633
      %v2635 = vpop.f32.mrb[0].mxu0
      %2636 = vdwg.mxu0
      %v2637 = vadd.f32 %v2474, %v2599
      %v2638 = vadd.f32 %v2475, %v2602
      %v2639 = vadd.f32 %v2476, %v2607
      %v2640 = vadd.f32 %v2477, %v2610
      %v2641 = vadd.f32 %v2478, %v2615
      %v2642 = vadd.f32 %v2479, %v2618
      %v2643 = vadd.f32 %v2480, %v2623
      %v2644 = vadd.f32 %v2481, %v2626
      %v2645 = vadd.f32 %v2482, %v2631
      %v2646 = vadd.f32 %v2483, %v2634
      %v2647 = vld [vmem:[%s165 + $0x8] sm:$0x8]
      %v2648 = vld [vmem:[%s1 + $0x14] sm:$0xc]
      %v2650 = vunpack.c.l.b16 %v2647
      %v2651 = vpack.c.b16 %v2301, %v2650
      %v2652 = vrot.slane %v2651, 3
      %v2653 = vrot.slane %v2312, 3
      %v2654 = vsel %vm688, %v2652, %v2653
      %v2655 = vrot.slane %v2313, 3
      %v2656 = vsel %vm688, %v2653, %v2655
      %v2657 = vrot.slane %v2314, 3
      %v2658 = vsel %vm688, %v2655, %v2657
      %v2659 = vrot.slane %v2315, 3
      %v2660 = vsel %vm688, %v2657, %v2659
      %v2661 = vrot.slane %v2316, 3
      %v2662 = vsel %vm688, %v2659, %v2661
      %v2664 = vunpack.c.l.b16 %v2648
      %v2665 = vpack.c.b16 %v2664, %v2664
      %v2667 = vshrl.u32 %v2665, 16
      %v2669 = vrot.slane %v2667, 2
      %v2670 = vshll.u32 %v2665, 16
      %v2672 = vrot.slane %v2670, 3
      %v2673 = vor.u32 %v2669, %v2672
      %v2675 = vsel %vm289, %v2654, 0
      %v2678 = vsel %vm289, %v2656, 0
      %v2681 = vsel %vm289, %v2658, 0
      %v2684 = vsel %vm289, %v2660, 0
      %v2687 = vsel %vm289, %v2662, 0
      %v2690 = vand.u32 %v2673, %v308
      %2692 = vmatprep.subr.bf16.mxu0 0
      %2693 = vmatpush1.bf16.msra.mxu0 %v2690
      %2694 = vmatprep.subr.bf16.mxu0 0
      %2695 = vmatpush1.bf16.msra.mxu0 0
      %2696 = vmatprep.subr.bf16.mxu0 0
      %2697 = vmatpush1.bf16.msra.mxu0 0
      %2698 = vmatprep.subr.bf16.mxu0 0
      %2699 = vmatpush1.bf16.msra.mxu0 0
      %2700 = vmatprep.subr.bf16.mxu0 0
      %2701 = vmatpush1.bf16.msra.mxu0 0
      %2702 = vmatprep.subr.bf16.mxu0 0
      %2703 = vmatpush1.bf16.msra.mxu0 0
      %2704 = vmatprep.subr.bf16.mxu0 0
      %2705 = vmatpush1.bf16.msra.mxu0 0
      %2706 = vmatprep.subr.bf16.mxu0 0
      %2707 = vmatpush1.bf16.msra.mxu0 0
      %2708 = vmatprep.subr.bf16.mxu0 0
      %2709 = vmatpush1.bf16.msra.mxu0 0
      %2710 = vmatprep.subr.bf16.mxu0 0
      %2711 = vmatpush1.bf16.msra.mxu0 0
      %2712 = vmatprep.subr.bf16.mxu0 0
      %2713 = vmatpush1.bf16.msra.mxu0 0
      %2714 = vmatprep.subr.bf16.mxu0 0
      %2715 = vmatpush1.bf16.msra.mxu0 0
      %2716 = vmatprep.subr.bf16.mxu0 0
      %2717 = vmatpush1.bf16.msra.mxu0 0
      %2718 = vmatprep.subr.bf16.mxu0 0
      %2719 = vmatpush1.bf16.msra.mxu0 0
      %2720 = vmatprep.subr.bf16.mxu0 0
      %2721 = vmatpush1.bf16.msra.mxu0 0
      %2722 = vmatprep.subr.bf16.mxu0 0
      %2723 = vmatpush1.bf16.msra.mxu0 0
      %2724 = vmatprep.mubr.bf16.mxu0 0
      %2725 = vmatmul.mubr.bf16.gmra.mrb[0].mxu0 %v2675
      %v2726 = vpop.f32.mrb[0].mxu0
      %v2727 = vadd.f32 0.0, %v2726
      %v2728 = vpop.f32.mrb[0].mxu0
      %v2729 = vpop.f32.mrb[0].mxu0
      %v2730 = vadd.f32 0.0, %v2729
      %v2731 = vpop.f32.mrb[0].mxu0
      %2732 = vmatprep.mubr.bf16.mxu0 0
      %2733 = vmatmul.mubr.bf16.gmra.mrb[0].mxu0 %v2678
      %v2734 = vpop.f32.mrb[0].mxu0
      %v2735 = vadd.f32 0.0, %v2734
      %v2736 = vpop.f32.mrb[0].mxu0
      %v2737 = vpop.f32.mrb[0].mxu0
      %v2738 = vadd.f32 0.0, %v2737
      %v2739 = vpop.f32.mrb[0].mxu0
      %2740 = vmatprep.mubr.bf16.mxu0 0
      %2741 = vmatmul.mubr.bf16.gmra.mrb[0].mxu0 %v2681
      %v2742 = vpop.f32.mrb[0].mxu0
      %v2743 = vadd.f32 0.0, %v2742
      %v2744 = vpop.f32.mrb[0].mxu0
      %v2745 = vpop.f32.mrb[0].mxu0
      %v2746 = vadd.f32 0.0, %v2745
      %v2747 = vpop.f32.mrb[0].mxu0
      %2748 = vmatprep.mubr.bf16.mxu0 0
      %2749 = vmatmul.mubr.bf16.gmra.mrb[0].mxu0 %v2684
      %v2750 = vpop.f32.mrb[0].mxu0
      %v2751 = vadd.f32 0.0, %v2750
      %v2752 = vpop.f32.mrb[0].mxu0
      %v2753 = vpop.f32.mrb[0].mxu0
      %v2754 = vadd.f32 0.0, %v2753
      %v2755 = vpop.f32.mrb[0].mxu0
      %2756 = vmatprep.mubr.bf16.mxu0 0
      %2757 = vmatmul.mubr.bf16.gmra.mrb[0].mxu0 %v2687
      %v2758 = vpop.f32.mrb[0].mxu0
      %v2759 = vadd.f32 0.0, %v2758
      %v2760 = vpop.f32.mrb[0].mxu0
      %v2761 = vpop.f32.mrb[0].mxu0
      %v2762 = vadd.f32 0.0, %v2761
      %v2763 = vpop.f32.mrb[0].mxu0
      %2764 = vdwg.mxu0
      %v2765 = vadd.f32 %v2637, %v2727
      %v2766 = vadd.f32 %v2638, %v2730
      %v2767 = vadd.f32 %v2639, %v2735
      %v2768 = vadd.f32 %v2640, %v2738
      %v2769 = vadd.f32 %v2641, %v2743
      %v2770 = vadd.f32 %v2642, %v2746
      %v2771 = vadd.f32 %v2643, %v2751
      %v2772 = vadd.f32 %v2644, %v2754
      %v2773 = vadd.f32 %v2645, %v2759
      %v2774 = vadd.f32 %v2646, %v2762
      %v2775 = vld [vmem:[%s2] sm:$0x1]
      %v2777 = vlaneseq
      %v2778 = vshrl.u32 %v2777, 7
      %v2779 = vsub.s32 0, %v2778
      %v2780 = vrot.slane %v2775, %v2779
      %v2782 = vadd.f32 %v2765, %v2780
      %v2783 = vadd.f32 %v2766, %v2780
      %v2784 = vadd.f32 %v2767, %v2780
      %v2785 = vadd.f32 %v2768, %v2780
      %v2786 = vadd.f32 %v2769, %v2780
      %v2787 = vadd.f32 %v2770, %v2780
      %v2788 = vadd.f32 %v2771, %v2780
      %v2789 = vadd.f32 %v2772, %v2780
      %v2790 = vadd.f32 %v2773, %v2780
      %v2791 = vadd.f32 %v2774, %v2780
      %vm2792 = vcmp.ge.f32.partialorder %v2782, 0.0
      %vm2793 = vcmp.ge.f32.partialorder %v2783, 0.0
      %vm2794 = vcmp.ge.f32.partialorder %v2784, 0.0
      %vm2795 = vcmp.ge.f32.partialorder %v2785, 0.0
      %vm2796 = vcmp.ge.f32.partialorder %v2786, 0.0
      %vm2797 = vcmp.ge.f32.partialorder %v2787, 0.0
      %vm2798 = vcmp.ge.f32.partialorder %v2788, 0.0
      %vm2799 = vcmp.ge.f32.partialorder %v2789, 0.0
      %vm2800 = vcmp.ge.f32.partialorder %v2790, 0.0
      %vm2801 = vcmp.ge.f32.partialorder %v2791, 0.0
      %v2802 = vmul.f32 %v2782, 0.2
      %v2803 = vmul.f32 %v2783, 0.2
      %v2804 = vmul.f32 %v2784, 0.2
      %v2805 = vmul.f32 %v2785, 0.2
      %v2806 = vmul.f32 %v2786, 0.2
      %v2807 = vmul.f32 %v2787, 0.2
      %v2808 = vmul.f32 %v2788, 0.2
      %v2809 = vmul.f32 %v2789, 0.2
      %v2810 = vmul.f32 %v2790, 0.2
      %v2811 = vmul.f32 %v2791, 0.2
      %v2812 = vsel %vm2792, %v2782, %v2802
      %v2813 = vsel %vm2793, %v2783, %v2803
      %v2814 = vsel %vm2794, %v2784, %v2804
      %v2815 = vsel %vm2795, %v2785, %v2805
      %v2816 = vsel %vm2796, %v2786, %v2806
      %v2817 = vsel %vm2797, %v2787, %v2807
      %v2818 = vsel %vm2798, %v2788, %v2808
      %v2819 = vsel %vm2799, %v2789, %v2809
      %v2820 = vsel %vm2800, %v2790, %v2810
      %v2821 = vsel %vm2801, %v2791, %v2811
      %v2822 = vpack.c.bf16 %v2813, %v2812
      %v2823 = vpack.c.bf16 %v2815, %v2814
      %v2824 = vpack.c.bf16 %v2817, %v2816
      %v2825 = vpack.c.bf16 %v2819, %v2818
      %v2826 = vpack.c.bf16 %v2821, %v2820
      %v2832 = vunpack.c.l.b16 %v2822
      %v2833 = vunpack.c.h.b16 %v2822
      %v2834 = vunpack.c.l.b16 %v2823
      %v2835 = vunpack.c.h.b16 %v2823
      %v2836 = vunpack.c.l.b16 %v2824
      %v2837 = vunpack.c.h.b16 %v2824
      %v2838 = vunpack.c.l.b16 %v2825
      %v2839 = vunpack.c.h.b16 %v2825
      %v2840 = vunpack.c.l.b16 %v2826
      %v2841 = vunpack.c.h.b16 %v2826
      %v2842 = vpack.c.b16 %v2832, %v2832
      %v2843 = vpack.c.b16 %v2833, %v2833
      %v2844 = vpack.c.b16 %v2834, %v2834
      %v2845 = vpack.c.b16 %v2835, %v2835
      %v2846 = vpack.c.b16 %v2836, %v2836
      %v2847 = vpack.c.b16 %v2837, %v2837
      %v2848 = vpack.c.b16 %v2838, %v2838
      %v2849 = vpack.c.b16 %v2839, %v2839
      %v2850 = vpack.c.b16 %v2840, %v2840
      %v2851 = vpack.c.b16 %v2841, %v2841
      %vm2862 = vcmask 125952
      %2863 = vst.msk [vmem:[%s170] sm:$0xf] %vm2862, %v2842
      %2864 = vst.msk [vmem:[%s170 + $0x4] sm:$0xf] %vm2862, %v2843
      %2865 = vst.msk [vmem:[%s170 + $0x8] sm:$0xf] %vm2862, %v2844
      %2866 = vst.msk [vmem:[%s170 + $0xc] sm:$0xf] %vm2862, %v2845
      %2867 = vst.msk [vmem:[%s170 + $0x10] sm:$0xf] %vm2862, %v2846
      %2868 = vst.msk [vmem:[%s170 + $0x14] sm:$0xf] %vm2862, %v2847
      %2869 = vst.msk [vmem:[%s170 + $0x18] sm:$0xf] %vm2862, %v2848
      %2870 = vst.msk [vmem:[%s170 + $0x1c] sm:$0xf] %vm2862, %v2849
      %2871 = vst.msk [vmem:[%s170 + $0x20] sm:$0xf] %vm2862, %v2850
      %2872 = vst.msk [vmem:[%s170 + $0x24] sm:$0xf] %vm2862, %v2851
      %p2873 = scmp.lt.s32.totalorder %s14, 3
      %s2874 = scalar_select %p2873, %s14, 3
      %s2875 = smul.addr %s2874, 10
      %s2876 = smul.addr %s2875, 4
      %s2877 = scalar_lea.vmem %s3, %s2876
      // Predicated region
      $region33: #{loss_D_forward.4} parent=31 // pred_check
        %p2878 = pneg %p100
      $region34: #{loss_D_forward.4} parent=31 // pred_check_branch
        %2880 = sbr.rel (%p2878) target = $region36
      $region35: #{loss_D_forward.4} parent=31 // pred_region
        _
      $region36: #{loss_D_forward.4} parent=31 // pred_fallthru
        _
    $region32: #{loss_D_forward.4} parent=5 // pred_fallthru
      _
    %p2881 = scmp.le.s32.totalorder 2, %s9
    // Predicated region
    $region37: #{loss_D_forward.4} parent=5 // pred_check
      %p2882 = pneg %p2881
    $region38: #{loss_D_forward.4} parent=5 // pred_check_branch
      %2884 = sbr.rel (%p2882) target = $region40
    $region39: #{loss_D_forward.4} parent=5 // pred_region
      %s2885 = ssub.s32 %s9, 2
      // Predicated region
      $region41: #{loss_D_forward.4} parent=39 // pred_check
        %p2886 = pneg %p106
      $region42: #{loss_D_forward.4} parent=39 // pred_check_branch
        %2888 = sbr.rel (%p2886) target = $region44
      $region43: #{loss_D_forward.4} parent=39 // pred_region
        %p2889 = scmp.lt.s32.totalorder %s15, 3
        %s2890 = scalar_select %p2889, %s15, 3
        %s2891 = smul.addr %s2890, 10
        %s2892 = smul.addr %s2891, 4
        %s2893 = scalar_lea.vmem %s3, %s2892
      $region44: #{loss_D_forward.4} parent=39 // pred_fallthru
        _
    $region40: #{loss_D_forward.4} parent=5 // pred_fallthru
      _
  $region6: #{loss_D_forward.4} parent=0 // loop_footer
    %s13 = sadd.s32 1, %s9
  $region7: #{loss_D_forward.4} parent=0 // loop_footer_branch
    %8 = sbr.rel target = $region3
  $region8: #{loss_D_forward.4} parent=0 // loop_exit
    _

// kernel: loss_D_forward.5
$region0: #{loss_D_forward.5}
  #allocation0 [shape = 'u32[]', space=smem, size = 0x4, offset = 0x4, fixed_abs, tag = 'smem constant byte address 0x4 - core index']
  #allocation1 [shape = 'u32[144,128]{1,0:T(1,128)}', space=vmem, size = 0x12000, scoped, tag = 'internal scratch']
  #allocation2 [shape = 'bf16[42,32]{1,0:T(8,128)(2,1)}', space=vmem, size = 0x3000, scoped, tag = 'scratch operand']
  #allocation3 [shape = 'f32[1,1]{1,0:T(1,128)}', space=vmem, size = 0x200, scoped, tag = 'scratch operand']
  #allocation4 [shape = 'f32[1,1]{1,0:T(1,128)S(1)}', space=vmem, size = 0x200, scoped, tag = 'scoped memory for loss_D_forward.5']
  %s0 = inlined_call_operand.vmem [shape: bf16[4,168,16], index: 0, kind: input, shape index: {}]
  %s1 = inlined_call_operand.vmem [shape: bf16[256,32], index: 1, kind: input, shape index: {}]
  %s2 = inlined_call_operand.vmem [shape: f32[1,32], index: 2, kind: input, shape index: {}]
  %s3 = inlined_call_operand.vmem [shape: bf16[512,1], index: 3, kind: input, shape index: {}]
  %s4 = inlined_call_operand.<no memory space> [shape: f32[1,1], index: 4, kind: input, shape index: {}]
  %s5 = inlined_call_operand.vmem [shape: f32[24,1], index: 5, kind: input, shape index: {}]
  %s6 = inlined_call_operand.vmem [shape: f32[18,1], index: 6, kind: input, shape index: {}]
  %s7 = inlined_call_operand.vmem [shape: f32[2,8,128], index: 7, kind: output, shape index: {}]
  %s8 = sld [smem:[#allocation0]]
  $region69: #{loss_D_forward.5} parent=0
    _
  %s10 = ssub.s32 1, %s8
  %s11 = scalar_select 0, %s10, %s8
  %v12 = vstv %s4
  %13 = vst [vmem:[#allocation4] sm:$0x1] %v12
  loop: start=0, step=1, limit=6
  $region2: #{loss_D_forward.5} parent=0 // loop_pre_header
    _
  $region3: #{loss_D_forward.5} parent=0 // loop_header
    %s15 = sphi 0, %s19
    %p16 = scmp.ge.s32.totalorder %s15, 6
    %s22 = sphi 0, %s34
    %s23 = sphi 0, %s30
    %s24 = sphi 0, %s22
    %s25 = sphi 0, %s23
    %s26 = sphi 0, %s24
    %s27 = sphi 0, %s25
    %s41 = sphi 0, %s43
    %s44 = sphi 0, %s41
    %s45 = sphi 0, %s44
    %s61 = sphi 0, %s45
    %s65 = sphi 0, %s65
    %s67 = sphi 0, %s65
    %s68 = sphi 0, %s67
    %s82 = sphi 0, %s68
    %s86 = sphi 0, %s86
    %s88 = sphi 0, %s86
    %s89 = sphi 0, %s88
    %s103 = sphi 0, %s89
    %s107 = sphi 0, %s107
    %s109 = sphi 0, %s107
    %s110 = sphi 0, %s109
    %s124 = sphi 0, %s110
    %s128 = sphi 0, %s128
    %s130 = sphi 0, %s128
    %s131 = sphi 0, %s130
    %s145 = sphi 0, %s131
    %s149 = sphi 0, %s149
    %s151 = sphi 0, %s149
    %s152 = sphi 0, %s151
    %s166 = sphi 0, %s152
    %s170 = sphi 0, %s170
    %s172 = sphi 0, %s170
    %s173 = sphi 0, %s172
    %s187 = sphi 0, %s173
    %s193 = sphi 0, %s195
    %s196 = sphi 0, %s193
    %s197 = sphi 0, %s196
    %s213 = sphi 0, %s197
  $region4: #{loss_D_forward.5} parent=0 // loop_header_branch
    %18 = sbr.rel (%p16) target = $region8
  $region5: #{loss_D_forward.5} parent=0 // loop_body
    %s20 = ssub.s32 %s15, 1
    %s21 = ssub.s32 %s15, 2
    %s28 = sadd.s32 1, %s23
    %p29 = scmp.ge.s32.totalorder %s28, 2
    %s30 = scalar_select %p29, 0, %s28
    %s31 = sadd.s32 1, %s22
    %s32 = scalar_select %p29, %s31, %s22
    %p33 = scmp.ge.s32.totalorder %s32, 2
    %s34 = scalar_select %p33, 0, %s32
    %s35 = smul.u32 %s22, 2
    %s36 = sadd.s32 %s35, %s23
    %s37 = smul.u32 %s34, 2
    %s38 = sadd.s32 %s37, %s30
    %s39 = ssub.s32 %s36, %s38
    %p40 = scmp.eq.s32.totalorder %s39, 0
    %s42 = sadd.s32 %s41, 1
    %s43 = scalar_select %p40, %s41, %s42
    %p46 = pneg %p40
    %p47 = scmp.eq.s32.totalorder %s15, 3
    %p48 = por %p46, %p47
    %p49 = scmp.ne.s32.totalorder %s41, %s44
    %p50 = scmp.eq.s32.totalorder %s15, 0
    %p51 = por %p49, %p50
    %p52 = scmp.ne.s32.totalorder %s41, %s44
    %p53 = scmp.eq.s32.totalorder %s20, 3
    %p54 = por %p52, %p53
    %p55 = scmp.ne.s32.totalorder %s44, %s45
    %p56 = scmp.eq.s32.totalorder %s20, 0
    %p57 = por %p55, %p56
    %p58 = scmp.ne.s32.totalorder %s44, %s45
    %p59 = scmp.eq.s32.totalorder %s21, 3
    %p60 = por %p58, %p59
    %p62 = scmp.ne.s32.totalorder %s45, %s61
    %p63 = scmp.eq.s32.totalorder %s21, 0
    %p64 = por %p62, %p63
    %s66 = sadd.s32 %s65, 1
    %p69 = scmp.eq.s32.totalorder %s15, 3
    %p70 = scmp.ne.s32.totalorder %s65, %s67
    %p71 = scmp.eq.s32.totalorder %s15, 0
    %p72 = por %p70, %p71
    %p73 = scmp.ne.s32.totalorder %s65, %s67
    %p74 = scmp.eq.s32.totalorder %s20, 3
    %p75 = por %p73, %p74
    %p76 = scmp.ne.s32.totalorder %s67, %s68
    %p77 = scmp.eq.s32.totalorder %s20, 0
    %p78 = por %p76, %p77
    %p79 = scmp.ne.s32.totalorder %s67, %s68
    %p80 = scmp.eq.s32.totalorder %s21, 3
    %p81 = por %p79, %p80
    %p83 = scmp.ne.s32.totalorder %s68, %s82
    %p84 = scmp.eq.s32.totalorder %s21, 0
    %p85 = por %p83, %p84
    %s87 = sadd.s32 %s86, 1
    %p90 = scmp.eq.s32.totalorder %s15, 3
    %p91 = scmp.ne.s32.totalorder %s86, %s88
    %p92 = scmp.eq.s32.totalorder %s15, 0
    %p93 = por %p91, %p92
    %p94 = scmp.ne.s32.totalorder %s86, %s88
    %p95 = scmp.eq.s32.totalorder %s20, 3
    %p96 = por %p94, %p95
    %p97 = scmp.ne.s32.totalorder %s88, %s89
    %p98 = scmp.eq.s32.totalorder %s20, 0
    %p99 = por %p97, %p98
    %p100 = scmp.ne.s32.totalorder %s88, %s89
    %p101 = scmp.eq.s32.totalorder %s21, 3
    %p102 = por %p100, %p101
    %p104 = scmp.ne.s32.totalorder %s89, %s103
    %p105 = scmp.eq.s32.totalorder %s21, 0
    %p106 = por %p104, %p105
    %s108 = sadd.s32 %s107, 1
    %p111 = scmp.eq.s32.totalorder %s15, 3
    %p112 = scmp.ne.s32.totalorder %s107, %s109
    %p113 = scmp.eq.s32.totalorder %s15, 0
    %p114 = por %p112, %p113
    %p115 = scmp.ne.s32.totalorder %s107, %s109
    %p116 = scmp.eq.s32.totalorder %s20, 3
    %p117 = por %p115, %p116
    %p118 = scmp.ne.s32.totalorder %s109, %s110
    %p119 = scmp.eq.s32.totalorder %s20, 0
    %p120 = por %p118, %p119
    %p121 = scmp.ne.s32.totalorder %s109, %s110
    %p122 = scmp.eq.s32.totalorder %s21, 3
    %p123 = por %p121, %p122
    %p125 = scmp.ne.s32.totalorder %s110, %s124
    %p126 = scmp.eq.s32.totalorder %s21, 0
    %p127 = por %p125, %p126
    %s129 = sadd.s32 %s128, 1
    %p132 = scmp.eq.s32.totalorder %s15, 3
    %p133 = scmp.ne.s32.totalorder %s128, %s130
    %p134 = scmp.eq.s32.totalorder %s15, 0
    %p135 = por %p133, %p134
    %p136 = scmp.ne.s32.totalorder %s128, %s130
    %p137 = scmp.eq.s32.totalorder %s20, 3
    %p138 = por %p136, %p137
    %p139 = scmp.ne.s32.totalorder %s130, %s131
    %p140 = scmp.eq.s32.totalorder %s20, 0
    %p141 = por %p139, %p140
    %p142 = scmp.ne.s32.totalorder %s130, %s131
    %p143 = scmp.eq.s32.totalorder %s21, 3
    %p144 = por %p142, %p143
    %p146 = scmp.ne.s32.totalorder %s131, %s145
    %p147 = scmp.eq.s32.totalorder %s21, 0
    %p148 = por %p146, %p147
    %s150 = sadd.s32 %s149, 1
    %p153 = scmp.eq.s32.totalorder %s15, 3
    %p154 = scmp.ne.s32.totalorder %s149, %s151
    %p155 = scmp.eq.s32.totalorder %s15, 0
    %p156 = por %p154, %p155
    %p157 = scmp.ne.s32.totalorder %s149, %s151
    %p158 = scmp.eq.s32.totalorder %s20, 3
    %p159 = por %p157, %p158
    %p160 = scmp.ne.s32.totalorder %s151, %s152
    %p161 = scmp.eq.s32.totalorder %s20, 0
    %p162 = por %p160, %p161
    %p163 = scmp.ne.s32.totalorder %s151, %s152
    %p164 = scmp.eq.s32.totalorder %s21, 3
    %p165 = por %p163, %p164
    %p167 = scmp.ne.s32.totalorder %s152, %s166
    %p168 = scmp.eq.s32.totalorder %s21, 0
    %p169 = por %p167, %p168
    %s171 = sadd.s32 %s170, 1
    %p174 = scmp.eq.s32.totalorder %s15, 3
    %p175 = scmp.ne.s32.totalorder %s170, %s172
    %p176 = scmp.eq.s32.totalorder %s15, 0
    %p177 = por %p175, %p176
    %p178 = scmp.ne.s32.totalorder %s170, %s172
    %p179 = scmp.eq.s32.totalorder %s20, 3
    %p180 = por %p178, %p179
    %p181 = scmp.ne.s32.totalorder %s172, %s173
    %p182 = scmp.eq.s32.totalorder %s20, 0
    %p183 = por %p181, %p182
    %p184 = scmp.ne.s32.totalorder %s172, %s173
    %p185 = scmp.eq.s32.totalorder %s21, 3
    %p186 = por %p184, %p185
    %p188 = scmp.ne.s32.totalorder %s173, %s187
    %p189 = scmp.eq.s32.totalorder %s21, 0
    %p190 = por %p188, %p189
    %s191 = ssub.s32 %s22, %s34
    %p192 = scmp.eq.s32.totalorder %s191, 0
    %s194 = sadd.s32 %s193, 1
    %s195 = scalar_select %p192, %s193, %s194
    %p198 = pneg %p192
    %p199 = scmp.eq.s32.totalorder %s15, 3
    %p200 = por %p198, %p199
    %p201 = scmp.ne.s32.totalorder %s193, %s196
    %p202 = scmp.eq.s32.totalorder %s15, 0
    %p203 = por %p201, %p202
    %p204 = scmp.ne.s32.totalorder %s193, %s196
    %p205 = scmp.eq.s32.totalorder %s20, 3
    %p206 = por %p204, %p205
    %p207 = scmp.ne.s32.totalorder %s196, %s197
    %p208 = scmp.eq.s32.totalorder %s20, 0
    %p209 = por %p207, %p208
    %p210 = scmp.ne.s32.totalorder %s196, %s197
    %p211 = scmp.eq.s32.totalorder %s21, 3
    %p212 = por %p210, %p211
    %p214 = scmp.ne.s32.totalorder %s197, %s213
    %p215 = scmp.eq.s32.totalorder %s21, 0
    %p216 = por %p214, %p215
    %p217 = scmp.le.s32.totalorder 1, %s15
    %p218 = scmp.lt.s32.totalorder %s15, 5
    %p219 = pnand %p217, %p218
    %p220 = pneg %p219
    // Predicated region
    $region9: #{loss_D_forward.5} parent=5 // pred_check
      _
    $region10: #{loss_D_forward.5} parent=5 // pred_check_branch
      %222 = sbr.rel (%p219) target = $region12
    $region11: #{loss_D_forward.5} parent=5 // pred_region
      %s223 = ssub.s32 %s15, 1
      // Predicated region
      $region13: #{loss_D_forward.5} parent=11 // pred_check
        %p224 = pneg %p78
      $region14: #{loss_D_forward.5} parent=11 // pred_check_branch
        %226 = sbr.rel (%p224) target = $region16
      $region15: #{loss_D_forward.5} parent=11 // pred_region
        _
      $region16: #{loss_D_forward.5} parent=11 // pred_fallthru
        _
      // Predicated region
      $region17: #{loss_D_forward.5} parent=11 // pred_check
        %p227 = pneg %p99
      $region18: #{loss_D_forward.5} parent=11 // pred_check_branch
        %229 = sbr.rel (%p227) target = $region20
      $region19: #{loss_D_forward.5} parent=11 // pred_region
        _
      $region20: #{loss_D_forward.5} parent=11 // pred_fallthru
        _
      // Predicated region
      $region21: #{loss_D_forward.5} parent=11 // pred_check
        %p230 = pneg %p120
      $region22: #{loss_D_forward.5} parent=11 // pred_check_branch
        %232 = sbr.rel (%p230) target = $region24
      $region23: #{loss_D_forward.5} parent=11 // pred_region
        _
      $region24: #{loss_D_forward.5} parent=11 // pred_fallthru
        _
      // Predicated region
      $region25: #{loss_D_forward.5} parent=11 // pred_check
        %p233 = pneg %p141
      $region26: #{loss_D_forward.5} parent=11 // pred_check_branch
        %235 = sbr.rel (%p233) target = $region28
      $region27: #{loss_D_forward.5} parent=11 // pred_region
        _
      $region28: #{loss_D_forward.5} parent=11 // pred_fallthru
        _
      // Predicated region
      $region29: #{loss_D_forward.5} parent=11 // pred_check
        %p236 = pneg %p162
      $region30: #{loss_D_forward.5} parent=11 // pred_check_branch
        %238 = sbr.rel (%p236) target = $region32
      $region31: #{loss_D_forward.5} parent=11 // pred_region
        _
      $region32: #{loss_D_forward.5} parent=11 // pred_fallthru
        _
      // Predicated region
      $region33: #{loss_D_forward.5} parent=11 // pred_check
        %p239 = pneg %p183
      $region34: #{loss_D_forward.5} parent=11 // pred_check_branch
        %241 = sbr.rel (%p239) target = $region36
      $region35: #{loss_D_forward.5} parent=11 // pred_region
        _
      $region36: #{loss_D_forward.5} parent=11 // pred_fallthru
        _
    $region12: #{loss_D_forward.5} parent=5 // pred_fallthru
      _
    %p242 = scmp.lt.s32.totalorder %s15, 4
    // Predicated region
    $region37: #{loss_D_forward.5} parent=5 // pred_check
      %p243 = pneg %p242
    $region38: #{loss_D_forward.5} parent=5 // pred_check_branch
      %245 = sbr.rel (%p243) target = $region40
    $region39: #{loss_D_forward.5} parent=5 // pred_region
      // Predicated region
      $region41: #{loss_D_forward.5} parent=39 // pred_check
        %p246 = pneg %p51
      $region42: #{loss_D_forward.5} parent=39 // pred_check_branch
        %248 = sbr.rel (%p246) target = $region44
      $region43: #{loss_D_forward.5} parent=39 // pred_region
        %s249 = smul.u32 %s22, 2
        %s250 = sadd.s32 %s249, %s23
        %p251 = scmp.lt.s32.totalorder %s250, 3
        %s252 = scalar_select %p251, %s250, 3
        %s253 = smul.addr %s252, 21
        %s254 = smul.addr %s253, 4
        %s255 = scalar_lea.vmem %s0, %s254
        %s256 = smul.u32 %s22, 2
        %s257 = sadd.s32 %s256, %s23
      $region44: #{loss_D_forward.5} parent=39 // pred_fallthru
        _
    $region40: #{loss_D_forward.5} parent=5 // pred_fallthru
      _
    %p258 = scmp.le.s32.totalorder 1, %s15
    %p259 = scmp.lt.s32.totalorder %s15, 5
    %p260 = pnand %p258, %p259
    %p261 = pneg %p260
    // Predicated region
    $region45: #{loss_D_forward.5} parent=5 // pred_check
      _
    $region46: #{loss_D_forward.5} parent=5 // pred_check_branch
      %263 = sbr.rel (%p260) target = $region48
    $region47: #{loss_D_forward.5} parent=5 // pred_region
      %s264 = ssub.s32 %s15, 1
      %s265 = smul.u32 %s24, 2
      %s266 = sadd.s32 %s265, %s25
      %p267 = scmp.lt.s32.totalorder %s266, 3
      %s268 = scalar_select %p267, %s266, 3
      %s269 = smul.addr %s268, 21
      %s270 = smul.addr %s269, 4
      %s271 = scalar_lea.vmem %s0, %s270
      %p272 = pneg %p57
      %p273 = pneg %p54
      %p274 = pneg %p78
      %p275 = pneg %p75
      %p276 = pneg %p99
      %p277 = pneg %p96
      %p278 = pneg %p120
      %p279 = pneg %p117
      %p280 = pneg %p141
      %p281 = pneg %p138
      %p282 = pneg %p162
      %p283 = pneg %p159
      %p284 = pneg %p183
      %p285 = pneg %p180
      %p286 = pneg %p209
      %p287 = pneg %p206
      %p288 = scmp.lt.s32.totalorder %s24, 1
      %s289 = scalar_select %p288, %s24, 1
      %s290 = smul.addr %s289, 8
      %s291 = scalar_lea.vmem %s7, %s290
      %s292 = smul.u32 %s24, 2
      %s293 = sadd.s32 %s292, %s25
      %p294 = scmp.lt.s32.totalorder %s293, 3
      %s295 = scalar_select %p294, %s293, 3
      %s296 = smul.addr %s295, 21
      %s297 = smul.addr %s296, 4
      %s298 = scalar_lea.vmem %s0, %s297
      %s299 = smul.u32 %s24, 2
      %s300 = sadd.s32 %s299, %s25
      %p301 = scmp.lt.s32.totalorder %s24, 1
      %s302 = scalar_select %p301, %s24, 1
      %s303 = smul.addr %s302, 8
      %s304 = scalar_lea.vmem %s7, %s303
      %s306 = smul.u32 %s24, 2
      %s307 = sadd.s32 %s306, %s25
      %p308 = scmp.eq.s32.totalorder %s25, 0
      // Predicated region
      $region49: #{loss_D_forward.5} parent=47 // pred_check
        %p309 = pneg %p308
      $region50: #{loss_D_forward.5} parent=47 // pred_check_branch
        %311 = sbr.rel (%p309) target = $region52
      $region51: #{loss_D_forward.5} parent=47 // pred_region
        %vm312 = vcmask 0
        %313 = vst.msk [vmem:[#allocation3] sm:$0x1] %vm312, 0.0
      $region52: #{loss_D_forward.5} parent=47 // pred_fallthru
        _
      %v314 = vld [vmem:[%s298 + $0x3c] sm:$0x8]
      %v315 = vld [vmem:[%s298 + $0x40] sm:$0xf]
      %v316 = vld [vmem:[%s298 + $0x44] sm:$0xf]
      %v317 = vld [vmem:[%s298 + $0x48] sm:$0x7]
      %v318 = vld [vmem:[%s1] sm:$0xf]
      %v319 = vld [vmem:[%s1 + $0x4] sm:$0xf]
      %v320 = vld [vmem:[%s298 + $0x28] sm:$0xc]
      %v321 = vld [vmem:[%s298 + $0x2c] sm:$0xf]
      %v322 = vld [vmem:[%s298 + $0x30] sm:$0xf]
      %v323 = vld [vmem:[%s298 + $0x34] sm:$0x7]
      %v324 = vld [vmem:[%s1 + $0x8] sm:$0xf]
      %v325 = vld [vmem:[%s1 + $0xc] sm:$0xf]
      %v330 = vunpack.c.l.b16 %v320
      %v331 = vunpack.c.l.b16 %v321
      %v332 = vunpack.c.l.b16 %v322
      %v333 = vunpack.c.l.b16 %v323
      %v334 = vpack.c.b16 %v331, %v330
      %v335 = vpack.c.b16 %v333, %v332
      %vm336 = vsmask.f32 5376
      %v338 = vshrl.u32 %v334, 16
      %v340 = vrot.slane %v338, 2
      %v341 = vshll.u32 %v334, 16
      %v343 = vrot.slane %v341, 3
      %v344 = vor.u32 %v340, %v343
      %v346 = vshrl.u32 %v335, 16
      %v348 = vrot.slane %v346, 2
      %v349 = vshll.u32 %v335, 16
      %v351 = vrot.slane %v349, 3
      %v352 = vor.u32 %v348, %v351
      %v353 = vsel %vm336, %v344, %v352
      %v356 = vunpack.c.l.b16 %v324
      %v357 = vunpack.c.l.b16 %v325
      %v358 = vpack.c.b16 %v357, %v356
      %vm360 = vcmask 130048
      %v362 = vsel %vm360, %v353, 0
      %v365 = vsel %vm360, %v352, 0
      %367 = vmatprep.subr.bf16.mxu0 0
      %368 = vmatpush1.bf16.msra.mxu0 %v358
      %369 = vmatprep.subr.bf16.mxu0 0
      %370 = vmatpush1.bf16.msra.mxu0 0
      %371 = vmatprep.subr.bf16.mxu0 0
      %372 = vmatpush1.bf16.msra.mxu0 0
      %373 = vmatprep.subr.bf16.mxu0 0
      %374 = vmatpush1.bf16.msra.mxu0 0
      %375 = vmatprep.subr.bf16.mxu0 0
      %376 = vmatpush1.bf16.msra.mxu0 0
      %377 = vmatprep.subr.bf16.mxu0 0
      %378 = vmatpush1.bf16.msra.mxu0 0
      %379 = vmatprep.subr.bf16.mxu0 0
      %380 = vmatpush1.bf16.msra.mxu0 0
      %381 = vmatprep.subr.bf16.mxu0 0
      %382 = vmatpush1.bf16.msra.mxu0 0
      %383 = vmatprep.subr.bf16.mxu0 0
      %384 = vmatpush1.bf16.msra.mxu0 0
      %385 = vmatprep.subr.bf16.mxu0 0
      %386 = vmatpush1.bf16.msra.mxu0 0
      %387 = vmatprep.subr.bf16.mxu0 0
      %388 = vmatpush1.bf16.msra.mxu0 0
      %389 = vmatprep.subr.bf16.mxu0 0
      %390 = vmatpush1.bf16.msra.mxu0 0
      %391 = vmatprep.subr.bf16.mxu0 0
      %392 = vmatpush1.bf16.msra.mxu0 0
      %393 = vmatprep.subr.bf16.mxu0 0
      %394 = vmatpush1.bf16.msra.mxu0 0
      %395 = vmatprep.subr.bf16.mxu0 0
      %396 = vmatpush1.bf16.msra.mxu0 0
      %397 = vmatprep.subr.bf16.mxu0 0
      %398 = vmatpush1.bf16.msra.mxu0 0
      %399 = vmatprep.mubr.bf16.mxu0 0
      %400 = vmatmul.mubr.bf16.gmra.mrb[0].mxu0 %v362
      %v401 = vpop.f32.mrb[0].mxu0
      %v402 = vadd.f32 0.0, %v401
      %v403 = vpop.f32.mrb[0].mxu0
      %v404 = vpop.f32.mrb[0].mxu0
      %v405 = vadd.f32 0.0, %v404
      %v406 = vpop.f32.mrb[0].mxu0
      %407 = vmatprep.mubr.bf16.mxu0 0
      %408 = vmatmul.mubr.bf16.gmra.mrb[0].mxu0 %v365
      %v409 = vpop.f32.mrb[0].mxu0
      %v410 = vadd.f32 0.0, %v409
      %v411 = vpop.f32.mrb[0].mxu0
      %v412 = vpop.f32.mrb[0].mxu0
      %v413 = vpop.f32.mrb[0].mxu0
      %414 = vdwg.mxu0
      %v419 = vunpack.c.l.b16 %v314
      %v420 = vunpack.c.l.b16 %v315
      %v421 = vunpack.c.l.b16 %v316
      %v422 = vunpack.c.l.b16 %v317
      %v423 = vpack.c.b16 %v420, %v419
      %v424 = vpack.c.b16 %v422, %v421
      %vm425 = vcmask 1044480
      %v426 = vrot.slane %v423, 3
      %v427 = vrot.slane %v424, 3
      %v428 = vsel %vm425, %v426, %v427
      %v431 = vunpack.c.l.b16 %v318
      %v432 = vunpack.c.l.b16 %v319
      %v433 = vpack.c.b16 %v432, %v431
      %v436 = vsel %vm360, %v428, 0
      %v439 = vsel %vm360, %v427, 0
      %441 = vmatprep.subr.bf16.mxu0 0
      %442 = vmatpush1.bf16.msra.mxu0 %v433
      %443 = vmatprep.subr.bf16.mxu0 0
      %444 = vmatpush1.bf16.msra.mxu0 0
      %445 = vmatprep.subr.bf16.mxu0 0
      %446 = vmatpush1.bf16.msra.mxu0 0
      %447 = vmatprep.subr.bf16.mxu0 0
      %448 = vmatpush1.bf16.msra.mxu0 0
      %449 = vmatprep.subr.bf16.mxu0 0
      %450 = vmatpush1.bf16.msra.mxu0 0
      %451 = vmatprep.subr.bf16.mxu0 0
      %452 = vmatpush1.bf16.msra.mxu0 0
      %453 = vmatprep.subr.bf16.mxu0 0
      %454 = vmatpush1.bf16.msra.mxu0 0
      %455 = vmatprep.subr.bf16.mxu0 0
      %456 = vmatpush1.bf16.msra.mxu0 0
      %457 = vmatprep.subr.bf16.mxu0 0
      %458 = vmatpush1.bf16.msra.mxu0 0
      %459 = vmatprep.subr.bf16.mxu0 0
      %460 = vmatpush1.bf16.msra.mxu0 0
      %461 = vmatprep.subr.bf16.mxu0 0
      %462 = vmatpush1.bf16.msra.mxu0 0
      %463 = vmatprep.subr.bf16.mxu0 0
      %464 = vmatpush1.bf16.msra.mxu0 0
      %465 = vmatprep.subr.bf16.mxu0 0
      %466 = vmatpush1.bf16.msra.mxu0 0
      %467 = vmatprep.subr.bf16.mxu0 0
      %468 = vmatpush1.bf16.msra.mxu0 0
      %469 = vmatprep.subr.bf16.mxu0 0
      %470 = vmatpush1.bf16.msra.mxu0 0
      %471 = vmatprep.subr.bf16.mxu0 0
      %472 = vmatpush1.bf16.msra.mxu0 0
      %473 = vmatprep.mubr.bf16.mxu0 0
      %474 = vmatmul.mubr.bf16.gmra.mrb[0].mxu0 %v436
      %v475 = vpop.f32.mrb[0].mxu0
      %v476 = vadd.f32 %v402, %v475
      %v477 = vpop.f32.mrb[0].mxu0
      %v478 = vpop.f32.mrb[0].mxu0
      %v479 = vadd.f32 %v405, %v478
      %v480 = vpop.f32.mrb[0].mxu0
      %481 = vmatprep.mubr.bf16.mxu0 0
      %482 = vmatmul.mubr.bf16.gmra.mrb[0].mxu0 %v439
      %v483 = vpop.f32.mrb[0].mxu0
      %v484 = vadd.f32 %v410, %v483
      %v485 = vpop.f32.mrb[0].mxu0
      %v486 = vpop.f32.mrb[0].mxu0
      %v487 = vpop.f32.mrb[0].mxu0
      %488 = vdwg.mxu0
      %v489 = vld [vmem:[%s298 + $0x48] sm:$0xf]
      %v490 = vld [vmem:[%s1 + $0x10] sm:$0xf]
      %v491 = vld [vmem:[%s1 + $0x14] sm:$0xf]
      %v493 = vunpack.c.l.b16 %v489
      %v494 = vpack.c.b16 %v493, %v421
      %vm495 = vsmask.f32 4352
      %v497 = vshrl.u32 %v423, 16
      %v499 = vrot.slane %v497, 3
      %v500 = vshll.u32 %v423, 16
      %v502 = vrot.slane %v500, 4
      %v503 = vor.u32 %v499, %v502
      %v505 = vshrl.u32 %v494, 16
      %v507 = vrot.slane %v505, 3
      %v508 = vshll.u32 %v494, 16
      %v510 = vrot.slane %v508, 4
      %v511 = vor.u32 %v507, %v510
      %v512 = vsel %vm495, %v503, %v511
      %v515 = vunpack.c.l.b16 %v490
      %v516 = vunpack.c.l.b16 %v491
      %v517 = vpack.c.b16 %v516, %v515
      %v520 = vsel %vm360, %v512, 0
      %v523 = vsel %vm360, %v511, 0
      %525 = vmatprep.subr.bf16.mxu0 0
      %526 = vmatpush1.bf16.msra.mxu0 %v517
      %527 = vmatprep.subr.bf16.mxu0 0
      %528 = vmatpush1.bf16.msra.mxu0 0
      %529 = vmatprep.subr.bf16.mxu0 0
      %530 = vmatpush1.bf16.msra.mxu0 0
      %531 = vmatprep.subr.bf16.mxu0 0
      %532 = vmatpush1.bf16.msra.mxu0 0
      %533 = vmatprep.subr.bf16.mxu0 0
      %534 = vmatpush1.bf16.msra.mxu0 0
      %535 = vmatprep.subr.bf16.mxu0 0
      %536 = vmatpush1.bf16.msra.mxu0 0
      %537 = vmatprep.subr.bf16.mxu0 0
      %538 = vmatpush1.bf16.msra.mxu0 0
      %539 = vmatprep.subr.bf16.mxu0 0
      %540 = vmatpush1.bf16.msra.mxu0 0
      %541 = vmatprep.subr.bf16.mxu0 0
      %542 = vmatpush1.bf16.msra.mxu0 0
      %543 = vmatprep.subr.bf16.mxu0 0
      %544 = vmatpush1.bf16.msra.mxu0 0
      %545 = vmatprep.subr.bf16.mxu0 0
      %546 = vmatpush1.bf16.msra.mxu0 0
      %547 = vmatprep.subr.bf16.mxu0 0
      %548 = vmatpush1.bf16.msra.mxu0 0
      %549 = vmatprep.subr.bf16.mxu0 0
      %550 = vmatpush1.bf16.msra.mxu0 0
      %551 = vmatprep.subr.bf16.mxu0 0
      %552 = vmatpush1.bf16.msra.mxu0 0
      %553 = vmatprep.subr.bf16.mxu0 0
      %554 = vmatpush1.bf16.msra.mxu0 0
      %555 = vmatprep.subr.bf16.mxu0 0
      %556 = vmatpush1.bf16.msra.mxu0 0
      %557 = vmatprep.mubr.bf16.mxu0 0
      %558 = vmatmul.mubr.bf16.gmra.mrb[0].mxu0 %v520
      %v559 = vpop.f32.mrb[0].mxu0
      %v560 = vadd.f32 0.0, %v559
      %v561 = vpop.f32.mrb[0].mxu0
      %v562 = vpop.f32.mrb[0].mxu0
      %v563 = vadd.f32 0.0, %v562
      %v564 = vpop.f32.mrb[0].mxu0
      %565 = vmatprep.mubr.bf16.mxu0 0
      %566 = vmatmul.mubr.bf16.gmra.mrb[0].mxu0 %v523
      %v567 = vpop.f32.mrb[0].mxu0
      %v568 = vadd.f32 0.0, %v567
      %v569 = vpop.f32.mrb[0].mxu0
      %v570 = vpop.f32.mrb[0].mxu0
      %v571 = vpop.f32.mrb[0].mxu0
      %572 = vdwg.mxu0
      %v573 = vadd.f32 %v476, %v560
      %v574 = vadd.f32 %v479, %v563
      %v575 = vadd.f32 %v484, %v568
      %v576 = vld [vmem:[%s298 + $0x28] sm:$0x8]
      %v577 = vld [vmem:[%s1 + $0x18] sm:$0xf]
      %v578 = vld [vmem:[%s1 + $0x1c] sm:$0xf]
      %v580 = vunpack.c.l.b16 %v576
      %v581 = vpack.c.b16 %v331, %v580
      %v582 = vrot.slane %v581, 3
      %v583 = vrot.slane %v335, 3
      %v584 = vsel %vm425, %v582, %v583
      %v587 = vunpack.c.l.b16 %v577
      %v588 = vunpack.c.l.b16 %v578
      %v589 = vpack.c.b16 %v588, %v587
      %v592 = vsel %vm360, %v584, 0
      %v595 = vsel %vm360, %v583, 0
      %597 = vmatprep.subr.bf16.mxu0 0
      %598 = vmatpush1.bf16.msra.mxu0 %v589
      %599 = vmatprep.subr.bf16.mxu0 0
      %600 = vmatpush1.bf16.msra.mxu0 0
      %601 = vmatprep.subr.bf16.mxu0 0
      %602 = vmatpush1.bf16.msra.mxu0 0
      %603 = vmatprep.subr.bf16.mxu0 0
      %604 = vmatpush1.bf16.msra.mxu0 0
      %605 = vmatprep.subr.bf16.mxu0 0
      %606 = vmatpush1.bf16.msra.mxu0 0
      %607 = vmatprep.subr.bf16.mxu0 0
      %608 = vmatpush1.bf16.msra.mxu0 0
      %609 = vmatprep.subr.bf16.mxu0 0
      %610 = vmatpush1.bf16.msra.mxu0 0
      %611 = vmatprep.subr.bf16.mxu0 0
      %612 = vmatpush1.bf16.msra.mxu0 0
      %613 = vmatprep.subr.bf16.mxu0 0
      %614 = vmatpush1.bf16.msra.mxu0 0
      %615 = vmatprep.subr.bf16.mxu0 0
      %616 = vmatpush1.bf16.msra.mxu0 0
      %617 = vmatprep.subr.bf16.mxu0 0
      %618 = vmatpush1.bf16.msra.mxu0 0
      %619 = vmatprep.subr.bf16.mxu0 0
      %620 = vmatpush1.bf16.msra.mxu0 0
      %621 = vmatprep.subr.bf16.mxu0 0
      %622 = vmatpush1.bf16.msra.mxu0 0
      %623 = vmatprep.subr.bf16.mxu0 0
      %624 = vmatpush1.bf16.msra.mxu0 0
      %625 = vmatprep.subr.bf16.mxu0 0
      %626 = vmatpush1.bf16.msra.mxu0 0
      %627 = vmatprep.subr.bf16.mxu0 0
      %628 = vmatpush1.bf16.msra.mxu0 0
      %629 = vmatprep.mubr.bf16.mxu0 0
      %630 = vmatmul.mubr.bf16.gmra.mrb[0].mxu0 %v592
      %v631 = vpop.f32.mrb[0].mxu0
      %v632 = vadd.f32 0.0, %v631
      %v633 = vpop.f32.mrb[0].mxu0
      %v634 = vpop.f32.mrb[0].mxu0
      %v635 = vadd.f32 0.0, %v634
      %v636 = vpop.f32.mrb[0].mxu0
      %637 = vmatprep.mubr.bf16.mxu0 0
      %638 = vmatmul.mubr.bf16.gmra.mrb[0].mxu0 %v595
      %v639 = vpop.f32.mrb[0].mxu0
      %v640 = vadd.f32 0.0, %v639
      %v641 = vpop.f32.mrb[0].mxu0
      %v642 = vpop.f32.mrb[0].mxu0
      %v643 = vpop.f32.mrb[0].mxu0
      %644 = vdwg.mxu0
      %v645 = vadd.f32 %v573, %v632
      %v646 = vadd.f32 %v574, %v635
      %v647 = vadd.f32 %v575, %v640
      %v648 = vld [vmem:[%s298 + $0x18] sm:$0xf]
      %v649 = vld [vmem:[%s298 + $0x1c] sm:$0xf]
      %v650 = vld [vmem:[%s298 + $0x20] sm:$0xf]
      %v651 = vld [vmem:[%s1 + $0x20] sm:$0xf]
      %v652 = vld [vmem:[%s1 + $0x24] sm:$0xf]
      %v656 = vunpack.c.l.b16 %v648
      %v657 = vunpack.c.l.b16 %v649
      %v658 = vunpack.c.l.b16 %v650
      %v659 = vpack.c.b16 %v657, %v656
      %v660 = vpack.c.b16 %v658, %v658
      %v663 = vunpack.c.l.b16 %v651
      %v664 = vunpack.c.l.b16 %v652
      %v665 = vpack.c.b16 %v664, %v663
      %v668 = vsel %vm360, %v659, 0
      %v671 = vsel %vm360, %v660, 0
      %673 = vmatprep.subr.bf16.mxu0 0
      %674 = vmatpush1.bf16.msra.mxu0 %v665
      %675 = vmatprep.subr.bf16.mxu0 0
      %676 = vmatpush1.bf16.msra.mxu0 0
      %677 = vmatprep.subr.bf16.mxu0 0
      %678 = vmatpush1.bf16.msra.mxu0 0
      %679 = vmatprep.subr.bf16.mxu0 0
      %680 = vmatpush1.bf16.msra.mxu0 0
      %681 = vmatprep.subr.bf16.mxu0 0
      %682 = vmatpush1.bf16.msra.mxu0 0
      %683 = vmatprep.subr.bf16.mxu0 0
      %684 = vmatpush1.bf16.msra.mxu0 0
      %685 = vmatprep.subr.bf16.mxu0 0
      %686 = vmatpush1.bf16.msra.mxu0 0
      %687 = vmatprep.subr.bf16.mxu0 0
      %688 = vmatpush1.bf16.msra.mxu0 0
      %689 = vmatprep.subr.bf16.mxu0 0
      %690 = vmatpush1.bf16.msra.mxu0 0
      %691 = vmatprep.subr.bf16.mxu0 0
      %692 = vmatpush1.bf16.msra.mxu0 0
      %693 = vmatprep.subr.bf16.mxu0 0
      %694 = vmatpush1.bf16.msra.mxu0 0
      %695 = vmatprep.subr.bf16.mxu0 0
      %696 = vmatpush1.bf16.msra.mxu0 0
      %697 = vmatprep.subr.bf16.mxu0 0
      %698 = vmatpush1.bf16.msra.mxu0 0
      %699 = vmatprep.subr.bf16.mxu0 0
      %700 = vmatpush1.bf16.msra.mxu0 0
      %701 = vmatprep.subr.bf16.mxu0 0
      %702 = vmatpush1.bf16.msra.mxu0 0
      %703 = vmatprep.subr.bf16.mxu0 0
      %704 = vmatpush1.bf16.msra.mxu0 0
      %705 = vmatprep.mubr.bf16.mxu0 0
      %706 = vmatmul.mubr.bf16.gmra.mrb[0].mxu0 %v668
      %v707 = vpop.f32.mrb[0].mxu0
      %v708 = vadd.f32 0.0, %v707
      %v709 = vpop.f32.mrb[0].mxu0
      %v710 = vpop.f32.mrb[0].mxu0
      %v711 = vadd.f32 0.0, %v710
      %v712 = vpop.f32.mrb[0].mxu0
      %713 = vmatprep.mubr.bf16.mxu0 0
      %714 = vmatmul.mubr.bf16.gmra.mrb[0].mxu0 %v671
      %v715 = vpop.f32.mrb[0].mxu0
      %v716 = vadd.f32 0.0, %v715
      %v717 = vpop.f32.mrb[0].mxu0
      %v718 = vpop.f32.mrb[0].mxu0
      %v719 = vpop.f32.mrb[0].mxu0
      %720 = vdwg.mxu0
      %v721 = vadd.f32 %v645, %v708
      %v722 = vadd.f32 %v646, %v711
      %v723 = vadd.f32 %v647, %v716
      %v724 = vld [vmem:[%s298] sm:$0x8]
      %v725 = vld [vmem:[%s298 + $0x4] sm:$0xf]
      %v726 = vld [vmem:[%s298 + $0x8] sm:$0xf]
      %v727 = vld [vmem:[%s298 + $0xc] sm:$0xf]
      %v728 = vld [vmem:[%s1 + $0x28] sm:$0xf]
      %v729 = vld [vmem:[%s1 + $0x2c] sm:$0xf]
      %v734 = vunpack.c.l.b16 %v724
      %v735 = vunpack.c.l.b16 %v725
      %v736 = vunpack.c.l.b16 %v726
      %v737 = vunpack.c.l.b16 %v727
      %v738 = vpack.c.b16 %v735, %v734
      %v739 = vpack.c.b16 %v737, %v736
      %v741 = vshrl.u32 %v738, 16
      %v743 = vrot.slane %v741, 3
      %v744 = vshll.u32 %v738, 16
      %v746 = vrot.slane %v744, 4
      %v747 = vor.u32 %v743, %v746
      %v749 = vshrl.u32 %v739, 16
      %v751 = vrot.slane %v749, 3
      %v752 = vshll.u32 %v739, 16
      %v754 = vrot.slane %v752, 4
      %v755 = vor.u32 %v751, %v754
      %v756 = vsel %vm495, %v747, %v755
      %v759 = vunpack.c.l.b16 %v728
      %v760 = vunpack.c.l.b16 %v729
      %v761 = vpack.c.b16 %v760, %v759
      %v764 = vsel %vm360, %v756, 0
      %v767 = vsel %vm360, %v755, 0
      %769 = vmatprep.subr.bf16.mxu0 0
      %770 = vmatpush1.bf16.msra.mxu0 %v761
      %771 = vmatprep.subr.bf16.mxu0 0
      %772 = vmatpush1.bf16.msra.mxu0 0
      %773 = vmatprep.subr.bf16.mxu0 0
      %774 = vmatpush1.bf16.msra.mxu0 0
      %775 = vmatprep.subr.bf16.mxu0 0
      %776 = vmatpush1.bf16.msra.mxu0 0
      %777 = vmatprep.subr.bf16.mxu0 0
      %778 = vmatpush1.bf16.msra.mxu0 0
      %779 = vmatprep.subr.bf16.mxu0 0
      %780 = vmatpush1.bf16.msra.mxu0 0
      %781 = vmatprep.subr.bf16.mxu0 0
      %782 = vmatpush1.bf16.msra.mxu0 0
      %783 = vmatprep.subr.bf16.mxu0 0
      %784 = vmatpush1.bf16.msra.mxu0 0
      %785 = vmatprep.subr.bf16.mxu0 0
      %786 = vmatpush1.bf16.msra.mxu0 0
      %787 = vmatprep.subr.bf16.mxu0 0
      %788 = vmatpush1.bf16.msra.mxu0 0
      %789 = vmatprep.subr.bf16.mxu0 0
      %790 = vmatpush1.bf16.msra.mxu0 0
      %791 = vmatprep.subr.bf16.mxu0 0
      %792 = vmatpush1.bf16.msra.mxu0 0
      %793 = vmatprep.subr.bf16.mxu0 0
      %794 = vmatpush1.bf16.msra.mxu0 0
      %795 = vmatprep.subr.bf16.mxu0 0
      %796 = vmatpush1.bf16.msra.mxu0 0
      %797 = vmatprep.subr.bf16.mxu0 0
      %798 = vmatpush1.bf16.msra.mxu0 0
      %799 = vmatprep.subr.bf16.mxu0 0
      %800 = vmatpush1.bf16.msra.mxu0 0
      %801 = vmatprep.mubr.bf16.mxu0 0
      %802 = vmatmul.mubr.bf16.gmra.mrb[0].mxu0 %v764
      %v803 = vpop.f32.mrb[0].mxu0
      %v804 = vadd.f32 0.0, %v803
      %v805 = vpop.f32.mrb[0].mxu0
      %v806 = vpop.f32.mrb[0].mxu0
      %v807 = vadd.f32 0.0, %v806
      %v808 = vpop.f32.mrb[0].mxu0
      %809 = vmatprep.mubr.bf16.mxu0 0
      %810 = vmatmul.mubr.bf16.gmra.mrb[0].mxu0 %v767
      %v811 = vpop.f32.mrb[0].mxu0
      %v812 = vadd.f32 0.0, %v811
      %v813 = vpop.f32.mrb[0].mxu0
      %v814 = vpop.f32.mrb[0].mxu0
      %v815 = vpop.f32.mrb[0].mxu0
      %816 = vdwg.mxu0
      %v817 = vadd.f32 %v721, %v804
      %v818 = vadd.f32 %v722, %v807
      %v819 = vadd.f32 %v723, %v812
      %v820 = vld [vmem:[%s298 + $0x18] sm:$0xf]
      %v821 = vld [vmem:[%s298 + $0x1c] sm:$0xf]
      %v822 = vld [vmem:[%s298 + $0x20] sm:$0xf]
      %v823 = vld [vmem:[%s298 + $0x24] sm:$0x1]
      %v824 = vld [vmem:[%s1 + $0x30] sm:$0xf]
      %v825 = vld [vmem:[%s1 + $0x34] sm:$0xf]
      %v830 = vunpack.c.l.b16 %v820
      %v831 = vunpack.c.l.b16 %v821
      %v832 = vunpack.c.l.b16 %v822
      %v833 = vunpack.c.l.b16 %v823
      %v834 = vpack.c.b16 %v831, %v830
      %v835 = vpack.c.b16 %v833, %v832
      %vm836 = vsmask.f32 7424
      %v838 = vshrl.u32 %v834, 16
      %v840 = vshll.u32 %v834, 16
      %v842 = vrot.slane %v840, 1
      %v843 = vor.u32 %v838, %v842
      %v845 = vshll.u32 %v835, 16
      %v847 = vrot.slane %v845, 1
      %v848 = vsel %vm836, %v843, %v847
      %v849 = vshrl.u32 %v835, 16
      %v851 = vor.u32 %v849, %v847
      %v854 = vunpack.c.l.b16 %v824
      %v855 = vunpack.c.l.b16 %v825
      %v856 = vpack.c.b16 %v855, %v854
      %v859 = vsel %vm360, %v848, 0
      %v862 = vsel %vm360, %v851, 0
      %864 = vmatprep.subr.bf16.mxu0 0
      %865 = vmatpush1.bf16.msra.mxu0 %v856
      %866 = vmatprep.subr.bf16.mxu0 0
      %867 = vmatpush1.bf16.msra.mxu0 0
      %868 = vmatprep.subr.bf16.mxu0 0
      %869 = vmatpush1.bf16.msra.mxu0 0
      %870 = vmatprep.subr.bf16.mxu0 0
      %871 = vmatpush1.bf16.msra.mxu0 0
      %872 = vmatprep.subr.bf16.mxu0 0
      %873 = vmatpush1.bf16.msra.mxu0 0
      %874 = vmatprep.subr.bf16.mxu0 0
      %875 = vmatpush1.bf16.msra.mxu0 0
      %876 = vmatprep.subr.bf16.mxu0 0
      %877 = vmatpush1.bf16.msra.mxu0 0
      %878 = vmatprep.subr.bf16.mxu0 0
      %879 = vmatpush1.bf16.msra.mxu0 0
      %880 = vmatprep.subr.bf16.mxu0 0
      %881 = vmatpush1.bf16.msra.mxu0 0
      %882 = vmatprep.subr.bf16.mxu0 0
      %883 = vmatpush1.bf16.msra.mxu0 0
      %884 = vmatprep.subr.bf16.mxu0 0
      %885 = vmatpush1.bf16.msra.mxu0 0
      %886 = vmatprep.subr.bf16.mxu0 0
      %887 = vmatpush1.bf16.msra.mxu0 0
      %888 = vmatprep.subr.bf16.mxu0 0
      %889 = vmatpush1.bf16.msra.mxu0 0
      %890 = vmatprep.subr.bf16.mxu0 0
      %891 = vmatpush1.bf16.msra.mxu0 0
      %892 = vmatprep.subr.bf16.mxu0 0
      %893 = vmatpush1.bf16.msra.mxu0 0
      %894 = vmatprep.subr.bf16.mxu0 0
      %895 = vmatpush1.bf16.msra.mxu0 0
      %896 = vmatprep.mubr.bf16.mxu0 0
      %897 = vmatmul.mubr.bf16.gmra.mrb[0].mxu0 %v859
      %v898 = vpop.f32.mrb[0].mxu0
      %v899 = vadd.f32 0.0, %v898
      %v900 = vpop.f32.mrb[0].mxu0
      %v901 = vpop.f32.mrb[0].mxu0
      %v902 = vadd.f32 0.0, %v901
      %v903 = vpop.f32.mrb[0].mxu0
      %904 = vmatprep.mubr.bf16.mxu0 0
      %905 = vmatmul.mubr.bf16.gmra.mrb[0].mxu0 %v862
      %v906 = vpop.f32.mrb[0].mxu0
      %v907 = vadd.f32 0.0, %v906
      %v908 = vpop.f32.mrb[0].mxu0
      %v909 = vpop.f32.mrb[0].mxu0
      %v910 = vpop.f32.mrb[0].mxu0
      %911 = vdwg.mxu0
      %v912 = vadd.f32 %v817, %v899
      %v913 = vadd.f32 %v818, %v902
      %v914 = vadd.f32 %v819, %v907
      %v915 = vld [vmem:[%s1 + $0x38] sm:$0xf]
      %v916 = vld [vmem:[%s1 + $0x3c] sm:$0xf]
      %v917 = vpack.c.b16 %v736, %v735
      %v918 = vpack.c.b16 %v737, %v737
      %v921 = vunpack.c.l.b16 %v915
      %v922 = vunpack.c.l.b16 %v916
      %v923 = vpack.c.b16 %v922, %v921
      %v926 = vsel %vm360, %v917, 0
      %v929 = vsel %vm360, %v918, 0
      %931 = vmatprep.subr.bf16.mxu0 0
      %932 = vmatpush1.bf16.msra.mxu0 %v923
      %933 = vmatprep.subr.bf16.mxu0 0
      %934 = vmatpush1.bf16.msra.mxu0 0
      %935 = vmatprep.subr.bf16.mxu0 0
      %936 = vmatpush1.bf16.msra.mxu0 0
      %937 = vmatprep.subr.bf16.mxu0 0
      %938 = vmatpush1.bf16.msra.mxu0 0
      %939 = vmatprep.subr.bf16.mxu0 0
      %940 = vmatpush1.bf16.msra.mxu0 0
      %941 = vmatprep.subr.bf16.mxu0 0
      %942 = vmatpush1.bf16.msra.mxu0 0
      %943 = vmatprep.subr.bf16.mxu0 0
      %944 = vmatpush1.bf16.msra.mxu0 0
      %945 = vmatprep.subr.bf16.mxu0 0
      %946 = vmatpush1.bf16.msra.mxu0 0
      %947 = vmatprep.subr.bf16.mxu0 0
      %948 = vmatpush1.bf16.msra.mxu0 0
      %949 = vmatprep.subr.bf16.mxu0 0
      %950 = vmatpush1.bf16.msra.mxu0 0
      %951 = vmatprep.subr.bf16.mxu0 0
      %952 = vmatpush1.bf16.msra.mxu0 0
      %953 = vmatprep.subr.bf16.mxu0 0
      %954 = vmatpush1.bf16.msra.mxu0 0
      %955 = vmatprep.subr.bf16.mxu0 0
      %956 = vmatpush1.bf16.msra.mxu0 0
      %957 = vmatprep.subr.bf16.mxu0 0
      %958 = vmatpush1.bf16.msra.mxu0 0
      %959 = vmatprep.subr.bf16.mxu0 0
      %960 = vmatpush1.bf16.msra.mxu0 0
      %961 = vmatprep.subr.bf16.mxu0 0
      %962 = vmatpush1.bf16.msra.mxu0 0
      %963 = vmatprep.mubr.bf16.mxu0 0
      %964 = vmatmul.mubr.bf16.gmra.mrb[0].mxu0 %v926
      %v965 = vpop.f32.mrb[0].mxu0
      %v966 = vadd.f32 0.0, %v965
      %v967 = vpop.f32.mrb[0].mxu0
      %v968 = vpop.f32.mrb[0].mxu0
      %v969 = vadd.f32 0.0, %v968
      %v970 = vpop.f32.mrb[0].mxu0
      %971 = vmatprep.mubr.bf16.mxu0 0
      %972 = vmatmul.mubr.bf16.gmra.mrb[0].mxu0 %v929
      %v973 = vpop.f32.mrb[0].mxu0
      %v974 = vadd.f32 0.0, %v973
      %v975 = vpop.f32.mrb[0].mxu0
      %v976 = vpop.f32.mrb[0].mxu0
      %v977 = vpop.f32.mrb[0].mxu0
      %978 = vdwg.mxu0
      %v979 = vadd.f32 %v912, %v966
      %v980 = vadd.f32 %v913, %v969
      %v981 = vadd.f32 %v914, %v974
      %v982 = vld [vmem:[%s298 + $0x40] sm:$0xc]
      %v983 = vld [vmem:[%s298 + $0x44] sm:$0xf]
      %v984 = vld [vmem:[%s298 + $0x48] sm:$0xf]
      %v985 = vld [vmem:[%s298 + $0x4c] sm:$0x3]
      %v986 = vld [vmem:[%s1 + $0x40] sm:$0xf]
      %v987 = vld [vmem:[%s1 + $0x44] sm:$0xf]
      %v992 = vunpack.c.l.b16 %v982
      %v993 = vunpack.c.l.b16 %v983
      %v994 = vunpack.c.l.b16 %v984
      %v995 = vunpack.c.l.b16 %v985
      %v996 = vpack.c.b16 %v993, %v992
      %v997 = vpack.c.b16 %v995, %v994
      %vm998 = vcmask 1045504
      %v999 = vrot.slane %v996, 2
      %v1000 = vrot.slane %v997, 2
      %v1001 = vsel %vm998, %v999, %v1000
      %v1004 = vunpack.c.l.b16 %v986
      %v1005 = vunpack.c.l.b16 %v987
      %v1006 = vpack.c.b16 %v1005, %v1004
      %v1009 = vsel %vm360, %v1001, 0
      %v1012 = vsel %vm360, %v1000, 0
      %1014 = vmatprep.subr.bf16.mxu0 0
      %1015 = vmatpush1.bf16.msra.mxu0 %v1006
      %1016 = vmatprep.subr.bf16.mxu0 0
      %1017 = vmatpush1.bf16.msra.mxu0 0
      %1018 = vmatprep.subr.bf16.mxu0 0
      %1019 = vmatpush1.bf16.msra.mxu0 0
      %1020 = vmatprep.subr.bf16.mxu0 0
      %1021 = vmatpush1.bf16.msra.mxu0 0
      %1022 = vmatprep.subr.bf16.mxu0 0
      %1023 = vmatpush1.bf16.msra.mxu0 0
      %1024 = vmatprep.subr.bf16.mxu0 0
      %1025 = vmatpush1.bf16.msra.mxu0 0
      %1026 = vmatprep.subr.bf16.mxu0 0
      %1027 = vmatpush1.bf16.msra.mxu0 0
      %1028 = vmatprep.subr.bf16.mxu0 0
      %1029 = vmatpush1.bf16.msra.mxu0 0
      %1030 = vmatprep.subr.bf16.mxu0 0
      %1031 = vmatpush1.bf16.msra.mxu0 0
      %1032 = vmatprep.subr.bf16.mxu0 0
      %1033 = vmatpush1.bf16.msra.mxu0 0
      %1034 = vmatprep.subr.bf16.mxu0 0
      %1035 = vmatpush1.bf16.msra.mxu0 0
      %1036 = vmatprep.subr.bf16.mxu0 0
      %1037 = vmatpush1.bf16.msra.mxu0 0
      %1038 = vmatprep.subr.bf16.mxu0 0
      %1039 = vmatpush1.bf16.msra.mxu0 0
      %1040 = vmatprep.subr.bf16.mxu0 0
      %1041 = vmatpush1.bf16.msra.mxu0 0
      %1042 = vmatprep.subr.bf16.mxu0 0
      %1043 = vmatpush1.bf16.msra.mxu0 0
      %1044 = vmatprep.subr.bf16.mxu0 0
      %1045 = vmatpush1.bf16.msra.mxu0 0
      %1046 = vmatprep.mubr.bf16.mxu0 0
      %1047 = vmatmul.mubr.bf16.gmra.mrb[0].mxu0 %v1009
      %v1048 = vpop.f32.mrb[0].mxu0
      %v1049 = vadd.f32 0.0, %v1048
      %v1050 = vpop.f32.mrb[0].mxu0
      %v1051 = vpop.f32.mrb[0].mxu0
      %v1052 = vadd.f32 0.0, %v1051
      %v1053 = vpop.f32.mrb[0].mxu0
      %1054 = vmatprep.mubr.bf16.mxu0 0
      %1055 = vmatmul.mubr.bf16.gmra.mrb[0].mxu0 %v1012
      %v1056 = vpop.f32.mrb[0].mxu0
      %v1057 = vadd.f32 0.0, %v1056
      %v1058 = vpop.f32.mrb[0].mxu0
      %v1059 = vpop.f32.mrb[0].mxu0
      %v1060 = vpop.f32.mrb[0].mxu0
      %1061 = vdwg.mxu0
      %v1062 = vadd.f32 %v979, %v1049
      %v1063 = vadd.f32 %v980, %v1052
      %v1064 = vadd.f32 %v981, %v1057
      %v1065 = vld [vmem:[%s298 + $0x2c] sm:$0xe]
      %v1066 = vld [vmem:[%s298 + $0x30] sm:$0xf]
      %v1067 = vld [vmem:[%s298 + $0x34] sm:$0xf]
      %v1068 = vld [vmem:[%s298 + $0x38] sm:$0x3]
      %v1069 = vld [vmem:[%s1 + $0x48] sm:$0xf]
      %v1070 = vld [vmem:[%s1 + $0x4c] sm:$0xf]
      %v1075 = vunpack.c.l.b16 %v1065
      %v1076 = vunpack.c.l.b16 %v1066
      %v1077 = vunpack.c.l.b16 %v1067
      %v1078 = vunpack.c.l.b16 %v1068
      %v1079 = vpack.c.b16 %v1076, %v1075
      %v1080 = vpack.c.b16 %v1078, %v1077
      %vm1081 = vsmask.f32 6400
      %v1083 = vshrl.u32 %v1079, 16
      %v1085 = vrot.slane %v1083, 1
      %v1086 = vshll.u32 %v1079, 16
      %v1088 = vrot.slane %v1086, 2
      %v1089 = vor.u32 %v1085, %v1088
      %v1091 = vshrl.u32 %v1080, 16
      %v1093 = vrot.slane %v1091, 1
      %v1094 = vshll.u32 %v1080, 16
      %v1096 = vrot.slane %v1094, 2
      %v1097 = vor.u32 %v1093, %v1096
      %v1098 = vsel %vm1081, %v1089, %v1097
      %v1101 = vunpack.c.l.b16 %v1069
      %v1102 = vunpack.c.l.b16 %v1070
      %v1103 = vpack.c.b16 %v1102, %v1101
      %v1106 = vsel %vm360, %v1098, 0
      %v1109 = vsel %vm360, %v1097, 0
      %1111 = vmatprep.subr.bf16.mxu0 0
      %1112 = vmatpush1.bf16.msra.mxu0 %v1103
      %1113 = vmatprep.subr.bf16.mxu0 0
      %1114 = vmatpush1.bf16.msra.mxu0 0
      %1115 = vmatprep.subr.bf16.mxu0 0
      %1116 = vmatpush1.bf16.msra.mxu0 0
      %1117 = vmatprep.subr.bf16.mxu0 0
      %1118 = vmatpush1.bf16.msra.mxu0 0
      %1119 = vmatprep.subr.bf16.mxu0 0
      %1120 = vmatpush1.bf16.msra.mxu0 0
      %1121 = vmatprep.subr.bf16.mxu0 0
      %1122 = vmatpush1.bf16.msra.mxu0 0
      %1123 = vmatprep.subr.bf16.mxu0 0
      %1124 = vmatpush1.bf16.msra.mxu0 0
      %1125 = vmatprep.subr.bf16.mxu0 0
      %1126 = vmatpush1.bf16.msra.mxu0 0
      %1127 = vmatprep.subr.bf16.mxu0 0
      %1128 = vmatpush1.bf16.msra.mxu0 0
      %1129 = vmatprep.subr.bf16.mxu0 0
      %1130 = vmatpush1.bf16.msra.mxu0 0
      %1131 = vmatprep.subr.bf16.mxu0 0
      %1132 = vmatpush1.bf16.msra.mxu0 0
      %1133 = vmatprep.subr.bf16.mxu0 0
      %1134 = vmatpush1.bf16.msra.mxu0 0
      %1135 = vmatprep.subr.bf16.mxu0 0
      %1136 = vmatpush1.bf16.msra.mxu0 0
      %1137 = vmatprep.subr.bf16.mxu0 0
      %1138 = vmatpush1.bf16.msra.mxu0 0
      %1139 = vmatprep.subr.bf16.mxu0 0
      %1140 = vmatpush1.bf16.msra.mxu0 0
      %1141 = vmatprep.subr.bf16.mxu0 0
      %1142 = vmatpush1.bf16.msra.mxu0 0
      %1143 = vmatprep.mubr.bf16.mxu0 0
      %1144 = vmatmul.mubr.bf16.gmra.mrb[0].mxu0 %v1106
      %v1145 = vpop.f32.mrb[0].mxu0
      %v1146 = vadd.f32 0.0, %v1145
      %v1147 = vpop.f32.mrb[0].mxu0
      %v1148 = vpop.f32.mrb[0].mxu0
      %v1149 = vadd.f32 0.0, %v1148
      %v1150 = vpop.f32.mrb[0].mxu0
      %1151 = vmatprep.mubr.bf16.mxu0 0
      %1152 = vmatmul.mubr.bf16.gmra.mrb[0].mxu0 %v1109
      %v1153 = vpop.f32.mrb[0].mxu0
      %v1154 = vadd.f32 0.0, %v1153
      %v1155 = vpop.f32.mrb[0].mxu0
      %v1156 = vpop.f32.mrb[0].mxu0
      %v1157 = vpop.f32.mrb[0].mxu0
      %1158 = vdwg.mxu0
      %v1159 = vadd.f32 %v1062, %v1146
      %v1160 = vadd.f32 %v1063, %v1149
      %v1161 = vadd.f32 %v1064, %v1154
      %v1162 = vld [vmem:[%s298 + $0x4c] sm:$0x7]
      %v1163 = vld [vmem:[%s1 + $0x50] sm:$0xf]
      %v1164 = vld [vmem:[%s1 + $0x54] sm:$0xf]
      %v1166 = vunpack.c.l.b16 %v1162
      %v1167 = vpack.c.b16 %v1166, %v994
      %v1169 = vshrl.u32 %v996, 16
      %v1171 = vrot.slane %v1169, 2
      %v1172 = vshll.u32 %v996, 16
      %v1174 = vrot.slane %v1172, 3
      %v1175 = vor.u32 %v1171, %v1174
      %v1177 = vshrl.u32 %v1167, 16
      %v1179 = vrot.slane %v1177, 2
      %v1180 = vshll.u32 %v1167, 16
      %v1182 = vrot.slane %v1180, 3
      %v1183 = vor.u32 %v1179, %v1182
      %v1184 = vsel %vm336, %v1175, %v1183
      %v1187 = vunpack.c.l.b16 %v1163
      %v1188 = vunpack.c.l.b16 %v1164
      %v1189 = vpack.c.b16 %v1188, %v1187
      %v1192 = vsel %vm360, %v1184, 0
      %v1195 = vsel %vm360, %v1183, 0
      %1197 = vmatprep.subr.bf16.mxu0 0
      %1198 = vmatpush1.bf16.msra.mxu0 %v1189
      %1199 = vmatprep.subr.bf16.mxu0 0
      %1200 = vmatpush1.bf16.msra.mxu0 0
      %1201 = vmatprep.subr.bf16.mxu0 0
      %1202 = vmatpush1.bf16.msra.mxu0 0
      %1203 = vmatprep.subr.bf16.mxu0 0
      %1204 = vmatpush1.bf16.msra.mxu0 0
      %1205 = vmatprep.subr.bf16.mxu0 0
      %1206 = vmatpush1.bf16.msra.mxu0 0
      %1207 = vmatprep.subr.bf16.mxu0 0
      %1208 = vmatpush1.bf16.msra.mxu0 0
      %1209 = vmatprep.subr.bf16.mxu0 0
      %1210 = vmatpush1.bf16.msra.mxu0 0
      %1211 = vmatprep.subr.bf16.mxu0 0
      %1212 = vmatpush1.bf16.msra.mxu0 0
      %1213 = vmatprep.subr.bf16.mxu0 0
      %1214 = vmatpush1.bf16.msra.mxu0 0
      %1215 = vmatprep.subr.bf16.mxu0 0
      %1216 = vmatpush1.bf16.msra.mxu0 0
      %1217 = vmatprep.subr.bf16.mxu0 0
      %1218 = vmatpush1.bf16.msra.mxu0 0
      %1219 = vmatprep.subr.bf16.mxu0 0
      %1220 = vmatpush1.bf16.msra.mxu0 0
      %1221 = vmatprep.subr.bf16.mxu0 0
      %1222 = vmatpush1.bf16.msra.mxu0 0
      %1223 = vmatprep.subr.bf16.mxu0 0
      %1224 = vmatpush1.bf16.msra.mxu0 0
      %1225 = vmatprep.subr.bf16.mxu0 0
      %1226 = vmatpush1.bf16.msra.mxu0 0
      %1227 = vmatprep.subr.bf16.mxu0 0
      %1228 = vmatpush1.bf16.msra.mxu0 0
      %1229 = vmatprep.mubr.bf16.mxu0 0
      %1230 = vmatmul.mubr.bf16.gmra.mrb[0].mxu0 %v1192
      %v1231 = vpop.f32.mrb[0].mxu0
      %v1232 = vadd.f32 0.0, %v1231
      %v1233 = vpop.f32.mrb[0].mxu0
      %v1234 = vpop.f32.mrb[0].mxu0
      %v1235 = vadd.f32 0.0, %v1234
      %v1236 = vpop.f32.mrb[0].mxu0
      %1237 = vmatprep.mubr.bf16.mxu0 0
      %1238 = vmatmul.mubr.bf16.gmra.mrb[0].mxu0 %v1195
      %v1239 = vpop.f32.mrb[0].mxu0
      %v1240 = vadd.f32 0.0, %v1239
      %v1241 = vpop.f32.mrb[0].mxu0
      %v1242 = vpop.f32.mrb[0].mxu0
      %v1243 = vpop.f32.mrb[0].mxu0
      %1244 = vdwg.mxu0
      %v1245 = vadd.f32 %v1159, %v1232
      %v1246 = vadd.f32 %v1160, %v1235
      %v1247 = vadd.f32 %v1161, %v1240
      %v1248 = vld [vmem:[%s298 + $0x2c] sm:$0xc]
      %v1249 = vld [vmem:[%s1 + $0x58] sm:$0xf]
      %v1250 = vld [vmem:[%s1 + $0x5c] sm:$0xf]
      %v1252 = vunpack.c.l.b16 %v1248
      %v1253 = vpack.c.b16 %v1076, %v1252
      %v1254 = vrot.slane %v1253, 2
      %v1255 = vrot.slane %v1080, 2
      %v1256 = vsel %vm998, %v1254, %v1255
      %v1259 = vunpack.c.l.b16 %v1249
      %v1260 = vunpack.c.l.b16 %v1250
      %v1261 = vpack.c.b16 %v1260, %v1259
      %v1264 = vsel %vm360, %v1256, 0
      %v1267 = vsel %vm360, %v1255, 0
      %1269 = vmatprep.subr.bf16.mxu0 0
      %1270 = vmatpush1.bf16.msra.mxu0 %v1261
      %1271 = vmatprep.subr.bf16.mxu0 0
      %1272 = vmatpush1.bf16.msra.mxu0 0
      %1273 = vmatprep.subr.bf16.mxu0 0
      %1274 = vmatpush1.bf16.msra.mxu0 0
      %1275 = vmatprep.subr.bf16.mxu0 0
      %1276 = vmatpush1.bf16.msra.mxu0 0
      %1277 = vmatprep.subr.bf16.mxu0 0
      %1278 = vmatpush1.bf16.msra.mxu0 0
      %1279 = vmatprep.subr.bf16.mxu0 0
      %1280 = vmatpush1.bf16.msra.mxu0 0
      %1281 = vmatprep.subr.bf16.mxu0 0
      %1282 = vmatpush1.bf16.msra.mxu0 0
      %1283 = vmatprep.subr.bf16.mxu0 0
      %1284 = vmatpush1.bf16.msra.mxu0 0
      %1285 = vmatprep.subr.bf16.mxu0 0
      %1286 = vmatpush1.bf16.msra.mxu0 0
      %1287 = vmatprep.subr.bf16.mxu0 0
      %1288 = vmatpush1.bf16.msra.mxu0 0
      %1289 = vmatprep.subr.bf16.mxu0 0
      %1290 = vmatpush1.bf16.msra.mxu0 0
      %1291 = vmatprep.subr.bf16.mxu0 0
      %1292 = vmatpush1.bf16.msra.mxu0 0
      %1293 = vmatprep.subr.bf16.mxu0 0
      %1294 = vmatpush1.bf16.msra.mxu0 0
      %1295 = vmatprep.subr.bf16.mxu0 0
      %1296 = vmatpush1.bf16.msra.mxu0 0
      %1297 = vmatprep.subr.bf16.mxu0 0
      %1298 = vmatpush1.bf16.msra.mxu0 0
      %1299 = vmatprep.subr.bf16.mxu0 0
      %1300 = vmatpush1.bf16.msra.mxu0 0
      %1301 = vmatprep.mubr.bf16.mxu0 0
      %1302 = vmatmul.mubr.bf16.gmra.mrb[0].mxu0 %v1264
      %v1303 = vpop.f32.mrb[0].mxu0
      %v1304 = vadd.f32 0.0, %v1303
      %v1305 = vpop.f32.mrb[0].mxu0
      %v1306 = vpop.f32.mrb[0].mxu0
      %v1307 = vadd.f32 0.0, %v1306
      %v1308 = vpop.f32.mrb[0].mxu0
      %1309 = vmatprep.mubr.bf16.mxu0 0
      %1310 = vmatmul.mubr.bf16.gmra.mrb[0].mxu0 %v1267
      %v1311 = vpop.f32.mrb[0].mxu0
      %v1312 = vadd.f32 0.0, %v1311
      %v1313 = vpop.f32.mrb[0].mxu0
      %v1314 = vpop.f32.mrb[0].mxu0
      %v1315 = vpop.f32.mrb[0].mxu0
      %1316 = vdwg.mxu0
      %v1317 = vadd.f32 %v1245, %v1304
      %v1318 = vadd.f32 %v1246, %v1307
      %v1319 = vadd.f32 %v1247, %v1312
      %v1320 = vld [vmem:[%s298 + $0x18] sm:$0x8]
      %v1321 = vld [vmem:[%s298 + $0x24] sm:$0x7]
      %v1322 = vld [vmem:[%s1 + $0x60] sm:$0xf]
      %v1323 = vld [vmem:[%s1 + $0x64] sm:$0xf]
      %v1326 = vunpack.c.l.b16 %v1320
      %v1327 = vunpack.c.l.b16 %v1321
      %v1328 = vpack.c.b16 %v831, %v1326
      %v1329 = vpack.c.b16 %v1327, %v832
      %v1330 = vrot.slane %v1328, 3
      %v1331 = vrot.slane %v1329, 3
      %v1332 = vsel %vm425, %v1330, %v1331
      %v1335 = vunpack.c.l.b16 %v1322
      %v1336 = vunpack.c.l.b16 %v1323
      %v1337 = vpack.c.b16 %v1336, %v1335
      %v1340 = vsel %vm360, %v1332, 0
      %v1343 = vsel %vm360, %v1331, 0
      %1345 = vmatprep.subr.bf16.mxu0 0
      %1346 = vmatpush1.bf16.msra.mxu0 %v1337
      %1347 = vmatprep.subr.bf16.mxu0 0
      %1348 = vmatpush1.bf16.msra.mxu0 0
      %1349 = vmatprep.subr.bf16.mxu0 0
      %1350 = vmatpush1.bf16.msra.mxu0 0
      %1351 = vmatprep.subr.bf16.mxu0 0
      %1352 = vmatpush1.bf16.msra.mxu0 0
      %1353 = vmatprep.subr.bf16.mxu0 0
      %1354 = vmatpush1.bf16.msra.mxu0 0
      %1355 = vmatprep.subr.bf16.mxu0 0
      %1356 = vmatpush1.bf16.msra.mxu0 0
      %1357 = vmatprep.subr.bf16.mxu0 0
      %1358 = vmatpush1.bf16.msra.mxu0 0
      %1359 = vmatprep.subr.bf16.mxu0 0
      %1360 = vmatpush1.bf16.msra.mxu0 0
      %1361 = vmatprep.subr.bf16.mxu0 0
      %1362 = vmatpush1.bf16.msra.mxu0 0
      %1363 = vmatprep.subr.bf16.mxu0 0
      %1364 = vmatpush1.bf16.msra.mxu0 0
      %1365 = vmatprep.subr.bf16.mxu0 0
      %1366 = vmatpush1.bf16.msra.mxu0 0
      %1367 = vmatprep.subr.bf16.mxu0 0
      %1368 = vmatpush1.bf16.msra.mxu0 0
      %1369 = vmatprep.subr.bf16.mxu0 0
      %1370 = vmatpush1.bf16.msra.mxu0 0
      %1371 = vmatprep.subr.bf16.mxu0 0
      %1372 = vmatpush1.bf16.msra.mxu0 0
      %1373 = vmatprep.subr.bf16.mxu0 0
      %1374 = vmatpush1.bf16.msra.mxu0 0
      %1375 = vmatprep.subr.bf16.mxu0 0
      %1376 = vmatpush1.bf16.msra.mxu0 0
      %1377 = vmatprep.mubr.bf16.mxu0 0
      %1378 = vmatmul.mubr.bf16.gmra.mrb[0].mxu0 %v1340
      %v1379 = vpop.f32.mrb[0].mxu0
      %v1380 = vadd.f32 0.0, %v1379
      %v1381 = vpop.f32.mrb[0].mxu0
      %v1382 = vpop.f32.mrb[0].mxu0
      %v1383 = vadd.f32 0.0, %v1382
      %v1384 = vpop.f32.mrb[0].mxu0
      %1385 = vmatprep.mubr.bf16.mxu0 0
      %1386 = vmatmul.mubr.bf16.gmra.mrb[0].mxu0 %v1343
      %v1387 = vpop.f32.mrb[0].mxu0
      %v1388 = vadd.f32 0.0, %v1387
      %v1389 = vpop.f32.mrb[0].mxu0
      %v1390 = vpop.f32.mrb[0].mxu0
      %v1391 = vpop.f32.mrb[0].mxu0
      %1392 = vdwg.mxu0
      %v1393 = vadd.f32 %v1317, %v1380
      %v1394 = vadd.f32 %v1318, %v1383
      %v1395 = vadd.f32 %v1319, %v1388
      %v1396 = vld [vmem:[%s298 + $0x4] sm:$0xc]
      %v1397 = vld [vmem:[%s298 + $0x8] sm:$0xf]
      %v1398 = vld [vmem:[%s298 + $0xc] sm:$0xf]
      %v1399 = vld [vmem:[%s298 + $0x10] sm:$0x7]
      %v1400 = vld [vmem:[%s1 + $0x68] sm:$0xf]
      %v1401 = vld [vmem:[%s1 + $0x6c] sm:$0xf]
      %v1406 = vunpack.c.l.b16 %v1396
      %v1407 = vunpack.c.l.b16 %v1397
      %v1408 = vunpack.c.l.b16 %v1398
      %v1409 = vunpack.c.l.b16 %v1399
      %v1410 = vpack.c.b16 %v1407, %v1406
      %v1411 = vpack.c.b16 %v1409, %v1408
      %v1413 = vshrl.u32 %v1410, 16
      %v1415 = vrot.slane %v1413, 2
      %v1416 = vshll.u32 %v1410, 16
      %v1418 = vrot.slane %v1416, 3
      %v1419 = vor.u32 %v1415, %v1418
      %v1421 = vshrl.u32 %v1411, 16
      %v1423 = vrot.slane %v1421, 2
      %v1424 = vshll.u32 %v1411, 16
      %v1426 = vrot.slane %v1424, 3
      %v1427 = vor.u32 %v1423, %v1426
      %v1428 = vsel %vm336, %v1419, %v1427
      %v1431 = vunpack.c.l.b16 %v1400
      %v1432 = vunpack.c.l.b16 %v1401
      %v1433 = vpack.c.b16 %v1432, %v1431
      %v1436 = vsel %vm360, %v1428, 0
      %v1439 = vsel %vm360, %v1427, 0
      %1441 = vmatprep.subr.bf16.mxu0 0
      %1442 = vmatpush1.bf16.msra.mxu0 %v1433
      %1443 = vmatprep.subr.bf16.mxu0 0
      %1444 = vmatpush1.bf16.msra.mxu0 0
      %1445 = vmatprep.subr.bf16.mxu0 0
      %1446 = vmatpush1.bf16.msra.mxu0 0
      %1447 = vmatprep.subr.bf16.mxu0 0
      %1448 = vmatpush1.bf16.msra.mxu0 0
      %1449 = vmatprep.subr.bf16.mxu0 0
      %1450 = vmatpush1.bf16.msra.mxu0 0
      %1451 = vmatprep.subr.bf16.mxu0 0
      %1452 = vmatpush1.bf16.msra.mxu0 0
      %1453 = vmatprep.subr.bf16.mxu0 0
      %1454 = vmatpush1.bf16.msra.mxu0 0
      %1455 = vmatprep.subr.bf16.mxu0 0
      %1456 = vmatpush1.bf16.msra.mxu0 0
      %1457 = vmatprep.subr.bf16.mxu0 0
      %1458 = vmatpush1.bf16.msra.mxu0 0
      %1459 = vmatprep.subr.bf16.mxu0 0
      %1460 = vmatpush1.bf16.msra.mxu0 0
      %1461 = vmatprep.subr.bf16.mxu0 0
      %1462 = vmatpush1.bf16.msra.mxu0 0
      %1463 = vmatprep.subr.bf16.mxu0 0
      %1464 = vmatpush1.bf16.msra.mxu0 0
      %1465 = vmatprep.subr.bf16.mxu0 0
      %1466 = vmatpush1.bf16.msra.mxu0 0
      %1467 = vmatprep.subr.bf16.mxu0 0
      %1468 = vmatpush1.bf16.msra.mxu0 0
      %1469 = vmatprep.subr.bf16.mxu0 0
      %1470 = vmatpush1.bf16.msra.mxu0 0
      %1471 = vmatprep.subr.bf16.mxu0 0
      %1472 = vmatpush1.bf16.msra.mxu0 0
      %1473 = vmatprep.mubr.bf16.mxu0 0
      %1474 = vmatmul.mubr.bf16.gmra.mrb[0].mxu0 %v1436
      %v1475 = vpop.f32.mrb[0].mxu0
      %v1476 = vadd.f32 0.0, %v1475
      %v1477 = vpop.f32.mrb[0].mxu0
      %v1478 = vpop.f32.mrb[0].mxu0
      %v1479 = vadd.f32 0.0, %v1478
      %v1480 = vpop.f32.mrb[0].mxu0
      %1481 = vmatprep.mubr.bf16.mxu0 0
      %1482 = vmatmul.mubr.bf16.gmra.mrb[0].mxu0 %v1439
      %v1483 = vpop.f32.mrb[0].mxu0
      %v1484 = vadd.f32 0.0, %v1483
      %v1485 = vpop.f32.mrb[0].mxu0
      %v1486 = vpop.f32.mrb[0].mxu0
      %v1487 = vpop.f32.mrb[0].mxu0
      %1488 = vdwg.mxu0
      %v1489 = vadd.f32 %v1393, %v1476
      %v1490 = vadd.f32 %v1394, %v1479
      %v1491 = vadd.f32 %v1395, %v1484
      %v1492 = vld [vmem:[%s298 + $0x24] sm:$0xf]
      %v1493 = vld [vmem:[%s1 + $0x70] sm:$0xf]
      %v1494 = vld [vmem:[%s1 + $0x74] sm:$0xf]
      %v1496 = vunpack.c.l.b16 %v1492
      %v1497 = vpack.c.b16 %v1496, %v832
      %v1499 = vshrl.u32 %v1328, 16
      %v1501 = vrot.slane %v1499, 3
      %v1502 = vshll.u32 %v1328, 16
      %v1504 = vrot.slane %v1502, 4
      %v1505 = vor.u32 %v1501, %v1504
      %v1507 = vshrl.u32 %v1497, 16
      %v1509 = vrot.slane %v1507, 3
      %v1510 = vshll.u32 %v1497, 16
      %v1512 = vrot.slane %v1510, 4
      %v1513 = vor.u32 %v1509, %v1512
      %v1514 = vsel %vm495, %v1505, %v1513
      %v1517 = vunpack.c.l.b16 %v1493
      %v1518 = vunpack.c.l.b16 %v1494
      %v1519 = vpack.c.b16 %v1518, %v1517
      %v1522 = vsel %vm360, %v1514, 0
      %v1525 = vsel %vm360, %v1513, 0
      %1527 = vmatprep.subr.bf16.mxu0 0
      %1528 = vmatpush1.bf16.msra.mxu0 %v1519
      %1529 = vmatprep.subr.bf16.mxu0 0
      %1530 = vmatpush1.bf16.msra.mxu0 0
      %1531 = vmatprep.subr.bf16.mxu0 0
      %1532 = vmatpush1.bf16.msra.mxu0 0
      %1533 = vmatprep.subr.bf16.mxu0 0
      %1534 = vmatpush1.bf16.msra.mxu0 0
      %1535 = vmatprep.subr.bf16.mxu0 0
      %1536 = vmatpush1.bf16.msra.mxu0 0
      %1537 = vmatprep.subr.bf16.mxu0 0
      %1538 = vmatpush1.bf16.msra.mxu0 0
      %1539 = vmatprep.subr.bf16.mxu0 0
      %1540 = vmatpush1.bf16.msra.mxu0 0
      %1541 = vmatprep.subr.bf16.mxu0 0
      %1542 = vmatpush1.bf16.msra.mxu0 0
      %1543 = vmatprep.subr.bf16.mxu0 0
      %1544 = vmatpush1.bf16.msra.mxu0 0
      %1545 = vmatprep.subr.bf16.mxu0 0
      %1546 = vmatpush1.bf16.msra.mxu0 0
      %1547 = vmatprep.subr.bf16.mxu0 0
      %1548 = vmatpush1.bf16.msra.mxu0 0
      %1549 = vmatprep.subr.bf16.mxu0 0
      %1550 = vmatpush1.bf16.msra.mxu0 0
      %1551 = vmatprep.subr.bf16.mxu0 0
      %1552 = vmatpush1.bf16.msra.mxu0 0
      %1553 = vmatprep.subr.bf16.mxu0 0
      %1554 = vmatpush1.bf16.msra.mxu0 0
      %1555 = vmatprep.subr.bf16.mxu0 0
      %1556 = vmatpush1.bf16.msra.mxu0 0
      %1557 = vmatprep.subr.bf16.mxu0 0
      %1558 = vmatpush1.bf16.msra.mxu0 0
      %1559 = vmatprep.mubr.bf16.mxu0 0
      %1560 = vmatmul.mubr.bf16.gmra.mrb[0].mxu0 %v1522
      %v1561 = vpop.f32.mrb[0].mxu0
      %v1562 = vadd.f32 0.0, %v1561
      %v1563 = vpop.f32.mrb[0].mxu0
      %v1564 = vpop.f32.mrb[0].mxu0
      %v1565 = vadd.f32 0.0, %v1564
      %v1566 = vpop.f32.mrb[0].mxu0
      %1567 = vmatprep.mubr.bf16.mxu0 0
      %1568 = vmatmul.mubr.bf16.gmra.mrb[0].mxu0 %v1525
      %v1569 = vpop.f32.mrb[0].mxu0
      %v1570 = vadd.f32 0.0, %v1569
      %v1571 = vpop.f32.mrb[0].mxu0
      %v1572 = vpop.f32.mrb[0].mxu0
      %v1573 = vpop.f32.mrb[0].mxu0
      %1574 = vdwg.mxu0
      %v1575 = vadd.f32 %v1489, %v1562
      %v1576 = vadd.f32 %v1490, %v1565
      %v1577 = vadd.f32 %v1491, %v1570
      %v1578 = vld [vmem:[%s298 + $0x4] sm:$0x8]
      %v1579 = vld [vmem:[%s1 + $0x78] sm:$0xf]
      %v1580 = vld [vmem:[%s1 + $0x7c] sm:$0xf]
      %v1582 = vunpack.c.l.b16 %v1578
      %v1583 = vpack.c.b16 %v1407, %v1582
      %v1584 = vrot.slane %v1583, 3
      %v1585 = vrot.slane %v1411, 3
      %v1586 = vsel %vm425, %v1584, %v1585
      %v1589 = vunpack.c.l.b16 %v1579
      %v1590 = vunpack.c.l.b16 %v1580
      %v1591 = vpack.c.b16 %v1590, %v1589
      %v1594 = vsel %vm360, %v1586, 0
      %v1597 = vsel %vm360, %v1585, 0
      %1599 = vmatprep.subr.bf16.mxu0 0
      %1600 = vmatpush1.bf16.msra.mxu0 %v1591
      %1601 = vmatprep.subr.bf16.mxu0 0
      %1602 = vmatpush1.bf16.msra.mxu0 0
      %1603 = vmatprep.subr.bf16.mxu0 0
      %1604 = vmatpush1.bf16.msra.mxu0 0
      %1605 = vmatprep.subr.bf16.mxu0 0
      %1606 = vmatpush1.bf16.msra.mxu0 0
      %1607 = vmatprep.subr.bf16.mxu0 0
      %1608 = vmatpush1.bf16.msra.mxu0 0
      %1609 = vmatprep.subr.bf16.mxu0 0
      %1610 = vmatpush1.bf16.msra.mxu0 0
      %1611 = vmatprep.subr.bf16.mxu0 0
      %1612 = vmatpush1.bf16.msra.mxu0 0
      %1613 = vmatprep.subr.bf16.mxu0 0
      %1614 = vmatpush1.bf16.msra.mxu0 0
      %1615 = vmatprep.subr.bf16.mxu0 0
      %1616 = vmatpush1.bf16.msra.mxu0 0
      %1617 = vmatprep.subr.bf16.mxu0 0
      %1618 = vmatpush1.bf16.msra.mxu0 0
      %1619 = vmatprep.subr.bf16.mxu0 0
      %1620 = vmatpush1.bf16.msra.mxu0 0
      %1621 = vmatprep.subr.bf16.mxu0 0
      %1622 = vmatpush1.bf16.msra.mxu0 0
      %1623 = vmatprep.subr.bf16.mxu0 0
      %1624 = vmatpush1.bf16.msra.mxu0 0
      %1625 = vmatprep.subr.bf16.mxu0 0
      %1626 = vmatpush1.bf16.msra.mxu0 0
      %1627 = vmatprep.subr.bf16.mxu0 0
      %1628 = vmatpush1.bf16.msra.mxu0 0
      %1629 = vmatprep.subr.bf16.mxu0 0
      %1630 = vmatpush1.bf16.msra.mxu0 0
      %1631 = vmatprep.mubr.bf16.mxu0 0
      %1632 = vmatmul.mubr.bf16.gmra.mrb[0].mxu0 %v1594
      %v1633 = vpop.f32.mrb[0].mxu0
      %v1634 = vadd.f32 0.0, %v1633
      %v1635 = vpop.f32.mrb[0].mxu0
      %v1636 = vpop.f32.mrb[0].mxu0
      %v1637 = vadd.f32 0.0, %v1636
      %v1638 = vpop.f32.mrb[0].mxu0
      %1639 = vmatprep.mubr.bf16.mxu0 0
      %1640 = vmatmul.mubr.bf16.gmra.mrb[0].mxu0 %v1597
      %v1641 = vpop.f32.mrb[0].mxu0
      %v1642 = vadd.f32 0.0, %v1641
      %v1643 = vpop.f32.mrb[0].mxu0
      %v1644 = vpop.f32.mrb[0].mxu0
      %v1645 = vpop.f32.mrb[0].mxu0
      %1646 = vdwg.mxu0
      %v1647 = vadd.f32 %v1575, %v1634
      %v1648 = vadd.f32 %v1576, %v1637
      %v1649 = vadd.f32 %v1577, %v1642
      %v1650 = vld [vmem:[%s2] sm:$0x1]
      %v1652 = vlaneseq
      %v1653 = vshrl.u32 %v1652, 7
      %v1654 = vsub.s32 0, %v1653
      %v1655 = vrot.slane %v1650, %v1654
      %v1657 = vadd.f32 %v1647, %v1655
      %v1658 = vadd.f32 %v1648, %v1655
      %v1659 = vadd.f32 %v1649, %v1655
      %vm1660 = vcmp.ge.f32.partialorder %v1657, 0.0
      %vm1661 = vcmp.ge.f32.partialorder %v1658, 0.0
      %vm1662 = vcmp.ge.f32.partialorder %v1659, 0.0
      %v1663 = vmul.f32 %v1657, 0.2
      %v1664 = vmul.f32 %v1658, 0.2
      %v1665 = vmul.f32 %v1659, 0.2
      %v1666 = vsel %vm1660, %v1657, %v1663
      %v1667 = vsel %vm1661, %v1658, %v1664
      %v1668 = vsel %vm1662, %v1659, %v1665
      %v1669 = vld [vmem:[%s5] sm:$0xff]
      %v1670 = vld [vmem:[%s5 + $0x8] sm:$0xff]
      %v1671 = vld [vmem:[%s5 + $0x10] sm:$0xff]
      %1673 = vset.pattern.permute.xlu0 0
      %1674 = vperm.xlu0 %1673, %v1669
      %v1675 = vpop.permute.xlu0 %1674
      %1678 = vset.pattern.permute.xlu0 0
      %1679 = vperm.xlu0 %1678, %v1670
      %v1680 = vpop.permute.xlu0 %1679
      %1683 = vset.pattern.permute.xlu0 0
      %1684 = vperm.xlu0 %1683, %v1671
      %v1685 = vpop.permute.xlu0 %1684
      %v1687 = vmul.f32 %v1666, %v1675
      %v1688 = vmul.f32 %v1667, %v1680
      %v1689 = vmul.f32 %v1668, %v1685
      %vm1690 = vcmask 257024
      %1691 = vst.msk [vmem:[#allocation2] sm:$0xf] %vm1690, 0
      %1692 = vst.msk [vmem:[#allocation2 + $0x4] sm:$0xf] %vm1690, 0
      %1693 = vst.msk [vmem:[#allocation2 + $0x8] sm:$0xf] %vm1690, 0
      %1694 = vst.msk [vmem:[#allocation2 + $0xc] sm:$0xf] %vm1690, 0
      %1695 = vst.msk [vmem:[#allocation2 + $0x10] sm:$0xf] %vm1690, 0
      %vm1696 = vcmask 253952
      %1697 = vst.msk [vmem:[#allocation2 + $0x14] sm:$0x1] %vm1696, 0
      %v1698 = vpack.c.bf16 %v1688, %v1687
      %v1699 = vpack.c.bf16 %v1689, %v1689
      %v1702 = vunpack.c.l.b16 %v1698
      %v1703 = vunpack.c.h.b16 %v1698
      %v1704 = vunpack.c.l.b16 %v1699
      %v1705 = vpack.c.b16 %v1702, %v1702
      %v1706 = vpack.c.b16 %v1703, %v1703
      %v1707 = vpack.c.b16 %v1704, %v1704
      %vm1708 = vsmask.f32 3328
      %vm1709 = vsmask.f32 7440
      %vm1710 = vmor %vm1708, %vm1709
      %v1712 = vshll.u32 %v1705, 16
      %v1714 = vrot.slane %v1712, 5
      %v1715 = vshrl.u32 %v1705, 16
      %v1717 = vrot.slane %v1715, 4
      %v1718 = vor.u32 %v1717, %v1714
      %v1719 = vrot.slane %v1718, 4
      %v1721 = vshll.u32 %v1706, 16
      %v1723 = vrot.slane %v1721, 5
      %v1724 = vsel %vm1710, %v1719, %v1723
      %v1725 = vshrl.u32 %v1706, 16
      %v1727 = vrot.slane %v1725, 4
      %v1728 = vor.u32 %v1727, %v1723
      %v1729 = vrot.slane %v1728, 4
      %v1731 = vshll.u32 %v1707, 16
      %v1733 = vrot.slane %v1731, 5
      %v1734 = vsel %vm1710, %v1729, %v1733
      %v1735 = vshrl.u32 %v1707, 16
      %v1737 = vrot.slane %v1735, 4
      %v1738 = vor.u32 %v1737, %v1733
      %v1739 = vrot.slane %v1738, 4
      %vm1744 = vcmask 257027
      %vm1745 = vsmask.f32 7950
      %vm1746 = vmand %vm1744, %vm1745
      %v1747 = vld [vmem:[#allocation2] sm:$0x8]
      %v1748 = vsel %vm1746, %v1714, %v1747
      %1749 = vst [vmem:[#allocation2] sm:$0x8] %v1748
      %1750 = vst.msk [vmem:[#allocation2 + $0x4] sm:$0xf] %vm1690, %v1724
      %1751 = vst.msk [vmem:[#allocation2 + $0x8] sm:$0xf] %vm1690, %v1734
      %vm1752 = vcmask 257024
      %vm1753 = vmand %vm1752, %vm1708
      %v1754 = vld [vmem:[#allocation2 + $0xc] sm:$0xf]
      %v1755 = vsel %vm1753, %v1739, %v1754
      %1756 = vst [vmem:[#allocation2 + $0xc] sm:$0xf] %v1755
      %v1757 = vld [vmem:[#allocation2] sm:$0xf]
      %v1758 = vld [vmem:[#allocation2 + $0x4] sm:$0xf]
      %v1759 = vld [vmem:[#allocation2 + $0x8] sm:$0x1]
      %v1760 = vld [vmem:[%s3] sm:$0xf]
      %v1761 = vld [vmem:[%s3 + $0x4] sm:$0xf]
      %v1762 = vld [vmem:[%s3 + $0x8] sm:$0xf]
      %v1763 = vld [vmem:[%s3 + $0xc] sm:$0xf]
      %v1764 = vld [vmem:[#allocation2 + $0x8] sm:$0x3]
      %v1765 = vld [vmem:[%s3 + $0x10] sm:$0xf]
      %v1766 = vld [vmem:[%s3 + $0x14] sm:$0xf]
      %v1767 = vld [vmem:[%s3 + $0x18] sm:$0xf]
      %v1768 = vld [vmem:[%s3 + $0x1c] sm:$0xf]
      %v1772 = vunpack.c.l.b16 %v1757
      %v1773 = vunpack.c.l.b16 %v1758
      %v1774 = vunpack.c.l.b16 %v1764
      %v1775 = vpack.c.b16 %v1773, %v1772
      %v1776 = vpack.c.b16 %v1774, %v1774
      %v1778 = vshrl.u32 %v1775, 16
      %v1780 = vshll.u32 %v1775, 16
      %v1782 = vrot.slane %v1780, 1
      %v1783 = vor.u32 %v1778, %v1782
      %v1785 = vshll.u32 %v1776, 16
      %v1787 = vrot.slane %v1785, 1
      %v1788 = vsel %vm836, %v1783, %v1787
      %v1789 = vshrl.u32 %v1776, 16
      %v1791 = vor.u32 %v1789, %v1787
      %v1796 = vunpack.c.l.b16 %v1765
      %v1797 = vunpack.c.l.b16 %v1766
      %v1798 = vunpack.c.l.b16 %v1767
      %v1799 = vunpack.c.l.b16 %v1768
      %v1800 = vpack.c.b16 %v1797, %v1796
      %v1801 = vpack.c.b16 %v1799, %v1798
      %vm1804 = vcmask 261120
      %v1806 = vsel %vm1804, %v1788, 0
      %v1809 = vsel %vm1804, %v1791, 0
      %1811 = vmatprep.subr.bf16.mxu0 0
      %1812 = vmatpush1.bf16.msra.mxu0 %v1800
      %1813 = vmatprep.subr.bf16.mxu0 0
      %1814 = vmatpush1.bf16.msra.mxu0 %v1801
      %1815 = vmatprep.subr.bf16.mxu0 0
      %1816 = vmatpush1.bf16.msra.mxu0 0
      %1817 = vmatprep.subr.bf16.mxu0 0
      %1818 = vmatpush1.bf16.msra.mxu0 0
      %1819 = vmatprep.subr.bf16.mxu0 0
      %1820 = vmatpush1.bf16.msra.mxu0 0
      %1821 = vmatprep.subr.bf16.mxu0 0
      %1822 = vmatpush1.bf16.msra.mxu0 0
      %1823 = vmatprep.subr.bf16.mxu0 0
      %1824 = vmatpush1.bf16.msra.mxu0 0
      %1825 = vmatprep.subr.bf16.mxu0 0
      %1826 = vmatpush1.bf16.msra.mxu0 0
      %1827 = vmatprep.subr.bf16.mxu0 0
      %1828 = vmatpush1.bf16.msra.mxu0 0
      %1829 = vmatprep.subr.bf16.mxu0 0
      %1830 = vmatpush1.bf16.msra.mxu0 0
      %1831 = vmatprep.subr.bf16.mxu0 0
      %1832 = vmatpush1.bf16.msra.mxu0 0
      %1833 = vmatprep.subr.bf16.mxu0 0
      %1834 = vmatpush1.bf16.msra.mxu0 0
      %1835 = vmatprep.subr.bf16.mxu0 0
      %1836 = vmatpush1.bf16.msra.mxu0 0
      %1837 = vmatprep.subr.bf16.mxu0 0
      %1838 = vmatpush1.bf16.msra.mxu0 0
      %1839 = vmatprep.subr.bf16.mxu0 0
      %1840 = vmatpush1.bf16.msra.mxu0 0
      %1841 = vmatprep.subr.bf16.mxu0 0
      %1842 = vmatpush1.bf16.msra.mxu0 0
      %1843 = vmatprep.mubr.bf16.mxu0 0
      %1844 = vmatmul.mubr.bf16.gmra.mrb[0].mxu0 %v1806
      %v1845 = vpop.f32.mrb[0].mxu0
      %v1846 = vadd.f32 0.0, %v1845
      %v1847 = vpop.f32.mrb[0].mxu0
      %v1848 = vpop.f32.mrb[0].mxu0
      %v1849 = vadd.f32 0.0, %v1848
      %v1850 = vpop.f32.mrb[0].mxu0
      %1851 = vmatprep.mubr.bf16.mxu0 0
      %1852 = vmatmul.mubr.bf16.gmra.mrb[0].mxu0 %v1809
      %v1853 = vpop.f32.mrb[0].mxu0
      %v1854 = vadd.f32 0.0, %v1853
      %v1855 = vpop.f32.mrb[0].mxu0
      %v1856 = vpop.f32.mrb[0].mxu0
      %v1857 = vpop.f32.mrb[0].mxu0
      %1858 = vdwg.mxu0
      %v1860 = vunpack.c.l.b16 %v1759
      %v1861 = vpack.c.b16 %v1860, %v1860
      %v1866 = vunpack.c.l.b16 %v1760
      %v1867 = vunpack.c.l.b16 %v1761
      %v1868 = vunpack.c.l.b16 %v1762
      %v1869 = vunpack.c.l.b16 %v1763
      %v1870 = vpack.c.b16 %v1867, %v1866
      %v1871 = vpack.c.b16 %v1869, %v1868
      %v1874 = vsel %vm1804, %v1775, 0
      %v1877 = vsel %vm1804, %v1861, 0
      %1879 = vmatprep.subr.bf16.mxu0 0
      %1880 = vmatpush1.bf16.msra.mxu0 %v1870
      %1881 = vmatprep.subr.bf16.mxu0 0
      %1882 = vmatpush1.bf16.msra.mxu0 %v1871
      %1883 = vmatprep.subr.bf16.mxu0 0
      %1884 = vmatpush1.bf16.msra.mxu0 0
      %1885 = vmatprep.subr.bf16.mxu0 0
      %1886 = vmatpush1.bf16.msra.mxu0 0
      %1887 = vmatprep.subr.bf16.mxu0 0
      %1888 = vmatpush1.bf16.msra.mxu0 0
      %1889 = vmatprep.subr.bf16.mxu0 0
      %1890 = vmatpush1.bf16.msra.mxu0 0
      %1891 = vmatprep.subr.bf16.mxu0 0
      %1892 = vmatpush1.bf16.msra.mxu0 0
      %1893 = vmatprep.subr.bf16.mxu0 0
      %1894 = vmatpush1.bf16.msra.mxu0 0
      %1895 = vmatprep.subr.bf16.mxu0 0
      %1896 = vmatpush1.bf16.msra.mxu0 0
      %1897 = vmatprep.subr.bf16.mxu0 0
      %1898 = vmatpush1.bf16.msra.mxu0 0
      %1899 = vmatprep.subr.bf16.mxu0 0
      %1900 = vmatpush1.bf16.msra.mxu0 0
      %1901 = vmatprep.subr.bf16.mxu0 0
      %1902 = vmatpush1.bf16.msra.mxu0 0
      %1903 = vmatprep.subr.bf16.mxu0 0
      %1904 = vmatpush1.bf16.msra.mxu0 0
      %1905 = vmatprep.subr.bf16.mxu0 0
      %1906 = vmatpush1.bf16.msra.mxu0 0
      %1907 = vmatprep.subr.bf16.mxu0 0
      %1908 = vmatpush1.bf16.msra.mxu0 0
      %1909 = vmatprep.subr.bf16.mxu0 0
      %1910 = vmatpush1.bf16.msra.mxu0 0
      %1911 = vmatprep.mubr.bf16.mxu0 0
      %1912 = vmatmul.mubr.bf16.gmra.mrb[0].mxu0 %v1874
      %v1913 = vpop.f32.mrb[0].mxu0
      %v1914 = vadd.f32 %v1846, %v1913
      %v1915 = vpop.f32.mrb[0].mxu0
      %v1916 = vpop.f32.mrb[0].mxu0
      %v1917 = vadd.f32 %v1849, %v1916
      %v1918 = vpop.f32.mrb[0].mxu0
      %1919 = vmatprep.mubr.bf16.mxu0 0
      %1920 = vmatmul.mubr.bf16.gmra.mrb[0].mxu0 %v1877
      %v1921 = vpop.f32.mrb[0].mxu0
      %v1922 = vadd.f32 %v1854, %v1921
      %v1923 = vpop.f32.mrb[0].mxu0
      %v1924 = vpop.f32.mrb[0].mxu0
      %v1925 = vpop.f32.mrb[0].mxu0
      %1926 = vdwg.mxu0
      %v1927 = vld [vmem:[#allocation2] sm:$0xe]
      %v1928 = vld [vmem:[%s3 + $0x20] sm:$0xf]
      %v1929 = vld [vmem:[%s3 + $0x24] sm:$0xf]
      %v1930 = vld [vmem:[%s3 + $0x28] sm:$0xf]
      %v1931 = vld [vmem:[%s3 + $0x2c] sm:$0xf]
      %v1933 = vunpack.c.l.b16 %v1927
      %v1934 = vpack.c.b16 %v1773, %v1933
      %vm1935 = vcmask 1046528
      %v1936 = vrot.slane %v1934, 1
      %v1937 = vrot.slane %v1776, 1
      %v1938 = vsel %vm1935, %v1936, %v1937
      %v1943 = vunpack.c.l.b16 %v1928
      %v1944 = vunpack.c.l.b16 %v1929
      %v1945 = vunpack.c.l.b16 %v1930
      %v1946 = vunpack.c.l.b16 %v1931
      %v1947 = vpack.c.b16 %v1944, %v1943
      %v1948 = vpack.c.b16 %v1946, %v1945
      %v1952 = vsel %vm1804, %v1938, 0
      %v1955 = vsel %vm1804, %v1937, 0
      %1957 = vmatprep.subr.bf16.mxu0 0
      %1958 = vmatpush1.bf16.msra.mxu0 %v1947
      %1959 = vmatprep.subr.bf16.mxu0 0
      %1960 = vmatpush1.bf16.msra.mxu0 %v1948
      %1961 = vmatprep.subr.bf16.mxu0 0
      %1962 = vmatpush1.bf16.msra.mxu0 0
      %1963 = vmatprep.subr.bf16.mxu0 0
      %1964 = vmatpush1.bf16.msra.mxu0 0
      %1965 = vmatprep.subr.bf16.mxu0 0
      %1966 = vmatpush1.bf16.msra.mxu0 0
      %1967 = vmatprep.subr.bf16.mxu0 0
      %1968 = vmatpush1.bf16.msra.mxu0 0
      %1969 = vmatprep.subr.bf16.mxu0 0
      %1970 = vmatpush1.bf16.msra.mxu0 0
      %1971 = vmatprep.subr.bf16.mxu0 0
      %1972 = vmatpush1.bf16.msra.mxu0 0
      %1973 = vmatprep.subr.bf16.mxu0 0
      %1974 = vmatpush1.bf16.msra.mxu0 0
      %1975 = vmatprep.subr.bf16.mxu0 0
      %1976 = vmatpush1.bf16.msra.mxu0 0
      %1977 = vmatprep.subr.bf16.mxu0 0
      %1978 = vmatpush1.bf16.msra.mxu0 0
      %1979 = vmatprep.subr.bf16.mxu0 0
      %1980 = vmatpush1.bf16.msra.mxu0 0
      %1981 = vmatprep.subr.bf16.mxu0 0
      %1982 = vmatpush1.bf16.msra.mxu0 0
      %1983 = vmatprep.subr.bf16.mxu0 0
      %1984 = vmatpush1.bf16.msra.mxu0 0
      %1985 = vmatprep.subr.bf16.mxu0 0
      %1986 = vmatpush1.bf16.msra.mxu0 0
      %1987 = vmatprep.subr.bf16.mxu0 0
      %1988 = vmatpush1.bf16.msra.mxu0 0
      %1989 = vmatprep.mubr.bf16.mxu0 0
      %1990 = vmatmul.mubr.bf16.gmra.mrb[0].mxu0 %v1952
      %v1991 = vpop.f32.mrb[0].mxu0
      %v1992 = vadd.f32 0.0, %v1991
      %v1993 = vpop.f32.mrb[0].mxu0
      %v1994 = vpop.f32.mrb[0].mxu0
      %v1995 = vadd.f32 0.0, %v1994
      %v1996 = vpop.f32.mrb[0].mxu0
      %1997 = vmatprep.mubr.bf16.mxu0 0
      %1998 = vmatmul.mubr.bf16.gmra.mrb[0].mxu0 %v1955
      %v1999 = vpop.f32.mrb[0].mxu0
      %v2000 = vadd.f32 0.0, %v1999
      %v2001 = vpop.f32.mrb[0].mxu0
      %v2002 = vpop.f32.mrb[0].mxu0
      %v2003 = vpop.f32.mrb[0].mxu0
      %2004 = vdwg.mxu0
      %v2005 = vadd.f32 %v1914, %v1992
      %v2006 = vadd.f32 %v1917, %v1995
      %v2007 = vadd.f32 %v1922, %v2000
      %v2008 = vld [vmem:[#allocation2 + $0x8] sm:$0x7]
      %v2009 = vld [vmem:[%s3 + $0x30] sm:$0xf]
      %v2010 = vld [vmem:[%s3 + $0x34] sm:$0xf]
      %v2011 = vld [vmem:[%s3 + $0x38] sm:$0xf]
      %v2012 = vld [vmem:[%s3 + $0x3c] sm:$0xf]
      %v2014 = vunpack.c.l.b16 %v2008
      %v2015 = vpack.c.b16 %v2014, %v2014
      %v2017 = vshrl.u32 %v1934, 16
      %v2019 = vrot.slane %v2017, 1
      %v2020 = vshll.u32 %v1934, 16
      %v2022 = vrot.slane %v2020, 2
      %v2023 = vor.u32 %v2019, %v2022
      %v2025 = vshrl.u32 %v2015, 16
      %v2027 = vrot.slane %v2025, 1
      %v2028 = vshll.u32 %v2015, 16
      %v2030 = vrot.slane %v2028, 2
      %v2031 = vor.u32 %v2027, %v2030
      %v2032 = vsel %vm1081, %v2023, %v2031
      %v2037 = vunpack.c.l.b16 %v2009
      %v2038 = vunpack.c.l.b16 %v2010
      %v2039 = vunpack.c.l.b16 %v2011
      %v2040 = vunpack.c.l.b16 %v2012
      %v2041 = vpack.c.b16 %v2038, %v2037
      %v2042 = vpack.c.b16 %v2040, %v2039
      %v2046 = vsel %vm1804, %v2032, 0
      %v2049 = vsel %vm1804, %v2031, 0
      %2051 = vmatprep.subr.bf16.mxu0 0
      %2052 = vmatpush1.bf16.msra.mxu0 %v2041
      %2053 = vmatprep.subr.bf16.mxu0 0
      %2054 = vmatpush1.bf16.msra.mxu0 %v2042
      %2055 = vmatprep.subr.bf16.mxu0 0
      %2056 = vmatpush1.bf16.msra.mxu0 0
      %2057 = vmatprep.subr.bf16.mxu0 0
      %2058 = vmatpush1.bf16.msra.mxu0 0
      %2059 = vmatprep.subr.bf16.mxu0 0
      %2060 = vmatpush1.bf16.msra.mxu0 0
      %2061 = vmatprep.subr.bf16.mxu0 0
      %2062 = vmatpush1.bf16.msra.mxu0 0
      %2063 = vmatprep.subr.bf16.mxu0 0
      %2064 = vmatpush1.bf16.msra.mxu0 0
      %2065 = vmatprep.subr.bf16.mxu0 0
      %2066 = vmatpush1.bf16.msra.mxu0 0
      %2067 = vmatprep.subr.bf16.mxu0 0
      %2068 = vmatpush1.bf16.msra.mxu0 0
      %2069 = vmatprep.subr.bf16.mxu0 0
      %2070 = vmatpush1.bf16.msra.mxu0 0
      %2071 = vmatprep.subr.bf16.mxu0 0
      %2072 = vmatpush1.bf16.msra.mxu0 0
      %2073 = vmatprep.subr.bf16.mxu0 0
      %2074 = vmatpush1.bf16.msra.mxu0 0
      %2075 = vmatprep.subr.bf16.mxu0 0
      %2076 = vmatpush1.bf16.msra.mxu0 0
      %2077 = vmatprep.subr.bf16.mxu0 0
      %2078 = vmatpush1.bf16.msra.mxu0 0
      %2079 = vmatprep.subr.bf16.mxu0 0
      %2080 = vmatpush1.bf16.msra.mxu0 0
      %2081 = vmatprep.subr.bf16.mxu0 0
      %2082 = vmatpush1.bf16.msra.mxu0 0
      %2083 = vmatprep.mubr.bf16.mxu0 0
      %2084 = vmatmul.mubr.bf16.gmra.mrb[0].mxu0 %v2046
      %v2085 = vpop.f32.mrb[0].mxu0
      %v2086 = vadd.f32 0.0, %v2085
      %v2087 = vpop.f32.mrb[0].mxu0
      %v2088 = vpop.f32.mrb[0].mxu0
      %v2089 = vadd.f32 0.0, %v2088
      %v2090 = vpop.f32.mrb[0].mxu0
      %2091 = vmatprep.mubr.bf16.mxu0 0
      %2092 = vmatmul.mubr.bf16.gmra.mrb[0].mxu0 %v2049
      %v2093 = vpop.f32.mrb[0].mxu0
      %v2094 = vadd.f32 0.0, %v2093
      %v2095 = vpop.f32.mrb[0].mxu0
      %v2096 = vpop.f32.mrb[0].mxu0
      %v2097 = vpop.f32.mrb[0].mxu0
      %2098 = vdwg.mxu0
      %v2099 = vadd.f32 %v2005, %v2086
      %v2100 = vadd.f32 %v2006, %v2089
      %v2101 = vadd.f32 %v2007, %v2094
      %v2102 = vld [vmem:[#allocation2] sm:$0x8]
      %v2103 = vld [vmem:[#allocation2 + $0x8] sm:$0xf]
      %v2104 = vld [vmem:[%s3 + $0x40] sm:$0xf]
      %v2105 = vld [vmem:[%s3 + $0x44] sm:$0xf]
      %v2106 = vld [vmem:[%s3 + $0x48] sm:$0xf]
      %v2107 = vld [vmem:[%s3 + $0x4c] sm:$0xf]
      %v2110 = vunpack.c.l.b16 %v2102
      %v2111 = vunpack.c.l.b16 %v2103
      %v2112 = vpack.c.b16 %v1773, %v2110
      %v2113 = vpack.c.b16 %v2111, %v2111
      %v2114 = vrot.slane %v2112, 3
      %v2115 = vrot.slane %v2113, 3
      %v2116 = vsel %vm425, %v2114, %v2115
      %v2121 = vunpack.c.l.b16 %v2104
      %v2122 = vunpack.c.l.b16 %v2105
      %v2123 = vunpack.c.l.b16 %v2106
      %v2124 = vunpack.c.l.b16 %v2107
      %v2125 = vpack.c.b16 %v2122, %v2121
      %v2126 = vpack.c.b16 %v2124, %v2123
      %v2130 = vsel %vm1804, %v2116, 0
      %v2133 = vsel %vm1804, %v2115, 0
      %2135 = vmatprep.subr.bf16.mxu0 0
      %2136 = vmatpush1.bf16.msra.mxu0 %v2125
      %2137 = vmatprep.subr.bf16.mxu0 0
      %2138 = vmatpush1.bf16.msra.mxu0 %v2126
      %2139 = vmatprep.subr.bf16.mxu0 0
      %2140 = vmatpush1.bf16.msra.mxu0 0
      %2141 = vmatprep.subr.bf16.mxu0 0
      %2142 = vmatpush1.bf16.msra.mxu0 0
      %2143 = vmatprep.subr.bf16.mxu0 0
      %2144 = vmatpush1.bf16.msra.mxu0 0
      %2145 = vmatprep.subr.bf16.mxu0 0
      %2146 = vmatpush1.bf16.msra.mxu0 0
      %2147 = vmatprep.subr.bf16.mxu0 0
      %2148 = vmatpush1.bf16.msra.mxu0 0
      %2149 = vmatprep.subr.bf16.mxu0 0
      %2150 = vmatpush1.bf16.msra.mxu0 0
      %2151 = vmatprep.subr.bf16.mxu0 0
      %2152 = vmatpush1.bf16.msra.mxu0 0
      %2153 = vmatprep.subr.bf16.mxu0 0
      %2154 = vmatpush1.bf16.msra.mxu0 0
      %2155 = vmatprep.subr.bf16.mxu0 0
      %2156 = vmatpush1.bf16.msra.mxu0 0
      %2157 = vmatprep.subr.bf16.mxu0 0
      %2158 = vmatpush1.bf16.msra.mxu0 0
      %2159 = vmatprep.subr.bf16.mxu0 0
      %2160 = vmatpush1.bf16.msra.mxu0 0
      %2161 = vmatprep.subr.bf16.mxu0 0
      %2162 = vmatpush1.bf16.msra.mxu0 0
      %2163 = vmatprep.subr.bf16.mxu0 0
      %2164 = vmatpush1.bf16.msra.mxu0 0
      %2165 = vmatprep.subr.bf16.mxu0 0
      %2166 = vmatpush1.bf16.msra.mxu0 0
      %2167 = vmatprep.mubr.bf16.mxu0 0
      %2168 = vmatmul.mubr.bf16.gmra.mrb[0].mxu0 %v2130
      %v2169 = vpop.f32.mrb[0].mxu0
      %v2170 = vadd.f32 0.0, %v2169
      %v2171 = vpop.f32.mrb[0].mxu0
      %v2172 = vpop.f32.mrb[0].mxu0
      %v2173 = vadd.f32 0.0, %v2172
      %v2174 = vpop.f32.mrb[0].mxu0
      %2175 = vmatprep.mubr.bf16.mxu0 0
      %2176 = vmatmul.mubr.bf16.gmra.mrb[0].mxu0 %v2133
      %v2177 = vpop.f32.mrb[0].mxu0
      %v2178 = vadd.f32 0.0, %v2177
      %v2179 = vpop.f32.mrb[0].mxu0
      %v2180 = vpop.f32.mrb[0].mxu0
      %v2181 = vpop.f32.mrb[0].mxu0
      %2182 = vdwg.mxu0
      %v2183 = vadd.f32 %v2099, %v2170
      %v2184 = vadd.f32 %v2100, %v2173
      %v2185 = vadd.f32 %v2101, %v2178
      %v2186 = vld [vmem:[#allocation2] sm:$0x8]
      %v2187 = vld [vmem:[#allocation2 + $0x4] sm:$0xf]
      %v2188 = vld [vmem:[#allocation2 + $0x8] sm:$0xf]
      %v2189 = vld [vmem:[#allocation2 + $0xc] sm:$0x1]
      %v2190 = vld [vmem:[%s3 + $0x50] sm:$0xf]
      %v2191 = vld [vmem:[%s3 + $0x54] sm:$0xf]
      %v2192 = vld [vmem:[%s3 + $0x58] sm:$0xf]
      %v2193 = vld [vmem:[%s3 + $0x5c] sm:$0xf]
      %v2198 = vunpack.c.l.b16 %v2186
      %v2199 = vunpack.c.l.b16 %v2187
      %v2200 = vunpack.c.l.b16 %v2188
      %v2201 = vunpack.c.l.b16 %v2189
      %v2202 = vpack.c.b16 %v2199, %v2198
      %v2203 = vpack.c.b16 %v2201, %v2200
      %v2205 = vshrl.u32 %v2202, 16
      %v2207 = vrot.slane %v2205, 3
      %v2208 = vshll.u32 %v2202, 16
      %v2210 = vrot.slane %v2208, 4
      %v2211 = vor.u32 %v2207, %v2210
      %v2213 = vshrl.u32 %v2203, 16
      %v2215 = vrot.slane %v2213, 3
      %v2216 = vshll.u32 %v2203, 16
      %v2218 = vrot.slane %v2216, 4
      %v2219 = vor.u32 %v2215, %v2218
      %v2220 = vsel %vm495, %v2211, %v2219
      %v2225 = vunpack.c.l.b16 %v2190
      %v2226 = vunpack.c.l.b16 %v2191
      %v2227 = vunpack.c.l.b16 %v2192
      %v2228 = vunpack.c.l.b16 %v2193
      %v2229 = vpack.c.b16 %v2226, %v2225
      %v2230 = vpack.c.b16 %v2228, %v2227
      %v2234 = vsel %vm1804, %v2220, 0
      %v2237 = vsel %vm1804, %v2219, 0
      %2239 = vmatprep.subr.bf16.mxu0 0
      %2240 = vmatpush1.bf16.msra.mxu0 %v2229
      %2241 = vmatprep.subr.bf16.mxu0 0
      %2242 = vmatpush1.bf16.msra.mxu0 %v2230
      %2243 = vmatprep.subr.bf16.mxu0 0
      %2244 = vmatpush1.bf16.msra.mxu0 0
      %2245 = vmatprep.subr.bf16.mxu0 0
      %2246 = vmatpush1.bf16.msra.mxu0 0
      %2247 = vmatprep.subr.bf16.mxu0 0
      %2248 = vmatpush1.bf16.msra.mxu0 0
      %2249 = vmatprep.subr.bf16.mxu0 0
      %2250 = vmatpush1.bf16.msra.mxu0 0
      %2251 = vmatprep.subr.bf16.mxu0 0
      %2252 = vmatpush1.bf16.msra.mxu0 0
      %2253 = vmatprep.subr.bf16.mxu0 0
      %2254 = vmatpush1.bf16.msra.mxu0 0
      %2255 = vmatprep.subr.bf16.mxu0 0
      %2256 = vmatpush1.bf16.msra.mxu0 0
      %2257 = vmatprep.subr.bf16.mxu0 0
      %2258 = vmatpush1.bf16.msra.mxu0 0
      %2259 = vmatprep.subr.bf16.mxu0 0
      %2260 = vmatpush1.bf16.msra.mxu0 0
      %2261 = vmatprep.subr.bf16.mxu0 0
      %2262 = vmatpush1.bf16.msra.mxu0 0
      %2263 = vmatprep.subr.bf16.mxu0 0
      %2264 = vmatpush1.bf16.msra.mxu0 0
      %2265 = vmatprep.subr.bf16.mxu0 0
      %2266 = vmatpush1.bf16.msra.mxu0 0
      %2267 = vmatprep.subr.bf16.mxu0 0
      %2268 = vmatpush1.bf16.msra.mxu0 0
      %2269 = vmatprep.subr.bf16.mxu0 0
      %2270 = vmatpush1.bf16.msra.mxu0 0
      %2271 = vmatprep.mubr.bf16.mxu0 0
      %2272 = vmatmul.mubr.bf16.gmra.mrb[0].mxu0 %v2234
      %v2273 = vpop.f32.mrb[0].mxu0
      %v2274 = vadd.f32 0.0, %v2273
      %v2275 = vpop.f32.mrb[0].mxu0
      %v2276 = vpop.f32.mrb[0].mxu0
      %v2277 = vadd.f32 0.0, %v2276
      %v2278 = vpop.f32.mrb[0].mxu0
      %2279 = vmatprep.mubr.bf16.mxu0 0
      %2280 = vmatmul.mubr.bf16.gmra.mrb[0].mxu0 %v2237
      %v2281 = vpop.f32.mrb[0].mxu0
      %v2282 = vadd.f32 0.0, %v2281
      %v2283 = vpop.f32.mrb[0].mxu0
      %v2284 = vpop.f32.mrb[0].mxu0
      %v2285 = vpop.f32.mrb[0].mxu0
      %2286 = vdwg.mxu0
      %v2287 = vadd.f32 %v2183, %v2274
      %v2288 = vadd.f32 %v2184, %v2277
      %v2289 = vadd.f32 %v2185, %v2282
      %v2290 = vld [vmem:[%s3 + $0x60] sm:$0xf]
      %v2291 = vld [vmem:[%s3 + $0x64] sm:$0xf]
      %v2292 = vld [vmem:[%s3 + $0x68] sm:$0xf]
      %v2293 = vld [vmem:[%s3 + $0x6c] sm:$0xf]
      %v2294 = vpack.c.b16 %v2200, %v2199
      %v2295 = vpack.c.b16 %v2201, %v2201
      %v2300 = vunpack.c.l.b16 %v2290
      %v2301 = vunpack.c.l.b16 %v2291
      %v2302 = vunpack.c.l.b16 %v2292
      %v2303 = vunpack.c.l.b16 %v2293
      %v2304 = vpack.c.b16 %v2301, %v2300
      %v2305 = vpack.c.b16 %v2303, %v2302
      %v2309 = vsel %vm1804, %v2294, 0
      %v2312 = vsel %vm1804, %v2295, 0
      %2314 = vmatprep.subr.bf16.mxu0 0
      %2315 = vmatpush1.bf16.msra.mxu0 %v2304
      %2316 = vmatprep.subr.bf16.mxu0 0
      %2317 = vmatpush1.bf16.msra.mxu0 %v2305
      %2318 = vmatprep.subr.bf16.mxu0 0
      %2319 = vmatpush1.bf16.msra.mxu0 0
      %2320 = vmatprep.subr.bf16.mxu0 0
      %2321 = vmatpush1.bf16.msra.mxu0 0
      %2322 = vmatprep.subr.bf16.mxu0 0
      %2323 = vmatpush1.bf16.msra.mxu0 0
      %2324 = vmatprep.subr.bf16.mxu0 0
      %2325 = vmatpush1.bf16.msra.mxu0 0
      %2326 = vmatprep.subr.bf16.mxu0 0
      %2327 = vmatpush1.bf16.msra.mxu0 0
      %2328 = vmatprep.subr.bf16.mxu0 0
      %2329 = vmatpush1.bf16.msra.mxu0 0
      %2330 = vmatprep.subr.bf16.mxu0 0
      %2331 = vmatpush1.bf16.msra.mxu0 0
      %2332 = vmatprep.subr.bf16.mxu0 0
      %2333 = vmatpush1.bf16.msra.mxu0 0
      %2334 = vmatprep.subr.bf16.mxu0 0
      %2335 = vmatpush1.bf16.msra.mxu0 0
      %2336 = vmatprep.subr.bf16.mxu0 0
      %2337 = vmatpush1.bf16.msra.mxu0 0
      %2338 = vmatprep.subr.bf16.mxu0 0
      %2339 = vmatpush1.bf16.msra.mxu0 0
      %2340 = vmatprep.subr.bf16.mxu0 0
      %2341 = vmatpush1.bf16.msra.mxu0 0
      %2342 = vmatprep.subr.bf16.mxu0 0
      %2343 = vmatpush1.bf16.msra.mxu0 0
      %2344 = vmatprep.subr.bf16.mxu0 0
      %2345 = vmatpush1.bf16.msra.mxu0 0
      %2346 = vmatprep.mubr.bf16.mxu0 0
      %2347 = vmatmul.mubr.bf16.gmra.mrb[0].mxu0 %v2309
      %v2348 = vpop.f32.mrb[0].mxu0
      %v2349 = vadd.f32 0.0, %v2348
      %v2350 = vpop.f32.mrb[0].mxu0
      %v2351 = vpop.f32.mrb[0].mxu0
      %v2352 = vadd.f32 0.0, %v2351
      %v2353 = vpop.f32.mrb[0].mxu0
      %2354 = vmatprep.mubr.bf16.mxu0 0
      %2355 = vmatmul.mubr.bf16.gmra.mrb[0].mxu0 %v2312
      %v2356 = vpop.f32.mrb[0].mxu0
      %v2357 = vadd.f32 0.0, %v2356
      %v2358 = vpop.f32.mrb[0].mxu0
      %v2359 = vpop.f32.mrb[0].mxu0
      %v2360 = vpop.f32.mrb[0].mxu0
      %2361 = vdwg.mxu0
      %v2362 = vadd.f32 %v2287, %v2349
      %v2363 = vadd.f32 %v2288, %v2352
      %v2364 = vadd.f32 %v2289, %v2357
      %v2365 = vld [vmem:[#allocation2 + $0xc] sm:$0x3]
      %v2366 = vld [vmem:[%s3 + $0x70] sm:$0xf]
      %v2367 = vld [vmem:[%s3 + $0x74] sm:$0xf]
      %v2368 = vld [vmem:[%s3 + $0x78] sm:$0xf]
      %v2369 = vld [vmem:[%s3 + $0x7c] sm:$0xf]
      %v2371 = vunpack.c.l.b16 %v2365
      %v2372 = vpack.c.b16 %v2371, %v2371
      %v2373 = vshrl.u32 %v2294, 16
      %v2375 = vshll.u32 %v2294, 16
      %v2377 = vrot.slane %v2375, 1
      %v2378 = vor.u32 %v2373, %v2377
      %v2380 = vshll.u32 %v2372, 16
      %v2382 = vrot.slane %v2380, 1
      %v2383 = vsel %vm836, %v2378, %v2382
      %v2384 = vshrl.u32 %v2372, 16
      %v2386 = vor.u32 %v2384, %v2382
      %v2391 = vunpack.c.l.b16 %v2366
      %v2392 = vunpack.c.l.b16 %v2367
      %v2393 = vunpack.c.l.b16 %v2368
      %v2394 = vunpack.c.l.b16 %v2369
      %v2395 = vpack.c.b16 %v2392, %v2391
      %v2396 = vpack.c.b16 %v2394, %v2393
      %v2400 = vsel %vm1804, %v2383, 0
      %v2403 = vsel %vm1804, %v2386, 0
      %2405 = vmatprep.subr.bf16.mxu0 0
      %2406 = vmatpush1.bf16.msra.mxu0 %v2395
      %2407 = vmatprep.subr.bf16.mxu0 0
      %2408 = vmatpush1.bf16.msra.mxu0 %v2396
      %2409 = vmatprep.subr.bf16.mxu0 0
      %2410 = vmatpush1.bf16.msra.mxu0 0
      %2411 = vmatprep.subr.bf16.mxu0 0
      %2412 = vmatpush1.bf16.msra.mxu0 0
      %2413 = vmatprep.subr.bf16.mxu0 0
      %2414 = vmatpush1.bf16.msra.mxu0 0
      %2415 = vmatprep.subr.bf16.mxu0 0
      %2416 = vmatpush1.bf16.msra.mxu0 0
      %2417 = vmatprep.subr.bf16.mxu0 0
      %2418 = vmatpush1.bf16.msra.mxu0 0
      %2419 = vmatprep.subr.bf16.mxu0 0
      %2420 = vmatpush1.bf16.msra.mxu0 0
      %2421 = vmatprep.subr.bf16.mxu0 0
      %2422 = vmatpush1.bf16.msra.mxu0 0
      %2423 = vmatprep.subr.bf16.mxu0 0
      %2424 = vmatpush1.bf16.msra.mxu0 0
      %2425 = vmatprep.subr.bf16.mxu0 0
      %2426 = vmatpush1.bf16.msra.mxu0 0
      %2427 = vmatprep.subr.bf16.mxu0 0
      %2428 = vmatpush1.bf16.msra.mxu0 0
      %2429 = vmatprep.subr.bf16.mxu0 0
      %2430 = vmatpush1.bf16.msra.mxu0 0
      %2431 = vmatprep.subr.bf16.mxu0 0
      %2432 = vmatpush1.bf16.msra.mxu0 0
      %2433 = vmatprep.subr.bf16.mxu0 0
      %2434 = vmatpush1.bf16.msra.mxu0 0
      %2435 = vmatprep.subr.bf16.mxu0 0
      %2436 = vmatpush1.bf16.msra.mxu0 0
      %2437 = vmatprep.mubr.bf16.mxu0 0
      %2438 = vmatmul.mubr.bf16.gmra.mrb[0].mxu0 %v2400
      %v2439 = vpop.f32.mrb[0].mxu0
      %v2440 = vadd.f32 0.0, %v2439
      %v2441 = vpop.f32.mrb[0].mxu0
      %v2442 = vpop.f32.mrb[0].mxu0
      %v2443 = vadd.f32 0.0, %v2442
      %v2444 = vpop.f32.mrb[0].mxu0
      %2445 = vmatprep.mubr.bf16.mxu0 0
      %2446 = vmatmul.mubr.bf16.gmra.mrb[0].mxu0 %v2403
      %v2447 = vpop.f32.mrb[0].mxu0
      %v2448 = vadd.f32 0.0, %v2447
      %v2449 = vpop.f32.mrb[0].mxu0
      %v2450 = vpop.f32.mrb[0].mxu0
      %v2451 = vpop.f32.mrb[0].mxu0
      %2452 = vdwg.mxu0
      %v2453 = vadd.f32 %v2362, %v2440
      %v2454 = vadd.f32 %v2363, %v2443
      %v2455 = vadd.f32 %v2364, %v2448
      %v2456 = vld [vmem:[#allocation2 + $0x4] sm:$0xc]
      %v2457 = vld [vmem:[#allocation2 + $0xc] sm:$0x7]
      %v2458 = vld [vmem:[%s3 + $0x80] sm:$0xf]
      %v2459 = vld [vmem:[%s3 + $0x84] sm:$0xf]
      %v2460 = vld [vmem:[%s3 + $0x88] sm:$0xf]
      %v2461 = vld [vmem:[%s3 + $0x8c] sm:$0xf]
      %v2464 = vunpack.c.l.b16 %v2456
      %v2465 = vunpack.c.l.b16 %v2457
      %v2466 = vpack.c.b16 %v2200, %v2464
      %v2467 = vpack.c.b16 %v2465, %v2465
      %v2468 = vrot.slane %v2466, 2
      %v2469 = vrot.slane %v2467, 2
      %v2470 = vsel %vm998, %v2468, %v2469
      %v2475 = vunpack.c.l.b16 %v2458
      %v2476 = vunpack.c.l.b16 %v2459
      %v2477 = vunpack.c.l.b16 %v2460
      %v2478 = vunpack.c.l.b16 %v2461
      %v2479 = vpack.c.b16 %v2476, %v2475
      %v2480 = vpack.c.b16 %v2478, %v2477
      %v2484 = vsel %vm1804, %v2470, 0
      %v2487 = vsel %vm1804, %v2469, 0
      %2489 = vmatprep.subr.bf16.mxu0 0
      %2490 = vmatpush1.bf16.msra.mxu0 %v2479
      %2491 = vmatprep.subr.bf16.mxu0 0
      %2492 = vmatpush1.bf16.msra.mxu0 %v2480
      %2493 = vmatprep.subr.bf16.mxu0 0
      %2494 = vmatpush1.bf16.msra.mxu0 0
      %2495 = vmatprep.subr.bf16.mxu0 0
      %2496 = vmatpush1.bf16.msra.mxu0 0
      %2497 = vmatprep.subr.bf16.mxu0 0
      %2498 = vmatpush1.bf16.msra.mxu0 0
      %2499 = vmatprep.subr.bf16.mxu0 0
      %2500 = vmatpush1.bf16.msra.mxu0 0
      %2501 = vmatprep.subr.bf16.mxu0 0
      %2502 = vmatpush1.bf16.msra.mxu0 0
      %2503 = vmatprep.subr.bf16.mxu0 0
      %2504 = vmatpush1.bf16.msra.mxu0 0
      %2505 = vmatprep.subr.bf16.mxu0 0
      %2506 = vmatpush1.bf16.msra.mxu0 0
      %2507 = vmatprep.subr.bf16.mxu0 0
      %2508 = vmatpush1.bf16.msra.mxu0 0
      %2509 = vmatprep.subr.bf16.mxu0 0
      %2510 = vmatpush1.bf16.msra.mxu0 0
      %2511 = vmatprep.subr.bf16.mxu0 0
      %2512 = vmatpush1.bf16.msra.mxu0 0
      %2513 = vmatprep.subr.bf16.mxu0 0
      %2514 = vmatpush1.bf16.msra.mxu0 0
      %2515 = vmatprep.subr.bf16.mxu0 0
      %2516 = vmatpush1.bf16.msra.mxu0 0
      %2517 = vmatprep.subr.bf16.mxu0 0
      %2518 = vmatpush1.bf16.msra.mxu0 0
      %2519 = vmatprep.subr.bf16.mxu0 0
      %2520 = vmatpush1.bf16.msra.mxu0 0
      %2521 = vmatprep.mubr.bf16.mxu0 0
      %2522 = vmatmul.mubr.bf16.gmra.mrb[0].mxu0 %v2484
      %v2523 = vpop.f32.mrb[0].mxu0
      %v2524 = vadd.f32 0.0, %v2523
      %v2525 = vpop.f32.mrb[0].mxu0
      %v2526 = vpop.f32.mrb[0].mxu0
      %v2527 = vadd.f32 0.0, %v2526
      %v2528 = vpop.f32.mrb[0].mxu0
      %2529 = vmatprep.mubr.bf16.mxu0 0
      %2530 = vmatmul.mubr.bf16.gmra.mrb[0].mxu0 %v2487
      %v2531 = vpop.f32.mrb[0].mxu0
      %v2532 = vadd.f32 0.0, %v2531
      %v2533 = vpop.f32.mrb[0].mxu0
      %v2534 = vpop.f32.mrb[0].mxu0
      %v2535 = vpop.f32.mrb[0].mxu0
      %2536 = vdwg.mxu0
      %v2537 = vadd.f32 %v2453, %v2524
      %v2538 = vadd.f32 %v2454, %v2527
      %v2539 = vadd.f32 %v2455, %v2532
      %v2540 = vld [vmem:[#allocation2 + $0xc] sm:$0xf]
      %v2541 = vld [vmem:[%s3 + $0x90] sm:$0xf]
      %v2542 = vld [vmem:[%s3 + $0x94] sm:$0xf]
      %v2543 = vld [vmem:[%s3 + $0x98] sm:$0xf]
      %v2544 = vld [vmem:[%s3 + $0x9c] sm:$0xf]
      %v2546 = vunpack.c.l.b16 %v2540
      %v2547 = vpack.c.b16 %v2546, %v2546
      %v2549 = vshrl.u32 %v2466, 16
      %v2551 = vrot.slane %v2549, 2
      %v2552 = vshll.u32 %v2466, 16
      %v2554 = vrot.slane %v2552, 3
      %v2555 = vor.u32 %v2551, %v2554
      %v2557 = vshrl.u32 %v2547, 16
      %v2559 = vrot.slane %v2557, 2
      %v2560 = vshll.u32 %v2547, 16
      %v2562 = vrot.slane %v2560, 3
      %v2563 = vor.u32 %v2559, %v2562
      %v2564 = vsel %vm336, %v2555, %v2563
      %v2569 = vunpack.c.l.b16 %v2541
      %v2570 = vunpack.c.l.b16 %v2542
      %v2571 = vunpack.c.l.b16 %v2543
      %v2572 = vunpack.c.l.b16 %v2544
      %v2573 = vpack.c.b16 %v2570, %v2569
      %v2574 = vpack.c.b16 %v2572, %v2571
      %v2578 = vsel %vm1804, %v2564, 0
      %v2581 = vsel %vm1804, %v2563, 0
      %2583 = vmatprep.subr.bf16.mxu0 0
      %2584 = vmatpush1.bf16.msra.mxu0 %v2573
      %2585 = vmatprep.subr.bf16.mxu0 0
      %2586 = vmatpush1.bf16.msra.mxu0 %v2574
      %2587 = vmatprep.subr.bf16.mxu0 0
      %2588 = vmatpush1.bf16.msra.mxu0 0
      %2589 = vmatprep.subr.bf16.mxu0 0
      %2590 = vmatpush1.bf16.msra.mxu0 0
      %2591 = vmatprep.subr.bf16.mxu0 0
      %2592 = vmatpush1.bf16.msra.mxu0 0
      %2593 = vmatprep.subr.bf16.mxu0 0
      %2594 = vmatpush1.bf16.msra.mxu0 0
      %2595 = vmatprep.subr.bf16.mxu0 0
      %2596 = vmatpush1.bf16.msra.mxu0 0
      %2597 = vmatprep.subr.bf16.mxu0 0
      %2598 = vmatpush1.bf16.msra.mxu0 0
      %2599 = vmatprep.subr.bf16.mxu0 0
      %2600 = vmatpush1.bf16.msra.mxu0 0
      %2601 = vmatprep.subr.bf16.mxu0 0
      %2602 = vmatpush1.bf16.msra.mxu0 0
      %2603 = vmatprep.subr.bf16.mxu0 0
      %2604 = vmatpush1.bf16.msra.mxu0 0
      %2605 = vmatprep.subr.bf16.mxu0 0
      %2606 = vmatpush1.bf16.msra.mxu0 0
      %2607 = vmatprep.subr.bf16.mxu0 0
      %2608 = vmatpush1.bf16.msra.mxu0 0
      %2609 = vmatprep.subr.bf16.mxu0 0
      %2610 = vmatpush1.bf16.msra.mxu0 0
      %2611 = vmatprep.subr.bf16.mxu0 0
      %2612 = vmatpush1.bf16.msra.mxu0 0
      %2613 = vmatprep.subr.bf16.mxu0 0
      %2614 = vmatpush1.bf16.msra.mxu0 0
      %2615 = vmatprep.mubr.bf16.mxu0 0
      %2616 = vmatmul.mubr.bf16.gmra.mrb[0].mxu0 %v2578
      %v2617 = vpop.f32.mrb[0].mxu0
      %v2618 = vadd.f32 0.0, %v2617
      %v2619 = vpop.f32.mrb[0].mxu0
      %v2620 = vpop.f32.mrb[0].mxu0
      %v2621 = vadd.f32 0.0, %v2620
      %v2622 = vpop.f32.mrb[0].mxu0
      %2623 = vmatprep.mubr.bf16.mxu0 0
      %2624 = vmatmul.mubr.bf16.gmra.mrb[0].mxu0 %v2581
      %v2625 = vpop.f32.mrb[0].mxu0
      %v2626 = vadd.f32 0.0, %v2625
      %v2627 = vpop.f32.mrb[0].mxu0
      %v2628 = vpop.f32.mrb[0].mxu0
      %v2629 = vpop.f32.mrb[0].mxu0
      %2630 = vdwg.mxu0
      %v2631 = vadd.f32 %v2537, %v2618
      %v2632 = vadd.f32 %v2538, %v2621
      %v2633 = vadd.f32 %v2539, %v2626
      %v2634 = vld [vmem:[#allocation2 + $0x4] sm:$0x8]
      %v2635 = vld [vmem:[%s3 + $0xa0] sm:$0xf]
      %v2636 = vld [vmem:[%s3 + $0xa4] sm:$0xf]
      %v2637 = vld [vmem:[%s3 + $0xa8] sm:$0xf]
      %v2638 = vld [vmem:[%s3 + $0xac] sm:$0xf]
      %v2640 = vunpack.c.l.b16 %v2634
      %v2641 = vpack.c.b16 %v2200, %v2640
      %v2642 = vrot.slane %v2641, 3
      %v2643 = vrot.slane %v2547, 3
      %v2644 = vsel %vm425, %v2642, %v2643
      %v2649 = vunpack.c.l.b16 %v2635
      %v2650 = vunpack.c.l.b16 %v2636
      %v2651 = vunpack.c.l.b16 %v2637
      %v2652 = vunpack.c.l.b16 %v2638
      %v2653 = vpack.c.b16 %v2650, %v2649
      %v2654 = vpack.c.b16 %v2652, %v2651
      %v2658 = vsel %vm1804, %v2644, 0
      %v2661 = vsel %vm1804, %v2643, 0
      %2663 = vmatprep.subr.bf16.mxu0 0
      %2664 = vmatpush1.bf16.msra.mxu0 %v2653
      %2665 = vmatprep.subr.bf16.mxu0 0
      %2666 = vmatpush1.bf16.msra.mxu0 %v2654
      %2667 = vmatprep.subr.bf16.mxu0 0
      %2668 = vmatpush1.bf16.msra.mxu0 0
      %2669 = vmatprep.subr.bf16.mxu0 0
      %2670 = vmatpush1.bf16.msra.mxu0 0
      %2671 = vmatprep.subr.bf16.mxu0 0
      %2672 = vmatpush1.bf16.msra.mxu0 0
      %2673 = vmatprep.subr.bf16.mxu0 0
      %2674 = vmatpush1.bf16.msra.mxu0 0
      %2675 = vmatprep.subr.bf16.mxu0 0
      %2676 = vmatpush1.bf16.msra.mxu0 0
      %2677 = vmatprep.subr.bf16.mxu0 0
      %2678 = vmatpush1.bf16.msra.mxu0 0
      %2679 = vmatprep.subr.bf16.mxu0 0
      %2680 = vmatpush1.bf16.msra.mxu0 0
      %2681 = vmatprep.subr.bf16.mxu0 0
      %2682 = vmatpush1.bf16.msra.mxu0 0
      %2683 = vmatprep.subr.bf16.mxu0 0
      %2684 = vmatpush1.bf16.msra.mxu0 0
      %2685 = vmatprep.subr.bf16.mxu0 0
      %2686 = vmatpush1.bf16.msra.mxu0 0
      %2687 = vmatprep.subr.bf16.mxu0 0
      %2688 = vmatpush1.bf16.msra.mxu0 0
      %2689 = vmatprep.subr.bf16.mxu0 0
      %2690 = vmatpush1.bf16.msra.mxu0 0
      %2691 = vmatprep.subr.bf16.mxu0 0
      %2692 = vmatpush1.bf16.msra.mxu0 0
      %2693 = vmatprep.subr.bf16.mxu0 0
      %2694 = vmatpush1.bf16.msra.mxu0 0
      %2695 = vmatprep.mubr.bf16.mxu0 0
      %2696 = vmatmul.mubr.bf16.gmra.mrb[0].mxu0 %v2658
      %v2697 = vpop.f32.mrb[0].mxu0
      %v2698 = vadd.f32 0.0, %v2697
      %v2699 = vpop.f32.mrb[0].mxu0
      %v2700 = vpop.f32.mrb[0].mxu0
      %v2701 = vadd.f32 0.0, %v2700
      %v2702 = vpop.f32.mrb[0].mxu0
      %2703 = vmatprep.mubr.bf16.mxu0 0
      %2704 = vmatmul.mubr.bf16.gmra.mrb[0].mxu0 %v2661
      %v2705 = vpop.f32.mrb[0].mxu0
      %v2706 = vadd.f32 0.0, %v2705
      %v2707 = vpop.f32.mrb[0].mxu0
      %v2708 = vpop.f32.mrb[0].mxu0
      %v2709 = vpop.f32.mrb[0].mxu0
      %2710 = vdwg.mxu0
      %v2711 = vadd.f32 %v2631, %v2698
      %v2712 = vadd.f32 %v2632, %v2701
      %v2713 = vadd.f32 %v2633, %v2706
      %v2714 = vld [vmem:[#allocation2 + $0x4] sm:$0x8]
      %v2715 = vld [vmem:[#allocation2 + $0x8] sm:$0xf]
      %v2716 = vld [vmem:[#allocation2 + $0xc] sm:$0xf]
      %v2717 = vld [vmem:[#allocation2 + $0x10] sm:$0x1]
      %v2718 = vld [vmem:[%s3 + $0xb0] sm:$0xf]
      %v2719 = vld [vmem:[%s3 + $0xb4] sm:$0xf]
      %v2720 = vld [vmem:[%s3 + $0xb8] sm:$0xf]
      %v2721 = vld [vmem:[%s3 + $0xbc] sm:$0xf]
      %v2726 = vunpack.c.l.b16 %v2714
      %v2727 = vunpack.c.l.b16 %v2715
      %v2728 = vunpack.c.l.b16 %v2716
      %v2729 = vunpack.c.l.b16 %v2717
      %v2730 = vpack.c.b16 %v2727, %v2726
      %v2731 = vpack.c.b16 %v2729, %v2728
      %v2733 = vshrl.u32 %v2730, 16
      %v2735 = vrot.slane %v2733, 3
      %v2736 = vshll.u32 %v2730, 16
      %v2738 = vrot.slane %v2736, 4
      %v2739 = vor.u32 %v2735, %v2738
      %v2741 = vshrl.u32 %v2731, 16
      %v2743 = vrot.slane %v2741, 3
      %v2744 = vshll.u32 %v2731, 16
      %v2746 = vrot.slane %v2744, 4
      %v2747 = vor.u32 %v2743, %v2746
      %v2748 = vsel %vm495, %v2739, %v2747
      %v2753 = vunpack.c.l.b16 %v2718
      %v2754 = vunpack.c.l.b16 %v2719
      %v2755 = vunpack.c.l.b16 %v2720
      %v2756 = vunpack.c.l.b16 %v2721
      %v2757 = vpack.c.b16 %v2754, %v2753
      %v2758 = vpack.c.b16 %v2756, %v2755
      %v2762 = vsel %vm1804, %v2748, 0
      %v2765 = vsel %vm1804, %v2747, 0
      %2767 = vmatprep.subr.bf16.mxu0 0
      %2768 = vmatpush1.bf16.msra.mxu0 %v2757
      %2769 = vmatprep.subr.bf16.mxu0 0
      %2770 = vmatpush1.bf16.msra.mxu0 %v2758
      %2771 = vmatprep.subr.bf16.mxu0 0
      %2772 = vmatpush1.bf16.msra.mxu0 0
      %2773 = vmatprep.subr.bf16.mxu0 0
      %2774 = vmatpush1.bf16.msra.mxu0 0
      %2775 = vmatprep.subr.bf16.mxu0 0
      %2776 = vmatpush1.bf16.msra.mxu0 0
      %2777 = vmatprep.subr.bf16.mxu0 0
      %2778 = vmatpush1.bf16.msra.mxu0 0
      %2779 = vmatprep.subr.bf16.mxu0 0
      %2780 = vmatpush1.bf16.msra.mxu0 0
      %2781 = vmatprep.subr.bf16.mxu0 0
      %2782 = vmatpush1.bf16.msra.mxu0 0
      %2783 = vmatprep.subr.bf16.mxu0 0
      %2784 = vmatpush1.bf16.msra.mxu0 0
      %2785 = vmatprep.subr.bf16.mxu0 0
      %2786 = vmatpush1.bf16.msra.mxu0 0
      %2787 = vmatprep.subr.bf16.mxu0 0
      %2788 = vmatpush1.bf16.msra.mxu0 0
      %2789 = vmatprep.subr.bf16.mxu0 0
      %2790 = vmatpush1.bf16.msra.mxu0 0
      %2791 = vmatprep.subr.bf16.mxu0 0
      %2792 = vmatpush1.bf16.msra.mxu0 0
      %2793 = vmatprep.subr.bf16.mxu0 0
      %2794 = vmatpush1.bf16.msra.mxu0 0
      %2795 = vmatprep.subr.bf16.mxu0 0
      %2796 = vmatpush1.bf16.msra.mxu0 0
      %2797 = vmatprep.subr.bf16.mxu0 0
      %2798 = vmatpush1.bf16.msra.mxu0 0
      %2799 = vmatprep.mubr.bf16.mxu0 0
      %2800 = vmatmul.mubr.bf16.gmra.mrb[0].mxu0 %v2762
      %v2801 = vpop.f32.mrb[0].mxu0
      %v2802 = vadd.f32 0.0, %v2801
      %v2803 = vpop.f32.mrb[0].mxu0
      %v2804 = vpop.f32.mrb[0].mxu0
      %v2805 = vadd.f32 0.0, %v2804
      %v2806 = vpop.f32.mrb[0].mxu0
      %2807 = vmatprep.mubr.bf16.mxu0 0
      %2808 = vmatmul.mubr.bf16.gmra.mrb[0].mxu0 %v2765
      %v2809 = vpop.f32.mrb[0].mxu0
      %v2810 = vadd.f32 0.0, %v2809
      %v2811 = vpop.f32.mrb[0].mxu0
      %v2812 = vpop.f32.mrb[0].mxu0
      %v2813 = vpop.f32.mrb[0].mxu0
      %2814 = vdwg.mxu0
      %v2815 = vadd.f32 %v2711, %v2802
      %v2816 = vadd.f32 %v2712, %v2805
      %v2817 = vadd.f32 %v2713, %v2810
      %v2818 = vld [vmem:[#allocation2 + $0x8] sm:$0xe]
      %v2819 = vld [vmem:[#allocation2 + $0x10] sm:$0x3]
      %v2820 = vld [vmem:[%s3 + $0xc0] sm:$0xf]
      %v2821 = vld [vmem:[%s3 + $0xc4] sm:$0xf]
      %v2822 = vld [vmem:[%s3 + $0xc8] sm:$0xf]
      %v2823 = vld [vmem:[%s3 + $0xcc] sm:$0xf]
      %v2826 = vunpack.c.l.b16 %v2818
      %v2827 = vunpack.c.l.b16 %v2819
      %v2828 = vpack.c.b16 %v2728, %v2826
      %v2829 = vpack.c.b16 %v2827, %v2827
      %v2830 = vrot.slane %v2828, 1
      %v2831 = vrot.slane %v2829, 1
      %v2832 = vsel %vm1935, %v2830, %v2831
      %v2837 = vunpack.c.l.b16 %v2820
      %v2838 = vunpack.c.l.b16 %v2821
      %v2839 = vunpack.c.l.b16 %v2822
      %v2840 = vunpack.c.l.b16 %v2823
      %v2841 = vpack.c.b16 %v2838, %v2837
      %v2842 = vpack.c.b16 %v2840, %v2839
      %v2846 = vsel %vm1804, %v2832, 0
      %v2849 = vsel %vm1804, %v2831, 0
      %2851 = vmatprep.subr.bf16.mxu0 0
      %2852 = vmatpush1.bf16.msra.mxu0 %v2841
      %2853 = vmatprep.subr.bf16.mxu0 0
      %2854 = vmatpush1.bf16.msra.mxu0 %v2842
      %2855 = vmatprep.subr.bf16.mxu0 0
      %2856 = vmatpush1.bf16.msra.mxu0 0
      %2857 = vmatprep.subr.bf16.mxu0 0
      %2858 = vmatpush1.bf16.msra.mxu0 0
      %2859 = vmatprep.subr.bf16.mxu0 0
      %2860 = vmatpush1.bf16.msra.mxu0 0
      %2861 = vmatprep.subr.bf16.mxu0 0
      %2862 = vmatpush1.bf16.msra.mxu0 0
      %2863 = vmatprep.subr.bf16.mxu0 0
      %2864 = vmatpush1.bf16.msra.mxu0 0
      %2865 = vmatprep.subr.bf16.mxu0 0
      %2866 = vmatpush1.bf16.msra.mxu0 0
      %2867 = vmatprep.subr.bf16.mxu0 0
      %2868 = vmatpush1.bf16.msra.mxu0 0
      %2869 = vmatprep.subr.bf16.mxu0 0
      %2870 = vmatpush1.bf16.msra.mxu0 0
      %2871 = vmatprep.subr.bf16.mxu0 0
      %2872 = vmatpush1.bf16.msra.mxu0 0
      %2873 = vmatprep.subr.bf16.mxu0 0
      %2874 = vmatpush1.bf16.msra.mxu0 0
      %2875 = vmatprep.subr.bf16.mxu0 0
      %2876 = vmatpush1.bf16.msra.mxu0 0
      %2877 = vmatprep.subr.bf16.mxu0 0
      %2878 = vmatpush1.bf16.msra.mxu0 0
      %2879 = vmatprep.subr.bf16.mxu0 0
      %2880 = vmatpush1.bf16.msra.mxu0 0
      %2881 = vmatprep.subr.bf16.mxu0 0
      %2882 = vmatpush1.bf16.msra.mxu0 0
      %2883 = vmatprep.mubr.bf16.mxu0 0
      %2884 = vmatmul.mubr.bf16.gmra.mrb[0].mxu0 %v2846
      %v2885 = vpop.f32.mrb[0].mxu0
      %v2886 = vadd.f32 0.0, %v2885
      %v2887 = vpop.f32.mrb[0].mxu0
      %v2888 = vpop.f32.mrb[0].mxu0
      %v2889 = vadd.f32 0.0, %v2888
      %v2890 = vpop.f32.mrb[0].mxu0
      %2891 = vmatprep.mubr.bf16.mxu0 0
      %2892 = vmatmul.mubr.bf16.gmra.mrb[0].mxu0 %v2849
      %v2893 = vpop.f32.mrb[0].mxu0
      %v2894 = vadd.f32 0.0, %v2893
      %v2895 = vpop.f32.mrb[0].mxu0
      %v2896 = vpop.f32.mrb[0].mxu0
      %v2897 = vpop.f32.mrb[0].mxu0
      %2898 = vdwg.mxu0
      %v2899 = vadd.f32 %v2815, %v2886
      %v2900 = vadd.f32 %v2816, %v2889
      %v2901 = vadd.f32 %v2817, %v2894
      %v2902 = vld [vmem:[#allocation2 + $0x10] sm:$0x7]
      %v2903 = vld [vmem:[%s3 + $0xd0] sm:$0xf]
      %v2904 = vld [vmem:[%s3 + $0xd4] sm:$0xf]
      %v2905 = vld [vmem:[%s3 + $0xd8] sm:$0xf]
      %v2906 = vld [vmem:[%s3 + $0xdc] sm:$0xf]
      %v2908 = vunpack.c.l.b16 %v2902
      %v2909 = vpack.c.b16 %v2908, %v2908
      %v2911 = vshrl.u32 %v2828, 16
      %v2913 = vrot.slane %v2911, 1
      %v2914 = vshll.u32 %v2828, 16
      %v2916 = vrot.slane %v2914, 2
      %v2917 = vor.u32 %v2913, %v2916
      %v2919 = vshrl.u32 %v2909, 16
      %v2921 = vrot.slane %v2919, 1
      %v2922 = vshll.u32 %v2909, 16
      %v2924 = vrot.slane %v2922, 2
      %v2925 = vor.u32 %v2921, %v2924
      %v2926 = vsel %vm1081, %v2917, %v2925
      %v2931 = vunpack.c.l.b16 %v2903
      %v2932 = vunpack.c.l.b16 %v2904
      %v2933 = vunpack.c.l.b16 %v2905
      %v2934 = vunpack.c.l.b16 %v2906
      %v2935 = vpack.c.b16 %v2932, %v2931
      %v2936 = vpack.c.b16 %v2934, %v2933
      %v2940 = vsel %vm1804, %v2926, 0
      %v2943 = vsel %vm1804, %v2925, 0
      %2945 = vmatprep.subr.bf16.mxu0 0
      %2946 = vmatpush1.bf16.msra.mxu0 %v2935
      %2947 = vmatprep.subr.bf16.mxu0 0
      %2948 = vmatpush1.bf16.msra.mxu0 %v2936
      %2949 = vmatprep.subr.bf16.mxu0 0
      %2950 = vmatpush1.bf16.msra.mxu0 0
      %2951 = vmatprep.subr.bf16.mxu0 0
      %2952 = vmatpush1.bf16.msra.mxu0 0
      %2953 = vmatprep.subr.bf16.mxu0 0
      %2954 = vmatpush1.bf16.msra.mxu0 0
      %2955 = vmatprep.subr.bf16.mxu0 0
      %2956 = vmatpush1.bf16.msra.mxu0 0
      %2957 = vmatprep.subr.bf16.mxu0 0
      %2958 = vmatpush1.bf16.msra.mxu0 0
      %2959 = vmatprep.subr.bf16.mxu0 0
      %2960 = vmatpush1.bf16.msra.mxu0 0
      %2961 = vmatprep.subr.bf16.mxu0 0
      %2962 = vmatpush1.bf16.msra.mxu0 0
      %2963 = vmatprep.subr.bf16.mxu0 0
      %2964 = vmatpush1.bf16.msra.mxu0 0
      %2965 = vmatprep.subr.bf16.mxu0 0
      %2966 = vmatpush1.bf16.msra.mxu0 0
      %2967 = vmatprep.subr.bf16.mxu0 0
      %2968 = vmatpush1.bf16.msra.mxu0 0
      %2969 = vmatprep.subr.bf16.mxu0 0
      %2970 = vmatpush1.bf16.msra.mxu0 0
      %2971 = vmatprep.subr.bf16.mxu0 0
      %2972 = vmatpush1.bf16.msra.mxu0 0
      %2973 = vmatprep.subr.bf16.mxu0 0
      %2974 = vmatpush1.bf16.msra.mxu0 0
      %2975 = vmatprep.subr.bf16.mxu0 0
      %2976 = vmatpush1.bf16.msra.mxu0 0
      %2977 = vmatprep.mubr.bf16.mxu0 0
      %2978 = vmatmul.mubr.bf16.gmra.mrb[0].mxu0 %v2940
      %v2979 = vpop.f32.mrb[0].mxu0
      %v2980 = vadd.f32 0.0, %v2979
      %v2981 = vpop.f32.mrb[0].mxu0
      %v2982 = vpop.f32.mrb[0].mxu0
      %v2983 = vadd.f32 0.0, %v2982
      %v2984 = vpop.f32.mrb[0].mxu0
      %2985 = vmatprep.mubr.bf16.mxu0 0
      %2986 = vmatmul.mubr.bf16.gmra.mrb[0].mxu0 %v2943
      %v2987 = vpop.f32.mrb[0].mxu0
      %v2988 = vadd.f32 0.0, %v2987
      %v2989 = vpop.f32.mrb[0].mxu0
      %v2990 = vpop.f32.mrb[0].mxu0
      %v2991 = vpop.f32.mrb[0].mxu0
      %2992 = vdwg.mxu0
      %v2993 = vadd.f32 %v2899, %v2980
      %v2994 = vadd.f32 %v2900, %v2983
      %v2995 = vadd.f32 %v2901, %v2988
      %v2996 = vld [vmem:[#allocation2 + $0x8] sm:$0xc]
      %v2997 = vld [vmem:[%s3 + $0xe0] sm:$0xf]
      %v2998 = vld [vmem:[%s3 + $0xe4] sm:$0xf]
      %v2999 = vld [vmem:[%s3 + $0xe8] sm:$0xf]
      %v3000 = vld [vmem:[%s3 + $0xec] sm:$0xf]
      %v3002 = vunpack.c.l.b16 %v2996
      %v3003 = vpack.c.b16 %v2728, %v3002
      %v3004 = vrot.slane %v3003, 2
      %v3005 = vrot.slane %v2909, 2
      %v3006 = vsel %vm998, %v3004, %v3005
      %v3011 = vunpack.c.l.b16 %v2997
      %v3012 = vunpack.c.l.b16 %v2998
      %v3013 = vunpack.c.l.b16 %v2999
      %v3014 = vunpack.c.l.b16 %v3000
      %v3015 = vpack.c.b16 %v3012, %v3011
      %v3016 = vpack.c.b16 %v3014, %v3013
      %v3020 = vsel %vm1804, %v3006, 0
      %v3023 = vsel %vm1804, %v3005, 0
      %3025 = vmatprep.subr.bf16.mxu0 0
      %3026 = vmatpush1.bf16.msra.mxu0 %v3015
      %3027 = vmatprep.subr.bf16.mxu0 0
      %3028 = vmatpush1.bf16.msra.mxu0 %v3016
      %3029 = vmatprep.subr.bf16.mxu0 0
      %3030 = vmatpush1.bf16.msra.mxu0 0
      %3031 = vmatprep.subr.bf16.mxu0 0
      %3032 = vmatpush1.bf16.msra.mxu0 0
      %3033 = vmatprep.subr.bf16.mxu0 0
      %3034 = vmatpush1.bf16.msra.mxu0 0
      %3035 = vmatprep.subr.bf16.mxu0 0
      %3036 = vmatpush1.bf16.msra.mxu0 0
      %3037 = vmatprep.subr.bf16.mxu0 0
      %3038 = vmatpush1.bf16.msra.mxu0 0
      %3039 = vmatprep.subr.bf16.mxu0 0
      %3040 = vmatpush1.bf16.msra.mxu0 0
      %3041 = vmatprep.subr.bf16.mxu0 0
      %3042 = vmatpush1.bf16.msra.mxu0 0
      %3043 = vmatprep.subr.bf16.mxu0 0
      %3044 = vmatpush1.bf16.msra.mxu0 0
      %3045 = vmatprep.subr.bf16.mxu0 0
      %3046 = vmatpush1.bf16.msra.mxu0 0
      %3047 = vmatprep.subr.bf16.mxu0 0
      %3048 = vmatpush1.bf16.msra.mxu0 0
      %3049 = vmatprep.subr.bf16.mxu0 0
      %3050 = vmatpush1.bf16.msra.mxu0 0
      %3051 = vmatprep.subr.bf16.mxu0 0
      %3052 = vmatpush1.bf16.msra.mxu0 0
      %3053 = vmatprep.subr.bf16.mxu0 0
      %3054 = vmatpush1.bf16.msra.mxu0 0
      %3055 = vmatprep.subr.bf16.mxu0 0
      %3056 = vmatpush1.bf16.msra.mxu0 0
      %3057 = vmatprep.mubr.bf16.mxu0 0
      %3058 = vmatmul.mubr.bf16.gmra.mrb[0].mxu0 %v3020
      %v3059 = vpop.f32.mrb[0].mxu0
      %v3060 = vadd.f32 0.0, %v3059
      %v3061 = vpop.f32.mrb[0].mxu0
      %v3062 = vpop.f32.mrb[0].mxu0
      %v3063 = vadd.f32 0.0, %v3062
      %v3064 = vpop.f32.mrb[0].mxu0
      %3065 = vmatprep.mubr.bf16.mxu0 0
      %3066 = vmatmul.mubr.bf16.gmra.mrb[0].mxu0 %v3023
      %v3067 = vpop.f32.mrb[0].mxu0
      %v3068 = vadd.f32 0.0, %v3067
      %v3069 = vpop.f32.mrb[0].mxu0
      %v3070 = vpop.f32.mrb[0].mxu0
      %v3071 = vpop.f32.mrb[0].mxu0
      %3072 = vdwg.mxu0
      %v3073 = vadd.f32 %v2993, %v3060
      %v3074 = vadd.f32 %v2994, %v3063
      %v3075 = vadd.f32 %v2995, %v3068
      %v3076 = vld [vmem:[#allocation2 + $0x10] sm:$0xf]
      %v3077 = vld [vmem:[%s3 + $0xf0] sm:$0xf]
      %v3078 = vld [vmem:[%s3 + $0xf4] sm:$0xf]
      %v3079 = vld [vmem:[%s3 + $0xf8] sm:$0xf]
      %v3080 = vld [vmem:[%s3 + $0xfc] sm:$0xf]
      %v3082 = vunpack.c.l.b16 %v3076
      %v3083 = vpack.c.b16 %v3082, %v3082
      %v3085 = vshrl.u32 %v3003, 16
      %v3087 = vrot.slane %v3085, 2
      %v3088 = vshll.u32 %v3003, 16
      %v3090 = vrot.slane %v3088, 3
      %v3091 = vor.u32 %v3087, %v3090
      %v3093 = vshrl.u32 %v3083, 16
      %v3095 = vrot.slane %v3093, 2
      %v3096 = vshll.u32 %v3083, 16
      %v3098 = vrot.slane %v3096, 3
      %v3099 = vor.u32 %v3095, %v3098
      %v3100 = vsel %vm336, %v3091, %v3099
      %v3105 = vunpack.c.l.b16 %v3077
      %v3106 = vunpack.c.l.b16 %v3078
      %v3107 = vunpack.c.l.b16 %v3079
      %v3108 = vunpack.c.l.b16 %v3080
      %v3109 = vpack.c.b16 %v3106, %v3105
      %v3110 = vpack.c.b16 %v3108, %v3107
      %v3114 = vsel %vm1804, %v3100, 0
      %v3117 = vsel %vm1804, %v3099, 0
      %3119 = vmatprep.subr.bf16.mxu0 0
      %3120 = vmatpush1.bf16.msra.mxu0 %v3109
      %3121 = vmatprep.subr.bf16.mxu0 0
      %3122 = vmatpush1.bf16.msra.mxu0 %v3110
      %3123 = vmatprep.subr.bf16.mxu0 0
      %3124 = vmatpush1.bf16.msra.mxu0 0
      %3125 = vmatprep.subr.bf16.mxu0 0
      %3126 = vmatpush1.bf16.msra.mxu0 0
      %3127 = vmatprep.subr.bf16.mxu0 0
      %3128 = vmatpush1.bf16.msra.mxu0 0
      %3129 = vmatprep.subr.bf16.mxu0 0
      %3130 = vmatpush1.bf16.msra.mxu0 0
      %3131 = vmatprep.subr.bf16.mxu0 0
      %3132 = vmatpush1.bf16.msra.mxu0 0
      %3133 = vmatprep.subr.bf16.mxu0 0
      %3134 = vmatpush1.bf16.msra.mxu0 0
      %3135 = vmatprep.subr.bf16.mxu0 0
      %3136 = vmatpush1.bf16.msra.mxu0 0
      %3137 = vmatprep.subr.bf16.mxu0 0
      %3138 = vmatpush1.bf16.msra.mxu0 0
      %3139 = vmatprep.subr.bf16.mxu0 0
      %3140 = vmatpush1.bf16.msra.mxu0 0
      %3141 = vmatprep.subr.bf16.mxu0 0
      %3142 = vmatpush1.bf16.msra.mxu0 0
      %3143 = vmatprep.subr.bf16.mxu0 0
      %3144 = vmatpush1.bf16.msra.mxu0 0
      %3145 = vmatprep.subr.bf16.mxu0 0
      %3146 = vmatpush1.bf16.msra.mxu0 0
      %3147 = vmatprep.subr.bf16.mxu0 0
      %3148 = vmatpush1.bf16.msra.mxu0 0
      %3149 = vmatprep.subr.bf16.mxu0 0
      %3150 = vmatpush1.bf16.msra.mxu0 0
      %3151 = vmatprep.mubr.bf16.mxu0 0
      %3152 = vmatmul.mubr.bf16.gmra.mrb[0].mxu0 %v3114
      %v3153 = vpop.f32.mrb[0].mxu0
      %v3154 = vadd.f32 0.0, %v3153
      %v3155 = vpop.f32.mrb[0].mxu0
      %v3156 = vpop.f32.mrb[0].mxu0
      %v3157 = vadd.f32 0.0, %v3156
      %v3158 = vpop.f32.mrb[0].mxu0
      %3159 = vmatprep.mubr.bf16.mxu0 0
      %3160 = vmatmul.mubr.bf16.gmra.mrb[0].mxu0 %v3117
      %v3161 = vpop.f32.mrb[0].mxu0
      %v3162 = vadd.f32 0.0, %v3161
      %v3163 = vpop.f32.mrb[0].mxu0
      %v3164 = vpop.f32.mrb[0].mxu0
      %v3165 = vpop.f32.mrb[0].mxu0
      %3166 = vdwg.mxu0
      %v3167 = vadd.f32 %v3073, %v3154
      %v3168 = vadd.f32 %v3074, %v3157
      %v3169 = vadd.f32 %v3075, %v3162
      %v3170 = vld [vmem:[#allocation4] sm:$0x1]
      %v3172 = vlaneseq
      %v3173 = vshrl.u32 %v3172, 7
      %v3174 = vsub.s32 0, %v3173
      %v3175 = vrot.slane %v3170, %v3174
      %v3177 = vadd.f32 %v3167, %v3175
      %v3178 = vadd.f32 %v3168, %v3175
      %v3179 = vadd.f32 %v3169, %v3175
      %p3180 = scmp.lt.s32.totalorder %s307, 2
      %s3181 = scalar_select %p3180, 1, 0
      %s3182 = scvt.s32.f32 %s3181
      %v3183 = vsub.f32 1.0, %v3177
      %v3184 = vsub.f32 1.0, %v3178
      %v3185 = vsub.f32 1.0, %v3179
      %v3186 = vmax.f32 %v3183, 0.0
      %v3187 = vmax.f32 %v3184, 0.0
      %v3188 = vmax.f32 %v3185, 0.0
      %v3189 = vmul.f32 %v3186, 0.055555556
      %v3190 = vmul.f32 %v3187, 0.055555556
      %v3191 = vmul.f32 %v3188, 0.055555556
      %v3192 = vstv %s3182
      %v3193 = vmul.f32 %v3192, %v3189
      %v3194 = vmul.f32 %v3192, %v3190
      %v3195 = vmul.f32 %v3192, %v3191
      %s3196 = ssub.f32 1.0, %s3182
      %v3197 = vadd.f32 %v3177, 1.0
      %v3198 = vadd.f32 %v3178, 1.0
      %v3199 = vadd.f32 %v3179, 1.0
      %v3200 = vmax.f32 %v3197, 0.0
      %v3201 = vmax.f32 %v3198, 0.0
      %v3202 = vmax.f32 %v3199, 0.0
      %v3203 = vmul.f32 %v3200, 0.055555556
      %v3204 = vmul.f32 %v3201, 0.055555556
      %v3205 = vmul.f32 %v3202, 0.055555556
      %v3206 = vstv %s3196
      %v3207 = vmul.f32 %v3206, %v3203
      %v3208 = vmul.f32 %v3206, %v3204
      %v3209 = vmul.f32 %v3206, %v3205
      %v3210 = vadd.f32 %v3193, %v3207
      %v3211 = vadd.f32 %v3194, %v3208
      %v3212 = vadd.f32 %v3195, %v3209
      %v3213 = vld [vmem:[#allocation3] sm:$0x1]
      %v3214 = vld [vmem:[%s6] sm:$0xff]
      %v3215 = vld [vmem:[%s6 + $0x8] sm:$0xff]
      %v3216 = vld [vmem:[%s6 + $0x10] sm:$0x3]
      %v3217 = vmul.f32 %v3210, %v3214
      %v3218 = vmul.f32 %v3211, %v3215
      %v3219 = vmul.f32 %v3212, %v3216
      %vm3220 = vcmask 7168
      %v3221 = vsel %vm3220, %v3217, 0.0
      %v3222 = vsel %vm3220, %v3218, 0.0
      %v3223 = vadd.f32 %v3221, %v3222
      %vm3224 = vcmask 1024
      %v3225 = vsel %vm3224, %v3219, 0.0
      %v3226 = vadd.f32 %v3223, %v3225
      %3227 = vadd.xlane.f32.xlu0 %v3226
      %v3228 = vpop.xlane.xlu0 %3227
      %v3229 = vrot.slane %v3228, 4
      %v3230 = vadd.f32 %v3228, %v3229
      %v3231 = vrot.slane %v3230, 2
      %v3232 = vadd.f32 %v3230, %v3231
      %v3233 = vrot.slane %v3232, 1
      %v3234 = vadd.f32 %v3232, %v3233
      %s3235 = vtos %v3234
      %v3236 = vstv %s3235
      %v3237 = vadd.f32 %v3213, %v3236
      %vm3238 = vcmask 0
      %3239 = vst.msk [vmem:[#allocation3] sm:$0x1] %vm3238, %v3237
      %p3240 = scmp.eq.s32.totalorder %s25, 1
      // Predicated region
      $region53: #{loss_D_forward.5} parent=47 // pred_check
        %p3241 = pneg %p3240
      $region54: #{loss_D_forward.5} parent=47 // pred_check_branch
        %3243 = sbr.rel (%p3241) target = $region56
      $region55: #{loss_D_forward.5} parent=47 // pred_region
        %v3244 = vld [vmem:[#allocation3] sm:$0x1]
        %v3246 = vlaneseq
        %v3247 = vshrl.u32 %v3246, 7
        %v3248 = vsub.s32 0, %v3247
        %v3249 = vrot.slane %v3244, %v3248
        %3250 = vset.pattern.permute.xlu0 0
        %3251 = vperm.xlu0 %3250, %v3249
        %v3252 = vpop.permute.xlu0 %3251
        %3254 = vst [vmem:[%s304] sm:$0xff] %v3252
      $region56: #{loss_D_forward.5} parent=47 // pred_fallthru
        _
      %p3255 = scmp.lt.s32.totalorder %s24, 1
      %s3256 = scalar_select %p3255, %s24, 1
      %s3257 = smul.addr %s3256, 8
      %s3258 = scalar_lea.vmem %s7, %s3257
      // Predicated region
      $region57: #{loss_D_forward.5} parent=47 // pred_check
        %p3259 = pneg %p206
      $region58: #{loss_D_forward.5} parent=47 // pred_check_branch
        %3261 = sbr.rel (%p3259) target = $region60
      $region59: #{loss_D_forward.5} parent=47 // pred_region
        _
      $region60: #{loss_D_forward.5} parent=47 // pred_fallthru
        _
    $region48: #{loss_D_forward.5} parent=5 // pred_fallthru
      _
    %p3262 = scmp.le.s32.totalorder 2, %s15
    // Predicated region
    $region61: #{loss_D_forward.5} parent=5 // pred_check
      %p3263 = pneg %p3262
    $region62: #{loss_D_forward.5} parent=5 // pred_check_branch
      %3265 = sbr.rel (%p3263) target = $region64
    $region63: #{loss_D_forward.5} parent=5 // pred_region
      %s3266 = ssub.s32 %s15, 2
      // Predicated region
      $region65: #{loss_D_forward.5} parent=63 // pred_check
        %p3267 = pneg %p212
      $region66: #{loss_D_forward.5} parent=63 // pred_check_branch
        %3269 = sbr.rel (%p3267) target = $region68
      $region67: #{loss_D_forward.5} parent=63 // pred_region
        %p3270 = scmp.lt.s32.totalorder %s26, 1
        %s3271 = scalar_select %p3270, %s26, 1
        %s3272 = smul.addr %s3271, 8
        %s3273 = scalar_lea.vmem %s7, %s3272
      $region68: #{loss_D_forward.5} parent=63 // pred_fallthru
        _
    $region64: #{loss_D_forward.5} parent=5 // pred_fallthru
      _
  $region6: #{loss_D_forward.5} parent=0 // loop_footer
    %s19 = sadd.s32 1, %s15
  $region7: #{loss_D_forward.5} parent=0 // loop_footer_branch
    %14 = sbr.rel target = $region3
  $region8: #{loss_D_forward.5} parent=0 // loop_exit
    _

</llo_original>
